<compile_context>
chip_gen: v7x
topology: tpu7x:2x2x1
jax: 0.10.0
libtpu: 0.0.40
codegen_flags: <defaults>
</compile_context>

<pallas_src>
import functools

import jax
import jax.numpy as jnp
import numpy as np
from jax import lax
from jax.experimental import pallas as pl
from jax.experimental.pallas import tpu as pltpu


# -----------------------------------------------------------------------------
# Pallas kernel: one batch element per grid step.
# -----------------------------------------------------------------------------
def sa_convlstm_kernel(xp_ref, c_ref, m_ref,
                       convw_ref, convb_ref, gng_ref, gnb_ref,
                       whm_ref, bhm_ref, wml_ref, wmr_ref, bz_ref, bm_ref,
                       out_ref, *, C, hid, H, W, ksize):
    f32 = jnp.float32
    bf16 = jnp.bfloat16
    HW = H * W
    C2, C3, C4 = 2 * C, 3 * C, 4 * C

    # ---- ConvLSTM gate pre-activations: 9 shifted-tap matmuls straight off the
    #      padded NHWC input (no im2col HBM stream).
    acc = jnp.zeros((HW, C4), dtype=f32)
    for dy in range(ksize):
        for dx in range(ksize):
            t = dy * ksize + dx
            tap = xp_ref[pl.ds(dy, H), pl.ds(dx, W), :].reshape(HW, C2)   # bf16
            w_t = convw_ref[pl.ds(t * C2, C2), :]                          # bf16
            acc = acc + jnp.dot(tap, w_t, preferred_element_type=f32)
    pre = acc + convb_ref[...]                                             # [HW,4C]

    # ---- GroupNorm with groups == 4C: per-channel stats over HW (two-pass).
    mean = jnp.mean(pre, axis=0, keepdims=True)
    xc = pre - mean
    var = jnp.mean(xc * xc, axis=0, keepdims=True)
    gn = xc * lax.rsqrt(var + 1e-5) * gng_ref[...] + gnb_ref[...]

    # ---- gates: one sigmoid pass over the contiguous [i|f|o] block, one tanh.
    sig = jax.nn.sigmoid(gn[:, :C3])
    i_g = sig[:, 0 * C:1 * C]
    f_g = sig[:, 1 * C:2 * C]
    o_g = sig[:, 2 * C:3 * C]
    g_g = jnp.tanh(gn[:, C3:])

    c_prev = c_ref[...]
    m_prev = m_ref[...]
    c_next = f_g * c_prev + i_g * g_g
    h = o_g * jnp.tanh(c_next)                                             # [HW,C]

    # ---- fused attention projections: [h|m] @ block-diag(W) -> q|kh|vhz|km|vmz
    h_b = h.astype(bf16)
    hm = jnp.concatenate([h_b, m_prev.astype(bf16)], axis=-1)              # [HW,2C]
    proj = jnp.dot(hm, whm_ref[...], preferred_element_type=f32) + bhm_ref[...]
    q = proj[:, :hid].astype(bf16)
    kh = proj[:, hid:2 * hid]
    vhz = proj[:, 2 * hid:2 * hid + C2]            # wv folded through layer_z (top)
    km = proj[:, 2 * hid + C2:3 * hid + C2]
    vmz = proj[:, 3 * hid + C2:]                   # wv2 folded through layer_z (bot)

    # TODO(synk): key-block this (flash-style online softmax) when HW grows large.
    def attn(k_mat, v_mat):
        s = lax.dot_general(q, k_mat.astype(bf16), (((1,), (1,)), ((), ())),
                            preferred_element_type=f32)                   # [HW,HW]
        s = s - jnp.max(s, axis=-1, keepdims=True)
        e = jnp.exp(s)
        a = e * pl.reciprocal(jnp.sum(e, axis=-1, keepdims=True), approx=True)
        return jnp.dot(a.astype(bf16), v_mat.astype(bf16),
                       preferred_element_type=f32)                         # [HW,2C]

    # z = layer_z(cat(Z_h, Z_m)) with the value weights pre-folded into the halves.
    z = attn(kh, vhz) + attn(km, vmz) + bz_ref[...]                        # [HW,2C]

    # layer_m with split (Z | h) weights; output columns reordered to [mo|mi|mg].
    comb = (jnp.dot(z.astype(bf16), wml_ref[...], preferred_element_type=f32)
            + jnp.dot(h_b, wmr_ref[...], preferred_element_type=f32)
            + bm_ref[...])                                                 # [HW,3C]
    sig2 = jax.nn.sigmoid(comb[:, :C2])
    mo = sig2[:, :C]
    mi = sig2[:, C:C2]
    mg = jnp.tanh(comb[:, C2:])
    new_m = (1.0 - mi) * m_prev + mi * mg
    new_h = mo * new_m

    # ---- single lane-dense (multiple-of-128 wide) store of [h | c | m | 0-pad].
    out_w = out_ref.shape[-1]
    pieces = [new_h, c_next, new_m]
    if out_w > C3:
        pieces.append(jnp.zeros((HW, out_w - C3), dtype=f32))
    out_ref[...] = jnp.concatenate(pieces, axis=-1).astype(out_ref.dtype)


# -----------------------------------------------------------------------------
# Parameter construction (torch Conv2d-style layouts).
# -----------------------------------------------------------------------------
def make_params(key, hidden_dim, att_hidden_dim, kernel_size):
    C, hid, k = hidden_dim, att_hidden_dim, kernel_size
    ks = jax.random.split(key, 18)

    def rnd(kk, shape, scale=0.1):
        return jax.random.normal(kk, shape, dtype=jnp.float32) * scale

    return dict(
        conv_w=rnd(ks[0], (4 * C, 2 * C, k, k), 0.05),   # [out, in, kh, kw]
        conv_b=rnd(ks[1], (4 * C,), 0.05),
        gn_gamma=1.0 + rnd(ks[2], (4 * C,), 0.1),
        gn_beta=rnd(ks[3], (4 * C,), 0.1),
        wq=rnd(ks[4], (hid, C)), bq=rnd(ks[5], (hid,)),
        wk=rnd(ks[6], (hid, C)), bk=rnd(ks[7], (hid,)),
        wv=rnd(ks[8], (C, C)), bv=rnd(ks[9], (C,)),
        wk2=rnd(ks[10], (hid, C)), bk2=rnd(ks[11], (hid,)),
        wv2=rnd(ks[12], (C, C)), bv2=rnd(ks[13], (C,)),
        wz=rnd(ks[14], (2 * C, 2 * C)), bz=rnd(ks[15], (2 * C,)),
        wm=rnd(ks[16], (3 * C, 3 * C)), bm=rnd(ks[17], (3 * C,)),
    )


# -----------------------------------------------------------------------------
# Plain-JAX glue: layout conversion + weight folding / fusing.
# -----------------------------------------------------------------------------
def _prepare_args(x, h, c, m, params, kernel_size, padding, att_hidden_dim):
    B, C, H, W = x.shape
    HW = H * W
    k, pad, hid = kernel_size, padding, att_hidden_dim
    Hp, Wp = H + 2 * pad, W + 2 * pad
    bf16 = jnp.bfloat16

    def to_tok(t):  # NCHW -> [B, HW, C]
        return jnp.transpose(t, (0, 2, 3, 1)).reshape(B, HW, C)

    # Padded NHWC [x|h]; the conv taps are applied in-kernel (no im2col stream).
    xh = jnp.transpose(jnp.concatenate([x, h], axis=1), (0, 2, 3, 1))      # [B,H,W,2C]
    xp = jnp.pad(xh, ((0, 0), (pad, pad), (pad, pad), (0, 0))).astype(bf16)

    # torch conv weight [4C,2C,kh,kw] -> stacked per-tap [(dy,dx)*2C, 4C].
    conv_w = jnp.transpose(params['conv_w'], (2, 3, 1, 0)).reshape(k * k * 2 * C, 4 * C)

    # ---- fold / fuse the attention weights ----
    wq_t, wk_t, wv_t = params['wq'].T, params['wk'].T, params['wv'].T
    wk2_t, wv2_t = params['wk2'].T, params['wv2'].T
    wz_t = params['wz'].T
    wz_top, wz_bot = wz_t[:C, :], wz_t[C:, :]
    wvz_h = wv_t @ wz_top                                   # [C, 2C]
    wvz_m = wv2_t @ wz_bot                                  # [C, 2C]
    # softmax rows sum to 1, so the value biases fold exactly into the z bias.
    bz_fold = params['bv'] @ wz_top + params['bv2'] @ wz_bot + params['bz']

    zch = jnp.zeros((C, hid), jnp.float32)
    zc2 = jnp.zeros((C, 2 * C), jnp.float32)
    whm = jnp.concatenate([
        jnp.concatenate([wq_t, wk_t, wvz_h, zch, zc2], axis=1),   # rows fed by h
        jnp.concatenate([zch, zch, zc2, wk2_t, wvz_m], axis=1),   # rows fed by m
    ], axis=0)                                                     # [2C, 3*hid+4C]
    bhm = jnp.concatenate([params['bq'], params['bk'], jnp.zeros((2 * C,)),
                           params['bk2'], jnp.zeros((2 * C,))])

    # layer_m: reorder outputs to [mo | mi | mg] (contiguous sigmoid block) and
    # split input rows into the Z part / h part (no in-kernel activation concat).
    wm, bm = params['wm'], params['bm']
    wm_perm = jnp.concatenate([wm[:C], wm[2 * C:3 * C], wm[C:2 * C]], axis=0)
    bm_perm = jnp.concatenate([bm[:C], bm[2 * C:3 * C], bm[C:2 * C]])
    wm_t = wm_perm.T
    wml, wmr = wm_t[:2 * C, :], wm_t[2 * C:, :]

    bf = lambda a: a.astype(bf16)
    row = lambda v: v.reshape(1, -1).astype(jnp.float32)

    args = (xp, to_tok(c), to_tok(m),
            bf(conv_w), row(params['conv_b']),
            row(params['gn_gamma']), row(params['gn_beta']),
            bf(whm), row(bhm), bf(wml), bf(wmr), row(bz_fold), row(bm_perm))
    return args, (B, C, H, W, Hp, Wp)


def sa_convlstm_cell_forward(x, hidden, params, *, kernel_size, padding, att_hidden_dim):
    """Inputs / outputs in PyTorch NCHW convention: x,h,c,m: [B, hidden_dim, H, W]."""
    h, c, m = hidden
    args, (B, C, H, W, Hp, Wp) = _prepare_args(x, h, c, m, params,
                                               kernel_size, padding, att_hidden_dim)
    HW = H * W
    out_w = ((3 * C + 127) // 128) * 128            # lane-dense packed output width

    xp_spec = pl.BlockSpec((pl.Squeezed(), Hp, Wp, 2 * C), lambda b: (b, 0, 0, 0))
    tok_spec = pl.BlockSpec((pl.Squeezed(), HW, C), lambda b: (b, 0, 0))
    out_spec = pl.BlockSpec((pl.Squeezed(), HW, out_w), lambda b: (b, 0, 0))

    def full_spec(a):
        nd = a.ndim
        return pl.BlockSpec(a.shape, lambda b, _nd=nd: (0,) * _nd)

    in_specs = [xp_spec, tok_spec, tok_spec] + [full_spec(a) for a in args[3:]]

    # VMEM budget: double-buffered per-step blocks + weights + live intermediates.
    weight_bytes = sum(int(a.size) * a.dtype.itemsize for a in args[3:])
    step_bytes = Hp * Wp * 2 * C * 2 + 2 * HW * C * 4 + HW * out_w * 4
    interm_bytes = 2 * HW * HW * 4 + 12 * HW * 4 * C * 4
    est = 2 * (step_bytes + weight_bytes) + interm_bytes + (4 << 20)
    try:
        phys = int(pltpu.get_tpu_info().vmem_capacity_bytes)
    except Exception:
        phys = 64 * 1024 * 1024
    vmem_limit = int(min(max(est, 16 * 1024 * 1024), int(phys * 0.75)))

    hid = att_hidden_dim
    flops = B * (2 * HW * (kernel_size ** 2) * 2 * C * 4 * C
                 + 2 * HW * 2 * C * (3 * hid + 4 * C)
                 + 4 * HW * HW * (hid + 2 * C)
                 + 2 * HW * 3 * C * 3 * C)
    cost = pl.CostEstimate(
        flops=int(flops),
        transcendentals=int(B * (2 * HW * HW + 8 * C * HW)),
        bytes_accessed=int(B * step_bytes + weight_bytes))

    kernel = functools.partial(sa_convlstm_kernel, C=C, hid=hid,
                               H=H, W=W, ksize=kernel_size)
    packed = pl.pallas_call(
        kernel,
        grid=(B,),
        in_specs=in_specs,
        out_specs=out_spec,
        out_shape=jax.ShapeDtypeStruct((B, HW, out_w), jnp.float32),
        compiler_params=pltpu.CompilerParams(
            dimension_semantics=("parallel",),
            vmem_limit_bytes=vmem_limit),
        cost_estimate=cost,
    )(*args)

    def to_nchw(t):  # [B, HW, C] -> NCHW
        return jnp.transpose(t.reshape(B, H, W, C), (0, 3, 1, 2))

    h_next = to_nchw(packed[:, :, 0 * C:1 * C])
    c_next = to_nchw(packed[:, :, 1 * C:2 * C])
    m_next = to_nchw(packed[:, :, 2 * C:3 * C])
    return h_next, (h_next, c_next, m_next)


# -----------------------------------------------------------------------------
# Pure-JAX reference (un-fused weights, f32) for a correctness check.
# -----------------------------------------------------------------------------
def _reference_forward(x, hidden, params, *, kernel_size, padding):
    h, c, m = hidden
    B, C, H, W = x.shape
    HW = H * W
    k, p = kernel_size, padding
    to_tok = lambda t: jnp.transpose(t, (0, 2, 3, 1)).reshape(B, HW, C)

    xh = jnp.transpose(jnp.concatenate([x, h], axis=1), (0, 2, 3, 1))
    xp = jnp.pad(xh, ((0, 0), (p, p), (p, p), (0, 0)))
    cols = [xp[:, dy:dy + H, dx:dx + W, :] for dy in range(k) for dx in range(k)]
    patches = jnp.stack(cols, axis=3).reshape(B, HW, k * k * 2 * C)
    conv_w = jnp.transpose(params['conv_w'], (2, 3, 1, 0)).reshape(-1, 4 * C)

    def per_batch(patch_b, c_b, m_b):
        pre = patch_b @ conv_w + params['conv_b']
        mean = jnp.mean(pre, axis=0, keepdims=True)
        var = jnp.mean((pre - mean) ** 2, axis=0, keepdims=True)
        gn = (pre - mean) / jnp.sqrt(var + 1e-5) * params['gn_gamma'] + params['gn_beta']
        i = jax.nn.sigmoid(gn[:, 0 * C:1 * C])
        f = jax.nn.sigmoid(gn[:, 1 * C:2 * C])
        o = jax.nn.sigmoid(gn[:, 2 * C:3 * C])
        g = jnp.tanh(gn[:, 3 * C:4 * C])
        c_next = f * c_b + i * g
        hh = o * jnp.tanh(c_next)

        lin = lambda xx, w, b: xx @ w.T + b
        q = lin(hh, params['wq'], params['bq'])
        kh = lin(hh, params['wk'], params['bk'])
        vh = lin(hh, params['wv'], params['bv'])
        km = lin(m_b, params['wk2'], params['bk2'])
        vm = lin(m_b, params['wv2'], params['bv2'])

        attend = lambda qm, kk, vv: jax.nn.softmax(qm @ kk.T, axis=-1) @ vv
        zh, zm = attend(q, kh, vh), attend(q, km, vm)
        z = lin(jnp.concatenate([zh, zm], axis=-1), params['wz'], params['bz'])
        comb = lin(jnp.concatenate([z, hh], axis=-1), params['wm'], params['bm'])
        mo, mg = comb[:, :C], comb[:, C:2 * C]
        mi = jax.nn.sigmoid(comb[:, 2 * C:3 * C])
        new_m = (1.0 - mi) * m_b + mi * jnp.tanh(mg)
        new_h = jax.nn.sigmoid(mo) * new_m
        return new_h, c_next, new_m

    h_t, c_t, m_t = jax.vmap(per_batch)(patches, to_tok(c), to_tok(m))
    to_nchw = lambda t: jnp.transpose(t.reshape(B, H, W, C), (0, 3, 1, 2))
    return to_nchw(h_t), to_nchw(c_t), to_nchw(m_t)


# -----------------------------------------------------------------------------
if __name__ == "__main__":
    B, C, H, W = 2, 32, 16, 16         # hidden_dim = 32
    KSIZE, PAD, ATT_HID = 3, 1, 16

    key = jax.random.PRNGKey(0)
    k_params, k_x, k_h, k_c, k_m = jax.random.split(key, 5)
    params = make_params(k_params, C, ATT_HID, KSIZE)

    x = jax.random.normal(k_x, (B, C, H, W), dtype=jnp.float32) * 0.5
    h = jax.random.normal(k_h, (B, C, H, W), dtype=jnp.float32) * 0.5
    c = jax.random.normal(k_c, (B, C, H, W), dtype=jnp.float32) * 0.5
    m = jax.random.normal(k_m, (B, C, H, W), dtype=jnp.float32) * 0.5

    h_next, (h2, c_next, m_next) = sa_convlstm_cell_forward(
        x, (h, c, m), params,
        kernel_size=KSIZE, padding=PAD, att_hidden_dim=ATT_HID)
    jax.block_until_ready((h_next, c_next, m_next))

    # Correctness check against a plain-JAX f32 reference with un-fused weights.
    h_ref, c_ref, m_ref = _reference_forward(x, (h, c, m), params,
                                             kernel_size=KSIZE, padding=PAD)
    np.testing.assert_allclose(np.asarray(h_next), np.asarray(h_ref), rtol=2e-2, atol=2e-2)
    np.testing.assert_allclose(np.asarray(c_next), np.asarray(c_ref), rtol=2e-2, atol=2e-2)
    np.testing.assert_allclose(np.asarray(m_next), np.asarray(m_ref), rtol=2e-2, atol=2e-2)
    assert h_next.shape == (B, C, H, W)

    print("KERNEL_OK")
</pallas_src>

<mosaic_0001>
module attributes {stable_mosaic.version = 11 : i64} {
  func.func @sa_convlstm_kernel(%arg0: i32, %arg1: memref<1x18x18x64xbf16, #tpu.memory_space<vmem>>, %arg2: memref<1x256x32xf32, #tpu.memory_space<vmem>>, %arg3: memref<1x256x32xf32, #tpu.memory_space<vmem>>, %arg4: memref<576x128xbf16, #tpu.memory_space<vmem>>, %arg5: memref<1x128xf32, #tpu.memory_space<vmem>>, %arg6: memref<1x128xf32, #tpu.memory_space<vmem>>, %arg7: memref<1x128xf32, #tpu.memory_space<vmem>>, %arg8: memref<64x176xbf16, #tpu.memory_space<vmem>>, %arg9: memref<1x176xf32, #tpu.memory_space<vmem>>, %arg10: memref<64x96xbf16, #tpu.memory_space<vmem>>, %arg11: memref<32x96xbf16, #tpu.memory_space<vmem>>, %arg12: memref<1x64xf32, #tpu.memory_space<vmem>>, %arg13: memref<1x96xf32, #tpu.memory_space<vmem>>, %arg14: memref<1x256x128xf32, #tpu.memory_space<vmem>>) attributes {dimension_semantics = [#tpu.dimension_semantics<parallel>], iteration_bounds = array<i64: 2>, scalar_prefetch = 0 : i64, scratch_operands = 0 : i64, tpu.core_type = #tpu.core_type<tc>, window_params = [{transform_indices = @transform_0, window_bounds = array<i64: 1, 18, 18, 64>}, {transform_indices = @transform_1, window_bounds = array<i64: 1, 256, 32>}, {transform_indices = @transform_2, window_bounds = array<i64: 1, 256, 32>}, {pipeline_mode = #tpu.pipeline_mode<synchronous>, transform_indices = @transform_3, window_bounds = array<i64: 576, 128>}, {pipeline_mode = #tpu.pipeline_mode<synchronous>, transform_indices = @transform_4, window_bounds = array<i64: 1, 128>}, {pipeline_mode = #tpu.pipeline_mode<synchronous>, transform_indices = @transform_5, window_bounds = array<i64: 1, 128>}, {pipeline_mode = #tpu.pipeline_mode<synchronous>, transform_indices = @transform_6, window_bounds = array<i64: 1, 128>}, {pipeline_mode = #tpu.pipeline_mode<synchronous>, transform_indices = @transform_7, window_bounds = array<i64: 64, 176>}, {pipeline_mode = #tpu.pipeline_mode<synchronous>, transform_indices = @transform_8, window_bounds = array<i64: 1, 176>}, {pipeline_mode = #tpu.pipeline_mode<synchronous>, transform_indices = @transform_9, window_bounds = array<i64: 64, 96>}, {pipeline_mode = #tpu.pipeline_mode<synchronous>, transform_indices = @transform_10, window_bounds = array<i64: 32, 96>}, {pipeline_mode = #tpu.pipeline_mode<synchronous>, transform_indices = @transform_11, window_bounds = array<i64: 1, 64>}, {pipeline_mode = #tpu.pipeline_mode<synchronous>, transform_indices = @transform_12, window_bounds = array<i64: 1, 96>}, {transform_indices = @transform_13, window_bounds = array<i64: 1, 256, 128>}]} {
    %cst = arith.constant 0.000000e+00 : f32
    %0 = vector.broadcast %cst : f32 to vector<256x128xf32>
    %c0 = arith.constant 0 : index
    %c0_0 = arith.constant 0 : index
    %c0_1 = arith.constant 0 : index
    %c0_2 = arith.constant 0 : index
    %1 = vector.load %arg1[%c0, %c0_0, %c0_1, %c0_2] : memref<1x18x18x64xbf16, #tpu.memory_space<vmem>>, vector<1x16x16x64xbf16>
    %2 = vector.shape_cast %1 : vector<1x16x16x64xbf16> to vector<16x16x64xbf16>
    %3 = vector.shape_cast %2 : vector<16x16x64xbf16> to vector<256x64xbf16>
    %c0_3 = arith.constant 0 : index
    %c0_4 = arith.constant 0 : index
    %4 = vector.load %arg4[%c0_3, %c0_4] : memref<576x128xbf16, #tpu.memory_space<vmem>>, vector<64x128xbf16>
    %cst_5 = arith.constant dense<0.000000e+00> : vector<256x128xf32>
    %5 = tpu.matmul %3, %4, %cst_5 {dimension_numbers = #tpu.dot_dimension_numbers<[1], [0], [0], [1], [0, 0, 1, 1], [], []>} : vector<256x64xbf16>, vector<64x128xbf16>, vector<256x128xf32> -> vector<256x128xf32>
    %6 = arith.addf %0, %5 : vector<256x128xf32>
    %c0_6 = arith.constant 0 : index
    %c0_7 = arith.constant 0 : index
    %c1 = arith.constant 1 : index
    %c0_8 = arith.constant 0 : index
    %7 = vector.load %arg1[%c0_6, %c0_7, %c1, %c0_8] : memref<1x18x18x64xbf16, #tpu.memory_space<vmem>>, vector<1x16x16x64xbf16>
    %8 = vector.shape_cast %7 : vector<1x16x16x64xbf16> to vector<16x16x64xbf16>
    %9 = vector.shape_cast %8 : vector<16x16x64xbf16> to vector<256x64xbf16>
    %c64 = arith.constant 64 : index
    %c0_9 = arith.constant 0 : index
    %10 = vector.load %arg4[%c64, %c0_9] : memref<576x128xbf16, #tpu.memory_space<vmem>>, vector<64x128xbf16>
    %cst_10 = arith.constant dense<0.000000e+00> : vector<256x128xf32>
    %11 = tpu.matmul %9, %10, %cst_10 {dimension_numbers = #tpu.dot_dimension_numbers<[1], [0], [0], [1], [0, 0, 1, 1], [], []>} : vector<256x64xbf16>, vector<64x128xbf16>, vector<256x128xf32> -> vector<256x128xf32>
    %12 = arith.addf %6, %11 : vector<256x128xf32>
    %c0_11 = arith.constant 0 : index
    %c0_12 = arith.constant 0 : index
    %c2 = arith.constant 2 : index
    %c0_13 = arith.constant 0 : index
    %13 = vector.load %arg1[%c0_11, %c0_12, %c2, %c0_13] : memref<1x18x18x64xbf16, #tpu.memory_space<vmem>>, vector<1x16x16x64xbf16>
    %14 = vector.shape_cast %13 : vector<1x16x16x64xbf16> to vector<16x16x64xbf16>
    %15 = vector.shape_cast %14 : vector<16x16x64xbf16> to vector<256x64xbf16>
    %c128 = arith.constant 128 : index
    %c0_14 = arith.constant 0 : index
    %16 = vector.load %arg4[%c128, %c0_14] : memref<576x128xbf16, #tpu.memory_space<vmem>>, vector<64x128xbf16>
    %cst_15 = arith.constant dense<0.000000e+00> : vector<256x128xf32>
    %17 = tpu.matmul %15, %16, %cst_15 {dimension_numbers = #tpu.dot_dimension_numbers<[1], [0], [0], [1], [0, 0, 1, 1], [], []>} : vector<256x64xbf16>, vector<64x128xbf16>, vector<256x128xf32> -> vector<256x128xf32>
    %18 = arith.addf %12, %17 : vector<256x128xf32>
    %c0_16 = arith.constant 0 : index
    %c1_17 = arith.constant 1 : index
    %c0_18 = arith.constant 0 : index
    %c0_19 = arith.constant 0 : index
    %19 = vector.load %arg1[%c0_16, %c1_17, %c0_18, %c0_19] : memref<1x18x18x64xbf16, #tpu.memory_space<vmem>>, vector<1x16x16x64xbf16>
    %20 = vector.shape_cast %19 : vector<1x16x16x64xbf16> to vector<16x16x64xbf16>
    %21 = vector.shape_cast %20 : vector<16x16x64xbf16> to vector<256x64xbf16>
    %c192 = arith.constant 192 : index
    %c0_20 = arith.constant 0 : index
    %22 = vector.load %arg4[%c192, %c0_20] : memref<576x128xbf16, #tpu.memory_space<vmem>>, vector<64x128xbf16>
    %cst_21 = arith.constant dense<0.000000e+00> : vector<256x128xf32>
    %23 = tpu.matmul %21, %22, %cst_21 {dimension_numbers = #tpu.dot_dimension_numbers<[1], [0], [0], [1], [0, 0, 1, 1], [], []>} : vector<256x64xbf16>, vector<64x128xbf16>, vector<256x128xf32> -> vector<256x128xf32>
    %24 = arith.addf %18, %23 : vector<256x128xf32>
    %c0_22 = arith.constant 0 : index
    %c1_23 = arith.constant 1 : index
    %c1_24 = arith.constant 1 : index
    %c0_25 = arith.constant 0 : index
    %25 = vector.load %arg1[%c0_22, %c1_23, %c1_24, %c0_25] : memref<1x18x18x64xbf16, #tpu.memory_space<vmem>>, vector<1x16x16x64xbf16>
    %26 = vector.shape_cast %25 : vector<1x16x16x64xbf16> to vector<16x16x64xbf16>
    %27 = vector.shape_cast %26 : vector<16x16x64xbf16> to vector<256x64xbf16>
    %c256 = arith.constant 256 : index
    %c0_26 = arith.constant 0 : index
    %28 = vector.load %arg4[%c256, %c0_26] : memref<576x128xbf16, #tpu.memory_space<vmem>>, vector<64x128xbf16>
    %cst_27 = arith.constant dense<0.000000e+00> : vector<256x128xf32>
    %29 = tpu.matmul %27, %28, %cst_27 {dimension_numbers = #tpu.dot_dimension_numbers<[1], [0], [0], [1], [0, 0, 1, 1], [], []>} : vector<256x64xbf16>, vector<64x128xbf16>, vector<256x128xf32> -> vector<256x128xf32>
    %30 = arith.addf %24, %29 : vector<256x128xf32>
    %c0_28 = arith.constant 0 : index
    %c1_29 = arith.constant 1 : index
    %c2_30 = arith.constant 2 : index
    %c0_31 = arith.constant 0 : index
    %31 = vector.load %arg1[%c0_28, %c1_29, %c2_30, %c0_31] : memref<1x18x18x64xbf16, #tpu.memory_space<vmem>>, vector<1x16x16x64xbf16>
    %32 = vector.shape_cast %31 : vector<1x16x16x64xbf16> to vector<16x16x64xbf16>
    %33 = vector.shape_cast %32 : vector<16x16x64xbf16> to vector<256x64xbf16>
    %c320 = arith.constant 320 : index
    %c0_32 = arith.constant 0 : index
    %34 = vector.load %arg4[%c320, %c0_32] : memref<576x128xbf16, #tpu.memory_space<vmem>>, vector<64x128xbf16>
    %cst_33 = arith.constant dense<0.000000e+00> : vector<256x128xf32>
    %35 = tpu.matmul %33, %34, %cst_33 {dimension_numbers = #tpu.dot_dimension_numbers<[1], [0], [0], [1], [0, 0, 1, 1], [], []>} : vector<256x64xbf16>, vector<64x128xbf16>, vector<256x128xf32> -> vector<256x128xf32>
    %36 = arith.addf %30, %35 : vector<256x128xf32>
    %c0_34 = arith.constant 0 : index
    %c2_35 = arith.constant 2 : index
    %c0_36 = arith.constant 0 : index
    %c0_37 = arith.constant 0 : index
    %37 = vector.load %arg1[%c0_34, %c2_35, %c0_36, %c0_37] : memref<1x18x18x64xbf16, #tpu.memory_space<vmem>>, vector<1x16x16x64xbf16>
    %38 = vector.shape_cast %37 : vector<1x16x16x64xbf16> to vector<16x16x64xbf16>
    %39 = vector.shape_cast %38 : vector<16x16x64xbf16> to vector<256x64xbf16>
    %c384 = arith.constant 384 : index
    %c0_38 = arith.constant 0 : index
    %40 = vector.load %arg4[%c384, %c0_38] : memref<576x128xbf16, #tpu.memory_space<vmem>>, vector<64x128xbf16>
    %cst_39 = arith.constant dense<0.000000e+00> : vector<256x128xf32>
    %41 = tpu.matmul %39, %40, %cst_39 {dimension_numbers = #tpu.dot_dimension_numbers<[1], [0], [0], [1], [0, 0, 1, 1], [], []>} : vector<256x64xbf16>, vector<64x128xbf16>, vector<256x128xf32> -> vector<256x128xf32>
    %42 = arith.addf %36, %41 : vector<256x128xf32>
    %c0_40 = arith.constant 0 : index
    %c2_41 = arith.constant 2 : index
    %c1_42 = arith.constant 1 : index
    %c0_43 = arith.constant 0 : index
    %43 = vector.load %arg1[%c0_40, %c2_41, %c1_42, %c0_43] : memref<1x18x18x64xbf16, #tpu.memory_space<vmem>>, vector<1x16x16x64xbf16>
    %44 = vector.shape_cast %43 : vector<1x16x16x64xbf16> to vector<16x16x64xbf16>
    %45 = vector.shape_cast %44 : vector<16x16x64xbf16> to vector<256x64xbf16>
    %c448 = arith.constant 448 : index
    %c0_44 = arith.constant 0 : index
    %46 = vector.load %arg4[%c448, %c0_44] : memref<576x128xbf16, #tpu.memory_space<vmem>>, vector<64x128xbf16>
    %cst_45 = arith.constant dense<0.000000e+00> : vector<256x128xf32>
    %47 = tpu.matmul %45, %46, %cst_45 {dimension_numbers = #tpu.dot_dimension_numbers<[1], [0], [0], [1], [0, 0, 1, 1], [], []>} : vector<256x64xbf16>, vector<64x128xbf16>, vector<256x128xf32> -> vector<256x128xf32>
    %48 = arith.addf %42, %47 : vector<256x128xf32>
    %c0_46 = arith.constant 0 : index
    %c2_47 = arith.constant 2 : index
    %c2_48 = arith.constant 2 : index
    %c0_49 = arith.constant 0 : index
    %49 = vector.load %arg1[%c0_46, %c2_47, %c2_48, %c0_49] : memref<1x18x18x64xbf16, #tpu.memory_space<vmem>>, vector<1x16x16x64xbf16>
    %50 = vector.shape_cast %49 : vector<1x16x16x64xbf16> to vector<16x16x64xbf16>
    %51 = vector.shape_cast %50 : vector<16x16x64xbf16> to vector<256x64xbf16>
    %c512 = arith.constant 512 : index
    %c0_50 = arith.constant 0 : index
    %52 = vector.load %arg4[%c512, %c0_50] : memref<576x128xbf16, #tpu.memory_space<vmem>>, vector<64x128xbf16>
    %cst_51 = arith.constant dense<0.000000e+00> : vector<256x128xf32>
    %53 = tpu.matmul %51, %52, %cst_51 {dimension_numbers = #tpu.dot_dimension_numbers<[1], [0], [0], [1], [0, 0, 1, 1], [], []>} : vector<256x64xbf16>, vector<64x128xbf16>, vector<256x128xf32> -> vector<256x128xf32>
    %54 = arith.addf %48, %53 : vector<256x128xf32>
    %c0_52 = arith.constant 0 : index
    %c0_53 = arith.constant 0 : index
    %55 = vector.load %arg5[%c0_52, %c0_53] : memref<1x128xf32, #tpu.memory_space<vmem>>, vector<1x128xf32>
    %56 = vector.broadcast %55 : vector<1x128xf32> to vector<256x128xf32>
    %57 = arith.addf %54, %56 : vector<256x128xf32>
    %cst_54 = arith.constant dense<0.000000e+00> : vector<128xf32>
    %58 = vector.multi_reduction <add>, %57, %cst_54 [0] : vector<256x128xf32> to vector<128xf32>
    %59 = vector.shape_cast %58 : vector<128xf32> to vector<1x128xf32>
    %cst_55 = arith.constant 2.560000e+02 : f32
    %60 = vector.broadcast %cst_55 : f32 to vector<1x128xf32>
    %61 = arith.divf %59, %60 : vector<1x128xf32>
    %62 = vector.broadcast %61 : vector<1x128xf32> to vector<256x128xf32>
    %63 = arith.subf %57, %62 : vector<256x128xf32>
    %64 = arith.mulf %63, %63 : vector<256x128xf32>
    %cst_56 = arith.constant dense<0.000000e+00> : vector<128xf32>
    %65 = vector.multi_reduction <add>, %64, %cst_56 [0] : vector<256x128xf32> to vector<128xf32>
    %66 = vector.shape_cast %65 : vector<128xf32> to vector<1x128xf32>
    %cst_57 = arith.constant 2.560000e+02 : f32
    %67 = vector.broadcast %cst_57 : f32 to vector<1x128xf32>
    %68 = arith.divf %66, %67 : vector<1x128xf32>
    %cst_58 = arith.constant 9.99999974E-6 : f32
    %69 = vector.broadcast %cst_58 : f32 to vector<1x128xf32>
    %70 = arith.addf %68, %69 : vector<1x128xf32>
    %71 = math.rsqrt %70 : vector<1x128xf32>
    %72 = vector.broadcast %71 : vector<1x128xf32> to vector<256x128xf32>
    %73 = arith.mulf %63, %72 : vector<256x128xf32>
    %c0_59 = arith.constant 0 : index
    %c0_60 = arith.constant 0 : index
    %74 = vector.load %arg6[%c0_59, %c0_60] : memref<1x128xf32, #tpu.memory_space<vmem>>, vector<1x128xf32>
    %75 = vector.broadcast %74 : vector<1x128xf32> to vector<256x128xf32>
    %76 = arith.mulf %73, %75 : vector<256x128xf32>
    %c0_61 = arith.constant 0 : index
    %c0_62 = arith.constant 0 : index
    %77 = vector.load %arg7[%c0_61, %c0_62] : memref<1x128xf32, #tpu.memory_space<vmem>>, vector<1x128xf32>
    %78 = vector.broadcast %77 : vector<1x128xf32> to vector<256x128xf32>
    %79 = arith.addf %76, %78 : vector<256x128xf32>
    %80 = vector.extract_strided_slice %79 {offsets = [0, 0], sizes = [256, 96], strides = [1, 1]} : vector<256x128xf32> to vector<256x96xf32>
    %81 = arith.negf %80 : vector<256x96xf32>
    %82 = math.exp %81 : vector<256x96xf32>
    %cst_63 = arith.constant 1.000000e+00 : f32
    %83 = vector.broadcast %cst_63 : f32 to vector<256x96xf32>
    %84 = arith.addf %83, %82 : vector<256x96xf32>
    %85 = arith.divf %83, %84 : vector<256x96xf32>
    %86 = vector.extract_strided_slice %85 {offsets = [0, 0], sizes = [256, 32], strides = [1, 1]} : vector<256x96xf32> to vector<256x32xf32>
    %87 = vector.extract_strided_slice %85 {offsets = [0, 32], sizes = [256, 32], strides = [1, 1]} : vector<256x96xf32> to vector<256x32xf32>
    %88 = vector.extract_strided_slice %85 {offsets = [0, 64], sizes = [256, 32], strides = [1, 1]} : vector<256x96xf32> to vector<256x32xf32>
    %89 = vector.extract_strided_slice %79 {offsets = [0, 96], sizes = [256, 32], strides = [1, 1]} : vector<256x128xf32> to vector<256x32xf32>
    %90 = math.tanh %89 : vector<256x32xf32>
    %c0_64 = arith.constant 0 : index
    %c0_65 = arith.constant 0 : index
    %c0_66 = arith.constant 0 : index
    %91 = vector.load %arg2[%c0_64, %c0_65, %c0_66] : memref<1x256x32xf32, #tpu.memory_space<vmem>>, vector<1x256x32xf32>
    %92 = vector.shape_cast %91 : vector<1x256x32xf32> to vector<256x32xf32>
    %c0_67 = arith.constant 0 : index
    %c0_68 = arith.constant 0 : index
    %c0_69 = arith.constant 0 : index
    %93 = vector.load %arg3[%c0_67, %c0_68, %c0_69] : memref<1x256x32xf32, #tpu.memory_space<vmem>>, vector<1x256x32xf32>
    %94 = vector.shape_cast %93 : vector<1x256x32xf32> to vector<256x32xf32>
    %95 = arith.mulf %87, %92 : vector<256x32xf32>
    %96 = arith.mulf %86, %90 : vector<256x32xf32>
    %97 = arith.addf %95, %96 : vector<256x32xf32>
    %98 = math.tanh %97 : vector<256x32xf32>
    %99 = arith.mulf %88, %98 : vector<256x32xf32>
    %100 = arith.truncf %99 : vector<256x32xf32> to vector<256x32xbf16>
    %101 = arith.truncf %94 : vector<256x32xf32> to vector<256x32xbf16>
    %102 = tpu.concatenate %100, %101 in 1 : vector<256x32xbf16>, vector<256x32xbf16> -> vector<256x64xbf16>
    %c0_70 = arith.constant 0 : index
    %c0_71 = arith.constant 0 : index
    %103 = vector.load %arg8[%c0_70, %c0_71] : memref<64x176xbf16, #tpu.memory_space<vmem>>, vector<64x176xbf16>
    %cst_72 = arith.constant dense<0.000000e+00> : vector<256x176xf32>
    %104 = tpu.matmul %102, %103, %cst_72 {dimension_numbers = #tpu.dot_dimension_numbers<[1], [0], [0], [1], [0, 0, 1, 1], [], []>} : vector<256x64xbf16>, vector<64x176xbf16>, vector<256x176xf32> -> vector<256x176xf32>
    %c0_73 = arith.constant 0 : index
    %c0_74 = arith.constant 0 : index
    %105 = vector.load %arg9[%c0_73, %c0_74] : memref<1x176xf32, #tpu.memory_space<vmem>>, vector<1x176xf32>
    %106 = vector.broadcast %105 : vector<1x176xf32> to vector<256x176xf32>
    %107 = arith.addf %104, %106 : vector<256x176xf32>
    %108 = vector.extract_strided_slice %107 {offsets = [0, 0], sizes = [256, 16], strides = [1, 1]} : vector<256x176xf32> to vector<256x16xf32>
    %109 = arith.truncf %108 : vector<256x16xf32> to vector<256x16xbf16>
    %110 = vector.extract_strided_slice %107 {offsets = [0, 16], sizes = [256, 16], strides = [1, 1]} : vector<256x176xf32> to vector<256x16xf32>
    %111 = vector.extract_strided_slice %107 {offsets = [0, 32], sizes = [256, 64], strides = [1, 1]} : vector<256x176xf32> to vector<256x64xf32>
    %112 = vector.extract_strided_slice %107 {offsets = [0, 96], sizes = [256, 16], strides = [1, 1]} : vector<256x176xf32> to vector<256x16xf32>
    %113 = vector.extract_strided_slice %107 {offsets = [0, 112], sizes = [256, 64], strides = [1, 1]} : vector<256x176xf32> to vector<256x64xf32>
    %114 = arith.truncf %110 : vector<256x16xf32> to vector<256x16xbf16>
    %cst_75 = arith.constant dense<0.000000e+00> : vector<256x256xf32>
    %115 = tpu.matmul %109, %114, %cst_75 {dimension_numbers = #tpu.dot_dimension_numbers<[1], [1], [0], [0], [0, 0, 1, 0], [], []>} : vector<256x16xbf16>, vector<256x16xbf16>, vector<256x256xf32> -> vector<256x256xf32>
    %cst_76 = arith.constant dense<0xFF800000> : vector<256xf32>
    %116 = vector.multi_reduction <maximumf>, %115, %cst_76 [1] : vector<256x256xf32> to vector<256xf32>
    %117 = vector.shape_cast %116 : vector<256xf32> to vector<256x1xf32>
    %118 = vector.broadcast %117 : vector<256x1xf32> to vector<256x256xf32>
    %119 = arith.subf %115, %118 : vector<256x256xf32>
    %120 = math.exp %119 : vector<256x256xf32>
    %cst_77 = arith.constant dense<0.000000e+00> : vector<256xf32>
    %121 = vector.multi_reduction <add>, %120, %cst_77 [1] : vector<256x256xf32> to vector<256xf32>
    %122 = vector.shape_cast %121 : vector<256xf32> to vector<256x1xf32>
    %123 = tpu.reciprocal %122 {approx = true} : vector<256x1xf32> -> vector<256x1xf32>
    %124 = vector.broadcast %123 : vector<256x1xf32> to vector<256x256xf32>
    %125 = arith.mulf %120, %124 : vector<256x256xf32>
    %126 = arith.truncf %125 : vector<256x256xf32> to vector<256x256xbf16>
    %127 = arith.truncf %111 : vector<256x64xf32> to vector<256x64xbf16>
    %cst_78 = arith.constant dense<0.000000e+00> : vector<256x64xf32>
    %128 = tpu.matmul %126, %127, %cst_78 {dimension_numbers = #tpu.dot_dimension_numbers<[1], [0], [0], [1], [0, 0, 1, 1], [], []>} : vector<256x256xbf16>, vector<256x64xbf16>, vector<256x64xf32> -> vector<256x64xf32>
    %129 = arith.truncf %112 : vector<256x16xf32> to vector<256x16xbf16>
    %cst_79 = arith.constant dense<0.000000e+00> : vector<256x256xf32>
    %130 = tpu.matmul %109, %129, %cst_79 {dimension_numbers = #tpu.dot_dimension_numbers<[1], [1], [0], [0], [0, 0, 1, 0], [], []>} : vector<256x16xbf16>, vector<256x16xbf16>, vector<256x256xf32> -> vector<256x256xf32>
    %cst_80 = arith.constant dense<0xFF800000> : vector<256xf32>
    %131 = vector.multi_reduction <maximumf>, %130, %cst_80 [1] : vector<256x256xf32> to vector<256xf32>
    %132 = vector.shape_cast %131 : vector<256xf32> to vector<256x1xf32>
    %133 = vector.broadcast %132 : vector<256x1xf32> to vector<256x256xf32>
    %134 = arith.subf %130, %133 : vector<256x256xf32>
    %135 = math.exp %134 : vector<256x256xf32>
    %cst_81 = arith.constant dense<0.000000e+00> : vector<256xf32>
    %136 = vector.multi_reduction <add>, %135, %cst_81 [1] : vector<256x256xf32> to vector<256xf32>
    %137 = vector.shape_cast %136 : vector<256xf32> to vector<256x1xf32>
    %138 = tpu.reciprocal %137 {approx = true} : vector<256x1xf32> -> vector<256x1xf32>
    %139 = vector.broadcast %138 : vector<256x1xf32> to vector<256x256xf32>
    %140 = arith.mulf %135, %139 : vector<256x256xf32>
    %141 = arith.truncf %140 : vector<256x256xf32> to vector<256x256xbf16>
    %142 = arith.truncf %113 : vector<256x64xf32> to vector<256x64xbf16>
    %cst_82 = arith.constant dense<0.000000e+00> : vector<256x64xf32>
    %143 = tpu.matmul %141, %142, %cst_82 {dimension_numbers = #tpu.dot_dimension_numbers<[1], [0], [0], [1], [0, 0, 1, 1], [], []>} : vector<256x256xbf16>, vector<256x64xbf16>, vector<256x64xf32> -> vector<256x64xf32>
    %144 = arith.addf %128, %143 : vector<256x64xf32>
    %c0_83 = arith.constant 0 : index
    %c0_84 = arith.constant 0 : index
    %145 = vector.load %arg12[%c0_83, %c0_84] : memref<1x64xf32, #tpu.memory_space<vmem>>, vector<1x64xf32>
    %146 = vector.broadcast %145 : vector<1x64xf32> to vector<256x64xf32>
    %147 = arith.addf %144, %146 : vector<256x64xf32>
    %148 = arith.truncf %147 : vector<256x64xf32> to vector<256x64xbf16>
    %c0_85 = arith.constant 0 : index
    %c0_86 = arith.constant 0 : index
    %149 = vector.load %arg10[%c0_85, %c0_86] : memref<64x96xbf16, #tpu.memory_space<vmem>>, vector<64x96xbf16>
    %cst_87 = arith.constant dense<0.000000e+00> : vector<256x96xf32>
    %150 = tpu.matmul %148, %149, %cst_87 {dimension_numbers = #tpu.dot_dimension_numbers<[1], [0], [0], [1], [0, 0, 1, 1], [], []>} : vector<256x64xbf16>, vector<64x96xbf16>, vector<256x96xf32> -> vector<256x96xf32>
    %c0_88 = arith.constant 0 : index
    %c0_89 = arith.constant 0 : index
    %151 = vector.load %arg11[%c0_88, %c0_89] : memref<32x96xbf16, #tpu.memory_space<vmem>>, vector<32x96xbf16>
    %cst_90 = arith.constant dense<0.000000e+00> : vector<256x96xf32>
    %152 = tpu.matmul %100, %151, %cst_90 {dimension_numbers = #tpu.dot_dimension_numbers<[1], [0], [0], [1], [0, 0, 1, 1], [], []>} : vector<256x32xbf16>, vector<32x96xbf16>, vector<256x96xf32> -> vector<256x96xf32>
    %153 = arith.addf %150, %152 : vector<256x96xf32>
    %c0_91 = arith.constant 0 : index
    %c0_92 = arith.constant 0 : index
    %154 = vector.load %arg13[%c0_91, %c0_92] : memref<1x96xf32, #tpu.memory_space<vmem>>, vector<1x96xf32>
    %155 = vector.broadcast %154 : vector<1x96xf32> to vector<256x96xf32>
    %156 = arith.addf %153, %155 : vector<256x96xf32>
    %157 = vector.extract_strided_slice %156 {offsets = [0, 0], sizes = [256, 64], strides = [1, 1]} : vector<256x96xf32> to vector<256x64xf32>
    %158 = arith.negf %157 : vector<256x64xf32>
    %159 = math.exp %158 : vector<256x64xf32>
    %cst_93 = arith.constant 1.000000e+00 : f32
    %160 = vector.broadcast %cst_93 : f32 to vector<256x64xf32>
    %161 = arith.addf %160, %159 : vector<256x64xf32>
    %162 = arith.divf %160, %161 : vector<256x64xf32>
    %163 = vector.extract_strided_slice %162 {offsets = [0, 0], sizes = [256, 32], strides = [1, 1]} : vector<256x64xf32> to vector<256x32xf32>
    %164 = vector.extract_strided_slice %162 {offsets = [0, 32], sizes = [256, 32], strides = [1, 1]} : vector<256x64xf32> to vector<256x32xf32>
    %165 = vector.extract_strided_slice %156 {offsets = [0, 64], sizes = [256, 32], strides = [1, 1]} : vector<256x96xf32> to vector<256x32xf32>
    %166 = math.tanh %165 : vector<256x32xf32>
    %cst_94 = arith.constant 1.000000e+00 : f32
    %167 = vector.broadcast %cst_94 : f32 to vector<256x32xf32>
    %168 = arith.subf %167, %164 : vector<256x32xf32>
    %169 = arith.mulf %168, %94 : vector<256x32xf32>
    %170 = arith.mulf %164, %166 : vector<256x32xf32>
    %171 = arith.addf %169, %170 : vector<256x32xf32>
    %172 = arith.mulf %163, %171 : vector<256x32xf32>
    %cst_95 = arith.constant 0.000000e+00 : f32
    %173 = vector.broadcast %cst_95 : f32 to vector<256x32xf32>
    %174 = tpu.concatenate %172, %97, %171, %173 in 1 : vector<256x32xf32>, vector<256x32xf32>, vector<256x32xf32>, vector<256x32xf32> -> vector<256x128xf32>
    %c0_96 = arith.constant 0 : index
    %c0_97 = arith.constant 0 : index
    %c0_98 = arith.constant 0 : index
    %175 = vector.load %arg14[%c0_96, %c0_97, %c0_98] : memref<1x256x128xf32, #tpu.memory_space<vmem>>, vector<1x256x128xf32>
    %176 = vector.shape_cast %175 : vector<1x256x128xf32> to vector<256x128xf32>
    %177 = vector.shape_cast %174 : vector<256x128xf32> to vector<1x256x128xf32>
    tpu.vector_store %arg14[%c0_96, %c0_97, %c0_98], %177 {strides = array<i32>} : memref<1x256x128xf32, #tpu.memory_space<vmem>>, vector<1x256x128xf32>,
    return
  }
  func.func @transform_0(%arg0: i32) -> (i32, i32, i32, i32) {
    %c0_i32 = arith.constant 0 : i32
    %c0_i32_0 = arith.constant 0 : i32
    %c0_i32_1 = arith.constant 0 : i32
    %c0_i32_2 = arith.constant 0 : i32
    return %arg0, %c0_i32, %c0_i32_0, %c0_i32_1 : i32, i32, i32, i32
  }
  func.func @transform_1(%arg0: i32) -> (i32, i32, i32) {
    %c0_i32 = arith.constant 0 : i32
    %c0_i32_0 = arith.constant 0 : i32
    %c0_i32_1 = arith.constant 0 : i32
    return %arg0, %c0_i32, %c0_i32_0 : i32, i32, i32
  }
  func.func @transform_2(%arg0: i32) -> (i32, i32, i32) {
    %c0_i32 = arith.constant 0 : i32
    %c0_i32_0 = arith.constant 0 : i32
    %c0_i32_1 = arith.constant 0 : i32
    return %arg0, %c0_i32, %c0_i32_0 : i32, i32, i32
  }
  func.func @transform_3(%arg0: i32) -> (i32, i32) {
    %c0_i32 = arith.constant 0 : i32
    %c0_i32_0 = arith.constant 0 : i32
    %c0_i32_1 = arith.constant 0 : i32
    return %c0_i32, %c0_i32_0 : i32, i32
  }
  func.func @transform_4(%arg0: i32) -> (i32, i32) {
    %c0_i32 = arith.constant 0 : i32
    %c0_i32_0 = arith.constant 0 : i32
    %c0_i32_1 = arith.constant 0 : i32
    return %c0_i32, %c0_i32_0 : i32, i32
  }
  func.func @transform_5(%arg0: i32) -> (i32, i32) {
    %c0_i32 = arith.constant 0 : i32
    %c0_i32_0 = arith.constant 0 : i32
    %c0_i32_1 = arith.constant 0 : i32
    return %c0_i32, %c0_i32_0 : i32, i32
  }
  func.func @transform_6(%arg0: i32) -> (i32, i32) {
    %c0_i32 = arith.constant 0 : i32
    %c0_i32_0 = arith.constant 0 : i32
    %c0_i32_1 = arith.constant 0 : i32
    return %c0_i32, %c0_i32_0 : i32, i32
  }
  func.func @transform_7(%arg0: i32) -> (i32, i32) {
    %c0_i32 = arith.constant 0 : i32
    %c0_i32_0 = arith.constant 0 : i32
    %c0_i32_1 = arith.constant 0 : i32
    return %c0_i32, %c0_i32_0 : i32, i32
  }
  func.func @transform_8(%arg0: i32) -> (i32, i32) {
    %c0_i32 = arith.constant 0 : i32
    %c0_i32_0 = arith.constant 0 : i32
    %c0_i32_1 = arith.constant 0 : i32
    return %c0_i32, %c0_i32_0 : i32, i32
  }
  func.func @transform_9(%arg0: i32) -> (i32, i32) {
    %c0_i32 = arith.constant 0 : i32
    %c0_i32_0 = arith.constant 0 : i32
    %c0_i32_1 = arith.constant 0 : i32
    return %c0_i32, %c0_i32_0 : i32, i32
  }
  func.func @transform_10(%arg0: i32) -> (i32, i32) {
    %c0_i32 = arith.constant 0 : i32
    %c0_i32_0 = arith.constant 0 : i32
    %c0_i32_1 = arith.constant 0 : i32
    return %c0_i32, %c0_i32_0 : i32, i32
  }
  func.func @transform_11(%arg0: i32) -> (i32, i32) {
    %c0_i32 = arith.constant 0 : i32
    %c0_i32_0 = arith.constant 0 : i32
    %c0_i32_1 = arith.constant 0 : i32
    return %c0_i32, %c0_i32_0 : i32, i32
  }
  func.func @transform_12(%arg0: i32) -> (i32, i32) {
    %c0_i32 = arith.constant 0 : i32
    %c0_i32_0 = arith.constant 0 : i32
    %c0_i32_1 = arith.constant 0 : i32
    return %c0_i32, %c0_i32_0 : i32, i32
  }
  func.func @transform_13(%arg0: i32) -> (i32, i32, i32) {
    %c0_i32 = arith.constant 0 : i32
    %c0_i32_0 = arith.constant 0 : i32
    %c0_i32_1 = arith.constant 0 : i32
    return %arg0, %c0_i32, %c0_i32_0 : i32, i32, i32
  }
}

</mosaic_0001>

<llo_original>
// kernel: tpu_custom_call.1
$region0: #{tpu_custom_call.1}
  #allocation0 [shape = 'u32[]', space=smem, size = 0x4, offset = 0x4, fixed_abs, tag = 'smem constant byte address 0x4 - core index']
  #allocation1 [shape = 'u32[144,128]{1,0:T(1,128)}', space=vmem, size = 0x12000, scoped, tag = 'internal scratch']
  %s0 = inlined_call_operand.vmem [shape: bf16[2,18,18,64], index: 0, kind: input, shape index: {}]
  %s1 = inlined_call_operand.vmem [shape: f32[2,256,32], index: 1, kind: input, shape index: {}]
  %s2 = inlined_call_operand.vmem [shape: f32[2,256,32], index: 2, kind: input, shape index: {}]
  %s3 = inlined_call_operand.vmem [shape: bf16[576,128], index: 3, kind: input, shape index: {}]
  %s4 = inlined_call_operand.vmem [shape: f32[1,128], index: 4, kind: input, shape index: {}]
  %s5 = inlined_call_operand.vmem [shape: f32[1,128], index: 5, kind: input, shape index: {}]
  %s6 = inlined_call_operand.vmem [shape: f32[1,128], index: 6, kind: input, shape index: {}]
  %s7 = inlined_call_operand.vmem [shape: bf16[64,176], index: 7, kind: input, shape index: {}]
  %s8 = inlined_call_operand.vmem [shape: f32[1,176], index: 8, kind: input, shape index: {}]
  %s9 = inlined_call_operand.vmem [shape: bf16[64,96], index: 9, kind: input, shape index: {}]
  %s10 = inlined_call_operand.vmem [shape: bf16[32,96], index: 10, kind: input, shape index: {}]
  %s11 = inlined_call_operand.vmem [shape: f32[1,64], index: 11, kind: input, shape index: {}]
  %s12 = inlined_call_operand.vmem [shape: f32[1,96], index: 12, kind: input, shape index: {}]
  %s13 = inlined_call_operand.hbm [shape: f32[2,256,128], index: 13, kind: output, shape index: {}]
  %s14 = sld [smem:[#allocation0]]
  $region85: #{tpu_custom_call.1} parent=0
    _
  %s16 = ssub.s32 1, %s14
  %s17 = scalar_select 0, %s16, %s14
  $region1: #{tpu_custom_call.1} parent=0
    #allocation2 [shape = 'u8[262144]{0}', space=vmem, size = 0x40000, scoped, tag = 'output window, operand 0']
    #allocation3 [shape = 's32[2]{0}', space=sflag, size = 0x8, scoped, tag = 'scoped memory for tpu_custom_call.1']
    %18 = vsyncpa [#allocation3], 0
    %s19 = scalar_lea.sflag [#allocation3], 1
    %20 = vsyncpa %s19, 0
    loop: start=0, step=1, limit=4
    $region2: #{tpu_custom_call.1} parent=1 // loop_pre_header
      _
    $region3: #{tpu_custom_call.1} parent=1 // loop_header
      %s22 = sphi 0, %s26
      %p23 = scmp.ge.s32.totalorder %s22, 4
      %s32 = sphi 0, %s34
      %s35 = sphi 0, %s32
      %s36 = sphi 0, %s35
      %s52 = sphi 0, %s36
      %s58 = sphi 0, %s60
      %s61 = sphi 0, %s58
      %s62 = sphi 0, %s61
      %s78 = sphi 0, %s62
      %s84 = sphi 0, %s86
      %s87 = sphi 0, %s84
      %s88 = sphi 0, %s87
      %s104 = sphi 0, %s88
      %s108 = sphi 0, %s108
      %s110 = sphi 0, %s108
      %s111 = sphi 0, %s110
      %s125 = sphi 0, %s111
      %s129 = sphi 0, %s129
      %s131 = sphi 0, %s129
      %s132 = sphi 0, %s131
      %s146 = sphi 0, %s132
      %s150 = sphi 0, %s150
      %s152 = sphi 0, %s150
      %s153 = sphi 0, %s152
      %s167 = sphi 0, %s153
      %s171 = sphi 0, %s171
      %s173 = sphi 0, %s171
      %s174 = sphi 0, %s173
      %s188 = sphi 0, %s174
      %s192 = sphi 0, %s192
      %s194 = sphi 0, %s192
      %s195 = sphi 0, %s194
      %s209 = sphi 0, %s195
      %s213 = sphi 0, %s213
      %s215 = sphi 0, %s213
      %s216 = sphi 0, %s215
      %s230 = sphi 0, %s216
      %s234 = sphi 0, %s234
      %s236 = sphi 0, %s234
      %s237 = sphi 0, %s236
      %s251 = sphi 0, %s237
      %s255 = sphi 0, %s255
      %s257 = sphi 0, %s255
      %s258 = sphi 0, %s257
      %s272 = sphi 0, %s258
      %s276 = sphi 0, %s276
      %s278 = sphi 0, %s276
      %s279 = sphi 0, %s278
      %s293 = sphi 0, %s279
      %s297 = sphi 0, %s297
      %s299 = sphi 0, %s297
      %s300 = sphi 0, %s299
      %s314 = sphi 0, %s300
      %s320 = sphi 0, %s322
      %s323 = sphi 0, %s320
      %s324 = sphi 0, %s323
      %s340 = sphi 0, %s324
    $region4: #{tpu_custom_call.1} parent=1 // loop_header_branch
      %25 = sbr.rel (%p23) target = $region8
    $region5: #{tpu_custom_call.1} parent=1 // loop_body
      %s27 = ssub.s32 %s22, 1
      %s28 = ssub.s32 %s22, 2
      %s29 = sadd.s32 %s22, 1
      %s30 = ssub.s32 %s22, %s29
      %p31 = scmp.eq.s32.totalorder %s30, 0
      %s33 = sadd.s32 %s32, 1
      %s34 = scalar_select %p31, %s32, %s33
      %p37 = pneg %p31
      %p38 = scmp.eq.s32.totalorder %s22, 1
      %p39 = por %p37, %p38
      %p40 = scmp.ne.s32.totalorder %s32, %s35
      %p41 = scmp.eq.s32.totalorder %s22, 0
      %p42 = por %p40, %p41
      %p43 = scmp.ne.s32.totalorder %s32, %s35
      %p44 = scmp.eq.s32.totalorder %s27, 1
      %p45 = por %p43, %p44
      %p46 = scmp.ne.s32.totalorder %s35, %s36
      %p47 = scmp.eq.s32.totalorder %s27, 0
      %p48 = por %p46, %p47
      %p49 = scmp.ne.s32.totalorder %s35, %s36
      %p50 = scmp.eq.s32.totalorder %s28, 1
      %p51 = por %p49, %p50
      %p53 = scmp.ne.s32.totalorder %s36, %s52
      %p54 = scmp.eq.s32.totalorder %s28, 0
      %p55 = por %p53, %p54
      %s56 = ssub.s32 %s22, %s29
      %p57 = scmp.eq.s32.totalorder %s56, 0
      %s59 = sadd.s32 %s58, 1
      %s60 = scalar_select %p57, %s58, %s59
      %p63 = pneg %p57
      %p64 = scmp.eq.s32.totalorder %s22, 1
      %p65 = por %p63, %p64
      %p66 = scmp.ne.s32.totalorder %s58, %s61
      %p67 = scmp.eq.s32.totalorder %s22, 0
      %p68 = por %p66, %p67
      %p69 = scmp.ne.s32.totalorder %s58, %s61
      %p70 = scmp.eq.s32.totalorder %s27, 1
      %p71 = por %p69, %p70
      %p72 = scmp.ne.s32.totalorder %s61, %s62
      %p73 = scmp.eq.s32.totalorder %s27, 0
      %p74 = por %p72, %p73
      %p75 = scmp.ne.s32.totalorder %s61, %s62
      %p76 = scmp.eq.s32.totalorder %s28, 1
      %p77 = por %p75, %p76
      %p79 = scmp.ne.s32.totalorder %s62, %s78
      %p80 = scmp.eq.s32.totalorder %s28, 0
      %p81 = por %p79, %p80
      %s82 = ssub.s32 %s22, %s29
      %p83 = scmp.eq.s32.totalorder %s82, 0
      %s85 = sadd.s32 %s84, 1
      %s86 = scalar_select %p83, %s84, %s85
      %p89 = pneg %p83
      %p90 = scmp.eq.s32.totalorder %s22, 1
      %p91 = por %p89, %p90
      %p92 = scmp.ne.s32.totalorder %s84, %s87
      %p93 = scmp.eq.s32.totalorder %s22, 0
      %p94 = por %p92, %p93
      %p95 = scmp.ne.s32.totalorder %s84, %s87
      %p96 = scmp.eq.s32.totalorder %s27, 1
      %p97 = por %p95, %p96
      %p98 = scmp.ne.s32.totalorder %s87, %s88
      %p99 = scmp.eq.s32.totalorder %s27, 0
      %p100 = por %p98, %p99
      %p101 = scmp.ne.s32.totalorder %s87, %s88
      %p102 = scmp.eq.s32.totalorder %s28, 1
      %p103 = por %p101, %p102
      %p105 = scmp.ne.s32.totalorder %s88, %s104
      %p106 = scmp.eq.s32.totalorder %s28, 0
      %p107 = por %p105, %p106
      %s109 = sadd.s32 %s108, 1
      %p112 = scmp.eq.s32.totalorder %s22, 1
      %p113 = scmp.ne.s32.totalorder %s108, %s110
      %p114 = scmp.eq.s32.totalorder %s22, 0
      %p115 = por %p113, %p114
      %p116 = scmp.ne.s32.totalorder %s108, %s110
      %p117 = scmp.eq.s32.totalorder %s27, 1
      %p118 = por %p116, %p117
      %p119 = scmp.ne.s32.totalorder %s110, %s111
      %p120 = scmp.eq.s32.totalorder %s27, 0
      %p121 = por %p119, %p120
      %p122 = scmp.ne.s32.totalorder %s110, %s111
      %p123 = scmp.eq.s32.totalorder %s28, 1
      %p124 = por %p122, %p123
      %p126 = scmp.ne.s32.totalorder %s111, %s125
      %p127 = scmp.eq.s32.totalorder %s28, 0
      %p128 = por %p126, %p127
      %s130 = sadd.s32 %s129, 1
      %p133 = scmp.eq.s32.totalorder %s22, 1
      %p134 = scmp.ne.s32.totalorder %s129, %s131
      %p135 = scmp.eq.s32.totalorder %s22, 0
      %p136 = por %p134, %p135
      %p137 = scmp.ne.s32.totalorder %s129, %s131
      %p138 = scmp.eq.s32.totalorder %s27, 1
      %p139 = por %p137, %p138
      %p140 = scmp.ne.s32.totalorder %s131, %s132
      %p141 = scmp.eq.s32.totalorder %s27, 0
      %p142 = por %p140, %p141
      %p143 = scmp.ne.s32.totalorder %s131, %s132
      %p144 = scmp.eq.s32.totalorder %s28, 1
      %p145 = por %p143, %p144
      %p147 = scmp.ne.s32.totalorder %s132, %s146
      %p148 = scmp.eq.s32.totalorder %s28, 0
      %p149 = por %p147, %p148
      %s151 = sadd.s32 %s150, 1
      %p154 = scmp.eq.s32.totalorder %s22, 1
      %p155 = scmp.ne.s32.totalorder %s150, %s152
      %p156 = scmp.eq.s32.totalorder %s22, 0
      %p157 = por %p155, %p156
      %p158 = scmp.ne.s32.totalorder %s150, %s152
      %p159 = scmp.eq.s32.totalorder %s27, 1
      %p160 = por %p158, %p159
      %p161 = scmp.ne.s32.totalorder %s152, %s153
      %p162 = scmp.eq.s32.totalorder %s27, 0
      %p163 = por %p161, %p162
      %p164 = scmp.ne.s32.totalorder %s152, %s153
      %p165 = scmp.eq.s32.totalorder %s28, 1
      %p166 = por %p164, %p165
      %p168 = scmp.ne.s32.totalorder %s153, %s167
      %p169 = scmp.eq.s32.totalorder %s28, 0
      %p170 = por %p168, %p169
      %s172 = sadd.s32 %s171, 1
      %p175 = scmp.eq.s32.totalorder %s22, 1
      %p176 = scmp.ne.s32.totalorder %s171, %s173
      %p177 = scmp.eq.s32.totalorder %s22, 0
      %p178 = por %p176, %p177
      %p179 = scmp.ne.s32.totalorder %s171, %s173
      %p180 = scmp.eq.s32.totalorder %s27, 1
      %p181 = por %p179, %p180
      %p182 = scmp.ne.s32.totalorder %s173, %s174
      %p183 = scmp.eq.s32.totalorder %s27, 0
      %p184 = por %p182, %p183
      %p185 = scmp.ne.s32.totalorder %s173, %s174
      %p186 = scmp.eq.s32.totalorder %s28, 1
      %p187 = por %p185, %p186
      %p189 = scmp.ne.s32.totalorder %s174, %s188
      %p190 = scmp.eq.s32.totalorder %s28, 0
      %p191 = por %p189, %p190
      %s193 = sadd.s32 %s192, 1
      %p196 = scmp.eq.s32.totalorder %s22, 1
      %p197 = scmp.ne.s32.totalorder %s192, %s194
      %p198 = scmp.eq.s32.totalorder %s22, 0
      %p199 = por %p197, %p198
      %p200 = scmp.ne.s32.totalorder %s192, %s194
      %p201 = scmp.eq.s32.totalorder %s27, 1
      %p202 = por %p200, %p201
      %p203 = scmp.ne.s32.totalorder %s194, %s195
      %p204 = scmp.eq.s32.totalorder %s27, 0
      %p205 = por %p203, %p204
      %p206 = scmp.ne.s32.totalorder %s194, %s195
      %p207 = scmp.eq.s32.totalorder %s28, 1
      %p208 = por %p206, %p207
      %p210 = scmp.ne.s32.totalorder %s195, %s209
      %p211 = scmp.eq.s32.totalorder %s28, 0
      %p212 = por %p210, %p211
      %s214 = sadd.s32 %s213, 1
      %p217 = scmp.eq.s32.totalorder %s22, 1
      %p218 = scmp.ne.s32.totalorder %s213, %s215
      %p219 = scmp.eq.s32.totalorder %s22, 0
      %p220 = por %p218, %p219
      %p221 = scmp.ne.s32.totalorder %s213, %s215
      %p222 = scmp.eq.s32.totalorder %s27, 1
      %p223 = por %p221, %p222
      %p224 = scmp.ne.s32.totalorder %s215, %s216
      %p225 = scmp.eq.s32.totalorder %s27, 0
      %p226 = por %p224, %p225
      %p227 = scmp.ne.s32.totalorder %s215, %s216
      %p228 = scmp.eq.s32.totalorder %s28, 1
      %p229 = por %p227, %p228
      %p231 = scmp.ne.s32.totalorder %s216, %s230
      %p232 = scmp.eq.s32.totalorder %s28, 0
      %p233 = por %p231, %p232
      %s235 = sadd.s32 %s234, 1
      %p238 = scmp.eq.s32.totalorder %s22, 1
      %p239 = scmp.ne.s32.totalorder %s234, %s236
      %p240 = scmp.eq.s32.totalorder %s22, 0
      %p241 = por %p239, %p240
      %p242 = scmp.ne.s32.totalorder %s234, %s236
      %p243 = scmp.eq.s32.totalorder %s27, 1
      %p244 = por %p242, %p243
      %p245 = scmp.ne.s32.totalorder %s236, %s237
      %p246 = scmp.eq.s32.totalorder %s27, 0
      %p247 = por %p245, %p246
      %p248 = scmp.ne.s32.totalorder %s236, %s237
      %p249 = scmp.eq.s32.totalorder %s28, 1
      %p250 = por %p248, %p249
      %p252 = scmp.ne.s32.totalorder %s237, %s251
      %p253 = scmp.eq.s32.totalorder %s28, 0
      %p254 = por %p252, %p253
      %s256 = sadd.s32 %s255, 1
      %p259 = scmp.eq.s32.totalorder %s22, 1
      %p260 = scmp.ne.s32.totalorder %s255, %s257
      %p261 = scmp.eq.s32.totalorder %s22, 0
      %p262 = por %p260, %p261
      %p263 = scmp.ne.s32.totalorder %s255, %s257
      %p264 = scmp.eq.s32.totalorder %s27, 1
      %p265 = por %p263, %p264
      %p266 = scmp.ne.s32.totalorder %s257, %s258
      %p267 = scmp.eq.s32.totalorder %s27, 0
      %p268 = por %p266, %p267
      %p269 = scmp.ne.s32.totalorder %s257, %s258
      %p270 = scmp.eq.s32.totalorder %s28, 1
      %p271 = por %p269, %p270
      %p273 = scmp.ne.s32.totalorder %s258, %s272
      %p274 = scmp.eq.s32.totalorder %s28, 0
      %p275 = por %p273, %p274
      %s277 = sadd.s32 %s276, 1
      %p280 = scmp.eq.s32.totalorder %s22, 1
      %p281 = scmp.ne.s32.totalorder %s276, %s278
      %p282 = scmp.eq.s32.totalorder %s22, 0
      %p283 = por %p281, %p282
      %p284 = scmp.ne.s32.totalorder %s276, %s278
      %p285 = scmp.eq.s32.totalorder %s27, 1
      %p286 = por %p284, %p285
      %p287 = scmp.ne.s32.totalorder %s278, %s279
      %p288 = scmp.eq.s32.totalorder %s27, 0
      %p289 = por %p287, %p288
      %p290 = scmp.ne.s32.totalorder %s278, %s279
      %p291 = scmp.eq.s32.totalorder %s28, 1
      %p292 = por %p290, %p291
      %p294 = scmp.ne.s32.totalorder %s279, %s293
      %p295 = scmp.eq.s32.totalorder %s28, 0
      %p296 = por %p294, %p295
      %s298 = sadd.s32 %s297, 1
      %p301 = scmp.eq.s32.totalorder %s22, 1
      %p302 = scmp.ne.s32.totalorder %s297, %s299
      %p303 = scmp.eq.s32.totalorder %s22, 0
      %p304 = por %p302, %p303
      %p305 = scmp.ne.s32.totalorder %s297, %s299
      %p306 = scmp.eq.s32.totalorder %s27, 1
      %p307 = por %p305, %p306
      %p308 = scmp.ne.s32.totalorder %s299, %s300
      %p309 = scmp.eq.s32.totalorder %s27, 0
      %p310 = por %p308, %p309
      %p311 = scmp.ne.s32.totalorder %s299, %s300
      %p312 = scmp.eq.s32.totalorder %s28, 1
      %p313 = por %p311, %p312
      %p315 = scmp.ne.s32.totalorder %s300, %s314
      %p316 = scmp.eq.s32.totalorder %s28, 0
      %p317 = por %p315, %p316
      %s318 = ssub.s32 %s22, %s29
      %p319 = scmp.eq.s32.totalorder %s318, 0
      %s321 = sadd.s32 %s320, 1
      %s322 = scalar_select %p319, %s320, %s321
      %p325 = pneg %p319
      %p326 = scmp.eq.s32.totalorder %s22, 1
      %p327 = por %p325, %p326
      %p328 = scmp.ne.s32.totalorder %s320, %s323
      %p329 = scmp.eq.s32.totalorder %s22, 0
      %p330 = por %p328, %p329
      %p331 = scmp.ne.s32.totalorder %s320, %s323
      %p332 = scmp.eq.s32.totalorder %s27, 1
      %p333 = por %p331, %p332
      %p334 = scmp.ne.s32.totalorder %s323, %s324
      %p335 = scmp.eq.s32.totalorder %s27, 0
      %p336 = por %p334, %p335
      %p337 = scmp.ne.s32.totalorder %s323, %s324
      %p338 = scmp.eq.s32.totalorder %s28, 1
      %p339 = por %p337, %p338
      %p341 = scmp.ne.s32.totalorder %s324, %s340
      %p342 = scmp.eq.s32.totalorder %s28, 0
      %p343 = por %p341, %p342
      %p344 = scmp.le.s32.totalorder 1, %s22
      %p345 = scmp.lt.s32.totalorder %s22, 3
      %p346 = pnand %p344, %p345
      %p347 = pneg %p346
      // Predicated region
      $region9: #{tpu_custom_call.1} parent=5 // pred_check
        _
      $region10: #{tpu_custom_call.1} parent=5 // pred_check_branch
        %349 = sbr.rel (%p346) target = $region12
      $region11: #{tpu_custom_call.1} parent=5 // pred_region
        %s350 = ssub.s32 %s22, 1
        // Predicated region
        $region13: #{tpu_custom_call.1} parent=11 // pred_check
          %p351 = pneg %p121
        $region14: #{tpu_custom_call.1} parent=11 // pred_check_branch
          %353 = sbr.rel (%p351) target = $region16
        $region15: #{tpu_custom_call.1} parent=11 // pred_region
          _
        $region16: #{tpu_custom_call.1} parent=11 // pred_fallthru
          _
        // Predicated region
        $region17: #{tpu_custom_call.1} parent=11 // pred_check
          %p354 = pneg %p142
        $region18: #{tpu_custom_call.1} parent=11 // pred_check_branch
          %356 = sbr.rel (%p354) target = $region20
        $region19: #{tpu_custom_call.1} parent=11 // pred_region
          _
        $region20: #{tpu_custom_call.1} parent=11 // pred_fallthru
          _
        // Predicated region
        $region21: #{tpu_custom_call.1} parent=11 // pred_check
          %p357 = pneg %p163
        $region22: #{tpu_custom_call.1} parent=11 // pred_check_branch
          %359 = sbr.rel (%p357) target = $region24
        $region23: #{tpu_custom_call.1} parent=11 // pred_region
          _
        $region24: #{tpu_custom_call.1} parent=11 // pred_fallthru
          _
        // Predicated region
        $region25: #{tpu_custom_call.1} parent=11 // pred_check
          %p360 = pneg %p184
        $region26: #{tpu_custom_call.1} parent=11 // pred_check_branch
          %362 = sbr.rel (%p360) target = $region28
        $region27: #{tpu_custom_call.1} parent=11 // pred_region
          _
        $region28: #{tpu_custom_call.1} parent=11 // pred_fallthru
          _
        // Predicated region
        $region29: #{tpu_custom_call.1} parent=11 // pred_check
          %p363 = pneg %p205
        $region30: #{tpu_custom_call.1} parent=11 // pred_check_branch
          %365 = sbr.rel (%p363) target = $region32
        $region31: #{tpu_custom_call.1} parent=11 // pred_region
          _
        $region32: #{tpu_custom_call.1} parent=11 // pred_fallthru
          _
        // Predicated region
        $region33: #{tpu_custom_call.1} parent=11 // pred_check
          %p366 = pneg %p226
        $region34: #{tpu_custom_call.1} parent=11 // pred_check_branch
          %368 = sbr.rel (%p366) target = $region36
        $region35: #{tpu_custom_call.1} parent=11 // pred_region
          _
        $region36: #{tpu_custom_call.1} parent=11 // pred_fallthru
          _
        // Predicated region
        $region37: #{tpu_custom_call.1} parent=11 // pred_check
          %p369 = pneg %p247
        $region38: #{tpu_custom_call.1} parent=11 // pred_check_branch
          %371 = sbr.rel (%p369) target = $region40
        $region39: #{tpu_custom_call.1} parent=11 // pred_region
          _
        $region40: #{tpu_custom_call.1} parent=11 // pred_fallthru
          _
        // Predicated region
        $region41: #{tpu_custom_call.1} parent=11 // pred_check
          %p372 = pneg %p268
        $region42: #{tpu_custom_call.1} parent=11 // pred_check_branch
          %374 = sbr.rel (%p372) target = $region44
        $region43: #{tpu_custom_call.1} parent=11 // pred_region
          _
        $region44: #{tpu_custom_call.1} parent=11 // pred_fallthru
          _
        // Predicated region
        $region45: #{tpu_custom_call.1} parent=11 // pred_check
          %p375 = pneg %p289
        $region46: #{tpu_custom_call.1} parent=11 // pred_check_branch
          %377 = sbr.rel (%p375) target = $region48
        $region47: #{tpu_custom_call.1} parent=11 // pred_region
          _
        $region48: #{tpu_custom_call.1} parent=11 // pred_fallthru
          _
        // Predicated region
        $region49: #{tpu_custom_call.1} parent=11 // pred_check
          %p378 = pneg %p310
        $region50: #{tpu_custom_call.1} parent=11 // pred_check_branch
          %380 = sbr.rel (%p378) target = $region52
        $region51: #{tpu_custom_call.1} parent=11 // pred_region
          _
        $region52: #{tpu_custom_call.1} parent=11 // pred_fallthru
          _
      $region12: #{tpu_custom_call.1} parent=5 // pred_fallthru
        _
      %p381 = scmp.lt.s32.totalorder %s22, 2
      // Predicated region
      $region53: #{tpu_custom_call.1} parent=5 // pred_check
        %p382 = pneg %p381
      $region54: #{tpu_custom_call.1} parent=5 // pred_check_branch
        %384 = sbr.rel (%p382) target = $region56
      $region55: #{tpu_custom_call.1} parent=5 // pred_region
        // Predicated region
        $region57: #{tpu_custom_call.1} parent=55 // pred_check
          %p385 = pneg %p42
        $region58: #{tpu_custom_call.1} parent=55 // pred_check_branch
          %387 = sbr.rel (%p385) target = $region60
        $region59: #{tpu_custom_call.1} parent=55 // pred_region
          %p388 = scmp.lt.s32.totalorder %s22, 1
          %s389 = scalar_select %p388, %s22, 1
          %s390 = smul.addr %s389, 54
          %s391 = smul.addr %s390, 4
          %s392 = scalar_lea.vmem %s0, %s391
        $region60: #{tpu_custom_call.1} parent=55 // pred_fallthru
          _
        // Predicated region
        $region61: #{tpu_custom_call.1} parent=55 // pred_check
          %p393 = pneg %p68
        $region62: #{tpu_custom_call.1} parent=55 // pred_check_branch
          %395 = sbr.rel (%p393) target = $region64
        $region63: #{tpu_custom_call.1} parent=55 // pred_region
          %p396 = scmp.lt.s32.totalorder %s22, 1
          %s397 = scalar_select %p396, %s22, 1
          %s398 = smul.addr %s397, 32
          %s399 = smul.addr %s398, 8
          %s400 = scalar_lea.vmem %s1, %s399
        $region64: #{tpu_custom_call.1} parent=55 // pred_fallthru
          _
        // Predicated region
        $region65: #{tpu_custom_call.1} parent=55 // pred_check
          %p401 = pneg %p94
        $region66: #{tpu_custom_call.1} parent=55 // pred_check_branch
          %403 = sbr.rel (%p401) target = $region68
        $region67: #{tpu_custom_call.1} parent=55 // pred_region
          %p404 = scmp.lt.s32.totalorder %s22, 1
          %s405 = scalar_select %p404, %s22, 1
          %s406 = smul.addr %s405, 32
          %s407 = smul.addr %s406, 8
          %s408 = scalar_lea.vmem %s2, %s407
        $region68: #{tpu_custom_call.1} parent=55 // pred_fallthru
          _
      $region56: #{tpu_custom_call.1} parent=5 // pred_fallthru
        _
      %p409 = scmp.le.s32.totalorder 1, %s22
      %p410 = scmp.lt.s32.totalorder %s22, 3
      %p411 = pnand %p409, %p410
      %p412 = pneg %p411
      // Predicated region
      $region69: #{tpu_custom_call.1} parent=5 // pred_check
        _
      $region70: #{tpu_custom_call.1} parent=5 // pred_check_branch
        %414 = sbr.rel (%p411) target = $region72
      $region71: #{tpu_custom_call.1} parent=5 // pred_region
        %s415 = ssub.s32 %s22, 1
        %p416 = scmp.lt.s32.totalorder %s27, 1
        %s417 = scalar_select %p416, %s27, 1
        %s418 = smul.addr %s417, 54
        %s419 = smul.addr %s418, 4
        %s420 = scalar_lea.vmem %s0, %s419
        %p421 = pneg %p48
        %p422 = pneg %p45
        %p423 = scmp.lt.s32.totalorder %s27, 1
        %s424 = scalar_select %p423, %s27, 1
        %s425 = smul.addr %s424, 32
        %s426 = smul.addr %s425, 8
        %s427 = scalar_lea.vmem %s1, %s426
        %p428 = pneg %p74
        %p429 = pneg %p71
        %p430 = scmp.lt.s32.totalorder %s27, 1
        %s431 = scalar_select %p430, %s27, 1
        %s432 = smul.addr %s431, 32
        %s433 = smul.addr %s432, 8
        %s434 = scalar_lea.vmem %s2, %s433
        %p435 = pneg %p100
        %p436 = pneg %p97
        %p437 = pneg %p121
        %p438 = pneg %p118
        %p439 = pneg %p142
        %p440 = pneg %p139
        %p441 = pneg %p163
        %p442 = pneg %p160
        %p443 = pneg %p184
        %p444 = pneg %p181
        %p445 = pneg %p205
        %p446 = pneg %p202
        %p447 = pneg %p226
        %p448 = pneg %p223
        %p449 = pneg %p247
        %p450 = pneg %p244
        %p451 = pneg %p268
        %p452 = pneg %p265
        %p453 = pneg %p289
        %p454 = pneg %p286
        %p455 = pneg %p310
        %p456 = pneg %p307
        %p457 = pneg %p336
        %p458 = pneg %p333
        %s459 = sand.u32 %s323, 1
        %s460 = scalar_lea.sflag [#allocation3], %s459
        %s461 = sand.u32 %s323, 1
        %s462 = smul.addr %s461, 256
        %s463 = scalar_lea.vmem [#allocation2], %s462
        %p464 = scmp.lt.s32.totalorder %s27, 1
        %s465 = scalar_select %p464, %s27, 1
        %s466 = smul.addr %s465, 54
        %s467 = smul.addr %s466, 4
        %s468 = scalar_lea.vmem %s0, %s467
        %p469 = scmp.lt.s32.totalorder %s27, 1
        %s470 = scalar_select %p469, %s27, 1
        %s471 = smul.addr %s470, 32
        %s472 = smul.addr %s471, 8
        %s473 = scalar_lea.vmem %s1, %s472
        %p474 = scmp.lt.s32.totalorder %s27, 1
        %s475 = scalar_select %p474, %s27, 1
        %s476 = smul.addr %s475, 32
        %s477 = smul.addr %s476, 8
        %s478 = scalar_lea.vmem %s2, %s477
        %v480 = vld [vmem:[%s468] sm:$0xf]
        %v481 = vld [vmem:[%s468 + $0x4] sm:$0xf]
        %v482 = vld [vmem:[%s468 + $0xc] sm:$0xf]
        %v483 = vld [vmem:[%s468 + $0x10] sm:$0xf]
        %v484 = vld [vmem:[%s468 + $0x18] sm:$0xf]
        %v485 = vld [vmem:[%s468 + $0x1c] sm:$0xf]
        %v486 = vld [vmem:[%s468 + $0x24] sm:$0xf]
        %v487 = vld [vmem:[%s468 + $0x28] sm:$0xf]
        %v488 = vld [vmem:[%s468 + $0x30] sm:$0xf]
        %v489 = vld [vmem:[%s468 + $0x34] sm:$0xf]
        %v490 = vld [vmem:[%s468 + $0x3c] sm:$0xf]
        %v491 = vld [vmem:[%s468 + $0x40] sm:$0xf]
        %v492 = vld [vmem:[%s468 + $0x48] sm:$0xf]
        %v493 = vld [vmem:[%s468 + $0x4c] sm:$0xf]
        %v494 = vld [vmem:[%s468 + $0x54] sm:$0xf]
        %v495 = vld [vmem:[%s468 + $0x58] sm:$0xf]
        %v496 = vld [vmem:[%s468 + $0x60] sm:$0xf]
        %v497 = vld [vmem:[%s468 + $0x64] sm:$0xf]
        %v498 = vld [vmem:[%s468 + $0x6c] sm:$0xf]
        %v499 = vld [vmem:[%s468 + $0x70] sm:$0xf]
        %v500 = vld [vmem:[%s468 + $0x78] sm:$0xf]
        %v501 = vld [vmem:[%s468 + $0x7c] sm:$0xf]
        %v502 = vld [vmem:[%s468 + $0x84] sm:$0xf]
        %v503 = vld [vmem:[%s468 + $0x88] sm:$0xf]
        %v504 = vld [vmem:[%s468 + $0x90] sm:$0xf]
        %v505 = vld [vmem:[%s468 + $0x94] sm:$0xf]
        %v506 = vld [vmem:[%s468 + $0x9c] sm:$0xf]
        %v507 = vld [vmem:[%s468 + $0xa0] sm:$0xf]
        %v508 = vld [vmem:[%s468 + $0xa8] sm:$0xf]
        %v509 = vld [vmem:[%s468 + $0xac] sm:$0xf]
        %v510 = vld [vmem:[%s468 + $0xb4] sm:$0xf]
        %v511 = vld [vmem:[%s468 + $0xb8] sm:$0xf]
        %v512 = vld [vmem:[%s3] sm:$0xf]
        %v513 = vld [vmem:[%s3 + $0x4] sm:$0xf]
        %v514 = vld [vmem:[%s3 + $0x8] sm:$0xf]
        %v515 = vld [vmem:[%s3 + $0xc] sm:$0xf]
        %v516 = vld [vmem:[%s3 + $0x10] sm:$0xf]
        %v517 = vld [vmem:[%s3 + $0x14] sm:$0xf]
        %v518 = vld [vmem:[%s3 + $0x18] sm:$0xf]
        %v519 = vld [vmem:[%s3 + $0x1c] sm:$0xf]
        %v520 = vld [vmem:[%s468 + $0x8] sm:$0x1]
        %v521 = vld [vmem:[%s468 + $0x14] sm:$0x1]
        %v522 = vld [vmem:[%s468 + $0x20] sm:$0x1]
        %v523 = vld [vmem:[%s468 + $0x2c] sm:$0x1]
        %v524 = vld [vmem:[%s468 + $0x38] sm:$0x1]
        %v525 = vld [vmem:[%s468 + $0x44] sm:$0x1]
        %v526 = vld [vmem:[%s468 + $0x50] sm:$0x1]
        %v527 = vld [vmem:[%s468 + $0x5c] sm:$0x1]
        %v528 = vld [vmem:[%s468 + $0x68] sm:$0x1]
        %v529 = vld [vmem:[%s468 + $0x74] sm:$0x1]
        %v530 = vld [vmem:[%s468 + $0x80] sm:$0x1]
        %v531 = vld [vmem:[%s468 + $0x8c] sm:$0x1]
        %v532 = vld [vmem:[%s468 + $0x98] sm:$0x1]
        %v533 = vld [vmem:[%s468 + $0xa4] sm:$0x1]
        %v534 = vld [vmem:[%s468 + $0xb0] sm:$0x1]
        %v535 = vld [vmem:[%s468 + $0xbc] sm:$0x1]
        %vm536 = vsmask.f32 3328
        %vm537 = vsmask.f32 7440
        %vm538 = vmor %vm536, %vm537
        %v540 = vshrl.u32 %v480, 16
        %v542 = vrot.slane %v540, 4
        %v543 = vshll.u32 %v480, 16
        %v545 = vrot.slane %v543, 5
        %v546 = vor.u32 %v542, %v545
        %v547 = vrot.slane %v546, 4
        %v549 = vshll.u32 %v481, 16
        %v551 = vrot.slane %v549, 5
        %v552 = vsel %vm538, %v547, %v551
        %v553 = vshrl.u32 %v481, 16
        %v555 = vrot.slane %v553, 4
        %v556 = vor.u32 %v555, %v551
        %v557 = vrot.slane %v556, 4
        %v559 = vshll.u32 %v520, 16
        %v561 = vrot.slane %v559, 5
        %v562 = vsel %vm538, %v557, %v561
        %v564 = vshrl.u32 %v482, 16
        %v566 = vrot.slane %v564, 4
        %v567 = vshll.u32 %v482, 16
        %v569 = vrot.slane %v567, 5
        %v570 = vor.u32 %v566, %v569
        %v571 = vrot.slane %v570, 4
        %v573 = vshll.u32 %v483, 16
        %v575 = vrot.slane %v573, 5
        %v576 = vsel %vm538, %v571, %v575
        %v577 = vshrl.u32 %v483, 16
        %v579 = vrot.slane %v577, 4
        %v580 = vor.u32 %v579, %v575
        %v581 = vrot.slane %v580, 4
        %v583 = vshll.u32 %v521, 16
        %v585 = vrot.slane %v583, 5
        %v586 = vsel %vm538, %v581, %v585
        %v588 = vshrl.u32 %v484, 16
        %v590 = vrot.slane %v588, 4
        %v591 = vshll.u32 %v484, 16
        %v593 = vrot.slane %v591, 5
        %v594 = vor.u32 %v590, %v593
        %v595 = vrot.slane %v594, 4
        %v597 = vshll.u32 %v485, 16
        %v599 = vrot.slane %v597, 5
        %v600 = vsel %vm538, %v595, %v599
        %v601 = vshrl.u32 %v485, 16
        %v603 = vrot.slane %v601, 4
        %v604 = vor.u32 %v603, %v599
        %v605 = vrot.slane %v604, 4
        %v607 = vshll.u32 %v522, 16
        %v609 = vrot.slane %v607, 5
        %v610 = vsel %vm538, %v605, %v609
        %v612 = vshrl.u32 %v486, 16
        %v614 = vrot.slane %v612, 4
        %v615 = vshll.u32 %v486, 16
        %v617 = vrot.slane %v615, 5
        %v618 = vor.u32 %v614, %v617
        %v619 = vrot.slane %v618, 4
        %v621 = vshll.u32 %v487, 16
        %v623 = vrot.slane %v621, 5
        %v624 = vsel %vm538, %v619, %v623
        %v625 = vshrl.u32 %v487, 16
        %v627 = vrot.slane %v625, 4
        %v628 = vor.u32 %v627, %v623
        %v629 = vrot.slane %v628, 4
        %v631 = vshll.u32 %v523, 16
        %v633 = vrot.slane %v631, 5
        %v634 = vsel %vm538, %v629, %v633
        %v636 = vshrl.u32 %v488, 16
        %v638 = vrot.slane %v636, 4
        %v639 = vshll.u32 %v488, 16
        %v641 = vrot.slane %v639, 5
        %v642 = vor.u32 %v638, %v641
        %v643 = vrot.slane %v642, 4
        %v645 = vshll.u32 %v489, 16
        %v647 = vrot.slane %v645, 5
        %v648 = vsel %vm538, %v643, %v647
        %v649 = vshrl.u32 %v489, 16
        %v651 = vrot.slane %v649, 4
        %v652 = vor.u32 %v651, %v647
        %v653 = vrot.slane %v652, 4
        %v655 = vshll.u32 %v524, 16
        %v657 = vrot.slane %v655, 5
        %v658 = vsel %vm538, %v653, %v657
        %v660 = vshrl.u32 %v490, 16
        %v662 = vrot.slane %v660, 4
        %v663 = vshll.u32 %v490, 16
        %v665 = vrot.slane %v663, 5
        %v666 = vor.u32 %v662, %v665
        %v667 = vrot.slane %v666, 4
        %v669 = vshll.u32 %v491, 16
        %v671 = vrot.slane %v669, 5
        %v672 = vsel %vm538, %v667, %v671
        %v673 = vshrl.u32 %v491, 16
        %v675 = vrot.slane %v673, 4
        %v676 = vor.u32 %v675, %v671
        %v677 = vrot.slane %v676, 4
        %v679 = vshll.u32 %v525, 16
        %v681 = vrot.slane %v679, 5
        %v682 = vsel %vm538, %v677, %v681
        %v684 = vshrl.u32 %v492, 16
        %v686 = vrot.slane %v684, 4
        %v687 = vshll.u32 %v492, 16
        %v689 = vrot.slane %v687, 5
        %v690 = vor.u32 %v686, %v689
        %v691 = vrot.slane %v690, 4
        %v693 = vshll.u32 %v493, 16
        %v695 = vrot.slane %v693, 5
        %v696 = vsel %vm538, %v691, %v695
        %v697 = vshrl.u32 %v493, 16
        %v699 = vrot.slane %v697, 4
        %v700 = vor.u32 %v699, %v695
        %v701 = vrot.slane %v700, 4
        %v703 = vshll.u32 %v526, 16
        %v705 = vrot.slane %v703, 5
        %v706 = vsel %vm538, %v701, %v705
        %v708 = vshrl.u32 %v494, 16
        %v710 = vrot.slane %v708, 4
        %v711 = vshll.u32 %v494, 16
        %v713 = vrot.slane %v711, 5
        %v714 = vor.u32 %v710, %v713
        %v715 = vrot.slane %v714, 4
        %v717 = vshll.u32 %v495, 16
        %v719 = vrot.slane %v717, 5
        %v720 = vsel %vm538, %v715, %v719
        %v721 = vshrl.u32 %v495, 16
        %v723 = vrot.slane %v721, 4
        %v724 = vor.u32 %v723, %v719
        %v725 = vrot.slane %v724, 4
        %v727 = vshll.u32 %v527, 16
        %v729 = vrot.slane %v727, 5
        %v730 = vsel %vm538, %v725, %v729
        %v732 = vshrl.u32 %v496, 16
        %v734 = vrot.slane %v732, 4
        %v735 = vshll.u32 %v496, 16
        %v737 = vrot.slane %v735, 5
        %v738 = vor.u32 %v734, %v737
        %v739 = vrot.slane %v738, 4
        %v741 = vshll.u32 %v497, 16
        %v743 = vrot.slane %v741, 5
        %v744 = vsel %vm538, %v739, %v743
        %v745 = vshrl.u32 %v497, 16
        %v747 = vrot.slane %v745, 4
        %v748 = vor.u32 %v747, %v743
        %v749 = vrot.slane %v748, 4
        %v751 = vshll.u32 %v528, 16
        %v753 = vrot.slane %v751, 5
        %v754 = vsel %vm538, %v749, %v753
        %v756 = vshrl.u32 %v498, 16
        %v758 = vrot.slane %v756, 4
        %v759 = vshll.u32 %v498, 16
        %v761 = vrot.slane %v759, 5
        %v762 = vor.u32 %v758, %v761
        %v763 = vrot.slane %v762, 4
        %v765 = vshll.u32 %v499, 16
        %v767 = vrot.slane %v765, 5
        %v768 = vsel %vm538, %v763, %v767
        %v769 = vshrl.u32 %v499, 16
        %v771 = vrot.slane %v769, 4
        %v772 = vor.u32 %v771, %v767
        %v773 = vrot.slane %v772, 4
        %v775 = vshll.u32 %v529, 16
        %v777 = vrot.slane %v775, 5
        %v778 = vsel %vm538, %v773, %v777
        %v780 = vshrl.u32 %v500, 16
        %v782 = vrot.slane %v780, 4
        %v783 = vshll.u32 %v500, 16
        %v785 = vrot.slane %v783, 5
        %v786 = vor.u32 %v782, %v785
        %v787 = vrot.slane %v786, 4
        %v789 = vshll.u32 %v501, 16
        %v791 = vrot.slane %v789, 5
        %v792 = vsel %vm538, %v787, %v791
        %v793 = vshrl.u32 %v501, 16
        %v795 = vrot.slane %v793, 4
        %v796 = vor.u32 %v795, %v791
        %v797 = vrot.slane %v796, 4
        %v799 = vshll.u32 %v530, 16
        %v801 = vrot.slane %v799, 5
        %v802 = vsel %vm538, %v797, %v801
        %v804 = vshrl.u32 %v502, 16
        %v806 = vrot.slane %v804, 4
        %v807 = vshll.u32 %v502, 16
        %v809 = vrot.slane %v807, 5
        %v810 = vor.u32 %v806, %v809
        %v811 = vrot.slane %v810, 4
        %v813 = vshll.u32 %v503, 16
        %v815 = vrot.slane %v813, 5
        %v816 = vsel %vm538, %v811, %v815
        %v817 = vshrl.u32 %v503, 16
        %v819 = vrot.slane %v817, 4
        %v820 = vor.u32 %v819, %v815
        %v821 = vrot.slane %v820, 4
        %v823 = vshll.u32 %v531, 16
        %v825 = vrot.slane %v823, 5
        %v826 = vsel %vm538, %v821, %v825
        %v828 = vshrl.u32 %v504, 16
        %v830 = vrot.slane %v828, 4
        %v831 = vshll.u32 %v504, 16
        %v833 = vrot.slane %v831, 5
        %v834 = vor.u32 %v830, %v833
        %v835 = vrot.slane %v834, 4
        %v837 = vshll.u32 %v505, 16
        %v839 = vrot.slane %v837, 5
        %v840 = vsel %vm538, %v835, %v839
        %v841 = vshrl.u32 %v505, 16
        %v843 = vrot.slane %v841, 4
        %v844 = vor.u32 %v843, %v839
        %v845 = vrot.slane %v844, 4
        %v847 = vshll.u32 %v532, 16
        %v849 = vrot.slane %v847, 5
        %v850 = vsel %vm538, %v845, %v849
        %v852 = vshrl.u32 %v506, 16
        %v854 = vrot.slane %v852, 4
        %v855 = vshll.u32 %v506, 16
        %v857 = vrot.slane %v855, 5
        %v858 = vor.u32 %v854, %v857
        %v859 = vrot.slane %v858, 4
        %v861 = vshll.u32 %v507, 16
        %v863 = vrot.slane %v861, 5
        %v864 = vsel %vm538, %v859, %v863
        %v865 = vshrl.u32 %v507, 16
        %v867 = vrot.slane %v865, 4
        %v868 = vor.u32 %v867, %v863
        %v869 = vrot.slane %v868, 4
        %v871 = vshll.u32 %v533, 16
        %v873 = vrot.slane %v871, 5
        %v874 = vsel %vm538, %v869, %v873
        %v876 = vshrl.u32 %v508, 16
        %v878 = vrot.slane %v876, 4
        %v879 = vshll.u32 %v508, 16
        %v881 = vrot.slane %v879, 5
        %v882 = vor.u32 %v878, %v881
        %v883 = vrot.slane %v882, 4
        %v885 = vshll.u32 %v509, 16
        %v887 = vrot.slane %v885, 5
        %v888 = vsel %vm538, %v883, %v887
        %v889 = vshrl.u32 %v509, 16
        %v891 = vrot.slane %v889, 4
        %v892 = vor.u32 %v891, %v887
        %v893 = vrot.slane %v892, 4
        %v895 = vshll.u32 %v534, 16
        %v897 = vrot.slane %v895, 5
        %v898 = vsel %vm538, %v893, %v897
        %v900 = vshrl.u32 %v510, 16
        %v902 = vrot.slane %v900, 4
        %v903 = vshll.u32 %v510, 16
        %v905 = vrot.slane %v903, 5
        %v906 = vor.u32 %v902, %v905
        %v907 = vrot.slane %v906, 4
        %v909 = vshll.u32 %v511, 16
        %v911 = vrot.slane %v909, 5
        %v912 = vsel %vm538, %v907, %v911
        %v913 = vshrl.u32 %v511, 16
        %v915 = vrot.slane %v913, 4
        %v916 = vor.u32 %v915, %v911
        %v917 = vrot.slane %v916, 4
        %v919 = vshll.u32 %v535, 16
        %v921 = vrot.slane %v919, 5
        %v922 = vsel %vm538, %v917, %v921
        %v923 = vld [vmem:[%s3 + $0x20] sm:$0xf]
        %v924 = vld [vmem:[%s3 + $0x24] sm:$0xf]
        %v925 = vld [vmem:[%s3 + $0x28] sm:$0xf]
        %v926 = vld [vmem:[%s3 + $0x2c] sm:$0xf]
        %v927 = vld [vmem:[%s3 + $0x30] sm:$0xf]
        %v928 = vld [vmem:[%s3 + $0x34] sm:$0xf]
        %v929 = vld [vmem:[%s3 + $0x38] sm:$0xf]
        %v930 = vld [vmem:[%s3 + $0x3c] sm:$0xf]
        %v931 = vunpack.c.l.b16 %v552
        %v932 = vunpack.c.l.b16 %v562
        %v933 = vunpack.c.l.b16 %v576
        %v934 = vunpack.c.l.b16 %v586
        %v935 = vunpack.c.l.b16 %v600
        %v936 = vunpack.c.l.b16 %v610
        %v937 = vunpack.c.l.b16 %v624
        %v938 = vunpack.c.l.b16 %v634
        %v939 = vunpack.c.l.b16 %v648
        %v940 = vunpack.c.l.b16 %v658
        %v941 = vunpack.c.l.b16 %v672
        %v942 = vunpack.c.l.b16 %v682
        %v943 = vunpack.c.l.b16 %v696
        %v944 = vunpack.c.l.b16 %v706
        %v945 = vunpack.c.l.b16 %v720
        %v946 = vunpack.c.l.b16 %v730
        %v947 = vunpack.c.l.b16 %v744
        %v948 = vunpack.c.l.b16 %v754
        %v949 = vunpack.c.l.b16 %v768
        %v950 = vunpack.c.l.b16 %v778
        %v951 = vunpack.c.l.b16 %v792
        %v952 = vunpack.c.l.b16 %v802
        %v953 = vunpack.c.l.b16 %v816
        %v954 = vunpack.c.l.b16 %v826
        %v955 = vunpack.c.l.b16 %v840
        %v956 = vunpack.c.l.b16 %v850
        %v957 = vunpack.c.l.b16 %v864
        %v958 = vunpack.c.l.b16 %v874
        %v959 = vunpack.c.l.b16 %v888
        %v960 = vunpack.c.l.b16 %v898
        %v961 = vunpack.c.l.b16 %v912
        %v962 = vunpack.c.l.b16 %v922
        %v963 = vpack.c.b16 %v932, %v931
        %v964 = vpack.c.b16 %v934, %v933
        %v965 = vpack.c.b16 %v936, %v935
        %v966 = vpack.c.b16 %v938, %v937
        %v967 = vpack.c.b16 %v940, %v939
        %v968 = vpack.c.b16 %v942, %v941
        %v969 = vpack.c.b16 %v944, %v943
        %v970 = vpack.c.b16 %v946, %v945
        %v971 = vpack.c.b16 %v948, %v947
        %v972 = vpack.c.b16 %v950, %v949
        %v973 = vpack.c.b16 %v952, %v951
        %v974 = vpack.c.b16 %v954, %v953
        %v975 = vpack.c.b16 %v956, %v955
        %v976 = vpack.c.b16 %v958, %v957
        %v977 = vpack.c.b16 %v960, %v959
        %v978 = vpack.c.b16 %v962, %v961
        %v987 = vunpack.c.l.b16 %v923
        %v988 = vunpack.c.l.b16 %v924
        %v989 = vunpack.c.l.b16 %v925
        %v990 = vunpack.c.l.b16 %v926
        %v991 = vunpack.c.l.b16 %v927
        %v992 = vunpack.c.l.b16 %v928
        %v993 = vunpack.c.l.b16 %v929
        %v994 = vunpack.c.l.b16 %v930
        %v995 = vpack.c.b16 %v988, %v987
        %v996 = vpack.c.b16 %v990, %v989
        %v997 = vpack.c.b16 %v992, %v991
        %v998 = vpack.c.b16 %v994, %v993
        %vm1003 = vcmask 523264
        %v1005 = vsel %vm1003, %v963, 0
        %v1008 = vsel %vm1003, %v964, 0
        %v1011 = vsel %vm1003, %v965, 0
        %v1014 = vsel %vm1003, %v966, 0
        %v1017 = vsel %vm1003, %v967, 0
        %v1020 = vsel %vm1003, %v968, 0
        %v1023 = vsel %vm1003, %v969, 0
        %v1026 = vsel %vm1003, %v970, 0
        %v1029 = vsel %vm1003, %v971, 0
        %v1032 = vsel %vm1003, %v972, 0
        %v1035 = vsel %vm1003, %v973, 0
        %v1038 = vsel %vm1003, %v974, 0
        %v1041 = vsel %vm1003, %v975, 0
        %v1044 = vsel %vm1003, %v976, 0
        %v1047 = vsel %vm1003, %v977, 0
        %v1050 = vsel %vm1003, %v978, 0
        %1052 = vmatprep.subr.bf16.mxu0 0
        %1053 = vmatpush1.bf16.msra.mxu0 %v995
        %1054 = vmatprep.subr.bf16.mxu0 0
        %1055 = vmatpush1.bf16.msra.mxu0 %v996
        %1056 = vmatprep.subr.bf16.mxu0 0
        %1057 = vmatpush1.bf16.msra.mxu0 %v997
        %1058 = vmatprep.subr.bf16.mxu0 0
        %1059 = vmatpush1.bf16.msra.mxu0 %v998
        %1060 = vmatprep.subr.bf16.mxu0 0
        %1061 = vmatpush1.bf16.msra.mxu0 0
        %1062 = vmatprep.subr.bf16.mxu0 0
        %1063 = vmatpush1.bf16.msra.mxu0 0
        %1064 = vmatprep.subr.bf16.mxu0 0
        %1065 = vmatpush1.bf16.msra.mxu0 0
        %1066 = vmatprep.subr.bf16.mxu0 0
        %1067 = vmatpush1.bf16.msra.mxu0 0
        %1068 = vmatprep.subr.bf16.mxu0 0
        %1069 = vmatpush1.bf16.msra.mxu0 0
        %1070 = vmatprep.subr.bf16.mxu0 0
        %1071 = vmatpush1.bf16.msra.mxu0 0
        %1072 = vmatprep.subr.bf16.mxu0 0
        %1073 = vmatpush1.bf16.msra.mxu0 0
        %1074 = vmatprep.subr.bf16.mxu0 0
        %1075 = vmatpush1.bf16.msra.mxu0 0
        %1076 = vmatprep.subr.bf16.mxu0 0
        %1077 = vmatpush1.bf16.msra.mxu0 0
        %1078 = vmatprep.subr.bf16.mxu0 0
        %1079 = vmatpush1.bf16.msra.mxu0 0
        %1080 = vmatprep.subr.bf16.mxu0 0
        %1081 = vmatpush1.bf16.msra.mxu0 0
        %1082 = vmatprep.subr.bf16.mxu0 0
        %1083 = vmatpush1.bf16.msra.mxu0 0
        %1084 = vmatprep.mubr.bf16.mxu0 0
        %1085 = vmatmul.mubr.bf16.gmra.mrb[0].mxu0 %v1005
        %v1086 = vpop.f32.mrb[0].mxu0
        %v1087 = vadd.f32 0.0, %v1086
        %v1088 = vpop.f32.mrb[0].mxu0
        %v1089 = vpop.f32.mrb[0].mxu0
        %v1090 = vadd.f32 0.0, %v1089
        %v1091 = vpop.f32.mrb[0].mxu0
        %1092 = vmatprep.mubr.bf16.mxu0 0
        %1093 = vmatmul.mubr.bf16.gmra.mrb[0].mxu0 %v1008
        %v1094 = vpop.f32.mrb[0].mxu0
        %v1095 = vadd.f32 0.0, %v1094
        %v1096 = vpop.f32.mrb[0].mxu0
        %v1097 = vpop.f32.mrb[0].mxu0
        %v1098 = vadd.f32 0.0, %v1097
        %v1099 = vpop.f32.mrb[0].mxu0
        %1100 = vmatprep.mubr.bf16.mxu0 0
        %1101 = vmatmul.mubr.bf16.gmra.mrb[0].mxu0 %v1011
        %v1102 = vpop.f32.mrb[0].mxu0
        %v1103 = vadd.f32 0.0, %v1102
        %v1104 = vpop.f32.mrb[0].mxu0
        %v1105 = vpop.f32.mrb[0].mxu0
        %v1106 = vadd.f32 0.0, %v1105
        %v1107 = vpop.f32.mrb[0].mxu0
        %1108 = vmatprep.mubr.bf16.mxu0 0
        %1109 = vmatmul.mubr.bf16.gmra.mrb[0].mxu0 %v1014
        %v1110 = vpop.f32.mrb[0].mxu0
        %v1111 = vadd.f32 0.0, %v1110
        %v1112 = vpop.f32.mrb[0].mxu0
        %v1113 = vpop.f32.mrb[0].mxu0
        %v1114 = vadd.f32 0.0, %v1113
        %v1115 = vpop.f32.mrb[0].mxu0
        %1116 = vmatprep.mubr.bf16.mxu0 0
        %1117 = vmatmul.mubr.bf16.gmra.mrb[0].mxu0 %v1017
        %v1118 = vpop.f32.mrb[0].mxu0
        %v1119 = vadd.f32 0.0, %v1118
        %v1120 = vpop.f32.mrb[0].mxu0
        %v1121 = vpop.f32.mrb[0].mxu0
        %v1122 = vadd.f32 0.0, %v1121
        %v1123 = vpop.f32.mrb[0].mxu0
        %1124 = vmatprep.mubr.bf16.mxu0 0
        %1125 = vmatmul.mubr.bf16.gmra.mrb[0].mxu0 %v1020
        %v1126 = vpop.f32.mrb[0].mxu0
        %v1127 = vadd.f32 0.0, %v1126
        %v1128 = vpop.f32.mrb[0].mxu0
        %v1129 = vpop.f32.mrb[0].mxu0
        %v1130 = vadd.f32 0.0, %v1129
        %v1131 = vpop.f32.mrb[0].mxu0
        %1132 = vmatprep.mubr.bf16.mxu0 0
        %1133 = vmatmul.mubr.bf16.gmra.mrb[0].mxu0 %v1023
        %v1134 = vpop.f32.mrb[0].mxu0
        %v1135 = vadd.f32 0.0, %v1134
        %v1136 = vpop.f32.mrb[0].mxu0
        %v1137 = vpop.f32.mrb[0].mxu0
        %v1138 = vadd.f32 0.0, %v1137
        %v1139 = vpop.f32.mrb[0].mxu0
        %1140 = vmatprep.mubr.bf16.mxu0 0
        %1141 = vmatmul.mubr.bf16.gmra.mrb[0].mxu0 %v1026
        %v1142 = vpop.f32.mrb[0].mxu0
        %v1143 = vadd.f32 0.0, %v1142
        %v1144 = vpop.f32.mrb[0].mxu0
        %v1145 = vpop.f32.mrb[0].mxu0
        %v1146 = vadd.f32 0.0, %v1145
        %v1147 = vpop.f32.mrb[0].mxu0
        %1148 = vmatprep.mubr.bf16.mxu0 0
        %1149 = vmatmul.mubr.bf16.gmra.mrb[0].mxu0 %v1029
        %v1150 = vpop.f32.mrb[0].mxu0
        %v1151 = vadd.f32 0.0, %v1150
        %v1152 = vpop.f32.mrb[0].mxu0
        %v1153 = vpop.f32.mrb[0].mxu0
        %v1154 = vadd.f32 0.0, %v1153
        %v1155 = vpop.f32.mrb[0].mxu0
        %1156 = vmatprep.mubr.bf16.mxu0 0
        %1157 = vmatmul.mubr.bf16.gmra.mrb[0].mxu0 %v1032
        %v1158 = vpop.f32.mrb[0].mxu0
        %v1159 = vadd.f32 0.0, %v1158
        %v1160 = vpop.f32.mrb[0].mxu0
        %v1161 = vpop.f32.mrb[0].mxu0
        %v1162 = vadd.f32 0.0, %v1161
        %v1163 = vpop.f32.mrb[0].mxu0
        %1164 = vmatprep.mubr.bf16.mxu0 0
        %1165 = vmatmul.mubr.bf16.gmra.mrb[0].mxu0 %v1035
        %v1166 = vpop.f32.mrb[0].mxu0
        %v1167 = vadd.f32 0.0, %v1166
        %v1168 = vpop.f32.mrb[0].mxu0
        %v1169 = vpop.f32.mrb[0].mxu0
        %v1170 = vadd.f32 0.0, %v1169
        %v1171 = vpop.f32.mrb[0].mxu0
        %1172 = vmatprep.mubr.bf16.mxu0 0
        %1173 = vmatmul.mubr.bf16.gmra.mrb[0].mxu0 %v1038
        %v1174 = vpop.f32.mrb[0].mxu0
        %v1175 = vadd.f32 0.0, %v1174
        %v1176 = vpop.f32.mrb[0].mxu0
        %v1177 = vpop.f32.mrb[0].mxu0
        %v1178 = vadd.f32 0.0, %v1177
        %v1179 = vpop.f32.mrb[0].mxu0
        %1180 = vmatprep.mubr.bf16.mxu0 0
        %1181 = vmatmul.mubr.bf16.gmra.mrb[0].mxu0 %v1041
        %v1182 = vpop.f32.mrb[0].mxu0
        %v1183 = vadd.f32 0.0, %v1182
        %v1184 = vpop.f32.mrb[0].mxu0
        %v1185 = vpop.f32.mrb[0].mxu0
        %v1186 = vadd.f32 0.0, %v1185
        %v1187 = vpop.f32.mrb[0].mxu0
        %1188 = vmatprep.mubr.bf16.mxu0 0
        %1189 = vmatmul.mubr.bf16.gmra.mrb[0].mxu0 %v1044
        %v1190 = vpop.f32.mrb[0].mxu0
        %v1191 = vadd.f32 0.0, %v1190
        %v1192 = vpop.f32.mrb[0].mxu0
        %v1193 = vpop.f32.mrb[0].mxu0
        %v1194 = vadd.f32 0.0, %v1193
        %v1195 = vpop.f32.mrb[0].mxu0
        %1196 = vmatprep.mubr.bf16.mxu0 0
        %1197 = vmatmul.mubr.bf16.gmra.mrb[0].mxu0 %v1047
        %v1198 = vpop.f32.mrb[0].mxu0
        %v1199 = vadd.f32 0.0, %v1198
        %v1200 = vpop.f32.mrb[0].mxu0
        %v1201 = vpop.f32.mrb[0].mxu0
        %v1202 = vadd.f32 0.0, %v1201
        %v1203 = vpop.f32.mrb[0].mxu0
        %1204 = vmatprep.mubr.bf16.mxu0 0
        %1205 = vmatmul.mubr.bf16.gmra.mrb[0].mxu0 %v1050
        %v1206 = vpop.f32.mrb[0].mxu0
        %v1207 = vadd.f32 0.0, %v1206
        %v1208 = vpop.f32.mrb[0].mxu0
        %v1209 = vpop.f32.mrb[0].mxu0
        %v1210 = vadd.f32 0.0, %v1209
        %v1211 = vpop.f32.mrb[0].mxu0
        %1212 = vdwg.mxu0
        %v1245 = vunpack.c.l.b16 %v480
        %v1246 = vunpack.c.l.b16 %v481
        %v1247 = vunpack.c.l.b16 %v482
        %v1248 = vunpack.c.l.b16 %v483
        %v1249 = vunpack.c.l.b16 %v484
        %v1250 = vunpack.c.l.b16 %v485
        %v1251 = vunpack.c.l.b16 %v486
        %v1252 = vunpack.c.l.b16 %v487
        %v1253 = vunpack.c.l.b16 %v488
        %v1254 = vunpack.c.l.b16 %v489
        %v1255 = vunpack.c.l.b16 %v490
        %v1256 = vunpack.c.l.b16 %v491
        %v1257 = vunpack.c.l.b16 %v492
        %v1258 = vunpack.c.l.b16 %v493
        %v1259 = vunpack.c.l.b16 %v494
        %v1260 = vunpack.c.l.b16 %v495
        %v1261 = vunpack.c.l.b16 %v496
        %v1262 = vunpack.c.l.b16 %v497
        %v1263 = vunpack.c.l.b16 %v498
        %v1264 = vunpack.c.l.b16 %v499
        %v1265 = vunpack.c.l.b16 %v500
        %v1266 = vunpack.c.l.b16 %v501
        %v1267 = vunpack.c.l.b16 %v502
        %v1268 = vunpack.c.l.b16 %v503
        %v1269 = vunpack.c.l.b16 %v504
        %v1270 = vunpack.c.l.b16 %v505
        %v1271 = vunpack.c.l.b16 %v506
        %v1272 = vunpack.c.l.b16 %v507
        %v1273 = vunpack.c.l.b16 %v508
        %v1274 = vunpack.c.l.b16 %v509
        %v1275 = vunpack.c.l.b16 %v510
        %v1276 = vunpack.c.l.b16 %v511
        %v1277 = vpack.c.b16 %v1246, %v1245
        %v1278 = vpack.c.b16 %v1248, %v1247
        %v1279 = vpack.c.b16 %v1250, %v1249
        %v1280 = vpack.c.b16 %v1252, %v1251
        %v1281 = vpack.c.b16 %v1254, %v1253
        %v1282 = vpack.c.b16 %v1256, %v1255
        %v1283 = vpack.c.b16 %v1258, %v1257
        %v1284 = vpack.c.b16 %v1260, %v1259
        %v1285 = vpack.c.b16 %v1262, %v1261
        %v1286 = vpack.c.b16 %v1264, %v1263
        %v1287 = vpack.c.b16 %v1266, %v1265
        %v1288 = vpack.c.b16 %v1268, %v1267
        %v1289 = vpack.c.b16 %v1270, %v1269
        %v1290 = vpack.c.b16 %v1272, %v1271
        %v1291 = vpack.c.b16 %v1274, %v1273
        %v1292 = vpack.c.b16 %v1276, %v1275
        %v1301 = vunpack.c.l.b16 %v512
        %v1302 = vunpack.c.l.b16 %v513
        %v1303 = vunpack.c.l.b16 %v514
        %v1304 = vunpack.c.l.b16 %v515
        %v1305 = vunpack.c.l.b16 %v516
        %v1306 = vunpack.c.l.b16 %v517
        %v1307 = vunpack.c.l.b16 %v518
        %v1308 = vunpack.c.l.b16 %v519
        %v1309 = vpack.c.b16 %v1302, %v1301
        %v1310 = vpack.c.b16 %v1304, %v1303
        %v1311 = vpack.c.b16 %v1306, %v1305
        %v1312 = vpack.c.b16 %v1308, %v1307
        %v1318 = vsel %vm1003, %v1277, 0
        %v1321 = vsel %vm1003, %v1278, 0
        %v1324 = vsel %vm1003, %v1279, 0
        %v1327 = vsel %vm1003, %v1280, 0
        %v1330 = vsel %vm1003, %v1281, 0
        %v1333 = vsel %vm1003, %v1282, 0
        %v1336 = vsel %vm1003, %v1283, 0
        %v1339 = vsel %vm1003, %v1284, 0
        %v1342 = vsel %vm1003, %v1285, 0
        %v1345 = vsel %vm1003, %v1286, 0
        %v1348 = vsel %vm1003, %v1287, 0
        %v1351 = vsel %vm1003, %v1288, 0
        %v1354 = vsel %vm1003, %v1289, 0
        %v1357 = vsel %vm1003, %v1290, 0
        %v1360 = vsel %vm1003, %v1291, 0
        %v1363 = vsel %vm1003, %v1292, 0
        %1365 = vmatprep.subr.bf16.mxu0 0
        %1366 = vmatpush1.bf16.msra.mxu0 %v1309
        %1367 = vmatprep.subr.bf16.mxu0 0
        %1368 = vmatpush1.bf16.msra.mxu0 %v1310
        %1369 = vmatprep.subr.bf16.mxu0 0
        %1370 = vmatpush1.bf16.msra.mxu0 %v1311
        %1371 = vmatprep.subr.bf16.mxu0 0
        %1372 = vmatpush1.bf16.msra.mxu0 %v1312
        %1373 = vmatprep.subr.bf16.mxu0 0
        %1374 = vmatpush1.bf16.msra.mxu0 0
        %1375 = vmatprep.subr.bf16.mxu0 0
        %1376 = vmatpush1.bf16.msra.mxu0 0
        %1377 = vmatprep.subr.bf16.mxu0 0
        %1378 = vmatpush1.bf16.msra.mxu0 0
        %1379 = vmatprep.subr.bf16.mxu0 0
        %1380 = vmatpush1.bf16.msra.mxu0 0
        %1381 = vmatprep.subr.bf16.mxu0 0
        %1382 = vmatpush1.bf16.msra.mxu0 0
        %1383 = vmatprep.subr.bf16.mxu0 0
        %1384 = vmatpush1.bf16.msra.mxu0 0
        %1385 = vmatprep.subr.bf16.mxu0 0
        %1386 = vmatpush1.bf16.msra.mxu0 0
        %1387 = vmatprep.subr.bf16.mxu0 0
        %1388 = vmatpush1.bf16.msra.mxu0 0
        %1389 = vmatprep.subr.bf16.mxu0 0
        %1390 = vmatpush1.bf16.msra.mxu0 0
        %1391 = vmatprep.subr.bf16.mxu0 0
        %1392 = vmatpush1.bf16.msra.mxu0 0
        %1393 = vmatprep.subr.bf16.mxu0 0
        %1394 = vmatpush1.bf16.msra.mxu0 0
        %1395 = vmatprep.subr.bf16.mxu0 0
        %1396 = vmatpush1.bf16.msra.mxu0 0
        %1397 = vmatprep.mubr.bf16.mxu0 0
        %1398 = vmatmul.mubr.bf16.gmra.mrb[0].mxu0 %v1318
        %v1399 = vpop.f32.mrb[0].mxu0
        %v1400 = vadd.f32 %v1087, %v1399
        %v1401 = vpop.f32.mrb[0].mxu0
        %v1402 = vpop.f32.mrb[0].mxu0
        %v1403 = vadd.f32 %v1090, %v1402
        %v1404 = vpop.f32.mrb[0].mxu0
        %1405 = vmatprep.mubr.bf16.mxu0 0
        %1406 = vmatmul.mubr.bf16.gmra.mrb[0].mxu0 %v1321
        %v1407 = vpop.f32.mrb[0].mxu0
        %v1408 = vadd.f32 %v1095, %v1407
        %v1409 = vpop.f32.mrb[0].mxu0
        %v1410 = vpop.f32.mrb[0].mxu0
        %v1411 = vadd.f32 %v1098, %v1410
        %v1412 = vpop.f32.mrb[0].mxu0
        %1413 = vmatprep.mubr.bf16.mxu0 0
        %1414 = vmatmul.mubr.bf16.gmra.mrb[0].mxu0 %v1324
        %v1415 = vpop.f32.mrb[0].mxu0
        %v1416 = vadd.f32 %v1103, %v1415
        %v1417 = vpop.f32.mrb[0].mxu0
        %v1418 = vpop.f32.mrb[0].mxu0
        %v1419 = vadd.f32 %v1106, %v1418
        %v1420 = vpop.f32.mrb[0].mxu0
        %1421 = vmatprep.mubr.bf16.mxu0 0
        %1422 = vmatmul.mubr.bf16.gmra.mrb[0].mxu0 %v1327
        %v1423 = vpop.f32.mrb[0].mxu0
        %v1424 = vadd.f32 %v1111, %v1423
        %v1425 = vpop.f32.mrb[0].mxu0
        %v1426 = vpop.f32.mrb[0].mxu0
        %v1427 = vadd.f32 %v1114, %v1426
        %v1428 = vpop.f32.mrb[0].mxu0
        %1429 = vmatprep.mubr.bf16.mxu0 0
        %1430 = vmatmul.mubr.bf16.gmra.mrb[0].mxu0 %v1330
        %v1431 = vpop.f32.mrb[0].mxu0
        %v1432 = vadd.f32 %v1119, %v1431
        %v1433 = vpop.f32.mrb[0].mxu0
        %v1434 = vpop.f32.mrb[0].mxu0
        %v1435 = vadd.f32 %v1122, %v1434
        %v1436 = vpop.f32.mrb[0].mxu0
        %1437 = vmatprep.mubr.bf16.mxu0 0
        %1438 = vmatmul.mubr.bf16.gmra.mrb[0].mxu0 %v1333
        %v1439 = vpop.f32.mrb[0].mxu0
        %v1440 = vadd.f32 %v1127, %v1439
        %v1441 = vpop.f32.mrb[0].mxu0
        %v1442 = vpop.f32.mrb[0].mxu0
        %v1443 = vadd.f32 %v1130, %v1442
        %v1444 = vpop.f32.mrb[0].mxu0
        %1445 = vmatprep.mubr.bf16.mxu0 0
        %1446 = vmatmul.mubr.bf16.gmra.mrb[0].mxu0 %v1336
        %v1447 = vpop.f32.mrb[0].mxu0
        %v1448 = vadd.f32 %v1135, %v1447
        %v1449 = vpop.f32.mrb[0].mxu0
        %v1450 = vpop.f32.mrb[0].mxu0
        %v1451 = vadd.f32 %v1138, %v1450
        %v1452 = vpop.f32.mrb[0].mxu0
        %1453 = vmatprep.mubr.bf16.mxu0 0
        %1454 = vmatmul.mubr.bf16.gmra.mrb[0].mxu0 %v1339
        %v1455 = vpop.f32.mrb[0].mxu0
        %v1456 = vadd.f32 %v1143, %v1455
        %v1457 = vpop.f32.mrb[0].mxu0
        %v1458 = vpop.f32.mrb[0].mxu0
        %v1459 = vadd.f32 %v1146, %v1458
        %v1460 = vpop.f32.mrb[0].mxu0
        %1461 = vmatprep.mubr.bf16.mxu0 0
        %1462 = vmatmul.mubr.bf16.gmra.mrb[0].mxu0 %v1342
        %v1463 = vpop.f32.mrb[0].mxu0
        %v1464 = vadd.f32 %v1151, %v1463
        %v1465 = vpop.f32.mrb[0].mxu0
        %v1466 = vpop.f32.mrb[0].mxu0
        %v1467 = vadd.f32 %v1154, %v1466
        %v1468 = vpop.f32.mrb[0].mxu0
        %1469 = vmatprep.mubr.bf16.mxu0 0
        %1470 = vmatmul.mubr.bf16.gmra.mrb[0].mxu0 %v1345
        %v1471 = vpop.f32.mrb[0].mxu0
        %v1472 = vadd.f32 %v1159, %v1471
        %v1473 = vpop.f32.mrb[0].mxu0
        %v1474 = vpop.f32.mrb[0].mxu0
        %v1475 = vadd.f32 %v1162, %v1474
        %v1476 = vpop.f32.mrb[0].mxu0
        %1477 = vmatprep.mubr.bf16.mxu0 0
        %1478 = vmatmul.mubr.bf16.gmra.mrb[0].mxu0 %v1348
        %v1479 = vpop.f32.mrb[0].mxu0
        %v1480 = vadd.f32 %v1167, %v1479
        %v1481 = vpop.f32.mrb[0].mxu0
        %v1482 = vpop.f32.mrb[0].mxu0
        %v1483 = vadd.f32 %v1170, %v1482
        %v1484 = vpop.f32.mrb[0].mxu0
        %1485 = vmatprep.mubr.bf16.mxu0 0
        %1486 = vmatmul.mubr.bf16.gmra.mrb[0].mxu0 %v1351
        %v1487 = vpop.f32.mrb[0].mxu0
        %v1488 = vadd.f32 %v1175, %v1487
        %v1489 = vpop.f32.mrb[0].mxu0
        %v1490 = vpop.f32.mrb[0].mxu0
        %v1491 = vadd.f32 %v1178, %v1490
        %v1492 = vpop.f32.mrb[0].mxu0
        %1493 = vmatprep.mubr.bf16.mxu0 0
        %1494 = vmatmul.mubr.bf16.gmra.mrb[0].mxu0 %v1354
        %v1495 = vpop.f32.mrb[0].mxu0
        %v1496 = vadd.f32 %v1183, %v1495
        %v1497 = vpop.f32.mrb[0].mxu0
        %v1498 = vpop.f32.mrb[0].mxu0
        %v1499 = vadd.f32 %v1186, %v1498
        %v1500 = vpop.f32.mrb[0].mxu0
        %1501 = vmatprep.mubr.bf16.mxu0 0
        %1502 = vmatmul.mubr.bf16.gmra.mrb[0].mxu0 %v1357
        %v1503 = vpop.f32.mrb[0].mxu0
        %v1504 = vadd.f32 %v1191, %v1503
        %v1505 = vpop.f32.mrb[0].mxu0
        %v1506 = vpop.f32.mrb[0].mxu0
        %v1507 = vadd.f32 %v1194, %v1506
        %v1508 = vpop.f32.mrb[0].mxu0
        %1509 = vmatprep.mubr.bf16.mxu0 0
        %1510 = vmatmul.mubr.bf16.gmra.mrb[0].mxu0 %v1360
        %v1511 = vpop.f32.mrb[0].mxu0
        %v1512 = vadd.f32 %v1199, %v1511
        %v1513 = vpop.f32.mrb[0].mxu0
        %v1514 = vpop.f32.mrb[0].mxu0
        %v1515 = vadd.f32 %v1202, %v1514
        %v1516 = vpop.f32.mrb[0].mxu0
        %1517 = vmatprep.mubr.bf16.mxu0 0
        %1518 = vmatmul.mubr.bf16.gmra.mrb[0].mxu0 %v1363
        %v1519 = vpop.f32.mrb[0].mxu0
        %v1520 = vadd.f32 %v1207, %v1519
        %v1521 = vpop.f32.mrb[0].mxu0
        %v1522 = vpop.f32.mrb[0].mxu0
        %v1523 = vadd.f32 %v1210, %v1522
        %v1524 = vpop.f32.mrb[0].mxu0
        %1525 = vdwg.mxu0
        %v1526 = vld [vmem:[%s468] sm:$0xe]
        %v1527 = vld [vmem:[%s468 + $0xc] sm:$0xe]
        %v1528 = vld [vmem:[%s468 + $0x18] sm:$0xe]
        %v1529 = vld [vmem:[%s468 + $0x24] sm:$0xe]
        %v1530 = vld [vmem:[%s468 + $0x30] sm:$0xe]
        %v1531 = vld [vmem:[%s468 + $0x3c] sm:$0xe]
        %v1532 = vld [vmem:[%s468 + $0x48] sm:$0xe]
        %v1533 = vld [vmem:[%s468 + $0x54] sm:$0xe]
        %v1534 = vld [vmem:[%s468 + $0x60] sm:$0xe]
        %v1535 = vld [vmem:[%s468 + $0x6c] sm:$0xe]
        %v1536 = vld [vmem:[%s468 + $0x78] sm:$0xe]
        %v1537 = vld [vmem:[%s468 + $0x84] sm:$0xe]
        %v1538 = vld [vmem:[%s468 + $0x90] sm:$0xe]
        %v1539 = vld [vmem:[%s468 + $0x9c] sm:$0xe]
        %v1540 = vld [vmem:[%s468 + $0xa8] sm:$0xe]
        %v1541 = vld [vmem:[%s468 + $0xb4] sm:$0xe]
        %vm1574 = vcmask 1042432
        %vm1575 = vcmask 1046532
        %vm1576 = vmor %vm1574, %vm1575
        %v1577 = vrot.slane %v1526, 5
        %v1578 = vrot.slane %v1577, 4
        %v1579 = vrot.slane %v481, 5
        %v1580 = vsel %vm1576, %v1578, %v1579
        %v1581 = vrot.slane %v1579, 4
        %v1582 = vrot.slane %v520, 5
        %v1583 = vsel %vm1576, %v1581, %v1582
        %v1584 = vrot.slane %v1527, 5
        %v1585 = vrot.slane %v1584, 4
        %v1586 = vrot.slane %v483, 5
        %v1587 = vsel %vm1576, %v1585, %v1586
        %v1588 = vrot.slane %v1586, 4
        %v1589 = vrot.slane %v521, 5
        %v1590 = vsel %vm1576, %v1588, %v1589
        %v1591 = vrot.slane %v1528, 5
        %v1592 = vrot.slane %v1591, 4
        %v1593 = vrot.slane %v485, 5
        %v1594 = vsel %vm1576, %v1592, %v1593
        %v1595 = vrot.slane %v1593, 4
        %v1596 = vrot.slane %v522, 5
        %v1597 = vsel %vm1576, %v1595, %v1596
        %v1598 = vrot.slane %v1529, 5
        %v1599 = vrot.slane %v1598, 4
        %v1600 = vrot.slane %v487, 5
        %v1601 = vsel %vm1576, %v1599, %v1600
        %v1602 = vrot.slane %v1600, 4
        %v1603 = vrot.slane %v523, 5
        %v1604 = vsel %vm1576, %v1602, %v1603
        %v1605 = vrot.slane %v1530, 5
        %v1606 = vrot.slane %v1605, 4
        %v1607 = vrot.slane %v489, 5
        %v1608 = vsel %vm1576, %v1606, %v1607
        %v1609 = vrot.slane %v1607, 4
        %v1610 = vrot.slane %v524, 5
        %v1611 = vsel %vm1576, %v1609, %v1610
        %v1612 = vrot.slane %v1531, 5
        %v1613 = vrot.slane %v1612, 4
        %v1614 = vrot.slane %v491, 5
        %v1615 = vsel %vm1576, %v1613, %v1614
        %v1616 = vrot.slane %v1614, 4
        %v1617 = vrot.slane %v525, 5
        %v1618 = vsel %vm1576, %v1616, %v1617
        %v1619 = vrot.slane %v1532, 5
        %v1620 = vrot.slane %v1619, 4
        %v1621 = vrot.slane %v493, 5
        %v1622 = vsel %vm1576, %v1620, %v1621
        %v1623 = vrot.slane %v1621, 4
        %v1624 = vrot.slane %v526, 5
        %v1625 = vsel %vm1576, %v1623, %v1624
        %v1626 = vrot.slane %v1533, 5
        %v1627 = vrot.slane %v1626, 4
        %v1628 = vrot.slane %v495, 5
        %v1629 = vsel %vm1576, %v1627, %v1628
        %v1630 = vrot.slane %v1628, 4
        %v1631 = vrot.slane %v527, 5
        %v1632 = vsel %vm1576, %v1630, %v1631
        %v1633 = vrot.slane %v1534, 5
        %v1634 = vrot.slane %v1633, 4
        %v1635 = vrot.slane %v497, 5
        %v1636 = vsel %vm1576, %v1634, %v1635
        %v1637 = vrot.slane %v1635, 4
        %v1638 = vrot.slane %v528, 5
        %v1639 = vsel %vm1576, %v1637, %v1638
        %v1640 = vrot.slane %v1535, 5
        %v1641 = vrot.slane %v1640, 4
        %v1642 = vrot.slane %v499, 5
        %v1643 = vsel %vm1576, %v1641, %v1642
        %v1644 = vrot.slane %v1642, 4
        %v1645 = vrot.slane %v529, 5
        %v1646 = vsel %vm1576, %v1644, %v1645
        %v1647 = vrot.slane %v1536, 5
        %v1648 = vrot.slane %v1647, 4
        %v1649 = vrot.slane %v501, 5
        %v1650 = vsel %vm1576, %v1648, %v1649
        %v1651 = vrot.slane %v1649, 4
        %v1652 = vrot.slane %v530, 5
        %v1653 = vsel %vm1576, %v1651, %v1652
        %v1654 = vrot.slane %v1537, 5
        %v1655 = vrot.slane %v1654, 4
        %v1656 = vrot.slane %v503, 5
        %v1657 = vsel %vm1576, %v1655, %v1656
        %v1658 = vrot.slane %v1656, 4
        %v1659 = vrot.slane %v531, 5
        %v1660 = vsel %vm1576, %v1658, %v1659
        %v1661 = vrot.slane %v1538, 5
        %v1662 = vrot.slane %v1661, 4
        %v1663 = vrot.slane %v505, 5
        %v1664 = vsel %vm1576, %v1662, %v1663
        %v1665 = vrot.slane %v1663, 4
        %v1666 = vrot.slane %v532, 5
        %v1667 = vsel %vm1576, %v1665, %v1666
        %v1668 = vrot.slane %v1539, 5
        %v1669 = vrot.slane %v1668, 4
        %v1670 = vrot.slane %v507, 5
        %v1671 = vsel %vm1576, %v1669, %v1670
        %v1672 = vrot.slane %v1670, 4
        %v1673 = vrot.slane %v533, 5
        %v1674 = vsel %vm1576, %v1672, %v1673
        %v1675 = vrot.slane %v1540, 5
        %v1676 = vrot.slane %v1675, 4
        %v1677 = vrot.slane %v509, 5
        %v1678 = vsel %vm1576, %v1676, %v1677
        %v1679 = vrot.slane %v1677, 4
        %v1680 = vrot.slane %v534, 5
        %v1681 = vsel %vm1576, %v1679, %v1680
        %v1682 = vrot.slane %v1541, 5
        %v1683 = vrot.slane %v1682, 4
        %v1684 = vrot.slane %v511, 5
        %v1685 = vsel %vm1576, %v1683, %v1684
        %v1686 = vrot.slane %v1684, 4
        %v1687 = vrot.slane %v535, 5
        %v1688 = vsel %vm1576, %v1686, %v1687
        %v1689 = vld [vmem:[%s3 + $0x40] sm:$0xf]
        %v1690 = vld [vmem:[%s3 + $0x44] sm:$0xf]
        %v1691 = vld [vmem:[%s3 + $0x48] sm:$0xf]
        %v1692 = vld [vmem:[%s3 + $0x4c] sm:$0xf]
        %v1693 = vld [vmem:[%s3 + $0x50] sm:$0xf]
        %v1694 = vld [vmem:[%s3 + $0x54] sm:$0xf]
        %v1695 = vld [vmem:[%s3 + $0x58] sm:$0xf]
        %v1696 = vld [vmem:[%s3 + $0x5c] sm:$0xf]
        %v1697 = vunpack.c.l.b16 %v1580
        %v1698 = vunpack.c.l.b16 %v1583
        %v1699 = vunpack.c.l.b16 %v1587
        %v1700 = vunpack.c.l.b16 %v1590
        %v1701 = vunpack.c.l.b16 %v1594
        %v1702 = vunpack.c.l.b16 %v1597
        %v1703 = vunpack.c.l.b16 %v1601
        %v1704 = vunpack.c.l.b16 %v1604
        %v1705 = vunpack.c.l.b16 %v1608
        %v1706 = vunpack.c.l.b16 %v1611
        %v1707 = vunpack.c.l.b16 %v1615
        %v1708 = vunpack.c.l.b16 %v1618
        %v1709 = vunpack.c.l.b16 %v1622
        %v1710 = vunpack.c.l.b16 %v1625
        %v1711 = vunpack.c.l.b16 %v1629
        %v1712 = vunpack.c.l.b16 %v1632
        %v1713 = vunpack.c.l.b16 %v1636
        %v1714 = vunpack.c.l.b16 %v1639
        %v1715 = vunpack.c.l.b16 %v1643
        %v1716 = vunpack.c.l.b16 %v1646
        %v1717 = vunpack.c.l.b16 %v1650
        %v1718 = vunpack.c.l.b16 %v1653
        %v1719 = vunpack.c.l.b16 %v1657
        %v1720 = vunpack.c.l.b16 %v1660
        %v1721 = vunpack.c.l.b16 %v1664
        %v1722 = vunpack.c.l.b16 %v1667
        %v1723 = vunpack.c.l.b16 %v1671
        %v1724 = vunpack.c.l.b16 %v1674
        %v1725 = vunpack.c.l.b16 %v1678
        %v1726 = vunpack.c.l.b16 %v1681
        %v1727 = vunpack.c.l.b16 %v1685
        %v1728 = vunpack.c.l.b16 %v1688
        %v1729 = vpack.c.b16 %v1698, %v1697
        %v1730 = vpack.c.b16 %v1700, %v1699
        %v1731 = vpack.c.b16 %v1702, %v1701
        %v1732 = vpack.c.b16 %v1704, %v1703
        %v1733 = vpack.c.b16 %v1706, %v1705
        %v1734 = vpack.c.b16 %v1708, %v1707
        %v1735 = vpack.c.b16 %v1710, %v1709
        %v1736 = vpack.c.b16 %v1712, %v1711
        %v1737 = vpack.c.b16 %v1714, %v1713
        %v1738 = vpack.c.b16 %v1716, %v1715
        %v1739 = vpack.c.b16 %v1718, %v1717
        %v1740 = vpack.c.b16 %v1720, %v1719
        %v1741 = vpack.c.b16 %v1722, %v1721
        %v1742 = vpack.c.b16 %v1724, %v1723
        %v1743 = vpack.c.b16 %v1726, %v1725
        %v1744 = vpack.c.b16 %v1728, %v1727
        %v1753 = vunpack.c.l.b16 %v1689
        %v1754 = vunpack.c.l.b16 %v1690
        %v1755 = vunpack.c.l.b16 %v1691
        %v1756 = vunpack.c.l.b16 %v1692
        %v1757 = vunpack.c.l.b16 %v1693
        %v1758 = vunpack.c.l.b16 %v1694
        %v1759 = vunpack.c.l.b16 %v1695
        %v1760 = vunpack.c.l.b16 %v1696
        %v1761 = vpack.c.b16 %v1754, %v1753
        %v1762 = vpack.c.b16 %v1756, %v1755
        %v1763 = vpack.c.b16 %v1758, %v1757
        %v1764 = vpack.c.b16 %v1760, %v1759
        %v1770 = vsel %vm1003, %v1729, 0
        %v1773 = vsel %vm1003, %v1730, 0
        %v1776 = vsel %vm1003, %v1731, 0
        %v1779 = vsel %vm1003, %v1732, 0
        %v1782 = vsel %vm1003, %v1733, 0
        %v1785 = vsel %vm1003, %v1734, 0
        %v1788 = vsel %vm1003, %v1735, 0
        %v1791 = vsel %vm1003, %v1736, 0
        %v1794 = vsel %vm1003, %v1737, 0
        %v1797 = vsel %vm1003, %v1738, 0
        %v1800 = vsel %vm1003, %v1739, 0
        %v1803 = vsel %vm1003, %v1740, 0
        %v1806 = vsel %vm1003, %v1741, 0
        %v1809 = vsel %vm1003, %v1742, 0
        %v1812 = vsel %vm1003, %v1743, 0
        %v1815 = vsel %vm1003, %v1744, 0
        %1817 = vmatprep.subr.bf16.mxu0 0
        %1818 = vmatpush1.bf16.msra.mxu0 %v1761
        %1819 = vmatprep.subr.bf16.mxu0 0
        %1820 = vmatpush1.bf16.msra.mxu0 %v1762
        %1821 = vmatprep.subr.bf16.mxu0 0
        %1822 = vmatpush1.bf16.msra.mxu0 %v1763
        %1823 = vmatprep.subr.bf16.mxu0 0
        %1824 = vmatpush1.bf16.msra.mxu0 %v1764
        %1825 = vmatprep.subr.bf16.mxu0 0
        %1826 = vmatpush1.bf16.msra.mxu0 0
        %1827 = vmatprep.subr.bf16.mxu0 0
        %1828 = vmatpush1.bf16.msra.mxu0 0
        %1829 = vmatprep.subr.bf16.mxu0 0
        %1830 = vmatpush1.bf16.msra.mxu0 0
        %1831 = vmatprep.subr.bf16.mxu0 0
        %1832 = vmatpush1.bf16.msra.mxu0 0
        %1833 = vmatprep.subr.bf16.mxu0 0
        %1834 = vmatpush1.bf16.msra.mxu0 0
        %1835 = vmatprep.subr.bf16.mxu0 0
        %1836 = vmatpush1.bf16.msra.mxu0 0
        %1837 = vmatprep.subr.bf16.mxu0 0
        %1838 = vmatpush1.bf16.msra.mxu0 0
        %1839 = vmatprep.subr.bf16.mxu0 0
        %1840 = vmatpush1.bf16.msra.mxu0 0
        %1841 = vmatprep.subr.bf16.mxu0 0
        %1842 = vmatpush1.bf16.msra.mxu0 0
        %1843 = vmatprep.subr.bf16.mxu0 0
        %1844 = vmatpush1.bf16.msra.mxu0 0
        %1845 = vmatprep.subr.bf16.mxu0 0
        %1846 = vmatpush1.bf16.msra.mxu0 0
        %1847 = vmatprep.subr.bf16.mxu0 0
        %1848 = vmatpush1.bf16.msra.mxu0 0
        %1849 = vmatprep.mubr.bf16.mxu0 0
        %1850 = vmatmul.mubr.bf16.gmra.mrb[0].mxu0 %v1770
        %v1851 = vpop.f32.mrb[0].mxu0
        %v1852 = vadd.f32 0.0, %v1851
        %v1853 = vpop.f32.mrb[0].mxu0
        %v1854 = vpop.f32.mrb[0].mxu0
        %v1855 = vadd.f32 0.0, %v1854
        %v1856 = vpop.f32.mrb[0].mxu0
        %1857 = vmatprep.mubr.bf16.mxu0 0
        %1858 = vmatmul.mubr.bf16.gmra.mrb[0].mxu0 %v1773
        %v1859 = vpop.f32.mrb[0].mxu0
        %v1860 = vadd.f32 0.0, %v1859
        %v1861 = vpop.f32.mrb[0].mxu0
        %v1862 = vpop.f32.mrb[0].mxu0
        %v1863 = vadd.f32 0.0, %v1862
        %v1864 = vpop.f32.mrb[0].mxu0
        %1865 = vmatprep.mubr.bf16.mxu0 0
        %1866 = vmatmul.mubr.bf16.gmra.mrb[0].mxu0 %v1776
        %v1867 = vpop.f32.mrb[0].mxu0
        %v1868 = vadd.f32 0.0, %v1867
        %v1869 = vpop.f32.mrb[0].mxu0
        %v1870 = vpop.f32.mrb[0].mxu0
        %v1871 = vadd.f32 0.0, %v1870
        %v1872 = vpop.f32.mrb[0].mxu0
        %1873 = vmatprep.mubr.bf16.mxu0 0
        %1874 = vmatmul.mubr.bf16.gmra.mrb[0].mxu0 %v1779
        %v1875 = vpop.f32.mrb[0].mxu0
        %v1876 = vadd.f32 0.0, %v1875
        %v1877 = vpop.f32.mrb[0].mxu0
        %v1878 = vpop.f32.mrb[0].mxu0
        %v1879 = vadd.f32 0.0, %v1878
        %v1880 = vpop.f32.mrb[0].mxu0
        %1881 = vmatprep.mubr.bf16.mxu0 0
        %1882 = vmatmul.mubr.bf16.gmra.mrb[0].mxu0 %v1782
        %v1883 = vpop.f32.mrb[0].mxu0
        %v1884 = vadd.f32 0.0, %v1883
        %v1885 = vpop.f32.mrb[0].mxu0
        %v1886 = vpop.f32.mrb[0].mxu0
        %v1887 = vadd.f32 0.0, %v1886
        %v1888 = vpop.f32.mrb[0].mxu0
        %1889 = vmatprep.mubr.bf16.mxu0 0
        %1890 = vmatmul.mubr.bf16.gmra.mrb[0].mxu0 %v1785
        %v1891 = vpop.f32.mrb[0].mxu0
        %v1892 = vadd.f32 0.0, %v1891
        %v1893 = vpop.f32.mrb[0].mxu0
        %v1894 = vpop.f32.mrb[0].mxu0
        %v1895 = vadd.f32 0.0, %v1894
        %v1896 = vpop.f32.mrb[0].mxu0
        %1897 = vmatprep.mubr.bf16.mxu0 0
        %1898 = vmatmul.mubr.bf16.gmra.mrb[0].mxu0 %v1788
        %v1899 = vpop.f32.mrb[0].mxu0
        %v1900 = vadd.f32 0.0, %v1899
        %v1901 = vpop.f32.mrb[0].mxu0
        %v1902 = vpop.f32.mrb[0].mxu0
        %v1903 = vadd.f32 0.0, %v1902
        %v1904 = vpop.f32.mrb[0].mxu0
        %1905 = vmatprep.mubr.bf16.mxu0 0
        %1906 = vmatmul.mubr.bf16.gmra.mrb[0].mxu0 %v1791
        %v1907 = vpop.f32.mrb[0].mxu0
        %v1908 = vadd.f32 0.0, %v1907
        %v1909 = vpop.f32.mrb[0].mxu0
        %v1910 = vpop.f32.mrb[0].mxu0
        %v1911 = vadd.f32 0.0, %v1910
        %v1912 = vpop.f32.mrb[0].mxu0
        %1913 = vmatprep.mubr.bf16.mxu0 0
        %1914 = vmatmul.mubr.bf16.gmra.mrb[0].mxu0 %v1794
        %v1915 = vpop.f32.mrb[0].mxu0
        %v1916 = vadd.f32 0.0, %v1915
        %v1917 = vpop.f32.mrb[0].mxu0
        %v1918 = vpop.f32.mrb[0].mxu0
        %v1919 = vadd.f32 0.0, %v1918
        %v1920 = vpop.f32.mrb[0].mxu0
        %1921 = vmatprep.mubr.bf16.mxu0 0
        %1922 = vmatmul.mubr.bf16.gmra.mrb[0].mxu0 %v1797
        %v1923 = vpop.f32.mrb[0].mxu0
        %v1924 = vadd.f32 0.0, %v1923
        %v1925 = vpop.f32.mrb[0].mxu0
        %v1926 = vpop.f32.mrb[0].mxu0
        %v1927 = vadd.f32 0.0, %v1926
        %v1928 = vpop.f32.mrb[0].mxu0
        %1929 = vmatprep.mubr.bf16.mxu0 0
        %1930 = vmatmul.mubr.bf16.gmra.mrb[0].mxu0 %v1800
        %v1931 = vpop.f32.mrb[0].mxu0
        %v1932 = vadd.f32 0.0, %v1931
        %v1933 = vpop.f32.mrb[0].mxu0
        %v1934 = vpop.f32.mrb[0].mxu0
        %v1935 = vadd.f32 0.0, %v1934
        %v1936 = vpop.f32.mrb[0].mxu0
        %1937 = vmatprep.mubr.bf16.mxu0 0
        %1938 = vmatmul.mubr.bf16.gmra.mrb[0].mxu0 %v1803
        %v1939 = vpop.f32.mrb[0].mxu0
        %v1940 = vadd.f32 0.0, %v1939
        %v1941 = vpop.f32.mrb[0].mxu0
        %v1942 = vpop.f32.mrb[0].mxu0
        %v1943 = vadd.f32 0.0, %v1942
        %v1944 = vpop.f32.mrb[0].mxu0
        %1945 = vmatprep.mubr.bf16.mxu0 0
        %1946 = vmatmul.mubr.bf16.gmra.mrb[0].mxu0 %v1806
        %v1947 = vpop.f32.mrb[0].mxu0
        %v1948 = vadd.f32 0.0, %v1947
        %v1949 = vpop.f32.mrb[0].mxu0
        %v1950 = vpop.f32.mrb[0].mxu0
        %v1951 = vadd.f32 0.0, %v1950
        %v1952 = vpop.f32.mrb[0].mxu0
        %1953 = vmatprep.mubr.bf16.mxu0 0
        %1954 = vmatmul.mubr.bf16.gmra.mrb[0].mxu0 %v1809
        %v1955 = vpop.f32.mrb[0].mxu0
        %v1956 = vadd.f32 0.0, %v1955
        %v1957 = vpop.f32.mrb[0].mxu0
        %v1958 = vpop.f32.mrb[0].mxu0
        %v1959 = vadd.f32 0.0, %v1958
        %v1960 = vpop.f32.mrb[0].mxu0
        %1961 = vmatprep.mubr.bf16.mxu0 0
        %1962 = vmatmul.mubr.bf16.gmra.mrb[0].mxu0 %v1812
        %v1963 = vpop.f32.mrb[0].mxu0
        %v1964 = vadd.f32 0.0, %v1963
        %v1965 = vpop.f32.mrb[0].mxu0
        %v1966 = vpop.f32.mrb[0].mxu0
        %v1967 = vadd.f32 0.0, %v1966
        %v1968 = vpop.f32.mrb[0].mxu0
        %1969 = vmatprep.mubr.bf16.mxu0 0
        %1970 = vmatmul.mubr.bf16.gmra.mrb[0].mxu0 %v1815
        %v1971 = vpop.f32.mrb[0].mxu0
        %v1972 = vadd.f32 0.0, %v1971
        %v1973 = vpop.f32.mrb[0].mxu0
        %v1974 = vpop.f32.mrb[0].mxu0
        %v1975 = vadd.f32 0.0, %v1974
        %v1976 = vpop.f32.mrb[0].mxu0
        %1977 = vdwg.mxu0
        %v1978 = vadd.f32 %v1400, %v1852
        %v1979 = vadd.f32 %v1403, %v1855
        %v1980 = vadd.f32 %v1408, %v1860
        %v1981 = vadd.f32 %v1411, %v1863
        %v1982 = vadd.f32 %v1416, %v1868
        %v1983 = vadd.f32 %v1419, %v1871
        %v1984 = vadd.f32 %v1424, %v1876
        %v1985 = vadd.f32 %v1427, %v1879
        %v1986 = vadd.f32 %v1432, %v1884
        %v1987 = vadd.f32 %v1435, %v1887
        %v1988 = vadd.f32 %v1440, %v1892
        %v1989 = vadd.f32 %v1443, %v1895
        %v1990 = vadd.f32 %v1448, %v1900
        %v1991 = vadd.f32 %v1451, %v1903
        %v1992 = vadd.f32 %v1456, %v1908
        %v1993 = vadd.f32 %v1459, %v1911
        %v1994 = vadd.f32 %v1464, %v1916
        %v1995 = vadd.f32 %v1467, %v1919
        %v1996 = vadd.f32 %v1472, %v1924
        %v1997 = vadd.f32 %v1475, %v1927
        %v1998 = vadd.f32 %v1480, %v1932
        %v1999 = vadd.f32 %v1483, %v1935
        %v2000 = vadd.f32 %v1488, %v1940
        %v2001 = vadd.f32 %v1491, %v1943
        %v2002 = vadd.f32 %v1496, %v1948
        %v2003 = vadd.f32 %v1499, %v1951
        %v2004 = vadd.f32 %v1504, %v1956
        %v2005 = vadd.f32 %v1507, %v1959
        %v2006 = vadd.f32 %v1512, %v1964
        %v2007 = vadd.f32 %v1515, %v1967
        %v2008 = vadd.f32 %v1520, %v1972
        %v2009 = vadd.f32 %v1523, %v1975
        %s2010 = scalar_lea.vmem %s468, 12
        %v2011 = vld [vmem:[%s2010] sm:$0xf]
        %v2012 = vld [vmem:[%s2010 + $0x4] sm:$0xf]
        %v2013 = vld [vmem:[%s2010 + $0xc] sm:$0xf]
        %v2014 = vld [vmem:[%s2010 + $0x10] sm:$0xf]
        %v2015 = vld [vmem:[%s2010 + $0x18] sm:$0xf]
        %v2016 = vld [vmem:[%s2010 + $0x1c] sm:$0xf]
        %v2017 = vld [vmem:[%s2010 + $0x24] sm:$0xf]
        %v2018 = vld [vmem:[%s2010 + $0x28] sm:$0xf]
        %v2019 = vld [vmem:[%s2010 + $0x30] sm:$0xf]
        %v2020 = vld [vmem:[%s2010 + $0x34] sm:$0xf]
        %v2021 = vld [vmem:[%s2010 + $0x3c] sm:$0xf]
        %v2022 = vld [vmem:[%s2010 + $0x40] sm:$0xf]
        %v2023 = vld [vmem:[%s2010 + $0x48] sm:$0xf]
        %v2024 = vld [vmem:[%s2010 + $0x4c] sm:$0xf]
        %v2025 = vld [vmem:[%s2010 + $0x54] sm:$0xf]
        %v2026 = vld [vmem:[%s2010 + $0x58] sm:$0xf]
        %v2027 = vld [vmem:[%s2010 + $0x60] sm:$0xf]
        %v2028 = vld [vmem:[%s2010 + $0x64] sm:$0xf]
        %v2029 = vld [vmem:[%s2010 + $0x6c] sm:$0xf]
        %v2030 = vld [vmem:[%s2010 + $0x70] sm:$0xf]
        %v2031 = vld [vmem:[%s2010 + $0x78] sm:$0xf]
        %v2032 = vld [vmem:[%s2010 + $0x7c] sm:$0xf]
        %v2033 = vld [vmem:[%s2010 + $0x84] sm:$0xf]
        %v2034 = vld [vmem:[%s2010 + $0x88] sm:$0xf]
        %v2035 = vld [vmem:[%s2010 + $0x90] sm:$0xf]
        %v2036 = vld [vmem:[%s2010 + $0x94] sm:$0xf]
        %v2037 = vld [vmem:[%s2010 + $0x9c] sm:$0xf]
        %v2038 = vld [vmem:[%s2010 + $0xa0] sm:$0xf]
        %v2039 = vld [vmem:[%s2010 + $0xa8] sm:$0xf]
        %v2040 = vld [vmem:[%s2010 + $0xac] sm:$0xf]
        %v2041 = vld [vmem:[%s2010 + $0xb4] sm:$0xf]
        %v2042 = vld [vmem:[%s2010 + $0xb8] sm:$0xf]
        %v2043 = vld [vmem:[%s3 + $0x60] sm:$0xf]
        %v2044 = vld [vmem:[%s3 + $0x64] sm:$0xf]
        %v2045 = vld [vmem:[%s3 + $0x68] sm:$0xf]
        %v2046 = vld [vmem:[%s3 + $0x6c] sm:$0xf]
        %v2047 = vld [vmem:[%s3 + $0x70] sm:$0xf]
        %v2048 = vld [vmem:[%s3 + $0x74] sm:$0xf]
        %v2049 = vld [vmem:[%s3 + $0x78] sm:$0xf]
        %v2050 = vld [vmem:[%s3 + $0x7c] sm:$0xf]
        %v2083 = vunpack.c.l.b16 %v2011
        %v2084 = vunpack.c.l.b16 %v2012
        %v2085 = vunpack.c.l.b16 %v2013
        %v2086 = vunpack.c.l.b16 %v2014
        %v2087 = vunpack.c.l.b16 %v2015
        %v2088 = vunpack.c.l.b16 %v2016
        %v2089 = vunpack.c.l.b16 %v2017
        %v2090 = vunpack.c.l.b16 %v2018
        %v2091 = vunpack.c.l.b16 %v2019
        %v2092 = vunpack.c.l.b16 %v2020
        %v2093 = vunpack.c.l.b16 %v2021
        %v2094 = vunpack.c.l.b16 %v2022
        %v2095 = vunpack.c.l.b16 %v2023
        %v2096 = vunpack.c.l.b16 %v2024
        %v2097 = vunpack.c.l.b16 %v2025
        %v2098 = vunpack.c.l.b16 %v2026
        %v2099 = vunpack.c.l.b16 %v2027
        %v2100 = vunpack.c.l.b16 %v2028
        %v2101 = vunpack.c.l.b16 %v2029
        %v2102 = vunpack.c.l.b16 %v2030
        %v2103 = vunpack.c.l.b16 %v2031
        %v2104 = vunpack.c.l.b16 %v2032
        %v2105 = vunpack.c.l.b16 %v2033
        %v2106 = vunpack.c.l.b16 %v2034
        %v2107 = vunpack.c.l.b16 %v2035
        %v2108 = vunpack.c.l.b16 %v2036
        %v2109 = vunpack.c.l.b16 %v2037
        %v2110 = vunpack.c.l.b16 %v2038
        %v2111 = vunpack.c.l.b16 %v2039
        %v2112 = vunpack.c.l.b16 %v2040
        %v2113 = vunpack.c.l.b16 %v2041
        %v2114 = vunpack.c.l.b16 %v2042
        %v2115 = vpack.c.b16 %v2084, %v2083
        %v2116 = vpack.c.b16 %v2086, %v2085
        %v2117 = vpack.c.b16 %v2088, %v2087
        %v2118 = vpack.c.b16 %v2090, %v2089
        %v2119 = vpack.c.b16 %v2092, %v2091
        %v2120 = vpack.c.b16 %v2094, %v2093
        %v2121 = vpack.c.b16 %v2096, %v2095
        %v2122 = vpack.c.b16 %v2098, %v2097
        %v2123 = vpack.c.b16 %v2100, %v2099
        %v2124 = vpack.c.b16 %v2102, %v2101
        %v2125 = vpack.c.b16 %v2104, %v2103
        %v2126 = vpack.c.b16 %v2106, %v2105
        %v2127 = vpack.c.b16 %v2108, %v2107
        %v2128 = vpack.c.b16 %v2110, %v2109
        %v2129 = vpack.c.b16 %v2112, %v2111
        %v2130 = vpack.c.b16 %v2114, %v2113
        %v2139 = vunpack.c.l.b16 %v2043
        %v2140 = vunpack.c.l.b16 %v2044
        %v2141 = vunpack.c.l.b16 %v2045
        %v2142 = vunpack.c.l.b16 %v2046
        %v2143 = vunpack.c.l.b16 %v2047
        %v2144 = vunpack.c.l.b16 %v2048
        %v2145 = vunpack.c.l.b16 %v2049
        %v2146 = vunpack.c.l.b16 %v2050
        %v2147 = vpack.c.b16 %v2140, %v2139
        %v2148 = vpack.c.b16 %v2142, %v2141
        %v2149 = vpack.c.b16 %v2144, %v2143
        %v2150 = vpack.c.b16 %v2146, %v2145
        %v2156 = vsel %vm1003, %v2115, 0
        %v2159 = vsel %vm1003, %v2116, 0
        %v2162 = vsel %vm1003, %v2117, 0
        %v2165 = vsel %vm1003, %v2118, 0
        %v2168 = vsel %vm1003, %v2119, 0
        %v2171 = vsel %vm1003, %v2120, 0
        %v2174 = vsel %vm1003, %v2121, 0
        %v2177 = vsel %vm1003, %v2122, 0
        %v2180 = vsel %vm1003, %v2123, 0
        %v2183 = vsel %vm1003, %v2124, 0
        %v2186 = vsel %vm1003, %v2125, 0
        %v2189 = vsel %vm1003, %v2126, 0
        %v2192 = vsel %vm1003, %v2127, 0
        %v2195 = vsel %vm1003, %v2128, 0
        %v2198 = vsel %vm1003, %v2129, 0
        %v2201 = vsel %vm1003, %v2130, 0
        %2203 = vmatprep.subr.bf16.mxu0 0
        %2204 = vmatpush1.bf16.msra.mxu0 %v2147
        %2205 = vmatprep.subr.bf16.mxu0 0
        %2206 = vmatpush1.bf16.msra.mxu0 %v2148
        %2207 = vmatprep.subr.bf16.mxu0 0
        %2208 = vmatpush1.bf16.msra.mxu0 %v2149
        %2209 = vmatprep.subr.bf16.mxu0 0
        %2210 = vmatpush1.bf16.msra.mxu0 %v2150
        %2211 = vmatprep.subr.bf16.mxu0 0
        %2212 = vmatpush1.bf16.msra.mxu0 0
        %2213 = vmatprep.subr.bf16.mxu0 0
        %2214 = vmatpush1.bf16.msra.mxu0 0
        %2215 = vmatprep.subr.bf16.mxu0 0
        %2216 = vmatpush1.bf16.msra.mxu0 0
        %2217 = vmatprep.subr.bf16.mxu0 0
        %2218 = vmatpush1.bf16.msra.mxu0 0
        %2219 = vmatprep.subr.bf16.mxu0 0
        %2220 = vmatpush1.bf16.msra.mxu0 0
        %2221 = vmatprep.subr.bf16.mxu0 0
        %2222 = vmatpush1.bf16.msra.mxu0 0
        %2223 = vmatprep.subr.bf16.mxu0 0
        %2224 = vmatpush1.bf16.msra.mxu0 0
        %2225 = vmatprep.subr.bf16.mxu0 0
        %2226 = vmatpush1.bf16.msra.mxu0 0
        %2227 = vmatprep.subr.bf16.mxu0 0
        %2228 = vmatpush1.bf16.msra.mxu0 0
        %2229 = vmatprep.subr.bf16.mxu0 0
        %2230 = vmatpush1.bf16.msra.mxu0 0
        %2231 = vmatprep.subr.bf16.mxu0 0
        %2232 = vmatpush1.bf16.msra.mxu0 0
        %2233 = vmatprep.subr.bf16.mxu0 0
        %2234 = vmatpush1.bf16.msra.mxu0 0
        %2235 = vmatprep.mubr.bf16.mxu0 0
        %2236 = vmatmul.mubr.bf16.gmra.mrb[0].mxu0 %v2156
        %v2237 = vpop.f32.mrb[0].mxu0
        %v2238 = vadd.f32 0.0, %v2237
        %v2239 = vpop.f32.mrb[0].mxu0
        %v2240 = vpop.f32.mrb[0].mxu0
        %v2241 = vadd.f32 0.0, %v2240
        %v2242 = vpop.f32.mrb[0].mxu0
        %2243 = vmatprep.mubr.bf16.mxu0 0
        %2244 = vmatmul.mubr.bf16.gmra.mrb[0].mxu0 %v2159
        %v2245 = vpop.f32.mrb[0].mxu0
        %v2246 = vadd.f32 0.0, %v2245
        %v2247 = vpop.f32.mrb[0].mxu0
        %v2248 = vpop.f32.mrb[0].mxu0
        %v2249 = vadd.f32 0.0, %v2248
        %v2250 = vpop.f32.mrb[0].mxu0
        %2251 = vmatprep.mubr.bf16.mxu0 0
        %2252 = vmatmul.mubr.bf16.gmra.mrb[0].mxu0 %v2162
        %v2253 = vpop.f32.mrb[0].mxu0
        %v2254 = vadd.f32 0.0, %v2253
        %v2255 = vpop.f32.mrb[0].mxu0
        %v2256 = vpop.f32.mrb[0].mxu0
        %v2257 = vadd.f32 0.0, %v2256
        %v2258 = vpop.f32.mrb[0].mxu0
        %2259 = vmatprep.mubr.bf16.mxu0 0
        %2260 = vmatmul.mubr.bf16.gmra.mrb[0].mxu0 %v2165
        %v2261 = vpop.f32.mrb[0].mxu0
        %v2262 = vadd.f32 0.0, %v2261
        %v2263 = vpop.f32.mrb[0].mxu0
        %v2264 = vpop.f32.mrb[0].mxu0
        %v2265 = vadd.f32 0.0, %v2264
        %v2266 = vpop.f32.mrb[0].mxu0
        %2267 = vmatprep.mubr.bf16.mxu0 0
        %2268 = vmatmul.mubr.bf16.gmra.mrb[0].mxu0 %v2168
        %v2269 = vpop.f32.mrb[0].mxu0
        %v2270 = vadd.f32 0.0, %v2269
        %v2271 = vpop.f32.mrb[0].mxu0
        %v2272 = vpop.f32.mrb[0].mxu0
        %v2273 = vadd.f32 0.0, %v2272
        %v2274 = vpop.f32.mrb[0].mxu0
        %2275 = vmatprep.mubr.bf16.mxu0 0
        %2276 = vmatmul.mubr.bf16.gmra.mrb[0].mxu0 %v2171
        %v2277 = vpop.f32.mrb[0].mxu0
        %v2278 = vadd.f32 0.0, %v2277
        %v2279 = vpop.f32.mrb[0].mxu0
        %v2280 = vpop.f32.mrb[0].mxu0
        %v2281 = vadd.f32 0.0, %v2280
        %v2282 = vpop.f32.mrb[0].mxu0
        %2283 = vmatprep.mubr.bf16.mxu0 0
        %2284 = vmatmul.mubr.bf16.gmra.mrb[0].mxu0 %v2174
        %v2285 = vpop.f32.mrb[0].mxu0
        %v2286 = vadd.f32 0.0, %v2285
        %v2287 = vpop.f32.mrb[0].mxu0
        %v2288 = vpop.f32.mrb[0].mxu0
        %v2289 = vadd.f32 0.0, %v2288
        %v2290 = vpop.f32.mrb[0].mxu0
        %2291 = vmatprep.mubr.bf16.mxu0 0
        %2292 = vmatmul.mubr.bf16.gmra.mrb[0].mxu0 %v2177
        %v2293 = vpop.f32.mrb[0].mxu0
        %v2294 = vadd.f32 0.0, %v2293
        %v2295 = vpop.f32.mrb[0].mxu0
        %v2296 = vpop.f32.mrb[0].mxu0
        %v2297 = vadd.f32 0.0, %v2296
        %v2298 = vpop.f32.mrb[0].mxu0
        %2299 = vmatprep.mubr.bf16.mxu0 0
        %2300 = vmatmul.mubr.bf16.gmra.mrb[0].mxu0 %v2180
        %v2301 = vpop.f32.mrb[0].mxu0
        %v2302 = vadd.f32 0.0, %v2301
        %v2303 = vpop.f32.mrb[0].mxu0
        %v2304 = vpop.f32.mrb[0].mxu0
        %v2305 = vadd.f32 0.0, %v2304
        %v2306 = vpop.f32.mrb[0].mxu0
        %2307 = vmatprep.mubr.bf16.mxu0 0
        %2308 = vmatmul.mubr.bf16.gmra.mrb[0].mxu0 %v2183
        %v2309 = vpop.f32.mrb[0].mxu0
        %v2310 = vadd.f32 0.0, %v2309
        %v2311 = vpop.f32.mrb[0].mxu0
        %v2312 = vpop.f32.mrb[0].mxu0
        %v2313 = vadd.f32 0.0, %v2312
        %v2314 = vpop.f32.mrb[0].mxu0
        %2315 = vmatprep.mubr.bf16.mxu0 0
        %2316 = vmatmul.mubr.bf16.gmra.mrb[0].mxu0 %v2186
        %v2317 = vpop.f32.mrb[0].mxu0
        %v2318 = vadd.f32 0.0, %v2317
        %v2319 = vpop.f32.mrb[0].mxu0
        %v2320 = vpop.f32.mrb[0].mxu0
        %v2321 = vadd.f32 0.0, %v2320
        %v2322 = vpop.f32.mrb[0].mxu0
        %2323 = vmatprep.mubr.bf16.mxu0 0
        %2324 = vmatmul.mubr.bf16.gmra.mrb[0].mxu0 %v2189
        %v2325 = vpop.f32.mrb[0].mxu0
        %v2326 = vadd.f32 0.0, %v2325
        %v2327 = vpop.f32.mrb[0].mxu0
        %v2328 = vpop.f32.mrb[0].mxu0
        %v2329 = vadd.f32 0.0, %v2328
        %v2330 = vpop.f32.mrb[0].mxu0
        %2331 = vmatprep.mubr.bf16.mxu0 0
        %2332 = vmatmul.mubr.bf16.gmra.mrb[0].mxu0 %v2192
        %v2333 = vpop.f32.mrb[0].mxu0
        %v2334 = vadd.f32 0.0, %v2333
        %v2335 = vpop.f32.mrb[0].mxu0
        %v2336 = vpop.f32.mrb[0].mxu0
        %v2337 = vadd.f32 0.0, %v2336
        %v2338 = vpop.f32.mrb[0].mxu0
        %2339 = vmatprep.mubr.bf16.mxu0 0
        %2340 = vmatmul.mubr.bf16.gmra.mrb[0].mxu0 %v2195
        %v2341 = vpop.f32.mrb[0].mxu0
        %v2342 = vadd.f32 0.0, %v2341
        %v2343 = vpop.f32.mrb[0].mxu0
        %v2344 = vpop.f32.mrb[0].mxu0
        %v2345 = vadd.f32 0.0, %v2344
        %v2346 = vpop.f32.mrb[0].mxu0
        %2347 = vmatprep.mubr.bf16.mxu0 0
        %2348 = vmatmul.mubr.bf16.gmra.mrb[0].mxu0 %v2198
        %v2349 = vpop.f32.mrb[0].mxu0
        %v2350 = vadd.f32 0.0, %v2349
        %v2351 = vpop.f32.mrb[0].mxu0
        %v2352 = vpop.f32.mrb[0].mxu0
        %v2353 = vadd.f32 0.0, %v2352
        %v2354 = vpop.f32.mrb[0].mxu0
        %2355 = vmatprep.mubr.bf16.mxu0 0
        %2356 = vmatmul.mubr.bf16.gmra.mrb[0].mxu0 %v2201
        %v2357 = vpop.f32.mrb[0].mxu0
        %v2358 = vadd.f32 0.0, %v2357
        %v2359 = vpop.f32.mrb[0].mxu0
        %v2360 = vpop.f32.mrb[0].mxu0
        %v2361 = vadd.f32 0.0, %v2360
        %v2362 = vpop.f32.mrb[0].mxu0
        %2363 = vdwg.mxu0
        %v2364 = vadd.f32 %v1978, %v2238
        %v2365 = vadd.f32 %v1979, %v2241
        %v2366 = vadd.f32 %v1980, %v2246
        %v2367 = vadd.f32 %v1981, %v2249
        %v2368 = vadd.f32 %v1982, %v2254
        %v2369 = vadd.f32 %v1983, %v2257
        %v2370 = vadd.f32 %v1984, %v2262
        %v2371 = vadd.f32 %v1985, %v2265
        %v2372 = vadd.f32 %v1986, %v2270
        %v2373 = vadd.f32 %v1987, %v2273
        %v2374 = vadd.f32 %v1988, %v2278
        %v2375 = vadd.f32 %v1989, %v2281
        %v2376 = vadd.f32 %v1990, %v2286
        %v2377 = vadd.f32 %v1991, %v2289
        %v2378 = vadd.f32 %v1992, %v2294
        %v2379 = vadd.f32 %v1993, %v2297
        %v2380 = vadd.f32 %v1994, %v2302
        %v2381 = vadd.f32 %v1995, %v2305
        %v2382 = vadd.f32 %v1996, %v2310
        %v2383 = vadd.f32 %v1997, %v2313
        %v2384 = vadd.f32 %v1998, %v2318
        %v2385 = vadd.f32 %v1999, %v2321
        %v2386 = vadd.f32 %v2000, %v2326
        %v2387 = vadd.f32 %v2001, %v2329
        %v2388 = vadd.f32 %v2002, %v2334
        %v2389 = vadd.f32 %v2003, %v2337
        %v2390 = vadd.f32 %v2004, %v2342
        %v2391 = vadd.f32 %v2005, %v2345
        %v2392 = vadd.f32 %v2006, %v2350
        %v2393 = vadd.f32 %v2007, %v2353
        %v2394 = vadd.f32 %v2008, %v2358
        %v2395 = vadd.f32 %v2009, %v2361
        %v2396 = vld [vmem:[%s2010] sm:$0xf]
        %v2397 = vld [vmem:[%s2010 + $0x4] sm:$0xf]
        %v2398 = vld [vmem:[%s2010 + $0x8] sm:$0x1]
        %v2399 = vld [vmem:[%s2010 + $0xc] sm:$0xf]
        %v2400 = vld [vmem:[%s2010 + $0x10] sm:$0xf]
        %v2401 = vld [vmem:[%s2010 + $0x14] sm:$0x1]
        %v2402 = vld [vmem:[%s2010 + $0x18] sm:$0xf]
        %v2403 = vld [vmem:[%s2010 + $0x1c] sm:$0xf]
        %v2404 = vld [vmem:[%s2010 + $0x20] sm:$0x1]
        %v2405 = vld [vmem:[%s2010 + $0x24] sm:$0xf]
        %v2406 = vld [vmem:[%s2010 + $0x28] sm:$0xf]
        %v2407 = vld [vmem:[%s2010 + $0x2c] sm:$0x1]
        %v2408 = vld [vmem:[%s2010 + $0x30] sm:$0xf]
        %v2409 = vld [vmem:[%s2010 + $0x34] sm:$0xf]
        %v2410 = vld [vmem:[%s2010 + $0x38] sm:$0x1]
        %v2411 = vld [vmem:[%s2010 + $0x3c] sm:$0xf]
        %v2412 = vld [vmem:[%s2010 + $0x40] sm:$0xf]
        %v2413 = vld [vmem:[%s2010 + $0x44] sm:$0x1]
        %v2414 = vld [vmem:[%s2010 + $0x48] sm:$0xf]
        %v2415 = vld [vmem:[%s2010 + $0x4c] sm:$0xf]
        %v2416 = vld [vmem:[%s2010 + $0x50] sm:$0x1]
        %v2417 = vld [vmem:[%s2010 + $0x54] sm:$0xf]
        %v2418 = vld [vmem:[%s2010 + $0x58] sm:$0xf]
        %v2419 = vld [vmem:[%s2010 + $0x5c] sm:$0x1]
        %v2420 = vld [vmem:[%s2010 + $0x60] sm:$0xf]
        %v2421 = vld [vmem:[%s2010 + $0x64] sm:$0xf]
        %v2422 = vld [vmem:[%s2010 + $0x68] sm:$0x1]
        %v2423 = vld [vmem:[%s2010 + $0x6c] sm:$0xf]
        %v2424 = vld [vmem:[%s2010 + $0x70] sm:$0xf]
        %v2425 = vld [vmem:[%s2010 + $0x74] sm:$0x1]
        %v2426 = vld [vmem:[%s2010 + $0x78] sm:$0xf]
        %v2427 = vld [vmem:[%s2010 + $0x7c] sm:$0xf]
        %v2428 = vld [vmem:[%s2010 + $0x80] sm:$0x1]
        %v2429 = vld [vmem:[%s2010 + $0x84] sm:$0xf]
        %v2430 = vld [vmem:[%s2010 + $0x88] sm:$0xf]
        %v2431 = vld [vmem:[%s2010 + $0x8c] sm:$0x1]
        %v2432 = vld [vmem:[%s2010 + $0x90] sm:$0xf]
        %v2433 = vld [vmem:[%s2010 + $0x94] sm:$0xf]
        %v2434 = vld [vmem:[%s2010 + $0x98] sm:$0x1]
        %v2435 = vld [vmem:[%s2010 + $0x9c] sm:$0xf]
        %v2436 = vld [vmem:[%s2010 + $0xa0] sm:$0xf]
        %v2437 = vld [vmem:[%s2010 + $0xa4] sm:$0x1]
        %v2438 = vld [vmem:[%s2010 + $0xa8] sm:$0xf]
        %v2439 = vld [vmem:[%s2010 + $0xac] sm:$0xf]
        %v2440 = vld [vmem:[%s2010 + $0xb0] sm:$0x1]
        %v2441 = vld [vmem:[%s2010 + $0xb4] sm:$0xf]
        %v2442 = vld [vmem:[%s2010 + $0xb8] sm:$0xf]
        %v2443 = vld [vmem:[%s2010 + $0xbc] sm:$0x1]
        %v2445 = vshrl.u32 %v2396, 16
        %v2447 = vrot.slane %v2445, 4
        %v2448 = vshll.u32 %v2396, 16
        %v2450 = vrot.slane %v2448, 5
        %v2451 = vor.u32 %v2447, %v2450
        %v2452 = vrot.slane %v2451, 4
        %v2454 = vshll.u32 %v2397, 16
        %v2456 = vrot.slane %v2454, 5
        %v2457 = vsel %vm538, %v2452, %v2456
        %v2458 = vshrl.u32 %v2397, 16
        %v2460 = vrot.slane %v2458, 4
        %v2461 = vor.u32 %v2460, %v2456
        %v2462 = vrot.slane %v2461, 4
        %v2464 = vshll.u32 %v2398, 16
        %v2466 = vrot.slane %v2464, 5
        %v2467 = vsel %vm538, %v2462, %v2466
        %v2469 = vshrl.u32 %v2399, 16
        %v2471 = vrot.slane %v2469, 4
        %v2472 = vshll.u32 %v2399, 16
        %v2474 = vrot.slane %v2472, 5
        %v2475 = vor.u32 %v2471, %v2474
        %v2476 = vrot.slane %v2475, 4
        %v2478 = vshll.u32 %v2400, 16
        %v2480 = vrot.slane %v2478, 5
        %v2481 = vsel %vm538, %v2476, %v2480
        %v2482 = vshrl.u32 %v2400, 16
        %v2484 = vrot.slane %v2482, 4
        %v2485 = vor.u32 %v2484, %v2480
        %v2486 = vrot.slane %v2485, 4
        %v2488 = vshll.u32 %v2401, 16
        %v2490 = vrot.slane %v2488, 5
        %v2491 = vsel %vm538, %v2486, %v2490
        %v2493 = vshrl.u32 %v2402, 16
        %v2495 = vrot.slane %v2493, 4
        %v2496 = vshll.u32 %v2402, 16
        %v2498 = vrot.slane %v2496, 5
        %v2499 = vor.u32 %v2495, %v2498
        %v2500 = vrot.slane %v2499, 4
        %v2502 = vshll.u32 %v2403, 16
        %v2504 = vrot.slane %v2502, 5
        %v2505 = vsel %vm538, %v2500, %v2504
        %v2506 = vshrl.u32 %v2403, 16
        %v2508 = vrot.slane %v2506, 4
        %v2509 = vor.u32 %v2508, %v2504
        %v2510 = vrot.slane %v2509, 4
        %v2512 = vshll.u32 %v2404, 16
        %v2514 = vrot.slane %v2512, 5
        %v2515 = vsel %vm538, %v2510, %v2514
        %v2517 = vshrl.u32 %v2405, 16
        %v2519 = vrot.slane %v2517, 4
        %v2520 = vshll.u32 %v2405, 16
        %v2522 = vrot.slane %v2520, 5
        %v2523 = vor.u32 %v2519, %v2522
        %v2524 = vrot.slane %v2523, 4
        %v2526 = vshll.u32 %v2406, 16
        %v2528 = vrot.slane %v2526, 5
        %v2529 = vsel %vm538, %v2524, %v2528
        %v2530 = vshrl.u32 %v2406, 16
        %v2532 = vrot.slane %v2530, 4
        %v2533 = vor.u32 %v2532, %v2528
        %v2534 = vrot.slane %v2533, 4
        %v2536 = vshll.u32 %v2407, 16
        %v2538 = vrot.slane %v2536, 5
        %v2539 = vsel %vm538, %v2534, %v2538
        %v2541 = vshrl.u32 %v2408, 16
        %v2543 = vrot.slane %v2541, 4
        %v2544 = vshll.u32 %v2408, 16
        %v2546 = vrot.slane %v2544, 5
        %v2547 = vor.u32 %v2543, %v2546
        %v2548 = vrot.slane %v2547, 4
        %v2550 = vshll.u32 %v2409, 16
        %v2552 = vrot.slane %v2550, 5
        %v2553 = vsel %vm538, %v2548, %v2552
        %v2554 = vshrl.u32 %v2409, 16
        %v2556 = vrot.slane %v2554, 4
        %v2557 = vor.u32 %v2556, %v2552
        %v2558 = vrot.slane %v2557, 4
        %v2560 = vshll.u32 %v2410, 16
        %v2562 = vrot.slane %v2560, 5
        %v2563 = vsel %vm538, %v2558, %v2562
        %v2565 = vshrl.u32 %v2411, 16
        %v2567 = vrot.slane %v2565, 4
        %v2568 = vshll.u32 %v2411, 16
        %v2570 = vrot.slane %v2568, 5
        %v2571 = vor.u32 %v2567, %v2570
        %v2572 = vrot.slane %v2571, 4
        %v2574 = vshll.u32 %v2412, 16
        %v2576 = vrot.slane %v2574, 5
        %v2577 = vsel %vm538, %v2572, %v2576
        %v2578 = vshrl.u32 %v2412, 16
        %v2580 = vrot.slane %v2578, 4
        %v2581 = vor.u32 %v2580, %v2576
        %v2582 = vrot.slane %v2581, 4
        %v2584 = vshll.u32 %v2413, 16
        %v2586 = vrot.slane %v2584, 5
        %v2587 = vsel %vm538, %v2582, %v2586
        %v2589 = vshrl.u32 %v2414, 16
        %v2591 = vrot.slane %v2589, 4
        %v2592 = vshll.u32 %v2414, 16
        %v2594 = vrot.slane %v2592, 5
        %v2595 = vor.u32 %v2591, %v2594
        %v2596 = vrot.slane %v2595, 4
        %v2598 = vshll.u32 %v2415, 16
        %v2600 = vrot.slane %v2598, 5
        %v2601 = vsel %vm538, %v2596, %v2600
        %v2602 = vshrl.u32 %v2415, 16
        %v2604 = vrot.slane %v2602, 4
        %v2605 = vor.u32 %v2604, %v2600
        %v2606 = vrot.slane %v2605, 4
        %v2608 = vshll.u32 %v2416, 16
        %v2610 = vrot.slane %v2608, 5
        %v2611 = vsel %vm538, %v2606, %v2610
        %v2613 = vshrl.u32 %v2417, 16
        %v2615 = vrot.slane %v2613, 4
        %v2616 = vshll.u32 %v2417, 16
        %v2618 = vrot.slane %v2616, 5
        %v2619 = vor.u32 %v2615, %v2618
        %v2620 = vrot.slane %v2619, 4
        %v2622 = vshll.u32 %v2418, 16
        %v2624 = vrot.slane %v2622, 5
        %v2625 = vsel %vm538, %v2620, %v2624
        %v2626 = vshrl.u32 %v2418, 16
        %v2628 = vrot.slane %v2626, 4
        %v2629 = vor.u32 %v2628, %v2624
        %v2630 = vrot.slane %v2629, 4
        %v2632 = vshll.u32 %v2419, 16
        %v2634 = vrot.slane %v2632, 5
        %v2635 = vsel %vm538, %v2630, %v2634
        %v2637 = vshrl.u32 %v2420, 16
        %v2639 = vrot.slane %v2637, 4
        %v2640 = vshll.u32 %v2420, 16
        %v2642 = vrot.slane %v2640, 5
        %v2643 = vor.u32 %v2639, %v2642
        %v2644 = vrot.slane %v2643, 4
        %v2646 = vshll.u32 %v2421, 16
        %v2648 = vrot.slane %v2646, 5
        %v2649 = vsel %vm538, %v2644, %v2648
        %v2650 = vshrl.u32 %v2421, 16
        %v2652 = vrot.slane %v2650, 4
        %v2653 = vor.u32 %v2652, %v2648
        %v2654 = vrot.slane %v2653, 4
        %v2656 = vshll.u32 %v2422, 16
        %v2658 = vrot.slane %v2656, 5
        %v2659 = vsel %vm538, %v2654, %v2658
        %v2661 = vshrl.u32 %v2423, 16
        %v2663 = vrot.slane %v2661, 4
        %v2664 = vshll.u32 %v2423, 16
        %v2666 = vrot.slane %v2664, 5
        %v2667 = vor.u32 %v2663, %v2666
        %v2668 = vrot.slane %v2667, 4
        %v2670 = vshll.u32 %v2424, 16
        %v2672 = vrot.slane %v2670, 5
        %v2673 = vsel %vm538, %v2668, %v2672
        %v2674 = vshrl.u32 %v2424, 16
        %v2676 = vrot.slane %v2674, 4
        %v2677 = vor.u32 %v2676, %v2672
        %v2678 = vrot.slane %v2677, 4
        %v2680 = vshll.u32 %v2425, 16
        %v2682 = vrot.slane %v2680, 5
        %v2683 = vsel %vm538, %v2678, %v2682
        %v2685 = vshrl.u32 %v2426, 16
        %v2687 = vrot.slane %v2685, 4
        %v2688 = vshll.u32 %v2426, 16
        %v2690 = vrot.slane %v2688, 5
        %v2691 = vor.u32 %v2687, %v2690
        %v2692 = vrot.slane %v2691, 4
        %v2694 = vshll.u32 %v2427, 16
        %v2696 = vrot.slane %v2694, 5
        %v2697 = vsel %vm538, %v2692, %v2696
        %v2698 = vshrl.u32 %v2427, 16
        %v2700 = vrot.slane %v2698, 4
        %v2701 = vor.u32 %v2700, %v2696
        %v2702 = vrot.slane %v2701, 4
        %v2704 = vshll.u32 %v2428, 16
        %v2706 = vrot.slane %v2704, 5
        %v2707 = vsel %vm538, %v2702, %v2706
        %v2709 = vshrl.u32 %v2429, 16
        %v2711 = vrot.slane %v2709, 4
        %v2712 = vshll.u32 %v2429, 16
        %v2714 = vrot.slane %v2712, 5
        %v2715 = vor.u32 %v2711, %v2714
        %v2716 = vrot.slane %v2715, 4
        %v2718 = vshll.u32 %v2430, 16
        %v2720 = vrot.slane %v2718, 5
        %v2721 = vsel %vm538, %v2716, %v2720
        %v2722 = vshrl.u32 %v2430, 16
        %v2724 = vrot.slane %v2722, 4
        %v2725 = vor.u32 %v2724, %v2720
        %v2726 = vrot.slane %v2725, 4
        %v2728 = vshll.u32 %v2431, 16
        %v2730 = vrot.slane %v2728, 5
        %v2731 = vsel %vm538, %v2726, %v2730
        %v2733 = vshrl.u32 %v2432, 16
        %v2735 = vrot.slane %v2733, 4
        %v2736 = vshll.u32 %v2432, 16
        %v2738 = vrot.slane %v2736, 5
        %v2739 = vor.u32 %v2735, %v2738
        %v2740 = vrot.slane %v2739, 4
        %v2742 = vshll.u32 %v2433, 16
        %v2744 = vrot.slane %v2742, 5
        %v2745 = vsel %vm538, %v2740, %v2744
        %v2746 = vshrl.u32 %v2433, 16
        %v2748 = vrot.slane %v2746, 4
        %v2749 = vor.u32 %v2748, %v2744
        %v2750 = vrot.slane %v2749, 4
        %v2752 = vshll.u32 %v2434, 16
        %v2754 = vrot.slane %v2752, 5
        %v2755 = vsel %vm538, %v2750, %v2754
        %v2757 = vshrl.u32 %v2435, 16
        %v2759 = vrot.slane %v2757, 4
        %v2760 = vshll.u32 %v2435, 16
        %v2762 = vrot.slane %v2760, 5
        %v2763 = vor.u32 %v2759, %v2762
        %v2764 = vrot.slane %v2763, 4
        %v2766 = vshll.u32 %v2436, 16
        %v2768 = vrot.slane %v2766, 5
        %v2769 = vsel %vm538, %v2764, %v2768
        %v2770 = vshrl.u32 %v2436, 16
        %v2772 = vrot.slane %v2770, 4
        %v2773 = vor.u32 %v2772, %v2768
        %v2774 = vrot.slane %v2773, 4
        %v2776 = vshll.u32 %v2437, 16
        %v2778 = vrot.slane %v2776, 5
        %v2779 = vsel %vm538, %v2774, %v2778
        %v2781 = vshrl.u32 %v2438, 16
        %v2783 = vrot.slane %v2781, 4
        %v2784 = vshll.u32 %v2438, 16
        %v2786 = vrot.slane %v2784, 5
        %v2787 = vor.u32 %v2783, %v2786
        %v2788 = vrot.slane %v2787, 4
        %v2790 = vshll.u32 %v2439, 16
        %v2792 = vrot.slane %v2790, 5
        %v2793 = vsel %vm538, %v2788, %v2792
        %v2794 = vshrl.u32 %v2439, 16
        %v2796 = vrot.slane %v2794, 4
        %v2797 = vor.u32 %v2796, %v2792
        %v2798 = vrot.slane %v2797, 4
        %v2800 = vshll.u32 %v2440, 16
        %v2802 = vrot.slane %v2800, 5
        %v2803 = vsel %vm538, %v2798, %v2802
        %v2805 = vshrl.u32 %v2441, 16
        %v2807 = vrot.slane %v2805, 4
        %v2808 = vshll.u32 %v2441, 16
        %v2810 = vrot.slane %v2808, 5
        %v2811 = vor.u32 %v2807, %v2810
        %v2812 = vrot.slane %v2811, 4
        %v2814 = vshll.u32 %v2442, 16
        %v2816 = vrot.slane %v2814, 5
        %v2817 = vsel %vm538, %v2812, %v2816
        %v2818 = vshrl.u32 %v2442, 16
        %v2820 = vrot.slane %v2818, 4
        %v2821 = vor.u32 %v2820, %v2816
        %v2822 = vrot.slane %v2821, 4
        %v2824 = vshll.u32 %v2443, 16
        %v2826 = vrot.slane %v2824, 5
        %v2827 = vsel %vm538, %v2822, %v2826
        %v2828 = vld [vmem:[%s3 + $0x80] sm:$0xf]
        %v2829 = vld [vmem:[%s3 + $0x84] sm:$0xf]
        %v2830 = vld [vmem:[%s3 + $0x88] sm:$0xf]
        %v2831 = vld [vmem:[%s3 + $0x8c] sm:$0xf]
        %v2832 = vld [vmem:[%s3 + $0x90] sm:$0xf]
        %v2833 = vld [vmem:[%s3 + $0x94] sm:$0xf]
        %v2834 = vld [vmem:[%s3 + $0x98] sm:$0xf]
        %v2835 = vld [vmem:[%s3 + $0x9c] sm:$0xf]
        %v2836 = vunpack.c.l.b16 %v2457
        %v2837 = vunpack.c.l.b16 %v2467
        %v2838 = vunpack.c.l.b16 %v2481
        %v2839 = vunpack.c.l.b16 %v2491
        %v2840 = vunpack.c.l.b16 %v2505
        %v2841 = vunpack.c.l.b16 %v2515
        %v2842 = vunpack.c.l.b16 %v2529
        %v2843 = vunpack.c.l.b16 %v2539
        %v2844 = vunpack.c.l.b16 %v2553
        %v2845 = vunpack.c.l.b16 %v2563
        %v2846 = vunpack.c.l.b16 %v2577
        %v2847 = vunpack.c.l.b16 %v2587
        %v2848 = vunpack.c.l.b16 %v2601
        %v2849 = vunpack.c.l.b16 %v2611
        %v2850 = vunpack.c.l.b16 %v2625
        %v2851 = vunpack.c.l.b16 %v2635
        %v2852 = vunpack.c.l.b16 %v2649
        %v2853 = vunpack.c.l.b16 %v2659
        %v2854 = vunpack.c.l.b16 %v2673
        %v2855 = vunpack.c.l.b16 %v2683
        %v2856 = vunpack.c.l.b16 %v2697
        %v2857 = vunpack.c.l.b16 %v2707
        %v2858 = vunpack.c.l.b16 %v2721
        %v2859 = vunpack.c.l.b16 %v2731
        %v2860 = vunpack.c.l.b16 %v2745
        %v2861 = vunpack.c.l.b16 %v2755
        %v2862 = vunpack.c.l.b16 %v2769
        %v2863 = vunpack.c.l.b16 %v2779
        %v2864 = vunpack.c.l.b16 %v2793
        %v2865 = vunpack.c.l.b16 %v2803
        %v2866 = vunpack.c.l.b16 %v2817
        %v2867 = vunpack.c.l.b16 %v2827
        %v2868 = vpack.c.b16 %v2837, %v2836
        %v2869 = vpack.c.b16 %v2839, %v2838
        %v2870 = vpack.c.b16 %v2841, %v2840
        %v2871 = vpack.c.b16 %v2843, %v2842
        %v2872 = vpack.c.b16 %v2845, %v2844
        %v2873 = vpack.c.b16 %v2847, %v2846
        %v2874 = vpack.c.b16 %v2849, %v2848
        %v2875 = vpack.c.b16 %v2851, %v2850
        %v2876 = vpack.c.b16 %v2853, %v2852
        %v2877 = vpack.c.b16 %v2855, %v2854
        %v2878 = vpack.c.b16 %v2857, %v2856
        %v2879 = vpack.c.b16 %v2859, %v2858
        %v2880 = vpack.c.b16 %v2861, %v2860
        %v2881 = vpack.c.b16 %v2863, %v2862
        %v2882 = vpack.c.b16 %v2865, %v2864
        %v2883 = vpack.c.b16 %v2867, %v2866
        %v2892 = vunpack.c.l.b16 %v2828
        %v2893 = vunpack.c.l.b16 %v2829
        %v2894 = vunpack.c.l.b16 %v2830
        %v2895 = vunpack.c.l.b16 %v2831
        %v2896 = vunpack.c.l.b16 %v2832
        %v2897 = vunpack.c.l.b16 %v2833
        %v2898 = vunpack.c.l.b16 %v2834
        %v2899 = vunpack.c.l.b16 %v2835
        %v2900 = vpack.c.b16 %v2893, %v2892
        %v2901 = vpack.c.b16 %v2895, %v2894
        %v2902 = vpack.c.b16 %v2897, %v2896
        %v2903 = vpack.c.b16 %v2899, %v2898
        %v2909 = vsel %vm1003, %v2868, 0
        %v2912 = vsel %vm1003, %v2869, 0
        %v2915 = vsel %vm1003, %v2870, 0
        %v2918 = vsel %vm1003, %v2871, 0
        %v2921 = vsel %vm1003, %v2872, 0
        %v2924 = vsel %vm1003, %v2873, 0
        %v2927 = vsel %vm1003, %v2874, 0
        %v2930 = vsel %vm1003, %v2875, 0
        %v2933 = vsel %vm1003, %v2876, 0
        %v2936 = vsel %vm1003, %v2877, 0
        %v2939 = vsel %vm1003, %v2878, 0
        %v2942 = vsel %vm1003, %v2879, 0
        %v2945 = vsel %vm1003, %v2880, 0
        %v2948 = vsel %vm1003, %v2881, 0
        %v2951 = vsel %vm1003, %v2882, 0
        %v2954 = vsel %vm1003, %v2883, 0
        %2956 = vmatprep.subr.bf16.mxu0 0
        %2957 = vmatpush1.bf16.msra.mxu0 %v2900
        %2958 = vmatprep.subr.bf16.mxu0 0
        %2959 = vmatpush1.bf16.msra.mxu0 %v2901
        %2960 = vmatprep.subr.bf16.mxu0 0
        %2961 = vmatpush1.bf16.msra.mxu0 %v2902
        %2962 = vmatprep.subr.bf16.mxu0 0
        %2963 = vmatpush1.bf16.msra.mxu0 %v2903
        %2964 = vmatprep.subr.bf16.mxu0 0
        %2965 = vmatpush1.bf16.msra.mxu0 0
        %2966 = vmatprep.subr.bf16.mxu0 0
        %2967 = vmatpush1.bf16.msra.mxu0 0
        %2968 = vmatprep.subr.bf16.mxu0 0
        %2969 = vmatpush1.bf16.msra.mxu0 0
        %2970 = vmatprep.subr.bf16.mxu0 0
        %2971 = vmatpush1.bf16.msra.mxu0 0
        %2972 = vmatprep.subr.bf16.mxu0 0
        %2973 = vmatpush1.bf16.msra.mxu0 0
        %2974 = vmatprep.subr.bf16.mxu0 0
        %2975 = vmatpush1.bf16.msra.mxu0 0
        %2976 = vmatprep.subr.bf16.mxu0 0
        %2977 = vmatpush1.bf16.msra.mxu0 0
        %2978 = vmatprep.subr.bf16.mxu0 0
        %2979 = vmatpush1.bf16.msra.mxu0 0
        %2980 = vmatprep.subr.bf16.mxu0 0
        %2981 = vmatpush1.bf16.msra.mxu0 0
        %2982 = vmatprep.subr.bf16.mxu0 0
        %2983 = vmatpush1.bf16.msra.mxu0 0
        %2984 = vmatprep.subr.bf16.mxu0 0
        %2985 = vmatpush1.bf16.msra.mxu0 0
        %2986 = vmatprep.subr.bf16.mxu0 0
        %2987 = vmatpush1.bf16.msra.mxu0 0
        %2988 = vmatprep.mubr.bf16.mxu0 0
        %2989 = vmatmul.mubr.bf16.gmra.mrb[0].mxu0 %v2909
        %v2990 = vpop.f32.mrb[0].mxu0
        %v2991 = vadd.f32 0.0, %v2990
        %v2992 = vpop.f32.mrb[0].mxu0
        %v2993 = vpop.f32.mrb[0].mxu0
        %v2994 = vadd.f32 0.0, %v2993
        %v2995 = vpop.f32.mrb[0].mxu0
        %2996 = vmatprep.mubr.bf16.mxu0 0
        %2997 = vmatmul.mubr.bf16.gmra.mrb[0].mxu0 %v2912
        %v2998 = vpop.f32.mrb[0].mxu0
        %v2999 = vadd.f32 0.0, %v2998
        %v3000 = vpop.f32.mrb[0].mxu0
        %v3001 = vpop.f32.mrb[0].mxu0
        %v3002 = vadd.f32 0.0, %v3001
        %v3003 = vpop.f32.mrb[0].mxu0
        %3004 = vmatprep.mubr.bf16.mxu0 0
        %3005 = vmatmul.mubr.bf16.gmra.mrb[0].mxu0 %v2915
        %v3006 = vpop.f32.mrb[0].mxu0
        %v3007 = vadd.f32 0.0, %v3006
        %v3008 = vpop.f32.mrb[0].mxu0
        %v3009 = vpop.f32.mrb[0].mxu0
        %v3010 = vadd.f32 0.0, %v3009
        %v3011 = vpop.f32.mrb[0].mxu0
        %3012 = vmatprep.mubr.bf16.mxu0 0
        %3013 = vmatmul.mubr.bf16.gmra.mrb[0].mxu0 %v2918
        %v3014 = vpop.f32.mrb[0].mxu0
        %v3015 = vadd.f32 0.0, %v3014
        %v3016 = vpop.f32.mrb[0].mxu0
        %v3017 = vpop.f32.mrb[0].mxu0
        %v3018 = vadd.f32 0.0, %v3017
        %v3019 = vpop.f32.mrb[0].mxu0
        %3020 = vmatprep.mubr.bf16.mxu0 0
        %3021 = vmatmul.mubr.bf16.gmra.mrb[0].mxu0 %v2921
        %v3022 = vpop.f32.mrb[0].mxu0
        %v3023 = vadd.f32 0.0, %v3022
        %v3024 = vpop.f32.mrb[0].mxu0
        %v3025 = vpop.f32.mrb[0].mxu0
        %v3026 = vadd.f32 0.0, %v3025
        %v3027 = vpop.f32.mrb[0].mxu0
        %3028 = vmatprep.mubr.bf16.mxu0 0
        %3029 = vmatmul.mubr.bf16.gmra.mrb[0].mxu0 %v2924
        %v3030 = vpop.f32.mrb[0].mxu0
        %v3031 = vadd.f32 0.0, %v3030
        %v3032 = vpop.f32.mrb[0].mxu0
        %v3033 = vpop.f32.mrb[0].mxu0
        %v3034 = vadd.f32 0.0, %v3033
        %v3035 = vpop.f32.mrb[0].mxu0
        %3036 = vmatprep.mubr.bf16.mxu0 0
        %3037 = vmatmul.mubr.bf16.gmra.mrb[0].mxu0 %v2927
        %v3038 = vpop.f32.mrb[0].mxu0
        %v3039 = vadd.f32 0.0, %v3038
        %v3040 = vpop.f32.mrb[0].mxu0
        %v3041 = vpop.f32.mrb[0].mxu0
        %v3042 = vadd.f32 0.0, %v3041
        %v3043 = vpop.f32.mrb[0].mxu0
        %3044 = vmatprep.mubr.bf16.mxu0 0
        %3045 = vmatmul.mubr.bf16.gmra.mrb[0].mxu0 %v2930
        %v3046 = vpop.f32.mrb[0].mxu0
        %v3047 = vadd.f32 0.0, %v3046
        %v3048 = vpop.f32.mrb[0].mxu0
        %v3049 = vpop.f32.mrb[0].mxu0
        %v3050 = vadd.f32 0.0, %v3049
        %v3051 = vpop.f32.mrb[0].mxu0
        %3052 = vmatprep.mubr.bf16.mxu0 0
        %3053 = vmatmul.mubr.bf16.gmra.mrb[0].mxu0 %v2933
        %v3054 = vpop.f32.mrb[0].mxu0
        %v3055 = vadd.f32 0.0, %v3054
        %v3056 = vpop.f32.mrb[0].mxu0
        %v3057 = vpop.f32.mrb[0].mxu0
        %v3058 = vadd.f32 0.0, %v3057
        %v3059 = vpop.f32.mrb[0].mxu0
        %3060 = vmatprep.mubr.bf16.mxu0 0
        %3061 = vmatmul.mubr.bf16.gmra.mrb[0].mxu0 %v2936
        %v3062 = vpop.f32.mrb[0].mxu0
        %v3063 = vadd.f32 0.0, %v3062
        %v3064 = vpop.f32.mrb[0].mxu0
        %v3065 = vpop.f32.mrb[0].mxu0
        %v3066 = vadd.f32 0.0, %v3065
        %v3067 = vpop.f32.mrb[0].mxu0
        %3068 = vmatprep.mubr.bf16.mxu0 0
        %3069 = vmatmul.mubr.bf16.gmra.mrb[0].mxu0 %v2939
        %v3070 = vpop.f32.mrb[0].mxu0
        %v3071 = vadd.f32 0.0, %v3070
        %v3072 = vpop.f32.mrb[0].mxu0
        %v3073 = vpop.f32.mrb[0].mxu0
        %v3074 = vadd.f32 0.0, %v3073
        %v3075 = vpop.f32.mrb[0].mxu0
        %3076 = vmatprep.mubr.bf16.mxu0 0
        %3077 = vmatmul.mubr.bf16.gmra.mrb[0].mxu0 %v2942
        %v3078 = vpop.f32.mrb[0].mxu0
        %v3079 = vadd.f32 0.0, %v3078
        %v3080 = vpop.f32.mrb[0].mxu0
        %v3081 = vpop.f32.mrb[0].mxu0
        %v3082 = vadd.f32 0.0, %v3081
        %v3083 = vpop.f32.mrb[0].mxu0
        %3084 = vmatprep.mubr.bf16.mxu0 0
        %3085 = vmatmul.mubr.bf16.gmra.mrb[0].mxu0 %v2945
        %v3086 = vpop.f32.mrb[0].mxu0
        %v3087 = vadd.f32 0.0, %v3086
        %v3088 = vpop.f32.mrb[0].mxu0
        %v3089 = vpop.f32.mrb[0].mxu0
        %v3090 = vadd.f32 0.0, %v3089
        %v3091 = vpop.f32.mrb[0].mxu0
        %3092 = vmatprep.mubr.bf16.mxu0 0
        %3093 = vmatmul.mubr.bf16.gmra.mrb[0].mxu0 %v2948
        %v3094 = vpop.f32.mrb[0].mxu0
        %v3095 = vadd.f32 0.0, %v3094
        %v3096 = vpop.f32.mrb[0].mxu0
        %v3097 = vpop.f32.mrb[0].mxu0
        %v3098 = vadd.f32 0.0, %v3097
        %v3099 = vpop.f32.mrb[0].mxu0
        %3100 = vmatprep.mubr.bf16.mxu0 0
        %3101 = vmatmul.mubr.bf16.gmra.mrb[0].mxu0 %v2951
        %v3102 = vpop.f32.mrb[0].mxu0
        %v3103 = vadd.f32 0.0, %v3102
        %v3104 = vpop.f32.mrb[0].mxu0
        %v3105 = vpop.f32.mrb[0].mxu0
        %v3106 = vadd.f32 0.0, %v3105
        %v3107 = vpop.f32.mrb[0].mxu0
        %3108 = vmatprep.mubr.bf16.mxu0 0
        %3109 = vmatmul.mubr.bf16.gmra.mrb[0].mxu0 %v2954
        %v3110 = vpop.f32.mrb[0].mxu0
        %v3111 = vadd.f32 0.0, %v3110
        %v3112 = vpop.f32.mrb[0].mxu0
        %v3113 = vpop.f32.mrb[0].mxu0
        %v3114 = vadd.f32 0.0, %v3113
        %v3115 = vpop.f32.mrb[0].mxu0
        %3116 = vdwg.mxu0
        %v3117 = vadd.f32 %v2364, %v2991
        %v3118 = vadd.f32 %v2365, %v2994
        %v3119 = vadd.f32 %v2366, %v2999
        %v3120 = vadd.f32 %v2367, %v3002
        %v3121 = vadd.f32 %v2368, %v3007
        %v3122 = vadd.f32 %v2369, %v3010
        %v3123 = vadd.f32 %v2370, %v3015
        %v3124 = vadd.f32 %v2371, %v3018
        %v3125 = vadd.f32 %v2372, %v3023
        %v3126 = vadd.f32 %v2373, %v3026
        %v3127 = vadd.f32 %v2374, %v3031
        %v3128 = vadd.f32 %v2375, %v3034
        %v3129 = vadd.f32 %v2376, %v3039
        %v3130 = vadd.f32 %v2377, %v3042
        %v3131 = vadd.f32 %v2378, %v3047
        %v3132 = vadd.f32 %v2379, %v3050
        %v3133 = vadd.f32 %v2380, %v3055
        %v3134 = vadd.f32 %v2381, %v3058
        %v3135 = vadd.f32 %v2382, %v3063
        %v3136 = vadd.f32 %v2383, %v3066
        %v3137 = vadd.f32 %v2384, %v3071
        %v3138 = vadd.f32 %v2385, %v3074
        %v3139 = vadd.f32 %v2386, %v3079
        %v3140 = vadd.f32 %v2387, %v3082
        %v3141 = vadd.f32 %v2388, %v3087
        %v3142 = vadd.f32 %v2389, %v3090
        %v3143 = vadd.f32 %v2390, %v3095
        %v3144 = vadd.f32 %v2391, %v3098
        %v3145 = vadd.f32 %v2392, %v3103
        %v3146 = vadd.f32 %v2393, %v3106
        %v3147 = vadd.f32 %v2394, %v3111
        %v3148 = vadd.f32 %v2395, %v3114
        %v3149 = vld [vmem:[%s2010] sm:$0xe]
        %v3150 = vld [vmem:[%s2010 + $0xc] sm:$0xe]
        %v3151 = vld [vmem:[%s2010 + $0x18] sm:$0xe]
        %v3152 = vld [vmem:[%s2010 + $0x24] sm:$0xe]
        %v3153 = vld [vmem:[%s2010 + $0x30] sm:$0xe]
        %v3154 = vld [vmem:[%s2010 + $0x3c] sm:$0xe]
        %v3155 = vld [vmem:[%s2010 + $0x48] sm:$0xe]
        %v3156 = vld [vmem:[%s2010 + $0x54] sm:$0xe]
        %v3157 = vld [vmem:[%s2010 + $0x60] sm:$0xe]
        %v3158 = vld [vmem:[%s2010 + $0x6c] sm:$0xe]
        %v3159 = vld [vmem:[%s2010 + $0x78] sm:$0xe]
        %v3160 = vld [vmem:[%s2010 + $0x84] sm:$0xe]
        %v3161 = vld [vmem:[%s2010 + $0x90] sm:$0xe]
        %v3162 = vld [vmem:[%s2010 + $0x9c] sm:$0xe]
        %v3163 = vld [vmem:[%s2010 + $0xa8] sm:$0xe]
        %v3164 = vld [vmem:[%s2010 + $0xb4] sm:$0xe]
        %v3213 = vrot.slane %v3149, 5
        %v3214 = vrot.slane %v3213, 4
        %v3215 = vrot.slane %v2397, 5
        %v3216 = vsel %vm1576, %v3214, %v3215
        %v3217 = vrot.slane %v3215, 4
        %v3218 = vrot.slane %v2398, 5
        %v3219 = vsel %vm1576, %v3217, %v3218
        %v3220 = vrot.slane %v3150, 5
        %v3221 = vrot.slane %v3220, 4
        %v3222 = vrot.slane %v2400, 5
        %v3223 = vsel %vm1576, %v3221, %v3222
        %v3224 = vrot.slane %v3222, 4
        %v3225 = vrot.slane %v2401, 5
        %v3226 = vsel %vm1576, %v3224, %v3225
        %v3227 = vrot.slane %v3151, 5
        %v3228 = vrot.slane %v3227, 4
        %v3229 = vrot.slane %v2403, 5
        %v3230 = vsel %vm1576, %v3228, %v3229
        %v3231 = vrot.slane %v3229, 4
        %v3232 = vrot.slane %v2404, 5
        %v3233 = vsel %vm1576, %v3231, %v3232
        %v3234 = vrot.slane %v3152, 5
        %v3235 = vrot.slane %v3234, 4
        %v3236 = vrot.slane %v2406, 5
        %v3237 = vsel %vm1576, %v3235, %v3236
        %v3238 = vrot.slane %v3236, 4
        %v3239 = vrot.slane %v2407, 5
        %v3240 = vsel %vm1576, %v3238, %v3239
        %v3241 = vrot.slane %v3153, 5
        %v3242 = vrot.slane %v3241, 4
        %v3243 = vrot.slane %v2409, 5
        %v3244 = vsel %vm1576, %v3242, %v3243
        %v3245 = vrot.slane %v3243, 4
        %v3246 = vrot.slane %v2410, 5
        %v3247 = vsel %vm1576, %v3245, %v3246
        %v3248 = vrot.slane %v3154, 5
        %v3249 = vrot.slane %v3248, 4
        %v3250 = vrot.slane %v2412, 5
        %v3251 = vsel %vm1576, %v3249, %v3250
        %v3252 = vrot.slane %v3250, 4
        %v3253 = vrot.slane %v2413, 5
        %v3254 = vsel %vm1576, %v3252, %v3253
        %v3255 = vrot.slane %v3155, 5
        %v3256 = vrot.slane %v3255, 4
        %v3257 = vrot.slane %v2415, 5
        %v3258 = vsel %vm1576, %v3256, %v3257
        %v3259 = vrot.slane %v3257, 4
        %v3260 = vrot.slane %v2416, 5
        %v3261 = vsel %vm1576, %v3259, %v3260
        %v3262 = vrot.slane %v3156, 5
        %v3263 = vrot.slane %v3262, 4
        %v3264 = vrot.slane %v2418, 5
        %v3265 = vsel %vm1576, %v3263, %v3264
        %v3266 = vrot.slane %v3264, 4
        %v3267 = vrot.slane %v2419, 5
        %v3268 = vsel %vm1576, %v3266, %v3267
        %v3269 = vrot.slane %v3157, 5
        %v3270 = vrot.slane %v3269, 4
        %v3271 = vrot.slane %v2421, 5
        %v3272 = vsel %vm1576, %v3270, %v3271
        %v3273 = vrot.slane %v3271, 4
        %v3274 = vrot.slane %v2422, 5
        %v3275 = vsel %vm1576, %v3273, %v3274
        %v3276 = vrot.slane %v3158, 5
        %v3277 = vrot.slane %v3276, 4
        %v3278 = vrot.slane %v2424, 5
        %v3279 = vsel %vm1576, %v3277, %v3278
        %v3280 = vrot.slane %v3278, 4
        %v3281 = vrot.slane %v2425, 5
        %v3282 = vsel %vm1576, %v3280, %v3281
        %v3283 = vrot.slane %v3159, 5
        %v3284 = vrot.slane %v3283, 4
        %v3285 = vrot.slane %v2427, 5
        %v3286 = vsel %vm1576, %v3284, %v3285
        %v3287 = vrot.slane %v3285, 4
        %v3288 = vrot.slane %v2428, 5
        %v3289 = vsel %vm1576, %v3287, %v3288
        %v3290 = vrot.slane %v3160, 5
        %v3291 = vrot.slane %v3290, 4
        %v3292 = vrot.slane %v2430, 5
        %v3293 = vsel %vm1576, %v3291, %v3292
        %v3294 = vrot.slane %v3292, 4
        %v3295 = vrot.slane %v2431, 5
        %v3296 = vsel %vm1576, %v3294, %v3295
        %v3297 = vrot.slane %v3161, 5
        %v3298 = vrot.slane %v3297, 4
        %v3299 = vrot.slane %v2433, 5
        %v3300 = vsel %vm1576, %v3298, %v3299
        %v3301 = vrot.slane %v3299, 4
        %v3302 = vrot.slane %v2434, 5
        %v3303 = vsel %vm1576, %v3301, %v3302
        %v3304 = vrot.slane %v3162, 5
        %v3305 = vrot.slane %v3304, 4
        %v3306 = vrot.slane %v2436, 5
        %v3307 = vsel %vm1576, %v3305, %v3306
        %v3308 = vrot.slane %v3306, 4
        %v3309 = vrot.slane %v2437, 5
        %v3310 = vsel %vm1576, %v3308, %v3309
        %v3311 = vrot.slane %v3163, 5
        %v3312 = vrot.slane %v3311, 4
        %v3313 = vrot.slane %v2439, 5
        %v3314 = vsel %vm1576, %v3312, %v3313
        %v3315 = vrot.slane %v3313, 4
        %v3316 = vrot.slane %v2440, 5
        %v3317 = vsel %vm1576, %v3315, %v3316
        %v3318 = vrot.slane %v3164, 5
        %v3319 = vrot.slane %v3318, 4
        %v3320 = vrot.slane %v2442, 5
        %v3321 = vsel %vm1576, %v3319, %v3320
        %v3322 = vrot.slane %v3320, 4
        %v3323 = vrot.slane %v2443, 5
        %v3324 = vsel %vm1576, %v3322, %v3323
        %v3325 = vld [vmem:[%s3 + $0xa0] sm:$0xf]
        %v3326 = vld [vmem:[%s3 + $0xa4] sm:$0xf]
        %v3327 = vld [vmem:[%s3 + $0xa8] sm:$0xf]
        %v3328 = vld [vmem:[%s3 + $0xac] sm:$0xf]
        %v3329 = vld [vmem:[%s3 + $0xb0] sm:$0xf]
        %v3330 = vld [vmem:[%s3 + $0xb4] sm:$0xf]
        %v3331 = vld [vmem:[%s3 + $0xb8] sm:$0xf]
        %v3332 = vld [vmem:[%s3 + $0xbc] sm:$0xf]
        %v3333 = vunpack.c.l.b16 %v3216
        %v3334 = vunpack.c.l.b16 %v3219
        %v3335 = vunpack.c.l.b16 %v3223
        %v3336 = vunpack.c.l.b16 %v3226
        %v3337 = vunpack.c.l.b16 %v3230
        %v3338 = vunpack.c.l.b16 %v3233
        %v3339 = vunpack.c.l.b16 %v3237
        %v3340 = vunpack.c.l.b16 %v3240
        %v3341 = vunpack.c.l.b16 %v3244
        %v3342 = vunpack.c.l.b16 %v3247
        %v3343 = vunpack.c.l.b16 %v3251
        %v3344 = vunpack.c.l.b16 %v3254
        %v3345 = vunpack.c.l.b16 %v3258
        %v3346 = vunpack.c.l.b16 %v3261
        %v3347 = vunpack.c.l.b16 %v3265
        %v3348 = vunpack.c.l.b16 %v3268
        %v3349 = vunpack.c.l.b16 %v3272
        %v3350 = vunpack.c.l.b16 %v3275
        %v3351 = vunpack.c.l.b16 %v3279
        %v3352 = vunpack.c.l.b16 %v3282
        %v3353 = vunpack.c.l.b16 %v3286
        %v3354 = vunpack.c.l.b16 %v3289
        %v3355 = vunpack.c.l.b16 %v3293
        %v3356 = vunpack.c.l.b16 %v3296
        %v3357 = vunpack.c.l.b16 %v3300
        %v3358 = vunpack.c.l.b16 %v3303
        %v3359 = vunpack.c.l.b16 %v3307
        %v3360 = vunpack.c.l.b16 %v3310
        %v3361 = vunpack.c.l.b16 %v3314
        %v3362 = vunpack.c.l.b16 %v3317
        %v3363 = vunpack.c.l.b16 %v3321
        %v3364 = vunpack.c.l.b16 %v3324
        %v3365 = vpack.c.b16 %v3334, %v3333
        %v3366 = vpack.c.b16 %v3336, %v3335
        %v3367 = vpack.c.b16 %v3338, %v3337
        %v3368 = vpack.c.b16 %v3340, %v3339
        %v3369 = vpack.c.b16 %v3342, %v3341
        %v3370 = vpack.c.b16 %v3344, %v3343
        %v3371 = vpack.c.b16 %v3346, %v3345
        %v3372 = vpack.c.b16 %v3348, %v3347
        %v3373 = vpack.c.b16 %v3350, %v3349
        %v3374 = vpack.c.b16 %v3352, %v3351
        %v3375 = vpack.c.b16 %v3354, %v3353
        %v3376 = vpack.c.b16 %v3356, %v3355
        %v3377 = vpack.c.b16 %v3358, %v3357
        %v3378 = vpack.c.b16 %v3360, %v3359
        %v3379 = vpack.c.b16 %v3362, %v3361
        %v3380 = vpack.c.b16 %v3364, %v3363
        %v3389 = vunpack.c.l.b16 %v3325
        %v3390 = vunpack.c.l.b16 %v3326
        %v3391 = vunpack.c.l.b16 %v3327
        %v3392 = vunpack.c.l.b16 %v3328
        %v3393 = vunpack.c.l.b16 %v3329
        %v3394 = vunpack.c.l.b16 %v3330
        %v3395 = vunpack.c.l.b16 %v3331
        %v3396 = vunpack.c.l.b16 %v3332
        %v3397 = vpack.c.b16 %v3390, %v3389
        %v3398 = vpack.c.b16 %v3392, %v3391
        %v3399 = vpack.c.b16 %v3394, %v3393
        %v3400 = vpack.c.b16 %v3396, %v3395
        %v3406 = vsel %vm1003, %v3365, 0
        %v3409 = vsel %vm1003, %v3366, 0
        %v3412 = vsel %vm1003, %v3367, 0
        %v3415 = vsel %vm1003, %v3368, 0
        %v3418 = vsel %vm1003, %v3369, 0
        %v3421 = vsel %vm1003, %v3370, 0
        %v3424 = vsel %vm1003, %v3371, 0
        %v3427 = vsel %vm1003, %v3372, 0
        %v3430 = vsel %vm1003, %v3373, 0
        %v3433 = vsel %vm1003, %v3374, 0
        %v3436 = vsel %vm1003, %v3375, 0
        %v3439 = vsel %vm1003, %v3376, 0
        %v3442 = vsel %vm1003, %v3377, 0
        %v3445 = vsel %vm1003, %v3378, 0
        %v3448 = vsel %vm1003, %v3379, 0
        %v3451 = vsel %vm1003, %v3380, 0
        %3453 = vmatprep.subr.bf16.mxu0 0
        %3454 = vmatpush1.bf16.msra.mxu0 %v3397
        %3455 = vmatprep.subr.bf16.mxu0 0
        %3456 = vmatpush1.bf16.msra.mxu0 %v3398
        %3457 = vmatprep.subr.bf16.mxu0 0
        %3458 = vmatpush1.bf16.msra.mxu0 %v3399
        %3459 = vmatprep.subr.bf16.mxu0 0
        %3460 = vmatpush1.bf16.msra.mxu0 %v3400
        %3461 = vmatprep.subr.bf16.mxu0 0
        %3462 = vmatpush1.bf16.msra.mxu0 0
        %3463 = vmatprep.subr.bf16.mxu0 0
        %3464 = vmatpush1.bf16.msra.mxu0 0
        %3465 = vmatprep.subr.bf16.mxu0 0
        %3466 = vmatpush1.bf16.msra.mxu0 0
        %3467 = vmatprep.subr.bf16.mxu0 0
        %3468 = vmatpush1.bf16.msra.mxu0 0
        %3469 = vmatprep.subr.bf16.mxu0 0
        %3470 = vmatpush1.bf16.msra.mxu0 0
        %3471 = vmatprep.subr.bf16.mxu0 0
        %3472 = vmatpush1.bf16.msra.mxu0 0
        %3473 = vmatprep.subr.bf16.mxu0 0
        %3474 = vmatpush1.bf16.msra.mxu0 0
        %3475 = vmatprep.subr.bf16.mxu0 0
        %3476 = vmatpush1.bf16.msra.mxu0 0
        %3477 = vmatprep.subr.bf16.mxu0 0
        %3478 = vmatpush1.bf16.msra.mxu0 0
        %3479 = vmatprep.subr.bf16.mxu0 0
        %3480 = vmatpush1.bf16.msra.mxu0 0
        %3481 = vmatprep.subr.bf16.mxu0 0
        %3482 = vmatpush1.bf16.msra.mxu0 0
        %3483 = vmatprep.subr.bf16.mxu0 0
        %3484 = vmatpush1.bf16.msra.mxu0 0
        %3485 = vmatprep.mubr.bf16.mxu0 0
        %3486 = vmatmul.mubr.bf16.gmra.mrb[0].mxu0 %v3406
        %v3487 = vpop.f32.mrb[0].mxu0
        %v3488 = vadd.f32 0.0, %v3487
        %v3489 = vpop.f32.mrb[0].mxu0
        %v3490 = vpop.f32.mrb[0].mxu0
        %v3491 = vadd.f32 0.0, %v3490
        %v3492 = vpop.f32.mrb[0].mxu0
        %3493 = vmatprep.mubr.bf16.mxu0 0
        %3494 = vmatmul.mubr.bf16.gmra.mrb[0].mxu0 %v3409
        %v3495 = vpop.f32.mrb[0].mxu0
        %v3496 = vadd.f32 0.0, %v3495
        %v3497 = vpop.f32.mrb[0].mxu0
        %v3498 = vpop.f32.mrb[0].mxu0
        %v3499 = vadd.f32 0.0, %v3498
        %v3500 = vpop.f32.mrb[0].mxu0
        %3501 = vmatprep.mubr.bf16.mxu0 0
        %3502 = vmatmul.mubr.bf16.gmra.mrb[0].mxu0 %v3412
        %v3503 = vpop.f32.mrb[0].mxu0
        %v3504 = vadd.f32 0.0, %v3503
        %v3505 = vpop.f32.mrb[0].mxu0
        %v3506 = vpop.f32.mrb[0].mxu0
        %v3507 = vadd.f32 0.0, %v3506
        %v3508 = vpop.f32.mrb[0].mxu0
        %3509 = vmatprep.mubr.bf16.mxu0 0
        %3510 = vmatmul.mubr.bf16.gmra.mrb[0].mxu0 %v3415
        %v3511 = vpop.f32.mrb[0].mxu0
        %v3512 = vadd.f32 0.0, %v3511
        %v3513 = vpop.f32.mrb[0].mxu0
        %v3514 = vpop.f32.mrb[0].mxu0
        %v3515 = vadd.f32 0.0, %v3514
        %v3516 = vpop.f32.mrb[0].mxu0
        %3517 = vmatprep.mubr.bf16.mxu0 0
        %3518 = vmatmul.mubr.bf16.gmra.mrb[0].mxu0 %v3418
        %v3519 = vpop.f32.mrb[0].mxu0
        %v3520 = vadd.f32 0.0, %v3519
        %v3521 = vpop.f32.mrb[0].mxu0
        %v3522 = vpop.f32.mrb[0].mxu0
        %v3523 = vadd.f32 0.0, %v3522
        %v3524 = vpop.f32.mrb[0].mxu0
        %3525 = vmatprep.mubr.bf16.mxu0 0
        %3526 = vmatmul.mubr.bf16.gmra.mrb[0].mxu0 %v3421
        %v3527 = vpop.f32.mrb[0].mxu0
        %v3528 = vadd.f32 0.0, %v3527
        %v3529 = vpop.f32.mrb[0].mxu0
        %v3530 = vpop.f32.mrb[0].mxu0
        %v3531 = vadd.f32 0.0, %v3530
        %v3532 = vpop.f32.mrb[0].mxu0
        %3533 = vmatprep.mubr.bf16.mxu0 0
        %3534 = vmatmul.mubr.bf16.gmra.mrb[0].mxu0 %v3424
        %v3535 = vpop.f32.mrb[0].mxu0
        %v3536 = vadd.f32 0.0, %v3535
        %v3537 = vpop.f32.mrb[0].mxu0
        %v3538 = vpop.f32.mrb[0].mxu0
        %v3539 = vadd.f32 0.0, %v3538
        %v3540 = vpop.f32.mrb[0].mxu0
        %3541 = vmatprep.mubr.bf16.mxu0 0
        %3542 = vmatmul.mubr.bf16.gmra.mrb[0].mxu0 %v3427
        %v3543 = vpop.f32.mrb[0].mxu0
        %v3544 = vadd.f32 0.0, %v3543
        %v3545 = vpop.f32.mrb[0].mxu0
        %v3546 = vpop.f32.mrb[0].mxu0
        %v3547 = vadd.f32 0.0, %v3546
        %v3548 = vpop.f32.mrb[0].mxu0
        %3549 = vmatprep.mubr.bf16.mxu0 0
        %3550 = vmatmul.mubr.bf16.gmra.mrb[0].mxu0 %v3430
        %v3551 = vpop.f32.mrb[0].mxu0
        %v3552 = vadd.f32 0.0, %v3551
        %v3553 = vpop.f32.mrb[0].mxu0
        %v3554 = vpop.f32.mrb[0].mxu0
        %v3555 = vadd.f32 0.0, %v3554
        %v3556 = vpop.f32.mrb[0].mxu0
        %3557 = vmatprep.mubr.bf16.mxu0 0
        %3558 = vmatmul.mubr.bf16.gmra.mrb[0].mxu0 %v3433
        %v3559 = vpop.f32.mrb[0].mxu0
        %v3560 = vadd.f32 0.0, %v3559
        %v3561 = vpop.f32.mrb[0].mxu0
        %v3562 = vpop.f32.mrb[0].mxu0
        %v3563 = vadd.f32 0.0, %v3562
        %v3564 = vpop.f32.mrb[0].mxu0
        %3565 = vmatprep.mubr.bf16.mxu0 0
        %3566 = vmatmul.mubr.bf16.gmra.mrb[0].mxu0 %v3436
        %v3567 = vpop.f32.mrb[0].mxu0
        %v3568 = vadd.f32 0.0, %v3567
        %v3569 = vpop.f32.mrb[0].mxu0
        %v3570 = vpop.f32.mrb[0].mxu0
        %v3571 = vadd.f32 0.0, %v3570
        %v3572 = vpop.f32.mrb[0].mxu0
        %3573 = vmatprep.mubr.bf16.mxu0 0
        %3574 = vmatmul.mubr.bf16.gmra.mrb[0].mxu0 %v3439
        %v3575 = vpop.f32.mrb[0].mxu0
        %v3576 = vadd.f32 0.0, %v3575
        %v3577 = vpop.f32.mrb[0].mxu0
        %v3578 = vpop.f32.mrb[0].mxu0
        %v3579 = vadd.f32 0.0, %v3578
        %v3580 = vpop.f32.mrb[0].mxu0
        %3581 = vmatprep.mubr.bf16.mxu0 0
        %3582 = vmatmul.mubr.bf16.gmra.mrb[0].mxu0 %v3442
        %v3583 = vpop.f32.mrb[0].mxu0
        %v3584 = vadd.f32 0.0, %v3583
        %v3585 = vpop.f32.mrb[0].mxu0
        %v3586 = vpop.f32.mrb[0].mxu0
        %v3587 = vadd.f32 0.0, %v3586
        %v3588 = vpop.f32.mrb[0].mxu0
        %3589 = vmatprep.mubr.bf16.mxu0 0
        %3590 = vmatmul.mubr.bf16.gmra.mrb[0].mxu0 %v3445
        %v3591 = vpop.f32.mrb[0].mxu0
        %v3592 = vadd.f32 0.0, %v3591
        %v3593 = vpop.f32.mrb[0].mxu0
        %v3594 = vpop.f32.mrb[0].mxu0
        %v3595 = vadd.f32 0.0, %v3594
        %v3596 = vpop.f32.mrb[0].mxu0
        %3597 = vmatprep.mubr.bf16.mxu0 0
        %3598 = vmatmul.mubr.bf16.gmra.mrb[0].mxu0 %v3448
        %v3599 = vpop.f32.mrb[0].mxu0
        %v3600 = vadd.f32 0.0, %v3599
        %v3601 = vpop.f32.mrb[0].mxu0
        %v3602 = vpop.f32.mrb[0].mxu0
        %v3603 = vadd.f32 0.0, %v3602
        %v3604 = vpop.f32.mrb[0].mxu0
        %3605 = vmatprep.mubr.bf16.mxu0 0
        %3606 = vmatmul.mubr.bf16.gmra.mrb[0].mxu0 %v3451
        %v3607 = vpop.f32.mrb[0].mxu0
        %v3608 = vadd.f32 0.0, %v3607
        %v3609 = vpop.f32.mrb[0].mxu0
        %v3610 = vpop.f32.mrb[0].mxu0
        %v3611 = vadd.f32 0.0, %v3610
        %v3612 = vpop.f32.mrb[0].mxu0
        %3613 = vdwg.mxu0
        %v3614 = vadd.f32 %v3117, %v3488
        %v3615 = vadd.f32 %v3118, %v3491
        %v3616 = vadd.f32 %v3119, %v3496
        %v3617 = vadd.f32 %v3120, %v3499
        %v3618 = vadd.f32 %v3121, %v3504
        %v3619 = vadd.f32 %v3122, %v3507
        %v3620 = vadd.f32 %v3123, %v3512
        %v3621 = vadd.f32 %v3124, %v3515
        %v3622 = vadd.f32 %v3125, %v3520
        %v3623 = vadd.f32 %v3126, %v3523
        %v3624 = vadd.f32 %v3127, %v3528
        %v3625 = vadd.f32 %v3128, %v3531
        %v3626 = vadd.f32 %v3129, %v3536
        %v3627 = vadd.f32 %v3130, %v3539
        %v3628 = vadd.f32 %v3131, %v3544
        %v3629 = vadd.f32 %v3132, %v3547
        %v3630 = vadd.f32 %v3133, %v3552
        %v3631 = vadd.f32 %v3134, %v3555
        %v3632 = vadd.f32 %v3135, %v3560
        %v3633 = vadd.f32 %v3136, %v3563
        %v3634 = vadd.f32 %v3137, %v3568
        %v3635 = vadd.f32 %v3138, %v3571
        %v3636 = vadd.f32 %v3139, %v3576
        %v3637 = vadd.f32 %v3140, %v3579
        %v3638 = vadd.f32 %v3141, %v3584
        %v3639 = vadd.f32 %v3142, %v3587
        %v3640 = vadd.f32 %v3143, %v3592
        %v3641 = vadd.f32 %v3144, %v3595
        %v3642 = vadd.f32 %v3145, %v3600
        %v3643 = vadd.f32 %v3146, %v3603
        %v3644 = vadd.f32 %v3147, %v3608
        %v3645 = vadd.f32 %v3148, %v3611
        %s3646 = scalar_lea.vmem %s468, 24
        %v3647 = vld [vmem:[%s3646] sm:$0xf]
        %v3648 = vld [vmem:[%s3646 + $0x4] sm:$0xf]
        %v3649 = vld [vmem:[%s3646 + $0xc] sm:$0xf]
        %v3650 = vld [vmem:[%s3646 + $0x10] sm:$0xf]
        %v3651 = vld [vmem:[%s3646 + $0x18] sm:$0xf]
        %v3652 = vld [vmem:[%s3646 + $0x1c] sm:$0xf]
        %v3653 = vld [vmem:[%s3646 + $0x24] sm:$0xf]
        %v3654 = vld [vmem:[%s3646 + $0x28] sm:$0xf]
        %v3655 = vld [vmem:[%s3646 + $0x30] sm:$0xf]
        %v3656 = vld [vmem:[%s3646 + $0x34] sm:$0xf]
        %v3657 = vld [vmem:[%s3646 + $0x3c] sm:$0xf]
        %v3658 = vld [vmem:[%s3646 + $0x40] sm:$0xf]
        %v3659 = vld [vmem:[%s3646 + $0x48] sm:$0xf]
        %v3660 = vld [vmem:[%s3646 + $0x4c] sm:$0xf]
        %v3661 = vld [vmem:[%s3646 + $0x54] sm:$0xf]
        %v3662 = vld [vmem:[%s3646 + $0x58] sm:$0xf]
        %v3663 = vld [vmem:[%s3646 + $0x60] sm:$0xf]
        %v3664 = vld [vmem:[%s3646 + $0x64] sm:$0xf]
        %v3665 = vld [vmem:[%s3646 + $0x6c] sm:$0xf]
        %v3666 = vld [vmem:[%s3646 + $0x70] sm:$0xf]
        %v3667 = vld [vmem:[%s3646 + $0x78] sm:$0xf]
        %v3668 = vld [vmem:[%s3646 + $0x7c] sm:$0xf]
        %v3669 = vld [vmem:[%s3646 + $0x84] sm:$0xf]
        %v3670 = vld [vmem:[%s3646 + $0x88] sm:$0xf]
        %v3671 = vld [vmem:[%s3646 + $0x90] sm:$0xf]
        %v3672 = vld [vmem:[%s3646 + $0x94] sm:$0xf]
        %v3673 = vld [vmem:[%s3646 + $0x9c] sm:$0xf]
        %v3674 = vld [vmem:[%s3646 + $0xa0] sm:$0xf]
        %v3675 = vld [vmem:[%s3646 + $0xa8] sm:$0xf]
        %v3676 = vld [vmem:[%s3646 + $0xac] sm:$0xf]
        %v3677 = vld [vmem:[%s3646 + $0xb4] sm:$0xf]
        %v3678 = vld [vmem:[%s3646 + $0xb8] sm:$0xf]
        %v3679 = vld [vmem:[%s3 + $0xc0] sm:$0xf]
        %v3680 = vld [vmem:[%s3 + $0xc4] sm:$0xf]
        %v3681 = vld [vmem:[%s3 + $0xc8] sm:$0xf]
        %v3682 = vld [vmem:[%s3 + $0xcc] sm:$0xf]
        %v3683 = vld [vmem:[%s3 + $0xd0] sm:$0xf]
        %v3684 = vld [vmem:[%s3 + $0xd4] sm:$0xf]
        %v3685 = vld [vmem:[%s3 + $0xd8] sm:$0xf]
        %v3686 = vld [vmem:[%s3 + $0xdc] sm:$0xf]
        %v3719 = vunpack.c.l.b16 %v3647
        %v3720 = vunpack.c.l.b16 %v3648
        %v3721 = vunpack.c.l.b16 %v3649
        %v3722 = vunpack.c.l.b16 %v3650
        %v3723 = vunpack.c.l.b16 %v3651
        %v3724 = vunpack.c.l.b16 %v3652
        %v3725 = vunpack.c.l.b16 %v3653
        %v3726 = vunpack.c.l.b16 %v3654
        %v3727 = vunpack.c.l.b16 %v3655
        %v3728 = vunpack.c.l.b16 %v3656
        %v3729 = vunpack.c.l.b16 %v3657
        %v3730 = vunpack.c.l.b16 %v3658
        %v3731 = vunpack.c.l.b16 %v3659
        %v3732 = vunpack.c.l.b16 %v3660
        %v3733 = vunpack.c.l.b16 %v3661
        %v3734 = vunpack.c.l.b16 %v3662
        %v3735 = vunpack.c.l.b16 %v3663
        %v3736 = vunpack.c.l.b16 %v3664
        %v3737 = vunpack.c.l.b16 %v3665
        %v3738 = vunpack.c.l.b16 %v3666
        %v3739 = vunpack.c.l.b16 %v3667
        %v3740 = vunpack.c.l.b16 %v3668
        %v3741 = vunpack.c.l.b16 %v3669
        %v3742 = vunpack.c.l.b16 %v3670
        %v3743 = vunpack.c.l.b16 %v3671
        %v3744 = vunpack.c.l.b16 %v3672
        %v3745 = vunpack.c.l.b16 %v3673
        %v3746 = vunpack.c.l.b16 %v3674
        %v3747 = vunpack.c.l.b16 %v3675
        %v3748 = vunpack.c.l.b16 %v3676
        %v3749 = vunpack.c.l.b16 %v3677
        %v3750 = vunpack.c.l.b16 %v3678
        %v3751 = vpack.c.b16 %v3720, %v3719
        %v3752 = vpack.c.b16 %v3722, %v3721
        %v3753 = vpack.c.b16 %v3724, %v3723
        %v3754 = vpack.c.b16 %v3726, %v3725
        %v3755 = vpack.c.b16 %v3728, %v3727
        %v3756 = vpack.c.b16 %v3730, %v3729
        %v3757 = vpack.c.b16 %v3732, %v3731
        %v3758 = vpack.c.b16 %v3734, %v3733
        %v3759 = vpack.c.b16 %v3736, %v3735
        %v3760 = vpack.c.b16 %v3738, %v3737
        %v3761 = vpack.c.b16 %v3740, %v3739
        %v3762 = vpack.c.b16 %v3742, %v3741
        %v3763 = vpack.c.b16 %v3744, %v3743
        %v3764 = vpack.c.b16 %v3746, %v3745
        %v3765 = vpack.c.b16 %v3748, %v3747
        %v3766 = vpack.c.b16 %v3750, %v3749
        %v3775 = vunpack.c.l.b16 %v3679
        %v3776 = vunpack.c.l.b16 %v3680
        %v3777 = vunpack.c.l.b16 %v3681
        %v3778 = vunpack.c.l.b16 %v3682
        %v3779 = vunpack.c.l.b16 %v3683
        %v3780 = vunpack.c.l.b16 %v3684
        %v3781 = vunpack.c.l.b16 %v3685
        %v3782 = vunpack.c.l.b16 %v3686
        %v3783 = vpack.c.b16 %v3776, %v3775
        %v3784 = vpack.c.b16 %v3778, %v3777
        %v3785 = vpack.c.b16 %v3780, %v3779
        %v3786 = vpack.c.b16 %v3782, %v3781
        %v3792 = vsel %vm1003, %v3751, 0
        %v3795 = vsel %vm1003, %v3752, 0
        %v3798 = vsel %vm1003, %v3753, 0
        %v3801 = vsel %vm1003, %v3754, 0
        %v3804 = vsel %vm1003, %v3755, 0
        %v3807 = vsel %vm1003, %v3756, 0
        %v3810 = vsel %vm1003, %v3757, 0
        %v3813 = vsel %vm1003, %v3758, 0
        %v3816 = vsel %vm1003, %v3759, 0
        %v3819 = vsel %vm1003, %v3760, 0
        %v3822 = vsel %vm1003, %v3761, 0
        %v3825 = vsel %vm1003, %v3762, 0
        %v3828 = vsel %vm1003, %v3763, 0
        %v3831 = vsel %vm1003, %v3764, 0
        %v3834 = vsel %vm1003, %v3765, 0
        %v3837 = vsel %vm1003, %v3766, 0
        %3839 = vmatprep.subr.bf16.mxu0 0
        %3840 = vmatpush1.bf16.msra.mxu0 %v3783
        %3841 = vmatprep.subr.bf16.mxu0 0
        %3842 = vmatpush1.bf16.msra.mxu0 %v3784
        %3843 = vmatprep.subr.bf16.mxu0 0
        %3844 = vmatpush1.bf16.msra.mxu0 %v3785
        %3845 = vmatprep.subr.bf16.mxu0 0
        %3846 = vmatpush1.bf16.msra.mxu0 %v3786
        %3847 = vmatprep.subr.bf16.mxu0 0
        %3848 = vmatpush1.bf16.msra.mxu0 0
        %3849 = vmatprep.subr.bf16.mxu0 0
        %3850 = vmatpush1.bf16.msra.mxu0 0
        %3851 = vmatprep.subr.bf16.mxu0 0
        %3852 = vmatpush1.bf16.msra.mxu0 0
        %3853 = vmatprep.subr.bf16.mxu0 0
        %3854 = vmatpush1.bf16.msra.mxu0 0
        %3855 = vmatprep.subr.bf16.mxu0 0
        %3856 = vmatpush1.bf16.msra.mxu0 0
        %3857 = vmatprep.subr.bf16.mxu0 0
        %3858 = vmatpush1.bf16.msra.mxu0 0
        %3859 = vmatprep.subr.bf16.mxu0 0
        %3860 = vmatpush1.bf16.msra.mxu0 0
        %3861 = vmatprep.subr.bf16.mxu0 0
        %3862 = vmatpush1.bf16.msra.mxu0 0
        %3863 = vmatprep.subr.bf16.mxu0 0
        %3864 = vmatpush1.bf16.msra.mxu0 0
        %3865 = vmatprep.subr.bf16.mxu0 0
        %3866 = vmatpush1.bf16.msra.mxu0 0
        %3867 = vmatprep.subr.bf16.mxu0 0
        %3868 = vmatpush1.bf16.msra.mxu0 0
        %3869 = vmatprep.subr.bf16.mxu0 0
        %3870 = vmatpush1.bf16.msra.mxu0 0
        %3871 = vmatprep.mubr.bf16.mxu0 0
        %3872 = vmatmul.mubr.bf16.gmra.mrb[0].mxu0 %v3792
        %v3873 = vpop.f32.mrb[0].mxu0
        %v3874 = vadd.f32 0.0, %v3873
        %v3875 = vpop.f32.mrb[0].mxu0
        %v3876 = vpop.f32.mrb[0].mxu0
        %v3877 = vadd.f32 0.0, %v3876
        %v3878 = vpop.f32.mrb[0].mxu0
        %3879 = vmatprep.mubr.bf16.mxu0 0
        %3880 = vmatmul.mubr.bf16.gmra.mrb[0].mxu0 %v3795
        %v3881 = vpop.f32.mrb[0].mxu0
        %v3882 = vadd.f32 0.0, %v3881
        %v3883 = vpop.f32.mrb[0].mxu0
        %v3884 = vpop.f32.mrb[0].mxu0
        %v3885 = vadd.f32 0.0, %v3884
        %v3886 = vpop.f32.mrb[0].mxu0
        %3887 = vmatprep.mubr.bf16.mxu0 0
        %3888 = vmatmul.mubr.bf16.gmra.mrb[0].mxu0 %v3798
        %v3889 = vpop.f32.mrb[0].mxu0
        %v3890 = vadd.f32 0.0, %v3889
        %v3891 = vpop.f32.mrb[0].mxu0
        %v3892 = vpop.f32.mrb[0].mxu0
        %v3893 = vadd.f32 0.0, %v3892
        %v3894 = vpop.f32.mrb[0].mxu0
        %3895 = vmatprep.mubr.bf16.mxu0 0
        %3896 = vmatmul.mubr.bf16.gmra.mrb[0].mxu0 %v3801
        %v3897 = vpop.f32.mrb[0].mxu0
        %v3898 = vadd.f32 0.0, %v3897
        %v3899 = vpop.f32.mrb[0].mxu0
        %v3900 = vpop.f32.mrb[0].mxu0
        %v3901 = vadd.f32 0.0, %v3900
        %v3902 = vpop.f32.mrb[0].mxu0
        %3903 = vmatprep.mubr.bf16.mxu0 0
        %3904 = vmatmul.mubr.bf16.gmra.mrb[0].mxu0 %v3804
        %v3905 = vpop.f32.mrb[0].mxu0
        %v3906 = vadd.f32 0.0, %v3905
        %v3907 = vpop.f32.mrb[0].mxu0
        %v3908 = vpop.f32.mrb[0].mxu0
        %v3909 = vadd.f32 0.0, %v3908
        %v3910 = vpop.f32.mrb[0].mxu0
        %3911 = vmatprep.mubr.bf16.mxu0 0
        %3912 = vmatmul.mubr.bf16.gmra.mrb[0].mxu0 %v3807
        %v3913 = vpop.f32.mrb[0].mxu0
        %v3914 = vadd.f32 0.0, %v3913
        %v3915 = vpop.f32.mrb[0].mxu0
        %v3916 = vpop.f32.mrb[0].mxu0
        %v3917 = vadd.f32 0.0, %v3916
        %v3918 = vpop.f32.mrb[0].mxu0
        %3919 = vmatprep.mubr.bf16.mxu0 0
        %3920 = vmatmul.mubr.bf16.gmra.mrb[0].mxu0 %v3810
        %v3921 = vpop.f32.mrb[0].mxu0
        %v3922 = vadd.f32 0.0, %v3921
        %v3923 = vpop.f32.mrb[0].mxu0
        %v3924 = vpop.f32.mrb[0].mxu0
        %v3925 = vadd.f32 0.0, %v3924
        %v3926 = vpop.f32.mrb[0].mxu0
        %3927 = vmatprep.mubr.bf16.mxu0 0
        %3928 = vmatmul.mubr.bf16.gmra.mrb[0].mxu0 %v3813
        %v3929 = vpop.f32.mrb[0].mxu0
        %v3930 = vadd.f32 0.0, %v3929
        %v3931 = vpop.f32.mrb[0].mxu0
        %v3932 = vpop.f32.mrb[0].mxu0
        %v3933 = vadd.f32 0.0, %v3932
        %v3934 = vpop.f32.mrb[0].mxu0
        %3935 = vmatprep.mubr.bf16.mxu0 0
        %3936 = vmatmul.mubr.bf16.gmra.mrb[0].mxu0 %v3816
        %v3937 = vpop.f32.mrb[0].mxu0
        %v3938 = vadd.f32 0.0, %v3937
        %v3939 = vpop.f32.mrb[0].mxu0
        %v3940 = vpop.f32.mrb[0].mxu0
        %v3941 = vadd.f32 0.0, %v3940
        %v3942 = vpop.f32.mrb[0].mxu0
        %3943 = vmatprep.mubr.bf16.mxu0 0
        %3944 = vmatmul.mubr.bf16.gmra.mrb[0].mxu0 %v3819
        %v3945 = vpop.f32.mrb[0].mxu0
        %v3946 = vadd.f32 0.0, %v3945
        %v3947 = vpop.f32.mrb[0].mxu0
        %v3948 = vpop.f32.mrb[0].mxu0
        %v3949 = vadd.f32 0.0, %v3948
        %v3950 = vpop.f32.mrb[0].mxu0
        %3951 = vmatprep.mubr.bf16.mxu0 0
        %3952 = vmatmul.mubr.bf16.gmra.mrb[0].mxu0 %v3822
        %v3953 = vpop.f32.mrb[0].mxu0
        %v3954 = vadd.f32 0.0, %v3953
        %v3955 = vpop.f32.mrb[0].mxu0
        %v3956 = vpop.f32.mrb[0].mxu0
        %v3957 = vadd.f32 0.0, %v3956
        %v3958 = vpop.f32.mrb[0].mxu0
        %3959 = vmatprep.mubr.bf16.mxu0 0
        %3960 = vmatmul.mubr.bf16.gmra.mrb[0].mxu0 %v3825
        %v3961 = vpop.f32.mrb[0].mxu0
        %v3962 = vadd.f32 0.0, %v3961
        %v3963 = vpop.f32.mrb[0].mxu0
        %v3964 = vpop.f32.mrb[0].mxu0
        %v3965 = vadd.f32 0.0, %v3964
        %v3966 = vpop.f32.mrb[0].mxu0
        %3967 = vmatprep.mubr.bf16.mxu0 0
        %3968 = vmatmul.mubr.bf16.gmra.mrb[0].mxu0 %v3828
        %v3969 = vpop.f32.mrb[0].mxu0
        %v3970 = vadd.f32 0.0, %v3969
        %v3971 = vpop.f32.mrb[0].mxu0
        %v3972 = vpop.f32.mrb[0].mxu0
        %v3973 = vadd.f32 0.0, %v3972
        %v3974 = vpop.f32.mrb[0].mxu0
        %3975 = vmatprep.mubr.bf16.mxu0 0
        %3976 = vmatmul.mubr.bf16.gmra.mrb[0].mxu0 %v3831
        %v3977 = vpop.f32.mrb[0].mxu0
        %v3978 = vadd.f32 0.0, %v3977
        %v3979 = vpop.f32.mrb[0].mxu0
        %v3980 = vpop.f32.mrb[0].mxu0
        %v3981 = vadd.f32 0.0, %v3980
        %v3982 = vpop.f32.mrb[0].mxu0
        %3983 = vmatprep.mubr.bf16.mxu0 0
        %3984 = vmatmul.mubr.bf16.gmra.mrb[0].mxu0 %v3834
        %v3985 = vpop.f32.mrb[0].mxu0
        %v3986 = vadd.f32 0.0, %v3985
        %v3987 = vpop.f32.mrb[0].mxu0
        %v3988 = vpop.f32.mrb[0].mxu0
        %v3989 = vadd.f32 0.0, %v3988
        %v3990 = vpop.f32.mrb[0].mxu0
        %3991 = vmatprep.mubr.bf16.mxu0 0
        %3992 = vmatmul.mubr.bf16.gmra.mrb[0].mxu0 %v3837
        %v3993 = vpop.f32.mrb[0].mxu0
        %v3994 = vadd.f32 0.0, %v3993
        %v3995 = vpop.f32.mrb[0].mxu0
        %v3996 = vpop.f32.mrb[0].mxu0
        %v3997 = vadd.f32 0.0, %v3996
        %v3998 = vpop.f32.mrb[0].mxu0
        %3999 = vdwg.mxu0
        %v4000 = vadd.f32 %v3614, %v3874
        %v4001 = vadd.f32 %v3615, %v3877
        %v4002 = vadd.f32 %v3616, %v3882
        %v4003 = vadd.f32 %v3617, %v3885
        %v4004 = vadd.f32 %v3618, %v3890
        %v4005 = vadd.f32 %v3619, %v3893
        %v4006 = vadd.f32 %v3620, %v3898
        %v4007 = vadd.f32 %v3621, %v3901
        %v4008 = vadd.f32 %v3622, %v3906
        %v4009 = vadd.f32 %v3623, %v3909
        %v4010 = vadd.f32 %v3624, %v3914
        %v4011 = vadd.f32 %v3625, %v3917
        %v4012 = vadd.f32 %v3626, %v3922
        %v4013 = vadd.f32 %v3627, %v3925
        %v4014 = vadd.f32 %v3628, %v3930
        %v4015 = vadd.f32 %v3629, %v3933
        %v4016 = vadd.f32 %v3630, %v3938
        %v4017 = vadd.f32 %v3631, %v3941
        %v4018 = vadd.f32 %v3632, %v3946
        %v4019 = vadd.f32 %v3633, %v3949
        %v4020 = vadd.f32 %v3634, %v3954
        %v4021 = vadd.f32 %v3635, %v3957
        %v4022 = vadd.f32 %v3636, %v3962
        %v4023 = vadd.f32 %v3637, %v3965
        %v4024 = vadd.f32 %v3638, %v3970
        %v4025 = vadd.f32 %v3639, %v3973
        %v4026 = vadd.f32 %v3640, %v3978
        %v4027 = vadd.f32 %v3641, %v3981
        %v4028 = vadd.f32 %v3642, %v3986
        %v4029 = vadd.f32 %v3643, %v3989
        %v4030 = vadd.f32 %v3644, %v3994
        %v4031 = vadd.f32 %v3645, %v3997
        %v4032 = vld [vmem:[%s3646] sm:$0xf]
        %v4033 = vld [vmem:[%s3646 + $0x4] sm:$0xf]
        %v4034 = vld [vmem:[%s3646 + $0x8] sm:$0x1]
        %v4035 = vld [vmem:[%s3646 + $0xc] sm:$0xf]
        %v4036 = vld [vmem:[%s3646 + $0x10] sm:$0xf]
        %v4037 = vld [vmem:[%s3646 + $0x14] sm:$0x1]
        %v4038 = vld [vmem:[%s3646 + $0x18] sm:$0xf]
        %v4039 = vld [vmem:[%s3646 + $0x1c] sm:$0xf]
        %v4040 = vld [vmem:[%s3646 + $0x20] sm:$0x1]
        %v4041 = vld [vmem:[%s3646 + $0x24] sm:$0xf]
        %v4042 = vld [vmem:[%s3646 + $0x28] sm:$0xf]
        %v4043 = vld [vmem:[%s3646 + $0x2c] sm:$0x1]
        %v4044 = vld [vmem:[%s3646 + $0x30] sm:$0xf]
        %v4045 = vld [vmem:[%s3646 + $0x34] sm:$0xf]
        %v4046 = vld [vmem:[%s3646 + $0x38] sm:$0x1]
        %v4047 = vld [vmem:[%s3646 + $0x3c] sm:$0xf]
        %v4048 = vld [vmem:[%s3646 + $0x40] sm:$0xf]
        %v4049 = vld [vmem:[%s3646 + $0x44] sm:$0x1]
        %v4050 = vld [vmem:[%s3646 + $0x48] sm:$0xf]
        %v4051 = vld [vmem:[%s3646 + $0x4c] sm:$0xf]
        %v4052 = vld [vmem:[%s3646 + $0x50] sm:$0x1]
        %v4053 = vld [vmem:[%s3646 + $0x54] sm:$0xf]
        %v4054 = vld [vmem:[%s3646 + $0x58] sm:$0xf]
        %v4055 = vld [vmem:[%s3646 + $0x5c] sm:$0x1]
        %v4056 = vld [vmem:[%s3646 + $0x60] sm:$0xf]
        %v4057 = vld [vmem:[%s3646 + $0x64] sm:$0xf]
        %v4058 = vld [vmem:[%s3646 + $0x68] sm:$0x1]
        %v4059 = vld [vmem:[%s3646 + $0x6c] sm:$0xf]
        %v4060 = vld [vmem:[%s3646 + $0x70] sm:$0xf]
        %v4061 = vld [vmem:[%s3646 + $0x74] sm:$0x1]
        %v4062 = vld [vmem:[%s3646 + $0x78] sm:$0xf]
        %v4063 = vld [vmem:[%s3646 + $0x7c] sm:$0xf]
        %v4064 = vld [vmem:[%s3646 + $0x80] sm:$0x1]
        %v4065 = vld [vmem:[%s3646 + $0x84] sm:$0xf]
        %v4066 = vld [vmem:[%s3646 + $0x88] sm:$0xf]
        %v4067 = vld [vmem:[%s3646 + $0x8c] sm:$0x1]
        %v4068 = vld [vmem:[%s3646 + $0x90] sm:$0xf]
        %v4069 = vld [vmem:[%s3646 + $0x94] sm:$0xf]
        %v4070 = vld [vmem:[%s3646 + $0x98] sm:$0x1]
        %v4071 = vld [vmem:[%s3646 + $0x9c] sm:$0xf]
        %v4072 = vld [vmem:[%s3646 + $0xa0] sm:$0xf]
        %v4073 = vld [vmem:[%s3646 + $0xa4] sm:$0x1]
        %v4074 = vld [vmem:[%s3646 + $0xa8] sm:$0xf]
        %v4075 = vld [vmem:[%s3646 + $0xac] sm:$0xf]
        %v4076 = vld [vmem:[%s3646 + $0xb0] sm:$0x1]
        %v4077 = vld [vmem:[%s3646 + $0xb4] sm:$0xf]
        %v4078 = vld [vmem:[%s3646 + $0xb8] sm:$0xf]
        %v4079 = vld [vmem:[%s3646 + $0xbc] sm:$0x1]
        %v4081 = vshrl.u32 %v4032, 16
        %v4083 = vrot.slane %v4081, 4
        %v4084 = vshll.u32 %v4032, 16
        %v4086 = vrot.slane %v4084, 5
        %v4087 = vor.u32 %v4083, %v4086
        %v4088 = vrot.slane %v4087, 4
        %v4090 = vshll.u32 %v4033, 16
        %v4092 = vrot.slane %v4090, 5
        %v4093 = vsel %vm538, %v4088, %v4092
        %v4094 = vshrl.u32 %v4033, 16
        %v4096 = vrot.slane %v4094, 4
        %v4097 = vor.u32 %v4096, %v4092
        %v4098 = vrot.slane %v4097, 4
        %v4100 = vshll.u32 %v4034, 16
        %v4102 = vrot.slane %v4100, 5
        %v4103 = vsel %vm538, %v4098, %v4102
        %v4105 = vshrl.u32 %v4035, 16
        %v4107 = vrot.slane %v4105, 4
        %v4108 = vshll.u32 %v4035, 16
        %v4110 = vrot.slane %v4108, 5
        %v4111 = vor.u32 %v4107, %v4110
        %v4112 = vrot.slane %v4111, 4
        %v4114 = vshll.u32 %v4036, 16
        %v4116 = vrot.slane %v4114, 5
        %v4117 = vsel %vm538, %v4112, %v4116
        %v4118 = vshrl.u32 %v4036, 16
        %v4120 = vrot.slane %v4118, 4
        %v4121 = vor.u32 %v4120, %v4116
        %v4122 = vrot.slane %v4121, 4
        %v4124 = vshll.u32 %v4037, 16
        %v4126 = vrot.slane %v4124, 5
        %v4127 = vsel %vm538, %v4122, %v4126
        %v4129 = vshrl.u32 %v4038, 16
        %v4131 = vrot.slane %v4129, 4
        %v4132 = vshll.u32 %v4038, 16
        %v4134 = vrot.slane %v4132, 5
        %v4135 = vor.u32 %v4131, %v4134
        %v4136 = vrot.slane %v4135, 4
        %v4138 = vshll.u32 %v4039, 16
        %v4140 = vrot.slane %v4138, 5
        %v4141 = vsel %vm538, %v4136, %v4140
        %v4142 = vshrl.u32 %v4039, 16
        %v4144 = vrot.slane %v4142, 4
        %v4145 = vor.u32 %v4144, %v4140
        %v4146 = vrot.slane %v4145, 4
        %v4148 = vshll.u32 %v4040, 16
        %v4150 = vrot.slane %v4148, 5
        %v4151 = vsel %vm538, %v4146, %v4150
        %v4153 = vshrl.u32 %v4041, 16
        %v4155 = vrot.slane %v4153, 4
        %v4156 = vshll.u32 %v4041, 16
        %v4158 = vrot.slane %v4156, 5
        %v4159 = vor.u32 %v4155, %v4158
        %v4160 = vrot.slane %v4159, 4
        %v4162 = vshll.u32 %v4042, 16
        %v4164 = vrot.slane %v4162, 5
        %v4165 = vsel %vm538, %v4160, %v4164
        %v4166 = vshrl.u32 %v4042, 16
        %v4168 = vrot.slane %v4166, 4
        %v4169 = vor.u32 %v4168, %v4164
        %v4170 = vrot.slane %v4169, 4
        %v4172 = vshll.u32 %v4043, 16
        %v4174 = vrot.slane %v4172, 5
        %v4175 = vsel %vm538, %v4170, %v4174
        %v4177 = vshrl.u32 %v4044, 16
        %v4179 = vrot.slane %v4177, 4
        %v4180 = vshll.u32 %v4044, 16
        %v4182 = vrot.slane %v4180, 5
        %v4183 = vor.u32 %v4179, %v4182
        %v4184 = vrot.slane %v4183, 4
        %v4186 = vshll.u32 %v4045, 16
        %v4188 = vrot.slane %v4186, 5
        %v4189 = vsel %vm538, %v4184, %v4188
        %v4190 = vshrl.u32 %v4045, 16
        %v4192 = vrot.slane %v4190, 4
        %v4193 = vor.u32 %v4192, %v4188
        %v4194 = vrot.slane %v4193, 4
        %v4196 = vshll.u32 %v4046, 16
        %v4198 = vrot.slane %v4196, 5
        %v4199 = vsel %vm538, %v4194, %v4198
        %v4201 = vshrl.u32 %v4047, 16
        %v4203 = vrot.slane %v4201, 4
        %v4204 = vshll.u32 %v4047, 16
        %v4206 = vrot.slane %v4204, 5
        %v4207 = vor.u32 %v4203, %v4206
        %v4208 = vrot.slane %v4207, 4
        %v4210 = vshll.u32 %v4048, 16
        %v4212 = vrot.slane %v4210, 5
        %v4213 = vsel %vm538, %v4208, %v4212
        %v4214 = vshrl.u32 %v4048, 16
        %v4216 = vrot.slane %v4214, 4
        %v4217 = vor.u32 %v4216, %v4212
        %v4218 = vrot.slane %v4217, 4
        %v4220 = vshll.u32 %v4049, 16
        %v4222 = vrot.slane %v4220, 5
        %v4223 = vsel %vm538, %v4218, %v4222
        %v4225 = vshrl.u32 %v4050, 16
        %v4227 = vrot.slane %v4225, 4
        %v4228 = vshll.u32 %v4050, 16
        %v4230 = vrot.slane %v4228, 5
        %v4231 = vor.u32 %v4227, %v4230
        %v4232 = vrot.slane %v4231, 4
        %v4234 = vshll.u32 %v4051, 16
        %v4236 = vrot.slane %v4234, 5
        %v4237 = vsel %vm538, %v4232, %v4236
        %v4238 = vshrl.u32 %v4051, 16
        %v4240 = vrot.slane %v4238, 4
        %v4241 = vor.u32 %v4240, %v4236
        %v4242 = vrot.slane %v4241, 4
        %v4244 = vshll.u32 %v4052, 16
        %v4246 = vrot.slane %v4244, 5
        %v4247 = vsel %vm538, %v4242, %v4246
        %v4249 = vshrl.u32 %v4053, 16
        %v4251 = vrot.slane %v4249, 4
        %v4252 = vshll.u32 %v4053, 16
        %v4254 = vrot.slane %v4252, 5
        %v4255 = vor.u32 %v4251, %v4254
        %v4256 = vrot.slane %v4255, 4
        %v4258 = vshll.u32 %v4054, 16
        %v4260 = vrot.slane %v4258, 5
        %v4261 = vsel %vm538, %v4256, %v4260
        %v4262 = vshrl.u32 %v4054, 16
        %v4264 = vrot.slane %v4262, 4
        %v4265 = vor.u32 %v4264, %v4260
        %v4266 = vrot.slane %v4265, 4
        %v4268 = vshll.u32 %v4055, 16
        %v4270 = vrot.slane %v4268, 5
        %v4271 = vsel %vm538, %v4266, %v4270
        %v4273 = vshrl.u32 %v4056, 16
        %v4275 = vrot.slane %v4273, 4
        %v4276 = vshll.u32 %v4056, 16
        %v4278 = vrot.slane %v4276, 5
        %v4279 = vor.u32 %v4275, %v4278
        %v4280 = vrot.slane %v4279, 4
        %v4282 = vshll.u32 %v4057, 16
        %v4284 = vrot.slane %v4282, 5
        %v4285 = vsel %vm538, %v4280, %v4284
        %v4286 = vshrl.u32 %v4057, 16
        %v4288 = vrot.slane %v4286, 4
        %v4289 = vor.u32 %v4288, %v4284
        %v4290 = vrot.slane %v4289, 4
        %v4292 = vshll.u32 %v4058, 16
        %v4294 = vrot.slane %v4292, 5
        %v4295 = vsel %vm538, %v4290, %v4294
        %v4297 = vshrl.u32 %v4059, 16
        %v4299 = vrot.slane %v4297, 4
        %v4300 = vshll.u32 %v4059, 16
        %v4302 = vrot.slane %v4300, 5
        %v4303 = vor.u32 %v4299, %v4302
        %v4304 = vrot.slane %v4303, 4
        %v4306 = vshll.u32 %v4060, 16
        %v4308 = vrot.slane %v4306, 5
        %v4309 = vsel %vm538, %v4304, %v4308
        %v4310 = vshrl.u32 %v4060, 16
        %v4312 = vrot.slane %v4310, 4
        %v4313 = vor.u32 %v4312, %v4308
        %v4314 = vrot.slane %v4313, 4
        %v4316 = vshll.u32 %v4061, 16
        %v4318 = vrot.slane %v4316, 5
        %v4319 = vsel %vm538, %v4314, %v4318
        %v4321 = vshrl.u32 %v4062, 16
        %v4323 = vrot.slane %v4321, 4
        %v4324 = vshll.u32 %v4062, 16
        %v4326 = vrot.slane %v4324, 5
        %v4327 = vor.u32 %v4323, %v4326
        %v4328 = vrot.slane %v4327, 4
        %v4330 = vshll.u32 %v4063, 16
        %v4332 = vrot.slane %v4330, 5
        %v4333 = vsel %vm538, %v4328, %v4332
        %v4334 = vshrl.u32 %v4063, 16
        %v4336 = vrot.slane %v4334, 4
        %v4337 = vor.u32 %v4336, %v4332
        %v4338 = vrot.slane %v4337, 4
        %v4340 = vshll.u32 %v4064, 16
        %v4342 = vrot.slane %v4340, 5
        %v4343 = vsel %vm538, %v4338, %v4342
        %v4345 = vshrl.u32 %v4065, 16
        %v4347 = vrot.slane %v4345, 4
        %v4348 = vshll.u32 %v4065, 16
        %v4350 = vrot.slane %v4348, 5
        %v4351 = vor.u32 %v4347, %v4350
        %v4352 = vrot.slane %v4351, 4
        %v4354 = vshll.u32 %v4066, 16
        %v4356 = vrot.slane %v4354, 5
        %v4357 = vsel %vm538, %v4352, %v4356
        %v4358 = vshrl.u32 %v4066, 16
        %v4360 = vrot.slane %v4358, 4
        %v4361 = vor.u32 %v4360, %v4356
        %v4362 = vrot.slane %v4361, 4
        %v4364 = vshll.u32 %v4067, 16
        %v4366 = vrot.slane %v4364, 5
        %v4367 = vsel %vm538, %v4362, %v4366
        %v4369 = vshrl.u32 %v4068, 16
        %v4371 = vrot.slane %v4369, 4
        %v4372 = vshll.u32 %v4068, 16
        %v4374 = vrot.slane %v4372, 5
        %v4375 = vor.u32 %v4371, %v4374
        %v4376 = vrot.slane %v4375, 4
        %v4378 = vshll.u32 %v4069, 16
        %v4380 = vrot.slane %v4378, 5
        %v4381 = vsel %vm538, %v4376, %v4380
        %v4382 = vshrl.u32 %v4069, 16
        %v4384 = vrot.slane %v4382, 4
        %v4385 = vor.u32 %v4384, %v4380
        %v4386 = vrot.slane %v4385, 4
        %v4388 = vshll.u32 %v4070, 16
        %v4390 = vrot.slane %v4388, 5
        %v4391 = vsel %vm538, %v4386, %v4390
        %v4393 = vshrl.u32 %v4071, 16
        %v4395 = vrot.slane %v4393, 4
        %v4396 = vshll.u32 %v4071, 16
        %v4398 = vrot.slane %v4396, 5
        %v4399 = vor.u32 %v4395, %v4398
        %v4400 = vrot.slane %v4399, 4
        %v4402 = vshll.u32 %v4072, 16
        %v4404 = vrot.slane %v4402, 5
        %v4405 = vsel %vm538, %v4400, %v4404
        %v4406 = vshrl.u32 %v4072, 16
        %v4408 = vrot.slane %v4406, 4
        %v4409 = vor.u32 %v4408, %v4404
        %v4410 = vrot.slane %v4409, 4
        %v4412 = vshll.u32 %v4073, 16
        %v4414 = vrot.slane %v4412, 5
        %v4415 = vsel %vm538, %v4410, %v4414
        %v4417 = vshrl.u32 %v4074, 16
        %v4419 = vrot.slane %v4417, 4
        %v4420 = vshll.u32 %v4074, 16
        %v4422 = vrot.slane %v4420, 5
        %v4423 = vor.u32 %v4419, %v4422
        %v4424 = vrot.slane %v4423, 4
        %v4426 = vshll.u32 %v4075, 16
        %v4428 = vrot.slane %v4426, 5
        %v4429 = vsel %vm538, %v4424, %v4428
        %v4430 = vshrl.u32 %v4075, 16
        %v4432 = vrot.slane %v4430, 4
        %v4433 = vor.u32 %v4432, %v4428
        %v4434 = vrot.slane %v4433, 4
        %v4436 = vshll.u32 %v4076, 16
        %v4438 = vrot.slane %v4436, 5
        %v4439 = vsel %vm538, %v4434, %v4438
        %v4441 = vshrl.u32 %v4077, 16
        %v4443 = vrot.slane %v4441, 4
        %v4444 = vshll.u32 %v4077, 16
        %v4446 = vrot.slane %v4444, 5
        %v4447 = vor.u32 %v4443, %v4446
        %v4448 = vrot.slane %v4447, 4
        %v4450 = vshll.u32 %v4078, 16
        %v4452 = vrot.slane %v4450, 5
        %v4453 = vsel %vm538, %v4448, %v4452
        %v4454 = vshrl.u32 %v4078, 16
        %v4456 = vrot.slane %v4454, 4
        %v4457 = vor.u32 %v4456, %v4452
        %v4458 = vrot.slane %v4457, 4
        %v4460 = vshll.u32 %v4079, 16
        %v4462 = vrot.slane %v4460, 5
        %v4463 = vsel %vm538, %v4458, %v4462
        %v4464 = vld [vmem:[%s3 + $0xe0] sm:$0xf]
        %v4465 = vld [vmem:[%s3 + $0xe4] sm:$0xf]
        %v4466 = vld [vmem:[%s3 + $0xe8] sm:$0xf]
        %v4467 = vld [vmem:[%s3 + $0xec] sm:$0xf]
        %v4468 = vld [vmem:[%s3 + $0xf0] sm:$0xf]
        %v4469 = vld [vmem:[%s3 + $0xf4] sm:$0xf]
        %v4470 = vld [vmem:[%s3 + $0xf8] sm:$0xf]
        %v4471 = vld [vmem:[%s3 + $0xfc] sm:$0xf]
        %v4472 = vunpack.c.l.b16 %v4093
        %v4473 = vunpack.c.l.b16 %v4103
        %v4474 = vunpack.c.l.b16 %v4117
        %v4475 = vunpack.c.l.b16 %v4127
        %v4476 = vunpack.c.l.b16 %v4141
        %v4477 = vunpack.c.l.b16 %v4151
        %v4478 = vunpack.c.l.b16 %v4165
        %v4479 = vunpack.c.l.b16 %v4175
        %v4480 = vunpack.c.l.b16 %v4189
        %v4481 = vunpack.c.l.b16 %v4199
        %v4482 = vunpack.c.l.b16 %v4213
        %v4483 = vunpack.c.l.b16 %v4223
        %v4484 = vunpack.c.l.b16 %v4237
        %v4485 = vunpack.c.l.b16 %v4247
        %v4486 = vunpack.c.l.b16 %v4261
        %v4487 = vunpack.c.l.b16 %v4271
        %v4488 = vunpack.c.l.b16 %v4285
        %v4489 = vunpack.c.l.b16 %v4295
        %v4490 = vunpack.c.l.b16 %v4309
        %v4491 = vunpack.c.l.b16 %v4319
        %v4492 = vunpack.c.l.b16 %v4333
        %v4493 = vunpack.c.l.b16 %v4343
        %v4494 = vunpack.c.l.b16 %v4357
        %v4495 = vunpack.c.l.b16 %v4367
        %v4496 = vunpack.c.l.b16 %v4381
        %v4497 = vunpack.c.l.b16 %v4391
        %v4498 = vunpack.c.l.b16 %v4405
        %v4499 = vunpack.c.l.b16 %v4415
        %v4500 = vunpack.c.l.b16 %v4429
        %v4501 = vunpack.c.l.b16 %v4439
        %v4502 = vunpack.c.l.b16 %v4453
        %v4503 = vunpack.c.l.b16 %v4463
        %v4504 = vpack.c.b16 %v4473, %v4472
        %v4505 = vpack.c.b16 %v4475, %v4474
        %v4506 = vpack.c.b16 %v4477, %v4476
        %v4507 = vpack.c.b16 %v4479, %v4478
        %v4508 = vpack.c.b16 %v4481, %v4480
        %v4509 = vpack.c.b16 %v4483, %v4482
        %v4510 = vpack.c.b16 %v4485, %v4484
        %v4511 = vpack.c.b16 %v4487, %v4486
        %v4512 = vpack.c.b16 %v4489, %v4488
        %v4513 = vpack.c.b16 %v4491, %v4490
        %v4514 = vpack.c.b16 %v4493, %v4492
        %v4515 = vpack.c.b16 %v4495, %v4494
        %v4516 = vpack.c.b16 %v4497, %v4496
        %v4517 = vpack.c.b16 %v4499, %v4498
        %v4518 = vpack.c.b16 %v4501, %v4500
        %v4519 = vpack.c.b16 %v4503, %v4502
        %v4528 = vunpack.c.l.b16 %v4464
        %v4529 = vunpack.c.l.b16 %v4465
        %v4530 = vunpack.c.l.b16 %v4466
        %v4531 = vunpack.c.l.b16 %v4467
        %v4532 = vunpack.c.l.b16 %v4468
        %v4533 = vunpack.c.l.b16 %v4469
        %v4534 = vunpack.c.l.b16 %v4470
        %v4535 = vunpack.c.l.b16 %v4471
        %v4536 = vpack.c.b16 %v4529, %v4528
        %v4537 = vpack.c.b16 %v4531, %v4530
        %v4538 = vpack.c.b16 %v4533, %v4532
        %v4539 = vpack.c.b16 %v4535, %v4534
        %v4545 = vsel %vm1003, %v4504, 0
        %v4548 = vsel %vm1003, %v4505, 0
        %v4551 = vsel %vm1003, %v4506, 0
        %v4554 = vsel %vm1003, %v4507, 0
        %v4557 = vsel %vm1003, %v4508, 0
        %v4560 = vsel %vm1003, %v4509, 0
        %v4563 = vsel %vm1003, %v4510, 0
        %v4566 = vsel %vm1003, %v4511, 0
        %v4569 = vsel %vm1003, %v4512, 0
        %v4572 = vsel %vm1003, %v4513, 0
        %v4575 = vsel %vm1003, %v4514, 0
        %v4578 = vsel %vm1003, %v4515, 0
        %v4581 = vsel %vm1003, %v4516, 0
        %v4584 = vsel %vm1003, %v4517, 0
        %v4587 = vsel %vm1003, %v4518, 0
        %v4590 = vsel %vm1003, %v4519, 0
        %4592 = vmatprep.subr.bf16.mxu0 0
        %4593 = vmatpush1.bf16.msra.mxu0 %v4536
        %4594 = vmatprep.subr.bf16.mxu0 0
        %4595 = vmatpush1.bf16.msra.mxu0 %v4537
        %4596 = vmatprep.subr.bf16.mxu0 0
        %4597 = vmatpush1.bf16.msra.mxu0 %v4538
        %4598 = vmatprep.subr.bf16.mxu0 0
        %4599 = vmatpush1.bf16.msra.mxu0 %v4539
        %4600 = vmatprep.subr.bf16.mxu0 0
        %4601 = vmatpush1.bf16.msra.mxu0 0
        %4602 = vmatprep.subr.bf16.mxu0 0
        %4603 = vmatpush1.bf16.msra.mxu0 0
        %4604 = vmatprep.subr.bf16.mxu0 0
        %4605 = vmatpush1.bf16.msra.mxu0 0
        %4606 = vmatprep.subr.bf16.mxu0 0
        %4607 = vmatpush1.bf16.msra.mxu0 0
        %4608 = vmatprep.subr.bf16.mxu0 0
        %4609 = vmatpush1.bf16.msra.mxu0 0
        %4610 = vmatprep.subr.bf16.mxu0 0
        %4611 = vmatpush1.bf16.msra.mxu0 0
        %4612 = vmatprep.subr.bf16.mxu0 0
        %4613 = vmatpush1.bf16.msra.mxu0 0
        %4614 = vmatprep.subr.bf16.mxu0 0
        %4615 = vmatpush1.bf16.msra.mxu0 0
        %4616 = vmatprep.subr.bf16.mxu0 0
        %4617 = vmatpush1.bf16.msra.mxu0 0
        %4618 = vmatprep.subr.bf16.mxu0 0
        %4619 = vmatpush1.bf16.msra.mxu0 0
        %4620 = vmatprep.subr.bf16.mxu0 0
        %4621 = vmatpush1.bf16.msra.mxu0 0
        %4622 = vmatprep.subr.bf16.mxu0 0
        %4623 = vmatpush1.bf16.msra.mxu0 0
        %4624 = vmatprep.mubr.bf16.mxu0 0
        %4625 = vmatmul.mubr.bf16.gmra.mrb[0].mxu0 %v4545
        %v4626 = vpop.f32.mrb[0].mxu0
        %v4627 = vadd.f32 0.0, %v4626
        %v4628 = vpop.f32.mrb[0].mxu0
        %v4629 = vpop.f32.mrb[0].mxu0
        %v4630 = vadd.f32 0.0, %v4629
        %v4631 = vpop.f32.mrb[0].mxu0
        %4632 = vmatprep.mubr.bf16.mxu0 0
        %4633 = vmatmul.mubr.bf16.gmra.mrb[0].mxu0 %v4548
        %v4634 = vpop.f32.mrb[0].mxu0
        %v4635 = vadd.f32 0.0, %v4634
        %v4636 = vpop.f32.mrb[0].mxu0
        %v4637 = vpop.f32.mrb[0].mxu0
        %v4638 = vadd.f32 0.0, %v4637
        %v4639 = vpop.f32.mrb[0].mxu0
        %4640 = vmatprep.mubr.bf16.mxu0 0
        %4641 = vmatmul.mubr.bf16.gmra.mrb[0].mxu0 %v4551
        %v4642 = vpop.f32.mrb[0].mxu0
        %v4643 = vadd.f32 0.0, %v4642
        %v4644 = vpop.f32.mrb[0].mxu0
        %v4645 = vpop.f32.mrb[0].mxu0
        %v4646 = vadd.f32 0.0, %v4645
        %v4647 = vpop.f32.mrb[0].mxu0
        %4648 = vmatprep.mubr.bf16.mxu0 0
        %4649 = vmatmul.mubr.bf16.gmra.mrb[0].mxu0 %v4554
        %v4650 = vpop.f32.mrb[0].mxu0
        %v4651 = vadd.f32 0.0, %v4650
        %v4652 = vpop.f32.mrb[0].mxu0
        %v4653 = vpop.f32.mrb[0].mxu0
        %v4654 = vadd.f32 0.0, %v4653
        %v4655 = vpop.f32.mrb[0].mxu0
        %4656 = vmatprep.mubr.bf16.mxu0 0
        %4657 = vmatmul.mubr.bf16.gmra.mrb[0].mxu0 %v4557
        %v4658 = vpop.f32.mrb[0].mxu0
        %v4659 = vadd.f32 0.0, %v4658
        %v4660 = vpop.f32.mrb[0].mxu0
        %v4661 = vpop.f32.mrb[0].mxu0
        %v4662 = vadd.f32 0.0, %v4661
        %v4663 = vpop.f32.mrb[0].mxu0
        %4664 = vmatprep.mubr.bf16.mxu0 0
        %4665 = vmatmul.mubr.bf16.gmra.mrb[0].mxu0 %v4560
        %v4666 = vpop.f32.mrb[0].mxu0
        %v4667 = vadd.f32 0.0, %v4666
        %v4668 = vpop.f32.mrb[0].mxu0
        %v4669 = vpop.f32.mrb[0].mxu0
        %v4670 = vadd.f32 0.0, %v4669
        %v4671 = vpop.f32.mrb[0].mxu0
        %4672 = vmatprep.mubr.bf16.mxu0 0
        %4673 = vmatmul.mubr.bf16.gmra.mrb[0].mxu0 %v4563
        %v4674 = vpop.f32.mrb[0].mxu0
        %v4675 = vadd.f32 0.0, %v4674
        %v4676 = vpop.f32.mrb[0].mxu0
        %v4677 = vpop.f32.mrb[0].mxu0
        %v4678 = vadd.f32 0.0, %v4677
        %v4679 = vpop.f32.mrb[0].mxu0
        %4680 = vmatprep.mubr.bf16.mxu0 0
        %4681 = vmatmul.mubr.bf16.gmra.mrb[0].mxu0 %v4566
        %v4682 = vpop.f32.mrb[0].mxu0
        %v4683 = vadd.f32 0.0, %v4682
        %v4684 = vpop.f32.mrb[0].mxu0
        %v4685 = vpop.f32.mrb[0].mxu0
        %v4686 = vadd.f32 0.0, %v4685
        %v4687 = vpop.f32.mrb[0].mxu0
        %4688 = vmatprep.mubr.bf16.mxu0 0
        %4689 = vmatmul.mubr.bf16.gmra.mrb[0].mxu0 %v4569
        %v4690 = vpop.f32.mrb[0].mxu0
        %v4691 = vadd.f32 0.0, %v4690
        %v4692 = vpop.f32.mrb[0].mxu0
        %v4693 = vpop.f32.mrb[0].mxu0
        %v4694 = vadd.f32 0.0, %v4693
        %v4695 = vpop.f32.mrb[0].mxu0
        %4696 = vmatprep.mubr.bf16.mxu0 0
        %4697 = vmatmul.mubr.bf16.gmra.mrb[0].mxu0 %v4572
        %v4698 = vpop.f32.mrb[0].mxu0
        %v4699 = vadd.f32 0.0, %v4698
        %v4700 = vpop.f32.mrb[0].mxu0
        %v4701 = vpop.f32.mrb[0].mxu0
        %v4702 = vadd.f32 0.0, %v4701
        %v4703 = vpop.f32.mrb[0].mxu0
        %4704 = vmatprep.mubr.bf16.mxu0 0
        %4705 = vmatmul.mubr.bf16.gmra.mrb[0].mxu0 %v4575
        %v4706 = vpop.f32.mrb[0].mxu0
        %v4707 = vadd.f32 0.0, %v4706
        %v4708 = vpop.f32.mrb[0].mxu0
        %v4709 = vpop.f32.mrb[0].mxu0
        %v4710 = vadd.f32 0.0, %v4709
        %v4711 = vpop.f32.mrb[0].mxu0
        %4712 = vmatprep.mubr.bf16.mxu0 0
        %4713 = vmatmul.mubr.bf16.gmra.mrb[0].mxu0 %v4578
        %v4714 = vpop.f32.mrb[0].mxu0
        %v4715 = vadd.f32 0.0, %v4714
        %v4716 = vpop.f32.mrb[0].mxu0
        %v4717 = vpop.f32.mrb[0].mxu0
        %v4718 = vadd.f32 0.0, %v4717
        %v4719 = vpop.f32.mrb[0].mxu0
        %4720 = vmatprep.mubr.bf16.mxu0 0
        %4721 = vmatmul.mubr.bf16.gmra.mrb[0].mxu0 %v4581
        %v4722 = vpop.f32.mrb[0].mxu0
        %v4723 = vadd.f32 0.0, %v4722
        %v4724 = vpop.f32.mrb[0].mxu0
        %v4725 = vpop.f32.mrb[0].mxu0
        %v4726 = vadd.f32 0.0, %v4725
        %v4727 = vpop.f32.mrb[0].mxu0
        %4728 = vmatprep.mubr.bf16.mxu0 0
        %4729 = vmatmul.mubr.bf16.gmra.mrb[0].mxu0 %v4584
        %v4730 = vpop.f32.mrb[0].mxu0
        %v4731 = vadd.f32 0.0, %v4730
        %v4732 = vpop.f32.mrb[0].mxu0
        %v4733 = vpop.f32.mrb[0].mxu0
        %v4734 = vadd.f32 0.0, %v4733
        %v4735 = vpop.f32.mrb[0].mxu0
        %4736 = vmatprep.mubr.bf16.mxu0 0
        %4737 = vmatmul.mubr.bf16.gmra.mrb[0].mxu0 %v4587
        %v4738 = vpop.f32.mrb[0].mxu0
        %v4739 = vadd.f32 0.0, %v4738
        %v4740 = vpop.f32.mrb[0].mxu0
        %v4741 = vpop.f32.mrb[0].mxu0
        %v4742 = vadd.f32 0.0, %v4741
        %v4743 = vpop.f32.mrb[0].mxu0
        %4744 = vmatprep.mubr.bf16.mxu0 0
        %4745 = vmatmul.mubr.bf16.gmra.mrb[0].mxu0 %v4590
        %v4746 = vpop.f32.mrb[0].mxu0
        %v4747 = vadd.f32 0.0, %v4746
        %v4748 = vpop.f32.mrb[0].mxu0
        %v4749 = vpop.f32.mrb[0].mxu0
        %v4750 = vadd.f32 0.0, %v4749
        %v4751 = vpop.f32.mrb[0].mxu0
        %4752 = vdwg.mxu0
        %v4753 = vadd.f32 %v4000, %v4627
        %v4754 = vadd.f32 %v4001, %v4630
        %v4755 = vadd.f32 %v4002, %v4635
        %v4756 = vadd.f32 %v4003, %v4638
        %v4757 = vadd.f32 %v4004, %v4643
        %v4758 = vadd.f32 %v4005, %v4646
        %v4759 = vadd.f32 %v4006, %v4651
        %v4760 = vadd.f32 %v4007, %v4654
        %v4761 = vadd.f32 %v4008, %v4659
        %v4762 = vadd.f32 %v4009, %v4662
        %v4763 = vadd.f32 %v4010, %v4667
        %v4764 = vadd.f32 %v4011, %v4670
        %v4765 = vadd.f32 %v4012, %v4675
        %v4766 = vadd.f32 %v4013, %v4678
        %v4767 = vadd.f32 %v4014, %v4683
        %v4768 = vadd.f32 %v4015, %v4686
        %v4769 = vadd.f32 %v4016, %v4691
        %v4770 = vadd.f32 %v4017, %v4694
        %v4771 = vadd.f32 %v4018, %v4699
        %v4772 = vadd.f32 %v4019, %v4702
        %v4773 = vadd.f32 %v4020, %v4707
        %v4774 = vadd.f32 %v4021, %v4710
        %v4775 = vadd.f32 %v4022, %v4715
        %v4776 = vadd.f32 %v4023, %v4718
        %v4777 = vadd.f32 %v4024, %v4723
        %v4778 = vadd.f32 %v4025, %v4726
        %v4779 = vadd.f32 %v4026, %v4731
        %v4780 = vadd.f32 %v4027, %v4734
        %v4781 = vadd.f32 %v4028, %v4739
        %v4782 = vadd.f32 %v4029, %v4742
        %v4783 = vadd.f32 %v4030, %v4747
        %v4784 = vadd.f32 %v4031, %v4750
        %v4785 = vld [vmem:[%s3646] sm:$0xe]
        %v4786 = vld [vmem:[%s3646 + $0xc] sm:$0xe]
        %v4787 = vld [vmem:[%s3646 + $0x18] sm:$0xe]
        %v4788 = vld [vmem:[%s3646 + $0x24] sm:$0xe]
        %v4789 = vld [vmem:[%s3646 + $0x30] sm:$0xe]
        %v4790 = vld [vmem:[%s3646 + $0x3c] sm:$0xe]
        %v4791 = vld [vmem:[%s3646 + $0x48] sm:$0xe]
        %v4792 = vld [vmem:[%s3646 + $0x54] sm:$0xe]
        %v4793 = vld [vmem:[%s3646 + $0x60] sm:$0xe]
        %v4794 = vld [vmem:[%s3646 + $0x6c] sm:$0xe]
        %v4795 = vld [vmem:[%s3646 + $0x78] sm:$0xe]
        %v4796 = vld [vmem:[%s3646 + $0x84] sm:$0xe]
        %v4797 = vld [vmem:[%s3646 + $0x90] sm:$0xe]
        %v4798 = vld [vmem:[%s3646 + $0x9c] sm:$0xe]
        %v4799 = vld [vmem:[%s3646 + $0xa8] sm:$0xe]
        %v4800 = vld [vmem:[%s3646 + $0xb4] sm:$0xe]
        %v4849 = vrot.slane %v4785, 5
        %v4850 = vrot.slane %v4849, 4
        %v4851 = vrot.slane %v4033, 5
        %v4852 = vsel %vm1576, %v4850, %v4851
        %v4853 = vrot.slane %v4851, 4
        %v4854 = vrot.slane %v4034, 5
        %v4855 = vsel %vm1576, %v4853, %v4854
        %v4856 = vrot.slane %v4786, 5
        %v4857 = vrot.slane %v4856, 4
        %v4858 = vrot.slane %v4036, 5
        %v4859 = vsel %vm1576, %v4857, %v4858
        %v4860 = vrot.slane %v4858, 4
        %v4861 = vrot.slane %v4037, 5
        %v4862 = vsel %vm1576, %v4860, %v4861
        %v4863 = vrot.slane %v4787, 5
        %v4864 = vrot.slane %v4863, 4
        %v4865 = vrot.slane %v4039, 5
        %v4866 = vsel %vm1576, %v4864, %v4865
        %v4867 = vrot.slane %v4865, 4
        %v4868 = vrot.slane %v4040, 5
        %v4869 = vsel %vm1576, %v4867, %v4868
        %v4870 = vrot.slane %v4788, 5
        %v4871 = vrot.slane %v4870, 4
        %v4872 = vrot.slane %v4042, 5
        %v4873 = vsel %vm1576, %v4871, %v4872
        %v4874 = vrot.slane %v4872, 4
        %v4875 = vrot.slane %v4043, 5
        %v4876 = vsel %vm1576, %v4874, %v4875
        %v4877 = vrot.slane %v4789, 5
        %v4878 = vrot.slane %v4877, 4
        %v4879 = vrot.slane %v4045, 5
        %v4880 = vsel %vm1576, %v4878, %v4879
        %v4881 = vrot.slane %v4879, 4
        %v4882 = vrot.slane %v4046, 5
        %v4883 = vsel %vm1576, %v4881, %v4882
        %v4884 = vrot.slane %v4790, 5
        %v4885 = vrot.slane %v4884, 4
        %v4886 = vrot.slane %v4048, 5
        %v4887 = vsel %vm1576, %v4885, %v4886
        %v4888 = vrot.slane %v4886, 4
        %v4889 = vrot.slane %v4049, 5
        %v4890 = vsel %vm1576, %v4888, %v4889
        %v4891 = vrot.slane %v4791, 5
        %v4892 = vrot.slane %v4891, 4
        %v4893 = vrot.slane %v4051, 5
        %v4894 = vsel %vm1576, %v4892, %v4893
        %v4895 = vrot.slane %v4893, 4
        %v4896 = vrot.slane %v4052, 5
        %v4897 = vsel %vm1576, %v4895, %v4896
        %v4898 = vrot.slane %v4792, 5
        %v4899 = vrot.slane %v4898, 4
        %v4900 = vrot.slane %v4054, 5
        %v4901 = vsel %vm1576, %v4899, %v4900
        %v4902 = vrot.slane %v4900, 4
        %v4903 = vrot.slane %v4055, 5
        %v4904 = vsel %vm1576, %v4902, %v4903
        %v4905 = vrot.slane %v4793, 5
        %v4906 = vrot.slane %v4905, 4
        %v4907 = vrot.slane %v4057, 5
        %v4908 = vsel %vm1576, %v4906, %v4907
        %v4909 = vrot.slane %v4907, 4
        %v4910 = vrot.slane %v4058, 5
        %v4911 = vsel %vm1576, %v4909, %v4910
        %v4912 = vrot.slane %v4794, 5
        %v4913 = vrot.slane %v4912, 4
        %v4914 = vrot.slane %v4060, 5
        %v4915 = vsel %vm1576, %v4913, %v4914
        %v4916 = vrot.slane %v4914, 4
        %v4917 = vrot.slane %v4061, 5
        %v4918 = vsel %vm1576, %v4916, %v4917
        %v4919 = vrot.slane %v4795, 5
        %v4920 = vrot.slane %v4919, 4
        %v4921 = vrot.slane %v4063, 5
        %v4922 = vsel %vm1576, %v4920, %v4921
        %v4923 = vrot.slane %v4921, 4
        %v4924 = vrot.slane %v4064, 5
        %v4925 = vsel %vm1576, %v4923, %v4924
        %v4926 = vrot.slane %v4796, 5
        %v4927 = vrot.slane %v4926, 4
        %v4928 = vrot.slane %v4066, 5
        %v4929 = vsel %vm1576, %v4927, %v4928
        %v4930 = vrot.slane %v4928, 4
        %v4931 = vrot.slane %v4067, 5
        %v4932 = vsel %vm1576, %v4930, %v4931
        %v4933 = vrot.slane %v4797, 5
        %v4934 = vrot.slane %v4933, 4
        %v4935 = vrot.slane %v4069, 5
        %v4936 = vsel %vm1576, %v4934, %v4935
        %v4937 = vrot.slane %v4935, 4
        %v4938 = vrot.slane %v4070, 5
        %v4939 = vsel %vm1576, %v4937, %v4938
        %v4940 = vrot.slane %v4798, 5
        %v4941 = vrot.slane %v4940, 4
        %v4942 = vrot.slane %v4072, 5
        %v4943 = vsel %vm1576, %v4941, %v4942
        %v4944 = vrot.slane %v4942, 4
        %v4945 = vrot.slane %v4073, 5
        %v4946 = vsel %vm1576, %v4944, %v4945
        %v4947 = vrot.slane %v4799, 5
        %v4948 = vrot.slane %v4947, 4
        %v4949 = vrot.slane %v4075, 5
        %v4950 = vsel %vm1576, %v4948, %v4949
        %v4951 = vrot.slane %v4949, 4
        %v4952 = vrot.slane %v4076, 5
        %v4953 = vsel %vm1576, %v4951, %v4952
        %v4954 = vrot.slane %v4800, 5
        %v4955 = vrot.slane %v4954, 4
        %v4956 = vrot.slane %v4078, 5
        %v4957 = vsel %vm1576, %v4955, %v4956
        %v4958 = vrot.slane %v4956, 4
        %v4959 = vrot.slane %v4079, 5
        %v4960 = vsel %vm1576, %v4958, %v4959
        %v4961 = vld [vmem:[%s3 + $0x100] sm:$0xf]
        %v4962 = vld [vmem:[%s3 + $0x104] sm:$0xf]
        %v4963 = vld [vmem:[%s3 + $0x108] sm:$0xf]
        %v4964 = vld [vmem:[%s3 + $0x10c] sm:$0xf]
        %v4965 = vld [vmem:[%s3 + $0x110] sm:$0xf]
        %v4966 = vld [vmem:[%s3 + $0x114] sm:$0xf]
        %v4967 = vld [vmem:[%s3 + $0x118] sm:$0xf]
        %v4968 = vld [vmem:[%s3 + $0x11c] sm:$0xf]
        %v4969 = vunpack.c.l.b16 %v4852
        %v4970 = vunpack.c.l.b16 %v4855
        %v4971 = vunpack.c.l.b16 %v4859
        %v4972 = vunpack.c.l.b16 %v4862
        %v4973 = vunpack.c.l.b16 %v4866
        %v4974 = vunpack.c.l.b16 %v4869
        %v4975 = vunpack.c.l.b16 %v4873
        %v4976 = vunpack.c.l.b16 %v4876
        %v4977 = vunpack.c.l.b16 %v4880
        %v4978 = vunpack.c.l.b16 %v4883
        %v4979 = vunpack.c.l.b16 %v4887
        %v4980 = vunpack.c.l.b16 %v4890
        %v4981 = vunpack.c.l.b16 %v4894
        %v4982 = vunpack.c.l.b16 %v4897
        %v4983 = vunpack.c.l.b16 %v4901
        %v4984 = vunpack.c.l.b16 %v4904
        %v4985 = vunpack.c.l.b16 %v4908
        %v4986 = vunpack.c.l.b16 %v4911
        %v4987 = vunpack.c.l.b16 %v4915
        %v4988 = vunpack.c.l.b16 %v4918
        %v4989 = vunpack.c.l.b16 %v4922
        %v4990 = vunpack.c.l.b16 %v4925
        %v4991 = vunpack.c.l.b16 %v4929
        %v4992 = vunpack.c.l.b16 %v4932
        %v4993 = vunpack.c.l.b16 %v4936
        %v4994 = vunpack.c.l.b16 %v4939
        %v4995 = vunpack.c.l.b16 %v4943
        %v4996 = vunpack.c.l.b16 %v4946
        %v4997 = vunpack.c.l.b16 %v4950
        %v4998 = vunpack.c.l.b16 %v4953
        %v4999 = vunpack.c.l.b16 %v4957
        %v5000 = vunpack.c.l.b16 %v4960
        %v5001 = vpack.c.b16 %v4970, %v4969
        %v5002 = vpack.c.b16 %v4972, %v4971
        %v5003 = vpack.c.b16 %v4974, %v4973
        %v5004 = vpack.c.b16 %v4976, %v4975
        %v5005 = vpack.c.b16 %v4978, %v4977
        %v5006 = vpack.c.b16 %v4980, %v4979
        %v5007 = vpack.c.b16 %v4982, %v4981
        %v5008 = vpack.c.b16 %v4984, %v4983
        %v5009 = vpack.c.b16 %v4986, %v4985
        %v5010 = vpack.c.b16 %v4988, %v4987
        %v5011 = vpack.c.b16 %v4990, %v4989
        %v5012 = vpack.c.b16 %v4992, %v4991
        %v5013 = vpack.c.b16 %v4994, %v4993
        %v5014 = vpack.c.b16 %v4996, %v4995
        %v5015 = vpack.c.b16 %v4998, %v4997
        %v5016 = vpack.c.b16 %v5000, %v4999
        %v5025 = vunpack.c.l.b16 %v4961
        %v5026 = vunpack.c.l.b16 %v4962
        %v5027 = vunpack.c.l.b16 %v4963
        %v5028 = vunpack.c.l.b16 %v4964
        %v5029 = vunpack.c.l.b16 %v4965
        %v5030 = vunpack.c.l.b16 %v4966
        %v5031 = vunpack.c.l.b16 %v4967
        %v5032 = vunpack.c.l.b16 %v4968
        %v5033 = vpack.c.b16 %v5026, %v5025
        %v5034 = vpack.c.b16 %v5028, %v5027
        %v5035 = vpack.c.b16 %v5030, %v5029
        %v5036 = vpack.c.b16 %v5032, %v5031
        %v5042 = vsel %vm1003, %v5001, 0
        %v5045 = vsel %vm1003, %v5002, 0
        %v5048 = vsel %vm1003, %v5003, 0
        %v5051 = vsel %vm1003, %v5004, 0
        %v5054 = vsel %vm1003, %v5005, 0
        %v5057 = vsel %vm1003, %v5006, 0
        %v5060 = vsel %vm1003, %v5007, 0
        %v5063 = vsel %vm1003, %v5008, 0
        %v5066 = vsel %vm1003, %v5009, 0
        %v5069 = vsel %vm1003, %v5010, 0
        %v5072 = vsel %vm1003, %v5011, 0
        %v5075 = vsel %vm1003, %v5012, 0
        %v5078 = vsel %vm1003, %v5013, 0
        %v5081 = vsel %vm1003, %v5014, 0
        %v5084 = vsel %vm1003, %v5015, 0
        %v5087 = vsel %vm1003, %v5016, 0
        %5089 = vmatprep.subr.bf16.mxu0 0
        %5090 = vmatpush1.bf16.msra.mxu0 %v5033
        %5091 = vmatprep.subr.bf16.mxu0 0
        %5092 = vmatpush1.bf16.msra.mxu0 %v5034
        %5093 = vmatprep.subr.bf16.mxu0 0
        %5094 = vmatpush1.bf16.msra.mxu0 %v5035
        %5095 = vmatprep.subr.bf16.mxu0 0
        %5096 = vmatpush1.bf16.msra.mxu0 %v5036
        %5097 = vmatprep.subr.bf16.mxu0 0
        %5098 = vmatpush1.bf16.msra.mxu0 0
        %5099 = vmatprep.subr.bf16.mxu0 0
        %5100 = vmatpush1.bf16.msra.mxu0 0
        %5101 = vmatprep.subr.bf16.mxu0 0
        %5102 = vmatpush1.bf16.msra.mxu0 0
        %5103 = vmatprep.subr.bf16.mxu0 0
        %5104 = vmatpush1.bf16.msra.mxu0 0
        %5105 = vmatprep.subr.bf16.mxu0 0
        %5106 = vmatpush1.bf16.msra.mxu0 0
        %5107 = vmatprep.subr.bf16.mxu0 0
        %5108 = vmatpush1.bf16.msra.mxu0 0
        %5109 = vmatprep.subr.bf16.mxu0 0
        %5110 = vmatpush1.bf16.msra.mxu0 0
        %5111 = vmatprep.subr.bf16.mxu0 0
        %5112 = vmatpush1.bf16.msra.mxu0 0
        %5113 = vmatprep.subr.bf16.mxu0 0
        %5114 = vmatpush1.bf16.msra.mxu0 0
        %5115 = vmatprep.subr.bf16.mxu0 0
        %5116 = vmatpush1.bf16.msra.mxu0 0
        %5117 = vmatprep.subr.bf16.mxu0 0
        %5118 = vmatpush1.bf16.msra.mxu0 0
        %5119 = vmatprep.subr.bf16.mxu0 0
        %5120 = vmatpush1.bf16.msra.mxu0 0
        %5121 = vmatprep.mubr.bf16.mxu0 0
        %5122 = vmatmul.mubr.bf16.gmra.mrb[0].mxu0 %v5042
        %v5123 = vpop.f32.mrb[0].mxu0
        %v5124 = vadd.f32 0.0, %v5123
        %v5125 = vpop.f32.mrb[0].mxu0
        %v5126 = vpop.f32.mrb[0].mxu0
        %v5127 = vadd.f32 0.0, %v5126
        %v5128 = vpop.f32.mrb[0].mxu0
        %5129 = vmatprep.mubr.bf16.mxu0 0
        %5130 = vmatmul.mubr.bf16.gmra.mrb[0].mxu0 %v5045
        %v5131 = vpop.f32.mrb[0].mxu0
        %v5132 = vadd.f32 0.0, %v5131
        %v5133 = vpop.f32.mrb[0].mxu0
        %v5134 = vpop.f32.mrb[0].mxu0
        %v5135 = vadd.f32 0.0, %v5134
        %v5136 = vpop.f32.mrb[0].mxu0
        %5137 = vmatprep.mubr.bf16.mxu0 0
        %5138 = vmatmul.mubr.bf16.gmra.mrb[0].mxu0 %v5048
        %v5139 = vpop.f32.mrb[0].mxu0
        %v5140 = vadd.f32 0.0, %v5139
        %v5141 = vpop.f32.mrb[0].mxu0
        %v5142 = vpop.f32.mrb[0].mxu0
        %v5143 = vadd.f32 0.0, %v5142
        %v5144 = vpop.f32.mrb[0].mxu0
        %5145 = vmatprep.mubr.bf16.mxu0 0
        %5146 = vmatmul.mubr.bf16.gmra.mrb[0].mxu0 %v5051
        %v5147 = vpop.f32.mrb[0].mxu0
        %v5148 = vadd.f32 0.0, %v5147
        %v5149 = vpop.f32.mrb[0].mxu0
        %v5150 = vpop.f32.mrb[0].mxu0
        %v5151 = vadd.f32 0.0, %v5150
        %v5152 = vpop.f32.mrb[0].mxu0
        %5153 = vmatprep.mubr.bf16.mxu0 0
        %5154 = vmatmul.mubr.bf16.gmra.mrb[0].mxu0 %v5054
        %v5155 = vpop.f32.mrb[0].mxu0
        %v5156 = vadd.f32 0.0, %v5155
        %v5157 = vpop.f32.mrb[0].mxu0
        %v5158 = vpop.f32.mrb[0].mxu0
        %v5159 = vadd.f32 0.0, %v5158
        %v5160 = vpop.f32.mrb[0].mxu0
        %5161 = vmatprep.mubr.bf16.mxu0 0
        %5162 = vmatmul.mubr.bf16.gmra.mrb[0].mxu0 %v5057
        %v5163 = vpop.f32.mrb[0].mxu0
        %v5164 = vadd.f32 0.0, %v5163
        %v5165 = vpop.f32.mrb[0].mxu0
        %v5166 = vpop.f32.mrb[0].mxu0
        %v5167 = vadd.f32 0.0, %v5166
        %v5168 = vpop.f32.mrb[0].mxu0
        %5169 = vmatprep.mubr.bf16.mxu0 0
        %5170 = vmatmul.mubr.bf16.gmra.mrb[0].mxu0 %v5060
        %v5171 = vpop.f32.mrb[0].mxu0
        %v5172 = vadd.f32 0.0, %v5171
        %v5173 = vpop.f32.mrb[0].mxu0
        %v5174 = vpop.f32.mrb[0].mxu0
        %v5175 = vadd.f32 0.0, %v5174
        %v5176 = vpop.f32.mrb[0].mxu0
        %5177 = vmatprep.mubr.bf16.mxu0 0
        %5178 = vmatmul.mubr.bf16.gmra.mrb[0].mxu0 %v5063
        %v5179 = vpop.f32.mrb[0].mxu0
        %v5180 = vadd.f32 0.0, %v5179
        %v5181 = vpop.f32.mrb[0].mxu0
        %v5182 = vpop.f32.mrb[0].mxu0
        %v5183 = vadd.f32 0.0, %v5182
        %v5184 = vpop.f32.mrb[0].mxu0
        %5185 = vmatprep.mubr.bf16.mxu0 0
        %5186 = vmatmul.mubr.bf16.gmra.mrb[0].mxu0 %v5066
        %v5187 = vpop.f32.mrb[0].mxu0
        %v5188 = vadd.f32 0.0, %v5187
        %v5189 = vpop.f32.mrb[0].mxu0
        %v5190 = vpop.f32.mrb[0].mxu0
        %v5191 = vadd.f32 0.0, %v5190
        %v5192 = vpop.f32.mrb[0].mxu0
        %5193 = vmatprep.mubr.bf16.mxu0 0
        %5194 = vmatmul.mubr.bf16.gmra.mrb[0].mxu0 %v5069
        %v5195 = vpop.f32.mrb[0].mxu0
        %v5196 = vadd.f32 0.0, %v5195
        %v5197 = vpop.f32.mrb[0].mxu0
        %v5198 = vpop.f32.mrb[0].mxu0
        %v5199 = vadd.f32 0.0, %v5198
        %v5200 = vpop.f32.mrb[0].mxu0
        %5201 = vmatprep.mubr.bf16.mxu0 0
        %5202 = vmatmul.mubr.bf16.gmra.mrb[0].mxu0 %v5072
        %v5203 = vpop.f32.mrb[0].mxu0
        %v5204 = vadd.f32 0.0, %v5203
        %v5205 = vpop.f32.mrb[0].mxu0
        %v5206 = vpop.f32.mrb[0].mxu0
        %v5207 = vadd.f32 0.0, %v5206
        %v5208 = vpop.f32.mrb[0].mxu0
        %5209 = vmatprep.mubr.bf16.mxu0 0
        %5210 = vmatmul.mubr.bf16.gmra.mrb[0].mxu0 %v5075
        %v5211 = vpop.f32.mrb[0].mxu0
        %v5212 = vadd.f32 0.0, %v5211
        %v5213 = vpop.f32.mrb[0].mxu0
        %v5214 = vpop.f32.mrb[0].mxu0
        %v5215 = vadd.f32 0.0, %v5214
        %v5216 = vpop.f32.mrb[0].mxu0
        %5217 = vmatprep.mubr.bf16.mxu0 0
        %5218 = vmatmul.mubr.bf16.gmra.mrb[0].mxu0 %v5078
        %v5219 = vpop.f32.mrb[0].mxu0
        %v5220 = vadd.f32 0.0, %v5219
        %v5221 = vpop.f32.mrb[0].mxu0
        %v5222 = vpop.f32.mrb[0].mxu0
        %v5223 = vadd.f32 0.0, %v5222
        %v5224 = vpop.f32.mrb[0].mxu0
        %5225 = vmatprep.mubr.bf16.mxu0 0
        %5226 = vmatmul.mubr.bf16.gmra.mrb[0].mxu0 %v5081
        %v5227 = vpop.f32.mrb[0].mxu0
        %v5228 = vadd.f32 0.0, %v5227
        %v5229 = vpop.f32.mrb[0].mxu0
        %v5230 = vpop.f32.mrb[0].mxu0
        %v5231 = vadd.f32 0.0, %v5230
        %v5232 = vpop.f32.mrb[0].mxu0
        %5233 = vmatprep.mubr.bf16.mxu0 0
        %5234 = vmatmul.mubr.bf16.gmra.mrb[0].mxu0 %v5084
        %v5235 = vpop.f32.mrb[0].mxu0
        %v5236 = vadd.f32 0.0, %v5235
        %v5237 = vpop.f32.mrb[0].mxu0
        %v5238 = vpop.f32.mrb[0].mxu0
        %v5239 = vadd.f32 0.0, %v5238
        %v5240 = vpop.f32.mrb[0].mxu0
        %5241 = vmatprep.mubr.bf16.mxu0 0
        %5242 = vmatmul.mubr.bf16.gmra.mrb[0].mxu0 %v5087
        %v5243 = vpop.f32.mrb[0].mxu0
        %v5244 = vadd.f32 0.0, %v5243
        %v5245 = vpop.f32.mrb[0].mxu0
        %v5246 = vpop.f32.mrb[0].mxu0
        %v5247 = vadd.f32 0.0, %v5246
        %v5248 = vpop.f32.mrb[0].mxu0
        %5249 = vdwg.mxu0
        %v5250 = vadd.f32 %v4753, %v5124
        %v5251 = vadd.f32 %v4754, %v5127
        %v5252 = vadd.f32 %v4755, %v5132
        %v5253 = vadd.f32 %v4756, %v5135
        %v5254 = vadd.f32 %v4757, %v5140
        %v5255 = vadd.f32 %v4758, %v5143
        %v5256 = vadd.f32 %v4759, %v5148
        %v5257 = vadd.f32 %v4760, %v5151
        %v5258 = vadd.f32 %v4761, %v5156
        %v5259 = vadd.f32 %v4762, %v5159
        %v5260 = vadd.f32 %v4763, %v5164
        %v5261 = vadd.f32 %v4764, %v5167
        %v5262 = vadd.f32 %v4765, %v5172
        %v5263 = vadd.f32 %v4766, %v5175
        %v5264 = vadd.f32 %v4767, %v5180
        %v5265 = vadd.f32 %v4768, %v5183
        %v5266 = vadd.f32 %v4769, %v5188
        %v5267 = vadd.f32 %v4770, %v5191
        %v5268 = vadd.f32 %v4771, %v5196
        %v5269 = vadd.f32 %v4772, %v5199
        %v5270 = vadd.f32 %v4773, %v5204
        %v5271 = vadd.f32 %v4774, %v5207
        %v5272 = vadd.f32 %v4775, %v5212
        %v5273 = vadd.f32 %v4776, %v5215
        %v5274 = vadd.f32 %v4777, %v5220
        %v5275 = vadd.f32 %v4778, %v5223
        %v5276 = vadd.f32 %v4779, %v5228
        %v5277 = vadd.f32 %v4780, %v5231
        %v5278 = vadd.f32 %v4781, %v5236
        %v5279 = vadd.f32 %v4782, %v5239
        %v5280 = vadd.f32 %v4783, %v5244
        %v5281 = vadd.f32 %v4784, %v5247
        %v5282 = vld [vmem:[%s4] sm:$0x1]
        %v5284 = vlaneseq
        %v5285 = vshrl.u32 %v5284, 7
        %v5286 = vsub.s32 0, %v5285
        %v5287 = vrot.slane %v5282, %v5286
        %v5289 = vadd.f32 %v5250, %v5287
        %v5290 = vadd.f32 %v5251, %v5287
        %v5291 = vadd.f32 %v5252, %v5287
        %v5292 = vadd.f32 %v5253, %v5287
        %v5293 = vadd.f32 %v5254, %v5287
        %v5294 = vadd.f32 %v5255, %v5287
        %v5295 = vadd.f32 %v5256, %v5287
        %v5296 = vadd.f32 %v5257, %v5287
        %v5297 = vadd.f32 %v5258, %v5287
        %v5298 = vadd.f32 %v5259, %v5287
        %v5299 = vadd.f32 %v5260, %v5287
        %v5300 = vadd.f32 %v5261, %v5287
        %v5301 = vadd.f32 %v5262, %v5287
        %v5302 = vadd.f32 %v5263, %v5287
        %v5303 = vadd.f32 %v5264, %v5287
        %v5304 = vadd.f32 %v5265, %v5287
        %v5305 = vadd.f32 %v5266, %v5287
        %v5306 = vadd.f32 %v5267, %v5287
        %v5307 = vadd.f32 %v5268, %v5287
        %v5308 = vadd.f32 %v5269, %v5287
        %v5309 = vadd.f32 %v5270, %v5287
        %v5310 = vadd.f32 %v5271, %v5287
        %v5311 = vadd.f32 %v5272, %v5287
        %v5312 = vadd.f32 %v5273, %v5287
        %v5313 = vadd.f32 %v5274, %v5287
        %v5314 = vadd.f32 %v5275, %v5287
        %v5315 = vadd.f32 %v5276, %v5287
        %v5316 = vadd.f32 %v5277, %v5287
        %v5317 = vadd.f32 %v5278, %v5287
        %v5318 = vadd.f32 %v5279, %v5287
        %v5319 = vadd.f32 %v5280, %v5287
        %v5320 = vadd.f32 %v5281, %v5287
        %v5321 = vadd.f32 %v5289, %v5290
        %v5322 = vadd.f32 %v5321, %v5291
        %v5323 = vadd.f32 %v5322, %v5292
        %v5324 = vadd.f32 %v5323, %v5293
        %v5325 = vadd.f32 %v5324, %v5294
        %v5326 = vadd.f32 %v5325, %v5295
        %v5327 = vadd.f32 %v5326, %v5296
        %v5328 = vadd.f32 %v5327, %v5297
        %v5329 = vadd.f32 %v5328, %v5298
        %v5330 = vadd.f32 %v5329, %v5299
        %v5331 = vadd.f32 %v5330, %v5300
        %v5332 = vadd.f32 %v5331, %v5301
        %v5333 = vadd.f32 %v5332, %v5302
        %v5334 = vadd.f32 %v5333, %v5303
        %v5335 = vadd.f32 %v5334, %v5304
        %v5336 = vadd.f32 %v5335, %v5305
        %v5337 = vadd.f32 %v5336, %v5306
        %v5338 = vadd.f32 %v5337, %v5307
        %v5339 = vadd.f32 %v5338, %v5308
        %v5340 = vadd.f32 %v5339, %v5309
        %v5341 = vadd.f32 %v5340, %v5310
        %v5342 = vadd.f32 %v5341, %v5311
        %v5343 = vadd.f32 %v5342, %v5312
        %v5344 = vadd.f32 %v5343, %v5313
        %v5345 = vadd.f32 %v5344, %v5314
        %v5346 = vadd.f32 %v5345, %v5315
        %v5347 = vadd.f32 %v5346, %v5316
        %v5348 = vadd.f32 %v5347, %v5317
        %v5349 = vadd.f32 %v5348, %v5318
        %v5350 = vadd.f32 %v5349, %v5319
        %v5351 = vadd.f32 %v5350, %v5320
        %v5352 = vrot.slane %v5351, 4
        %v5353 = vadd.f32 %v5351, %v5352
        %v5354 = vrot.slane %v5353, 2
        %v5355 = vadd.f32 %v5353, %v5354
        %v5356 = vrot.slane %v5355, 1
        %v5357 = vadd.f32 %v5355, %v5356
        %v5358 = vrcp.pop 256.0
        %v5359 = vmul.f32 %v5357, %v5358
        %v5360 = vsub.f32 %v5289, %v5359
        %v5361 = vsub.f32 %v5290, %v5359
        %v5362 = vsub.f32 %v5291, %v5359
        %v5363 = vsub.f32 %v5292, %v5359
        %v5364 = vsub.f32 %v5293, %v5359
        %v5365 = vsub.f32 %v5294, %v5359
        %v5366 = vsub.f32 %v5295, %v5359
        %v5367 = vsub.f32 %v5296, %v5359
        %v5368 = vsub.f32 %v5297, %v5359
        %v5369 = vsub.f32 %v5298, %v5359
        %v5370 = vsub.f32 %v5299, %v5359
        %v5371 = vsub.f32 %v5300, %v5359
        %v5372 = vsub.f32 %v5301, %v5359
        %v5373 = vsub.f32 %v5302, %v5359
        %v5374 = vsub.f32 %v5303, %v5359
        %v5375 = vsub.f32 %v5304, %v5359
        %v5376 = vsub.f32 %v5305, %v5359
        %v5377 = vsub.f32 %v5306, %v5359
        %v5378 = vsub.f32 %v5307, %v5359
        %v5379 = vsub.f32 %v5308, %v5359
        %v5380 = vsub.f32 %v5309, %v5359
        %v5381 = vsub.f32 %v5310, %v5359
        %v5382 = vsub.f32 %v5311, %v5359
        %v5383 = vsub.f32 %v5312, %v5359
        %v5384 = vsub.f32 %v5313, %v5359
        %v5385 = vsub.f32 %v5314, %v5359
        %v5386 = vsub.f32 %v5315, %v5359
        %v5387 = vsub.f32 %v5316, %v5359
        %v5388 = vsub.f32 %v5317, %v5359
        %v5389 = vsub.f32 %v5318, %v5359
        %v5390 = vsub.f32 %v5319, %v5359
        %v5391 = vsub.f32 %v5320, %v5359
        %v5392 = vmul.f32 %v5360, %v5360
        %v5393 = vmul.f32 %v5361, %v5361
        %v5394 = vmul.f32 %v5362, %v5362
        %v5395 = vmul.f32 %v5363, %v5363
        %v5396 = vmul.f32 %v5364, %v5364
        %v5397 = vmul.f32 %v5365, %v5365
        %v5398 = vmul.f32 %v5366, %v5366
        %v5399 = vmul.f32 %v5367, %v5367
        %v5400 = vmul.f32 %v5368, %v5368
        %v5401 = vmul.f32 %v5369, %v5369
        %v5402 = vmul.f32 %v5370, %v5370
        %v5403 = vmul.f32 %v5371, %v5371
        %v5404 = vmul.f32 %v5372, %v5372
        %v5405 = vmul.f32 %v5373, %v5373
        %v5406 = vmul.f32 %v5374, %v5374
        %v5407 = vmul.f32 %v5375, %v5375
        %v5408 = vmul.f32 %v5376, %v5376
        %v5409 = vmul.f32 %v5377, %v5377
        %v5410 = vmul.f32 %v5378, %v5378
        %v5411 = vmul.f32 %v5379, %v5379
        %v5412 = vmul.f32 %v5380, %v5380
        %v5413 = vmul.f32 %v5381, %v5381
        %v5414 = vmul.f32 %v5382, %v5382
        %v5415 = vmul.f32 %v5383, %v5383
        %v5416 = vmul.f32 %v5384, %v5384
        %v5417 = vmul.f32 %v5385, %v5385
        %v5418 = vmul.f32 %v5386, %v5386
        %v5419 = vmul.f32 %v5387, %v5387
        %v5420 = vmul.f32 %v5388, %v5388
        %v5421 = vmul.f32 %v5389, %v5389
        %v5422 = vmul.f32 %v5390, %v5390
        %v5423 = vmul.f32 %v5391, %v5391
        %v5424 = vadd.f32 %v5392, %v5393
        %v5425 = vadd.f32 %v5424, %v5394
        %v5426 = vadd.f32 %v5425, %v5395
        %v5427 = vadd.f32 %v5426, %v5396
        %v5428 = vadd.f32 %v5427, %v5397
        %v5429 = vadd.f32 %v5428, %v5398
        %v5430 = vadd.f32 %v5429, %v5399
        %v5431 = vadd.f32 %v5430, %v5400
        %v5432 = vadd.f32 %v5431, %v5401
        %v5433 = vadd.f32 %v5432, %v5402
        %v5434 = vadd.f32 %v5433, %v5403
        %v5435 = vadd.f32 %v5434, %v5404
        %v5436 = vadd.f32 %v5435, %v5405
        %v5437 = vadd.f32 %v5436, %v5406
        %v5438 = vadd.f32 %v5437, %v5407
        %v5439 = vadd.f32 %v5438, %v5408
        %v5440 = vadd.f32 %v5439, %v5409
        %v5441 = vadd.f32 %v5440, %v5410
        %v5442 = vadd.f32 %v5441, %v5411
        %v5443 = vadd.f32 %v5442, %v5412
        %v5444 = vadd.f32 %v5443, %v5413
        %v5445 = vadd.f32 %v5444, %v5414
        %v5446 = vadd.f32 %v5445, %v5415
        %v5447 = vadd.f32 %v5446, %v5416
        %v5448 = vadd.f32 %v5447, %v5417
        %v5449 = vadd.f32 %v5448, %v5418
        %v5450 = vadd.f32 %v5449, %v5419
        %v5451 = vadd.f32 %v5450, %v5420
        %v5452 = vadd.f32 %v5451, %v5421
        %v5453 = vadd.f32 %v5452, %v5422
        %v5454 = vadd.f32 %v5453, %v5423
        %v5455 = vrot.slane %v5454, 4
        %v5456 = vadd.f32 %v5454, %v5455
        %v5457 = vrot.slane %v5456, 2
        %v5458 = vadd.f32 %v5456, %v5457
        %v5459 = vrot.slane %v5458, 1
        %v5460 = vadd.f32 %v5458, %v5459
        %v5461 = vmul.f32 %v5460, %v5358
        %v5462 = vadd.f32 %v5461, 1e-05
        %v5463 = vrsqrt.pop %v5462
        %v5464 = vmul.f32 %v5360, %v5463
        %v5465 = vmul.f32 %v5361, %v5463
        %v5466 = vmul.f32 %v5362, %v5463
        %v5467 = vmul.f32 %v5363, %v5463
        %v5468 = vmul.f32 %v5364, %v5463
        %v5469 = vmul.f32 %v5365, %v5463
        %v5470 = vmul.f32 %v5366, %v5463
        %v5471 = vmul.f32 %v5367, %v5463
        %v5472 = vmul.f32 %v5368, %v5463
        %v5473 = vmul.f32 %v5369, %v5463
        %v5474 = vmul.f32 %v5370, %v5463
        %v5475 = vmul.f32 %v5371, %v5463
        %v5476 = vmul.f32 %v5372, %v5463
        %v5477 = vmul.f32 %v5373, %v5463
        %v5478 = vmul.f32 %v5374, %v5463
        %v5479 = vmul.f32 %v5375, %v5463
        %v5480 = vmul.f32 %v5376, %v5463
        %v5481 = vmul.f32 %v5377, %v5463
        %v5482 = vmul.f32 %v5378, %v5463
        %v5483 = vmul.f32 %v5379, %v5463
        %v5484 = vmul.f32 %v5380, %v5463
        %v5485 = vmul.f32 %v5381, %v5463
        %v5486 = vmul.f32 %v5382, %v5463
        %v5487 = vmul.f32 %v5383, %v5463
        %v5488 = vmul.f32 %v5384, %v5463
        %v5489 = vmul.f32 %v5385, %v5463
        %v5490 = vmul.f32 %v5386, %v5463
        %v5491 = vmul.f32 %v5387, %v5463
        %v5492 = vmul.f32 %v5388, %v5463
        %v5493 = vmul.f32 %v5389, %v5463
        %v5494 = vmul.f32 %v5390, %v5463
        %v5495 = vmul.f32 %v5391, %v5463
        %v5496 = vld [vmem:[%s5] sm:$0x1]
        %v5498 = vlaneseq
        %v5499 = vshrl.u32 %v5498, 7
        %v5500 = vsub.s32 0, %v5499
        %v5501 = vrot.slane %v5496, %v5500
        %v5503 = vmul.f32 %v5464, %v5501
        %v5504 = vmul.f32 %v5465, %v5501
        %v5505 = vmul.f32 %v5466, %v5501
        %v5506 = vmul.f32 %v5467, %v5501
        %v5507 = vmul.f32 %v5468, %v5501
        %v5508 = vmul.f32 %v5469, %v5501
        %v5509 = vmul.f32 %v5470, %v5501
        %v5510 = vmul.f32 %v5471, %v5501
        %v5511 = vmul.f32 %v5472, %v5501
        %v5512 = vmul.f32 %v5473, %v5501
        %v5513 = vmul.f32 %v5474, %v5501
        %v5514 = vmul.f32 %v5475, %v5501
        %v5515 = vmul.f32 %v5476, %v5501
        %v5516 = vmul.f32 %v5477, %v5501
        %v5517 = vmul.f32 %v5478, %v5501
        %v5518 = vmul.f32 %v5479, %v5501
        %v5519 = vmul.f32 %v5480, %v5501
        %v5520 = vmul.f32 %v5481, %v5501
        %v5521 = vmul.f32 %v5482, %v5501
        %v5522 = vmul.f32 %v5483, %v5501
        %v5523 = vmul.f32 %v5484, %v5501
        %v5524 = vmul.f32 %v5485, %v5501
        %v5525 = vmul.f32 %v5486, %v5501
        %v5526 = vmul.f32 %v5487, %v5501
        %v5527 = vmul.f32 %v5488, %v5501
        %v5528 = vmul.f32 %v5489, %v5501
        %v5529 = vmul.f32 %v5490, %v5501
        %v5530 = vmul.f32 %v5491, %v5501
        %v5531 = vmul.f32 %v5492, %v5501
        %v5532 = vmul.f32 %v5493, %v5501
        %v5533 = vmul.f32 %v5494, %v5501
        %v5534 = vmul.f32 %v5495, %v5501
        %v5535 = vld [vmem:[%s6] sm:$0x1]
        %v5537 = vlaneseq
        %v5538 = vshrl.u32 %v5537, 7
        %v5539 = vsub.s32 0, %v5538
        %v5540 = vrot.slane %v5535, %v5539
        %v5542 = vadd.f32 %v5503, %v5540
        %v5543 = vadd.f32 %v5504, %v5540
        %v5544 = vadd.f32 %v5505, %v5540
        %v5545 = vadd.f32 %v5506, %v5540
        %v5546 = vadd.f32 %v5507, %v5540
        %v5547 = vadd.f32 %v5508, %v5540
        %v5548 = vadd.f32 %v5509, %v5540
        %v5549 = vadd.f32 %v5510, %v5540
        %v5550 = vadd.f32 %v5511, %v5540
        %v5551 = vadd.f32 %v5512, %v5540
        %v5552 = vadd.f32 %v5513, %v5540
        %v5553 = vadd.f32 %v5514, %v5540
        %v5554 = vadd.f32 %v5515, %v5540
        %v5555 = vadd.f32 %v5516, %v5540
        %v5556 = vadd.f32 %v5517, %v5540
        %v5557 = vadd.f32 %v5518, %v5540
        %v5558 = vadd.f32 %v5519, %v5540
        %v5559 = vadd.f32 %v5520, %v5540
        %v5560 = vadd.f32 %v5521, %v5540
        %v5561 = vadd.f32 %v5522, %v5540
        %v5562 = vadd.f32 %v5523, %v5540
        %v5563 = vadd.f32 %v5524, %v5540
        %v5564 = vadd.f32 %v5525, %v5540
        %v5565 = vadd.f32 %v5526, %v5540
        %v5566 = vadd.f32 %v5527, %v5540
        %v5567 = vadd.f32 %v5528, %v5540
        %v5568 = vadd.f32 %v5529, %v5540
        %v5569 = vadd.f32 %v5530, %v5540
        %v5570 = vadd.f32 %v5531, %v5540
        %v5571 = vadd.f32 %v5532, %v5540
        %v5572 = vadd.f32 %v5533, %v5540
        %v5573 = vadd.f32 %v5534, %v5540
        %v5574 = vxor.u32 %v5542, 2147483648
        %v5575 = vxor.u32 %v5543, 2147483648
        %v5576 = vxor.u32 %v5544, 2147483648
        %v5577 = vxor.u32 %v5545, 2147483648
        %v5578 = vxor.u32 %v5546, 2147483648
        %v5579 = vxor.u32 %v5547, 2147483648
        %v5580 = vxor.u32 %v5548, 2147483648
        %v5581 = vxor.u32 %v5549, 2147483648
        %v5582 = vxor.u32 %v5550, 2147483648
        %v5583 = vxor.u32 %v5551, 2147483648
        %v5584 = vxor.u32 %v5552, 2147483648
        %v5585 = vxor.u32 %v5553, 2147483648
        %v5586 = vxor.u32 %v5554, 2147483648
        %v5587 = vxor.u32 %v5555, 2147483648
        %v5588 = vxor.u32 %v5556, 2147483648
        %v5589 = vxor.u32 %v5557, 2147483648
        %v5590 = vxor.u32 %v5558, 2147483648
        %v5591 = vxor.u32 %v5559, 2147483648
        %v5592 = vxor.u32 %v5560, 2147483648
        %v5593 = vxor.u32 %v5561, 2147483648
        %v5594 = vxor.u32 %v5562, 2147483648
        %v5595 = vxor.u32 %v5563, 2147483648
        %v5596 = vxor.u32 %v5564, 2147483648
        %v5597 = vxor.u32 %v5565, 2147483648
        %v5598 = vxor.u32 %v5566, 2147483648
        %v5599 = vxor.u32 %v5567, 2147483648
        %v5600 = vxor.u32 %v5568, 2147483648
        %v5601 = vxor.u32 %v5569, 2147483648
        %v5602 = vxor.u32 %v5570, 2147483648
        %v5603 = vxor.u32 %v5571, 2147483648
        %v5604 = vxor.u32 %v5572, 2147483648
        %v5605 = vxor.u32 %v5573, 2147483648
        %v5606 = vmul.f32 %v5574, 1.442695
        %v5607 = vpow.pop %v5606
        %v5608 = vmul.f32 %v5575, 1.442695
        %v5609 = vpow.pop %v5608
        %v5610 = vmul.f32 %v5576, 1.442695
        %v5611 = vpow.pop %v5610
        %v5612 = vmul.f32 %v5577, 1.442695
        %v5613 = vpow.pop %v5612
        %v5614 = vmul.f32 %v5578, 1.442695
        %v5615 = vpow.pop %v5614
        %v5616 = vmul.f32 %v5579, 1.442695
        %v5617 = vpow.pop %v5616
        %v5618 = vmul.f32 %v5580, 1.442695
        %v5619 = vpow.pop %v5618
        %v5620 = vmul.f32 %v5581, 1.442695
        %v5621 = vpow.pop %v5620
        %v5622 = vmul.f32 %v5582, 1.442695
        %v5623 = vpow.pop %v5622
        %v5624 = vmul.f32 %v5583, 1.442695
        %v5625 = vpow.pop %v5624
        %v5626 = vmul.f32 %v5584, 1.442695
        %v5627 = vpow.pop %v5626
        %v5628 = vmul.f32 %v5585, 1.442695
        %v5629 = vpow.pop %v5628
        %v5630 = vmul.f32 %v5586, 1.442695
        %v5631 = vpow.pop %v5630
        %v5632 = vmul.f32 %v5587, 1.442695
        %v5633 = vpow.pop %v5632
        %v5634 = vmul.f32 %v5588, 1.442695
        %v5635 = vpow.pop %v5634
        %v5636 = vmul.f32 %v5589, 1.442695
        %v5637 = vpow.pop %v5636
        %v5638 = vmul.f32 %v5590, 1.442695
        %v5639 = vpow.pop %v5638
        %v5640 = vmul.f32 %v5591, 1.442695
        %v5641 = vpow.pop %v5640
        %v5642 = vmul.f32 %v5592, 1.442695
        %v5643 = vpow.pop %v5642
        %v5644 = vmul.f32 %v5593, 1.442695
        %v5645 = vpow.pop %v5644
        %v5646 = vmul.f32 %v5594, 1.442695
        %v5647 = vpow.pop %v5646
        %v5648 = vmul.f32 %v5595, 1.442695
        %v5649 = vpow.pop %v5648
        %v5650 = vmul.f32 %v5596, 1.442695
        %v5651 = vpow.pop %v5650
        %v5652 = vmul.f32 %v5597, 1.442695
        %v5653 = vpow.pop %v5652
        %v5654 = vmul.f32 %v5598, 1.442695
        %v5655 = vpow.pop %v5654
        %v5656 = vmul.f32 %v5599, 1.442695
        %v5657 = vpow.pop %v5656
        %v5658 = vmul.f32 %v5600, 1.442695
        %v5659 = vpow.pop %v5658
        %v5660 = vmul.f32 %v5601, 1.442695
        %v5661 = vpow.pop %v5660
        %v5662 = vmul.f32 %v5602, 1.442695
        %v5663 = vpow.pop %v5662
        %v5664 = vmul.f32 %v5603, 1.442695
        %v5665 = vpow.pop %v5664
        %v5666 = vmul.f32 %v5604, 1.442695
        %v5667 = vpow.pop %v5666
        %v5668 = vmul.f32 %v5605, 1.442695
        %v5669 = vpow.pop %v5668
        %v5670 = vadd.f32 %v5607, 1.0
        %v5671 = vadd.f32 %v5609, 1.0
        %v5672 = vadd.f32 %v5611, 1.0
        %v5673 = vadd.f32 %v5613, 1.0
        %v5674 = vadd.f32 %v5615, 1.0
        %v5675 = vadd.f32 %v5617, 1.0
        %v5676 = vadd.f32 %v5619, 1.0
        %v5677 = vadd.f32 %v5621, 1.0
        %v5678 = vadd.f32 %v5623, 1.0
        %v5679 = vadd.f32 %v5625, 1.0
        %v5680 = vadd.f32 %v5627, 1.0
        %v5681 = vadd.f32 %v5629, 1.0
        %v5682 = vadd.f32 %v5631, 1.0
        %v5683 = vadd.f32 %v5633, 1.0
        %v5684 = vadd.f32 %v5635, 1.0
        %v5685 = vadd.f32 %v5637, 1.0
        %v5686 = vadd.f32 %v5639, 1.0
        %v5687 = vadd.f32 %v5641, 1.0
        %v5688 = vadd.f32 %v5643, 1.0
        %v5689 = vadd.f32 %v5645, 1.0
        %v5690 = vadd.f32 %v5647, 1.0
        %v5691 = vadd.f32 %v5649, 1.0
        %v5692 = vadd.f32 %v5651, 1.0
        %v5693 = vadd.f32 %v5653, 1.0
        %v5694 = vadd.f32 %v5655, 1.0
        %v5695 = vadd.f32 %v5657, 1.0
        %v5696 = vadd.f32 %v5659, 1.0
        %v5697 = vadd.f32 %v5661, 1.0
        %v5698 = vadd.f32 %v5663, 1.0
        %v5699 = vadd.f32 %v5665, 1.0
        %v5700 = vadd.f32 %v5667, 1.0
        %v5701 = vadd.f32 %v5669, 1.0
        %v5702 = vrcp.pop %v5670
        %v5703 = vmul.f32 1.0, %v5702
        %v5704 = vrcp.pop %v5671
        %v5705 = vmul.f32 1.0, %v5704
        %v5706 = vrcp.pop %v5672
        %v5707 = vmul.f32 1.0, %v5706
        %v5708 = vrcp.pop %v5673
        %v5709 = vmul.f32 1.0, %v5708
        %v5710 = vrcp.pop %v5674
        %v5711 = vmul.f32 1.0, %v5710
        %v5712 = vrcp.pop %v5675
        %v5713 = vmul.f32 1.0, %v5712
        %v5714 = vrcp.pop %v5676
        %v5715 = vmul.f32 1.0, %v5714
        %v5716 = vrcp.pop %v5677
        %v5717 = vmul.f32 1.0, %v5716
        %v5718 = vrcp.pop %v5678
        %v5719 = vmul.f32 1.0, %v5718
        %v5720 = vrcp.pop %v5679
        %v5721 = vmul.f32 1.0, %v5720
        %v5722 = vrcp.pop %v5680
        %v5723 = vmul.f32 1.0, %v5722
        %v5724 = vrcp.pop %v5681
        %v5725 = vmul.f32 1.0, %v5724
        %v5726 = vrcp.pop %v5682
        %v5727 = vmul.f32 1.0, %v5726
        %v5728 = vrcp.pop %v5683
        %v5729 = vmul.f32 1.0, %v5728
        %v5730 = vrcp.pop %v5684
        %v5731 = vmul.f32 1.0, %v5730
        %v5732 = vrcp.pop %v5685
        %v5733 = vmul.f32 1.0, %v5732
        %v5734 = vrcp.pop %v5686
        %v5735 = vmul.f32 1.0, %v5734
        %v5736 = vrcp.pop %v5687
        %v5737 = vmul.f32 1.0, %v5736
        %v5738 = vrcp.pop %v5688
        %v5739 = vmul.f32 1.0, %v5738
        %v5740 = vrcp.pop %v5689
        %v5741 = vmul.f32 1.0, %v5740
        %v5742 = vrcp.pop %v5690
        %v5743 = vmul.f32 1.0, %v5742
        %v5744 = vrcp.pop %v5691
        %v5745 = vmul.f32 1.0, %v5744
        %v5746 = vrcp.pop %v5692
        %v5747 = vmul.f32 1.0, %v5746
        %v5748 = vrcp.pop %v5693
        %v5749 = vmul.f32 1.0, %v5748
        %v5750 = vrcp.pop %v5694
        %v5751 = vmul.f32 1.0, %v5750
        %v5752 = vrcp.pop %v5695
        %v5753 = vmul.f32 1.0, %v5752
        %v5754 = vrcp.pop %v5696
        %v5755 = vmul.f32 1.0, %v5754
        %v5756 = vrcp.pop %v5697
        %v5757 = vmul.f32 1.0, %v5756
        %v5758 = vrcp.pop %v5698
        %v5759 = vmul.f32 1.0, %v5758
        %v5760 = vrcp.pop %v5699
        %v5761 = vmul.f32 1.0, %v5760
        %v5762 = vrcp.pop %v5700
        %v5763 = vmul.f32 1.0, %v5762
        %v5764 = vrcp.pop %v5701
        %v5765 = vmul.f32 1.0, %v5764
        %v5766 = vtanh.pop %v5542
        %v5767 = vtanh.pop %v5543
        %v5768 = vtanh.pop %v5544
        %v5769 = vtanh.pop %v5545
        %v5770 = vtanh.pop %v5546
        %v5771 = vtanh.pop %v5547
        %v5772 = vtanh.pop %v5548
        %v5773 = vtanh.pop %v5549
        %v5774 = vtanh.pop %v5550
        %v5775 = vtanh.pop %v5551
        %v5776 = vtanh.pop %v5552
        %v5777 = vtanh.pop %v5553
        %v5778 = vtanh.pop %v5554
        %v5779 = vtanh.pop %v5555
        %v5780 = vtanh.pop %v5556
        %v5781 = vtanh.pop %v5557
        %v5782 = vtanh.pop %v5558
        %v5783 = vtanh.pop %v5559
        %v5784 = vtanh.pop %v5560
        %v5785 = vtanh.pop %v5561
        %v5786 = vtanh.pop %v5562
        %v5787 = vtanh.pop %v5563
        %v5788 = vtanh.pop %v5564
        %v5789 = vtanh.pop %v5565
        %v5790 = vtanh.pop %v5566
        %v5791 = vtanh.pop %v5567
        %v5792 = vtanh.pop %v5568
        %v5793 = vtanh.pop %v5569
        %v5794 = vtanh.pop %v5570
        %v5795 = vtanh.pop %v5571
        %v5796 = vtanh.pop %v5572
        %v5797 = vtanh.pop %v5573
        %v5798 = vld [vmem:[%s473] sm:$0xff]
        %v5799 = vld [vmem:[%s473 + $0x8] sm:$0xff]
        %v5800 = vld [vmem:[%s473 + $0x10] sm:$0xff]
        %v5801 = vld [vmem:[%s473 + $0x18] sm:$0xff]
        %v5802 = vld [vmem:[%s473 + $0x20] sm:$0xff]
        %v5803 = vld [vmem:[%s473 + $0x28] sm:$0xff]
        %v5804 = vld [vmem:[%s473 + $0x30] sm:$0xff]
        %v5805 = vld [vmem:[%s473 + $0x38] sm:$0xff]
        %v5806 = vld [vmem:[%s473 + $0x40] sm:$0xff]
        %v5807 = vld [vmem:[%s473 + $0x48] sm:$0xff]
        %v5808 = vld [vmem:[%s473 + $0x50] sm:$0xff]
        %v5809 = vld [vmem:[%s473 + $0x58] sm:$0xff]
        %v5810 = vld [vmem:[%s473 + $0x60] sm:$0xff]
        %v5811 = vld [vmem:[%s473 + $0x68] sm:$0xff]
        %v5812 = vld [vmem:[%s473 + $0x70] sm:$0xff]
        %v5813 = vld [vmem:[%s473 + $0x78] sm:$0xff]
        %v5814 = vld [vmem:[%s473 + $0x80] sm:$0xff]
        %v5815 = vld [vmem:[%s473 + $0x88] sm:$0xff]
        %v5816 = vld [vmem:[%s473 + $0x90] sm:$0xff]
        %v5817 = vld [vmem:[%s473 + $0x98] sm:$0xff]
        %v5818 = vld [vmem:[%s473 + $0xa0] sm:$0xff]
        %v5819 = vld [vmem:[%s473 + $0xa8] sm:$0xff]
        %v5820 = vld [vmem:[%s473 + $0xb0] sm:$0xff]
        %v5821 = vld [vmem:[%s473 + $0xb8] sm:$0xff]
        %v5822 = vld [vmem:[%s473 + $0xc0] sm:$0xff]
        %v5823 = vld [vmem:[%s473 + $0xc8] sm:$0xff]
        %v5824 = vld [vmem:[%s473 + $0xd0] sm:$0xff]
        %v5825 = vld [vmem:[%s473 + $0xd8] sm:$0xff]
        %v5826 = vld [vmem:[%s473 + $0xe0] sm:$0xff]
        %v5827 = vld [vmem:[%s473 + $0xe8] sm:$0xff]
        %v5828 = vld [vmem:[%s473 + $0xf0] sm:$0xff]
        %v5829 = vld [vmem:[%s473 + $0xf8] sm:$0xff]
        %v5830 = vld [vmem:[%s478] sm:$0xff]
        %v5831 = vld [vmem:[%s478 + $0x8] sm:$0xff]
        %v5832 = vld [vmem:[%s478 + $0x10] sm:$0xff]
        %v5833 = vld [vmem:[%s478 + $0x18] sm:$0xff]
        %v5834 = vld [vmem:[%s478 + $0x20] sm:$0xff]
        %v5835 = vld [vmem:[%s478 + $0x28] sm:$0xff]
        %v5836 = vld [vmem:[%s478 + $0x30] sm:$0xff]
        %v5837 = vld [vmem:[%s478 + $0x38] sm:$0xff]
        %v5838 = vld [vmem:[%s478 + $0x40] sm:$0xff]
        %v5839 = vld [vmem:[%s478 + $0x48] sm:$0xff]
        %v5840 = vld [vmem:[%s478 + $0x50] sm:$0xff]
        %v5841 = vld [vmem:[%s478 + $0x58] sm:$0xff]
        %v5842 = vld [vmem:[%s478 + $0x60] sm:$0xff]
        %v5843 = vld [vmem:[%s478 + $0x68] sm:$0xff]
        %v5844 = vld [vmem:[%s478 + $0x70] sm:$0xff]
        %v5845 = vld [vmem:[%s478 + $0x78] sm:$0xff]
        %v5846 = vld [vmem:[%s478 + $0x80] sm:$0xff]
        %v5847 = vld [vmem:[%s478 + $0x88] sm:$0xff]
        %v5848 = vld [vmem:[%s478 + $0x90] sm:$0xff]
        %v5849 = vld [vmem:[%s478 + $0x98] sm:$0xff]
        %v5850 = vld [vmem:[%s478 + $0xa0] sm:$0xff]
        %v5851 = vld [vmem:[%s478 + $0xa8] sm:$0xff]
        %v5852 = vld [vmem:[%s478 + $0xb0] sm:$0xff]
        %v5853 = vld [vmem:[%s478 + $0xb8] sm:$0xff]
        %v5854 = vld [vmem:[%s478 + $0xc0] sm:$0xff]
        %v5855 = vld [vmem:[%s478 + $0xc8] sm:$0xff]
        %v5856 = vld [vmem:[%s478 + $0xd0] sm:$0xff]
        %v5857 = vld [vmem:[%s478 + $0xd8] sm:$0xff]
        %v5858 = vld [vmem:[%s478 + $0xe0] sm:$0xff]
        %v5859 = vld [vmem:[%s478 + $0xe8] sm:$0xff]
        %v5860 = vld [vmem:[%s478 + $0xf0] sm:$0xff]
        %v5861 = vld [vmem:[%s478 + $0xf8] sm:$0xff]
        %5894 = vrot.lane.b32.xlu0 %v5798, 32
        %v5895 = vpop.permute.xlu0 %5894
        %5896 = vrot.lane.b32.xlu0 %v5799, 32
        %v5897 = vpop.permute.xlu0 %5896
        %5898 = vrot.lane.b32.xlu0 %v5800, 32
        %v5899 = vpop.permute.xlu0 %5898
        %5900 = vrot.lane.b32.xlu0 %v5801, 32
        %v5901 = vpop.permute.xlu0 %5900
        %5902 = vrot.lane.b32.xlu0 %v5802, 32
        %v5903 = vpop.permute.xlu0 %5902
        %5904 = vrot.lane.b32.xlu0 %v5803, 32
        %v5905 = vpop.permute.xlu0 %5904
        %5906 = vrot.lane.b32.xlu0 %v5804, 32
        %v5907 = vpop.permute.xlu0 %5906
        %5908 = vrot.lane.b32.xlu0 %v5805, 32
        %v5909 = vpop.permute.xlu0 %5908
        %5910 = vrot.lane.b32.xlu0 %v5806, 32
        %v5911 = vpop.permute.xlu0 %5910
        %5912 = vrot.lane.b32.xlu0 %v5807, 32
        %v5913 = vpop.permute.xlu0 %5912
        %5914 = vrot.lane.b32.xlu0 %v5808, 32
        %v5915 = vpop.permute.xlu0 %5914
        %5916 = vrot.lane.b32.xlu0 %v5809, 32
        %v5917 = vpop.permute.xlu0 %5916
        %5918 = vrot.lane.b32.xlu0 %v5810, 32
        %v5919 = vpop.permute.xlu0 %5918
        %5920 = vrot.lane.b32.xlu0 %v5811, 32
        %v5921 = vpop.permute.xlu0 %5920
        %5922 = vrot.lane.b32.xlu0 %v5812, 32
        %v5923 = vpop.permute.xlu0 %5922
        %5924 = vrot.lane.b32.xlu0 %v5813, 32
        %v5925 = vpop.permute.xlu0 %5924
        %5926 = vrot.lane.b32.xlu0 %v5814, 32
        %v5927 = vpop.permute.xlu0 %5926
        %5928 = vrot.lane.b32.xlu0 %v5815, 32
        %v5929 = vpop.permute.xlu0 %5928
        %5930 = vrot.lane.b32.xlu0 %v5816, 32
        %v5931 = vpop.permute.xlu0 %5930
        %5932 = vrot.lane.b32.xlu0 %v5817, 32
        %v5933 = vpop.permute.xlu0 %5932
        %5934 = vrot.lane.b32.xlu0 %v5818, 32
        %v5935 = vpop.permute.xlu0 %5934
        %5936 = vrot.lane.b32.xlu0 %v5819, 32
        %v5937 = vpop.permute.xlu0 %5936
        %5938 = vrot.lane.b32.xlu0 %v5820, 32
        %v5939 = vpop.permute.xlu0 %5938
        %5940 = vrot.lane.b32.xlu0 %v5821, 32
        %v5941 = vpop.permute.xlu0 %5940
        %5942 = vrot.lane.b32.xlu0 %v5822, 32
        %v5943 = vpop.permute.xlu0 %5942
        %5944 = vrot.lane.b32.xlu0 %v5823, 32
        %v5945 = vpop.permute.xlu0 %5944
        %5946 = vrot.lane.b32.xlu0 %v5824, 32
        %v5947 = vpop.permute.xlu0 %5946
        %5948 = vrot.lane.b32.xlu0 %v5825, 32
        %v5949 = vpop.permute.xlu0 %5948
        %5950 = vrot.lane.b32.xlu0 %v5826, 32
        %v5951 = vpop.permute.xlu0 %5950
        %5952 = vrot.lane.b32.xlu0 %v5827, 32
        %v5953 = vpop.permute.xlu0 %5952
        %5954 = vrot.lane.b32.xlu0 %v5828, 32
        %v5955 = vpop.permute.xlu0 %5954
        %5956 = vrot.lane.b32.xlu0 %v5829, 32
        %v5957 = vpop.permute.xlu0 %5956
        %v5990 = vmul.f32 %v5703, %v5895
        %v5991 = vmul.f32 %v5705, %v5897
        %v5992 = vmul.f32 %v5707, %v5899
        %v5993 = vmul.f32 %v5709, %v5901
        %v5994 = vmul.f32 %v5711, %v5903
        %v5995 = vmul.f32 %v5713, %v5905
        %v5996 = vmul.f32 %v5715, %v5907
        %v5997 = vmul.f32 %v5717, %v5909
        %v5998 = vmul.f32 %v5719, %v5911
        %v5999 = vmul.f32 %v5721, %v5913
        %v6000 = vmul.f32 %v5723, %v5915
        %v6001 = vmul.f32 %v5725, %v5917
        %v6002 = vmul.f32 %v5727, %v5919
        %v6003 = vmul.f32 %v5729, %v5921
        %v6004 = vmul.f32 %v5731, %v5923
        %v6005 = vmul.f32 %v5733, %v5925
        %v6006 = vmul.f32 %v5735, %v5927
        %v6007 = vmul.f32 %v5737, %v5929
        %v6008 = vmul.f32 %v5739, %v5931
        %v6009 = vmul.f32 %v5741, %v5933
        %v6010 = vmul.f32 %v5743, %v5935
        %v6011 = vmul.f32 %v5745, %v5937
        %v6012 = vmul.f32 %v5747, %v5939
        %v6013 = vmul.f32 %v5749, %v5941
        %v6014 = vmul.f32 %v5751, %v5943
        %v6015 = vmul.f32 %v5753, %v5945
        %v6016 = vmul.f32 %v5755, %v5947
        %v6017 = vmul.f32 %v5757, %v5949
        %v6018 = vmul.f32 %v5759, %v5951
        %v6019 = vmul.f32 %v5761, %v5953
        %v6020 = vmul.f32 %v5763, %v5955
        %v6021 = vmul.f32 %v5765, %v5957
        %6054 = vrot.lane.b32.xlu0 %v5766, 32
        %v6055 = vpop.permute.xlu0 %6054
        %6056 = vrot.lane.b32.xlu0 %v5767, 32
        %v6057 = vpop.permute.xlu0 %6056
        %6058 = vrot.lane.b32.xlu0 %v5768, 32
        %v6059 = vpop.permute.xlu0 %6058
        %6060 = vrot.lane.b32.xlu0 %v5769, 32
        %v6061 = vpop.permute.xlu0 %6060
        %6062 = vrot.lane.b32.xlu0 %v5770, 32
        %v6063 = vpop.permute.xlu0 %6062
        %6064 = vrot.lane.b32.xlu0 %v5771, 32
        %v6065 = vpop.permute.xlu0 %6064
        %6066 = vrot.lane.b32.xlu0 %v5772, 32
        %v6067 = vpop.permute.xlu0 %6066
        %6068 = vrot.lane.b32.xlu0 %v5773, 32
        %v6069 = vpop.permute.xlu0 %6068
        %6070 = vrot.lane.b32.xlu0 %v5774, 32
        %v6071 = vpop.permute.xlu0 %6070
        %6072 = vrot.lane.b32.xlu0 %v5775, 32
        %v6073 = vpop.permute.xlu0 %6072
        %6074 = vrot.lane.b32.xlu0 %v5776, 32
        %v6075 = vpop.permute.xlu0 %6074
        %6076 = vrot.lane.b32.xlu0 %v5777, 32
        %v6077 = vpop.permute.xlu0 %6076
        %6078 = vrot.lane.b32.xlu0 %v5778, 32
        %v6079 = vpop.permute.xlu0 %6078
        %6080 = vrot.lane.b32.xlu0 %v5779, 32
        %v6081 = vpop.permute.xlu0 %6080
        %6082 = vrot.lane.b32.xlu0 %v5780, 32
        %v6083 = vpop.permute.xlu0 %6082
        %6084 = vrot.lane.b32.xlu0 %v5781, 32
        %v6085 = vpop.permute.xlu0 %6084
        %6086 = vrot.lane.b32.xlu0 %v5782, 32
        %v6087 = vpop.permute.xlu0 %6086
        %6088 = vrot.lane.b32.xlu0 %v5783, 32
        %v6089 = vpop.permute.xlu0 %6088
        %6090 = vrot.lane.b32.xlu0 %v5784, 32
        %v6091 = vpop.permute.xlu0 %6090
        %6092 = vrot.lane.b32.xlu0 %v5785, 32
        %v6093 = vpop.permute.xlu0 %6092
        %6094 = vrot.lane.b32.xlu0 %v5786, 32
        %v6095 = vpop.permute.xlu0 %6094
        %6096 = vrot.lane.b32.xlu0 %v5787, 32
        %v6097 = vpop.permute.xlu0 %6096
        %6098 = vrot.lane.b32.xlu0 %v5788, 32
        %v6099 = vpop.permute.xlu0 %6098
        %6100 = vrot.lane.b32.xlu0 %v5789, 32
        %v6101 = vpop.permute.xlu0 %6100
        %6102 = vrot.lane.b32.xlu0 %v5790, 32
        %v6103 = vpop.permute.xlu0 %6102
        %6104 = vrot.lane.b32.xlu0 %v5791, 32
        %v6105 = vpop.permute.xlu0 %6104
        %6106 = vrot.lane.b32.xlu0 %v5792, 32
        %v6107 = vpop.permute.xlu0 %6106
        %6108 = vrot.lane.b32.xlu0 %v5793, 32
        %v6109 = vpop.permute.xlu0 %6108
        %6110 = vrot.lane.b32.xlu0 %v5794, 32
        %v6111 = vpop.permute.xlu0 %6110
        %6112 = vrot.lane.b32.xlu0 %v5795, 32
        %v6113 = vpop.permute.xlu0 %6112
        %6114 = vrot.lane.b32.xlu0 %v5796, 32
        %v6115 = vpop.permute.xlu0 %6114
        %6116 = vrot.lane.b32.xlu0 %v5797, 32
        %v6117 = vpop.permute.xlu0 %6116
        %v6150 = vmul.f32 %v5703, %v6055
        %v6151 = vmul.f32 %v5705, %v6057
        %v6152 = vmul.f32 %v5707, %v6059
        %v6153 = vmul.f32 %v5709, %v6061
        %v6154 = vmul.f32 %v5711, %v6063
        %v6155 = vmul.f32 %v5713, %v6065
        %v6156 = vmul.f32 %v5715, %v6067
        %v6157 = vmul.f32 %v5717, %v6069
        %v6158 = vmul.f32 %v5719, %v6071
        %v6159 = vmul.f32 %v5721, %v6073
        %v6160 = vmul.f32 %v5723, %v6075
        %v6161 = vmul.f32 %v5725, %v6077
        %v6162 = vmul.f32 %v5727, %v6079
        %v6163 = vmul.f32 %v5729, %v6081
        %v6164 = vmul.f32 %v5731, %v6083
        %v6165 = vmul.f32 %v5733, %v6085
        %v6166 = vmul.f32 %v5735, %v6087
        %v6167 = vmul.f32 %v5737, %v6089
        %v6168 = vmul.f32 %v5739, %v6091
        %v6169 = vmul.f32 %v5741, %v6093
        %v6170 = vmul.f32 %v5743, %v6095
        %v6171 = vmul.f32 %v5745, %v6097
        %v6172 = vmul.f32 %v5747, %v6099
        %v6173 = vmul.f32 %v5749, %v6101
        %v6174 = vmul.f32 %v5751, %v6103
        %v6175 = vmul.f32 %v5753, %v6105
        %v6176 = vmul.f32 %v5755, %v6107
        %v6177 = vmul.f32 %v5757, %v6109
        %v6178 = vmul.f32 %v5759, %v6111
        %v6179 = vmul.f32 %v5761, %v6113
        %v6180 = vmul.f32 %v5763, %v6115
        %v6181 = vmul.f32 %v5765, %v6117
        %6214 = vrot.lane.b32.xlu0 %v6150, 32
        %v6215 = vpop.permute.xlu0 %6214
        %6216 = vrot.lane.b32.xlu0 %v6151, 32
        %v6217 = vpop.permute.xlu0 %6216
        %6218 = vrot.lane.b32.xlu0 %v6152, 32
        %v6219 = vpop.permute.xlu0 %6218
        %6220 = vrot.lane.b32.xlu0 %v6153, 32
        %v6221 = vpop.permute.xlu0 %6220
        %6222 = vrot.lane.b32.xlu0 %v6154, 32
        %v6223 = vpop.permute.xlu0 %6222
        %6224 = vrot.lane.b32.xlu0 %v6155, 32
        %v6225 = vpop.permute.xlu0 %6224
        %6226 = vrot.lane.b32.xlu0 %v6156, 32
        %v6227 = vpop.permute.xlu0 %6226
        %6228 = vrot.lane.b32.xlu0 %v6157, 32
        %v6229 = vpop.permute.xlu0 %6228
        %6230 = vrot.lane.b32.xlu0 %v6158, 32
        %v6231 = vpop.permute.xlu0 %6230
        %6232 = vrot.lane.b32.xlu0 %v6159, 32
        %v6233 = vpop.permute.xlu0 %6232
        %6234 = vrot.lane.b32.xlu0 %v6160, 32
        %v6235 = vpop.permute.xlu0 %6234
        %6236 = vrot.lane.b32.xlu0 %v6161, 32
        %v6237 = vpop.permute.xlu0 %6236
        %6238 = vrot.lane.b32.xlu0 %v6162, 32
        %v6239 = vpop.permute.xlu0 %6238
        %6240 = vrot.lane.b32.xlu0 %v6163, 32
        %v6241 = vpop.permute.xlu0 %6240
        %6242 = vrot.lane.b32.xlu0 %v6164, 32
        %v6243 = vpop.permute.xlu0 %6242
        %6244 = vrot.lane.b32.xlu0 %v6165, 32
        %v6245 = vpop.permute.xlu0 %6244
        %6246 = vrot.lane.b32.xlu0 %v6166, 32
        %v6247 = vpop.permute.xlu0 %6246
        %6248 = vrot.lane.b32.xlu0 %v6167, 32
        %v6249 = vpop.permute.xlu0 %6248
        %6250 = vrot.lane.b32.xlu0 %v6168, 32
        %v6251 = vpop.permute.xlu0 %6250
        %6252 = vrot.lane.b32.xlu0 %v6169, 32
        %v6253 = vpop.permute.xlu0 %6252
        %6254 = vrot.lane.b32.xlu0 %v6170, 32
        %v6255 = vpop.permute.xlu0 %6254
        %6256 = vrot.lane.b32.xlu0 %v6171, 32
        %v6257 = vpop.permute.xlu0 %6256
        %6258 = vrot.lane.b32.xlu0 %v6172, 32
        %v6259 = vpop.permute.xlu0 %6258
        %6260 = vrot.lane.b32.xlu0 %v6173, 32
        %v6261 = vpop.permute.xlu0 %6260
        %6262 = vrot.lane.b32.xlu0 %v6174, 32
        %v6263 = vpop.permute.xlu0 %6262
        %6264 = vrot.lane.b32.xlu0 %v6175, 32
        %v6265 = vpop.permute.xlu0 %6264
        %6266 = vrot.lane.b32.xlu0 %v6176, 32
        %v6267 = vpop.permute.xlu0 %6266
        %6268 = vrot.lane.b32.xlu0 %v6177, 32
        %v6269 = vpop.permute.xlu0 %6268
        %6270 = vrot.lane.b32.xlu0 %v6178, 32
        %v6271 = vpop.permute.xlu0 %6270
        %6272 = vrot.lane.b32.xlu0 %v6179, 32
        %v6273 = vpop.permute.xlu0 %6272
        %6274 = vrot.lane.b32.xlu0 %v6180, 32
        %v6275 = vpop.permute.xlu0 %6274
        %6276 = vrot.lane.b32.xlu0 %v6181, 32
        %v6277 = vpop.permute.xlu0 %6276
        %v6310 = vadd.f32 %v5990, %v6215
        %v6311 = vadd.f32 %v5991, %v6217
        %v6312 = vadd.f32 %v5992, %v6219
        %v6313 = vadd.f32 %v5993, %v6221
        %v6314 = vadd.f32 %v5994, %v6223
        %v6315 = vadd.f32 %v5995, %v6225
        %v6316 = vadd.f32 %v5996, %v6227
        %v6317 = vadd.f32 %v5997, %v6229
        %v6318 = vadd.f32 %v5998, %v6231
        %v6319 = vadd.f32 %v5999, %v6233
        %v6320 = vadd.f32 %v6000, %v6235
        %v6321 = vadd.f32 %v6001, %v6237
        %v6322 = vadd.f32 %v6002, %v6239
        %v6323 = vadd.f32 %v6003, %v6241
        %v6324 = vadd.f32 %v6004, %v6243
        %v6325 = vadd.f32 %v6005, %v6245
        %v6326 = vadd.f32 %v6006, %v6247
        %v6327 = vadd.f32 %v6007, %v6249
        %v6328 = vadd.f32 %v6008, %v6251
        %v6329 = vadd.f32 %v6009, %v6253
        %v6330 = vadd.f32 %v6010, %v6255
        %v6331 = vadd.f32 %v6011, %v6257
        %v6332 = vadd.f32 %v6012, %v6259
        %v6333 = vadd.f32 %v6013, %v6261
        %v6334 = vadd.f32 %v6014, %v6263
        %v6335 = vadd.f32 %v6015, %v6265
        %v6336 = vadd.f32 %v6016, %v6267
        %v6337 = vadd.f32 %v6017, %v6269
        %v6338 = vadd.f32 %v6018, %v6271
        %v6339 = vadd.f32 %v6019, %v6273
        %v6340 = vadd.f32 %v6020, %v6275
        %v6341 = vadd.f32 %v6021, %v6277
        %v6342 = vtanh.pop %v6310
        %v6343 = vtanh.pop %v6311
        %v6344 = vtanh.pop %v6312
        %v6345 = vtanh.pop %v6313
        %v6346 = vtanh.pop %v6314
        %v6347 = vtanh.pop %v6315
        %v6348 = vtanh.pop %v6316
        %v6349 = vtanh.pop %v6317
        %v6350 = vtanh.pop %v6318
        %v6351 = vtanh.pop %v6319
        %v6352 = vtanh.pop %v6320
        %v6353 = vtanh.pop %v6321
        %v6354 = vtanh.pop %v6322
        %v6355 = vtanh.pop %v6323
        %v6356 = vtanh.pop %v6324
        %v6357 = vtanh.pop %v6325
        %v6358 = vtanh.pop %v6326
        %v6359 = vtanh.pop %v6327
        %v6360 = vtanh.pop %v6328
        %v6361 = vtanh.pop %v6329
        %v6362 = vtanh.pop %v6330
        %v6363 = vtanh.pop %v6331
        %v6364 = vtanh.pop %v6332
        %v6365 = vtanh.pop %v6333
        %v6366 = vtanh.pop %v6334
        %v6367 = vtanh.pop %v6335
        %v6368 = vtanh.pop %v6336
        %v6369 = vtanh.pop %v6337
        %v6370 = vtanh.pop %v6338
        %v6371 = vtanh.pop %v6339
        %v6372 = vtanh.pop %v6340
        %v6373 = vtanh.pop %v6341
        %6406 = vrot.lane.b32.xlu0 %v6342, 32
        %v6407 = vpop.permute.xlu0 %6406
        %6408 = vrot.lane.b32.xlu0 %v6343, 32
        %v6409 = vpop.permute.xlu0 %6408
        %6410 = vrot.lane.b32.xlu0 %v6344, 32
        %v6411 = vpop.permute.xlu0 %6410
        %6412 = vrot.lane.b32.xlu0 %v6345, 32
        %v6413 = vpop.permute.xlu0 %6412
        %6414 = vrot.lane.b32.xlu0 %v6346, 32
        %v6415 = vpop.permute.xlu0 %6414
        %6416 = vrot.lane.b32.xlu0 %v6347, 32
        %v6417 = vpop.permute.xlu0 %6416
        %6418 = vrot.lane.b32.xlu0 %v6348, 32
        %v6419 = vpop.permute.xlu0 %6418
        %6420 = vrot.lane.b32.xlu0 %v6349, 32
        %v6421 = vpop.permute.xlu0 %6420
        %6422 = vrot.lane.b32.xlu0 %v6350, 32
        %v6423 = vpop.permute.xlu0 %6422
        %6424 = vrot.lane.b32.xlu0 %v6351, 32
        %v6425 = vpop.permute.xlu0 %6424
        %6426 = vrot.lane.b32.xlu0 %v6352, 32
        %v6427 = vpop.permute.xlu0 %6426
        %6428 = vrot.lane.b32.xlu0 %v6353, 32
        %v6429 = vpop.permute.xlu0 %6428
        %6430 = vrot.lane.b32.xlu0 %v6354, 32
        %v6431 = vpop.permute.xlu0 %6430
        %6432 = vrot.lane.b32.xlu0 %v6355, 32
        %v6433 = vpop.permute.xlu0 %6432
        %6434 = vrot.lane.b32.xlu0 %v6356, 32
        %v6435 = vpop.permute.xlu0 %6434
        %6436 = vrot.lane.b32.xlu0 %v6357, 32
        %v6437 = vpop.permute.xlu0 %6436
        %6438 = vrot.lane.b32.xlu0 %v6358, 32
        %v6439 = vpop.permute.xlu0 %6438
        %6440 = vrot.lane.b32.xlu0 %v6359, 32
        %v6441 = vpop.permute.xlu0 %6440
        %6442 = vrot.lane.b32.xlu0 %v6360, 32
        %v6443 = vpop.permute.xlu0 %6442
        %6444 = vrot.lane.b32.xlu0 %v6361, 32
        %v6445 = vpop.permute.xlu0 %6444
        %6446 = vrot.lane.b32.xlu0 %v6362, 32
        %v6447 = vpop.permute.xlu0 %6446
        %6448 = vrot.lane.b32.xlu0 %v6363, 32
        %v6449 = vpop.permute.xlu0 %6448
        %6450 = vrot.lane.b32.xlu0 %v6364, 32
        %v6451 = vpop.permute.xlu0 %6450
        %6452 = vrot.lane.b32.xlu0 %v6365, 32
        %v6453 = vpop.permute.xlu0 %6452
        %6454 = vrot.lane.b32.xlu0 %v6366, 32
        %v6455 = vpop.permute.xlu0 %6454
        %6456 = vrot.lane.b32.xlu0 %v6367, 32
        %v6457 = vpop.permute.xlu0 %6456
        %6458 = vrot.lane.b32.xlu0 %v6368, 32
        %v6459 = vpop.permute.xlu0 %6458
        %6460 = vrot.lane.b32.xlu0 %v6369, 32
        %v6461 = vpop.permute.xlu0 %6460
        %6462 = vrot.lane.b32.xlu0 %v6370, 32
        %v6463 = vpop.permute.xlu0 %6462
        %6464 = vrot.lane.b32.xlu0 %v6371, 32
        %v6465 = vpop.permute.xlu0 %6464
        %6466 = vrot.lane.b32.xlu0 %v6372, 32
        %v6467 = vpop.permute.xlu0 %6466
        %6468 = vrot.lane.b32.xlu0 %v6373, 32
        %v6469 = vpop.permute.xlu0 %6468
        %v6502 = vmul.f32 %v5703, %v6407
        %v6503 = vmul.f32 %v5705, %v6409
        %v6504 = vmul.f32 %v5707, %v6411
        %v6505 = vmul.f32 %v5709, %v6413
        %v6506 = vmul.f32 %v5711, %v6415
        %v6507 = vmul.f32 %v5713, %v6417
        %v6508 = vmul.f32 %v5715, %v6419
        %v6509 = vmul.f32 %v5717, %v6421
        %v6510 = vmul.f32 %v5719, %v6423
        %v6511 = vmul.f32 %v5721, %v6425
        %v6512 = vmul.f32 %v5723, %v6427
        %v6513 = vmul.f32 %v5725, %v6429
        %v6514 = vmul.f32 %v5727, %v6431
        %v6515 = vmul.f32 %v5729, %v6433
        %v6516 = vmul.f32 %v5731, %v6435
        %v6517 = vmul.f32 %v5733, %v6437
        %v6518 = vmul.f32 %v5735, %v6439
        %v6519 = vmul.f32 %v5737, %v6441
        %v6520 = vmul.f32 %v5739, %v6443
        %v6521 = vmul.f32 %v5741, %v6445
        %v6522 = vmul.f32 %v5743, %v6447
        %v6523 = vmul.f32 %v5745, %v6449
        %v6524 = vmul.f32 %v5747, %v6451
        %v6525 = vmul.f32 %v5749, %v6453
        %v6526 = vmul.f32 %v5751, %v6455
        %v6527 = vmul.f32 %v5753, %v6457
        %v6528 = vmul.f32 %v5755, %v6459
        %v6529 = vmul.f32 %v5757, %v6461
        %v6530 = vmul.f32 %v5759, %v6463
        %v6531 = vmul.f32 %v5761, %v6465
        %v6532 = vmul.f32 %v5763, %v6467
        %v6533 = vmul.f32 %v5765, %v6469
        %v6534 = vpack.c.bf16 %v6503, %v6502
        %v6535 = vpack.c.bf16 %v6505, %v6504
        %v6536 = vpack.c.bf16 %v6507, %v6506
        %v6537 = vpack.c.bf16 %v6509, %v6508
        %v6538 = vpack.c.bf16 %v6511, %v6510
        %v6539 = vpack.c.bf16 %v6513, %v6512
        %v6540 = vpack.c.bf16 %v6515, %v6514
        %v6541 = vpack.c.bf16 %v6517, %v6516
        %v6542 = vpack.c.bf16 %v6519, %v6518
        %v6543 = vpack.c.bf16 %v6521, %v6520
        %v6544 = vpack.c.bf16 %v6523, %v6522
        %v6545 = vpack.c.bf16 %v6525, %v6524
        %v6546 = vpack.c.bf16 %v6527, %v6526
        %v6547 = vpack.c.bf16 %v6529, %v6528
        %v6548 = vpack.c.bf16 %v6531, %v6530
        %v6549 = vpack.c.bf16 %v6533, %v6532
        %v6550 = vpack.c.bf16 %v5831, %v5830
        %v6551 = vpack.c.bf16 %v5833, %v5832
        %v6552 = vpack.c.bf16 %v5835, %v5834
        %v6553 = vpack.c.bf16 %v5837, %v5836
        %v6554 = vpack.c.bf16 %v5839, %v5838
        %v6555 = vpack.c.bf16 %v5841, %v5840
        %v6556 = vpack.c.bf16 %v5843, %v5842
        %v6557 = vpack.c.bf16 %v5845, %v5844
        %v6558 = vpack.c.bf16 %v5847, %v5846
        %v6559 = vpack.c.bf16 %v5849, %v5848
        %v6560 = vpack.c.bf16 %v5851, %v5850
        %v6561 = vpack.c.bf16 %v5853, %v5852
        %v6562 = vpack.c.bf16 %v5855, %v5854
        %v6563 = vpack.c.bf16 %v5857, %v5856
        %v6564 = vpack.c.bf16 %v5859, %v5858
        %v6565 = vpack.c.bf16 %v5861, %v5860
        %6582 = vrot.lane.b32.xlu0 %v6534, 64
        %v6583 = vpop.permute.xlu0 %6582
        %6584 = vrot.lane.b32.xlu0 %v6535, 64
        %v6585 = vpop.permute.xlu0 %6584
        %6586 = vrot.lane.b32.xlu0 %v6536, 64
        %v6587 = vpop.permute.xlu0 %6586
        %6588 = vrot.lane.b32.xlu0 %v6537, 64
        %v6589 = vpop.permute.xlu0 %6588
        %6590 = vrot.lane.b32.xlu0 %v6538, 64
        %v6591 = vpop.permute.xlu0 %6590
        %6592 = vrot.lane.b32.xlu0 %v6539, 64
        %v6593 = vpop.permute.xlu0 %6592
        %6594 = vrot.lane.b32.xlu0 %v6540, 64
        %v6595 = vpop.permute.xlu0 %6594
        %6596 = vrot.lane.b32.xlu0 %v6541, 64
        %v6597 = vpop.permute.xlu0 %6596
        %6598 = vrot.lane.b32.xlu0 %v6542, 64
        %v6599 = vpop.permute.xlu0 %6598
        %6600 = vrot.lane.b32.xlu0 %v6543, 64
        %v6601 = vpop.permute.xlu0 %6600
        %6602 = vrot.lane.b32.xlu0 %v6544, 64
        %v6603 = vpop.permute.xlu0 %6602
        %6604 = vrot.lane.b32.xlu0 %v6545, 64
        %v6605 = vpop.permute.xlu0 %6604
        %6606 = vrot.lane.b32.xlu0 %v6546, 64
        %v6607 = vpop.permute.xlu0 %6606
        %6608 = vrot.lane.b32.xlu0 %v6547, 64
        %v6609 = vpop.permute.xlu0 %6608
        %6610 = vrot.lane.b32.xlu0 %v6548, 64
        %v6611 = vpop.permute.xlu0 %6610
        %6612 = vrot.lane.b32.xlu0 %v6549, 64
        %v6613 = vpop.permute.xlu0 %6612
        %6630 = vrot.lane.b32.xlu0 %v6550, 32
        %v6631 = vpop.permute.xlu0 %6630
        %6632 = vrot.lane.b32.xlu0 %v6551, 32
        %v6633 = vpop.permute.xlu0 %6632
        %6634 = vrot.lane.b32.xlu0 %v6552, 32
        %v6635 = vpop.permute.xlu0 %6634
        %6636 = vrot.lane.b32.xlu0 %v6553, 32
        %v6637 = vpop.permute.xlu0 %6636
        %6638 = vrot.lane.b32.xlu0 %v6554, 32
        %v6639 = vpop.permute.xlu0 %6638
        %6640 = vrot.lane.b32.xlu0 %v6555, 32
        %v6641 = vpop.permute.xlu0 %6640
        %6642 = vrot.lane.b32.xlu0 %v6556, 32
        %v6643 = vpop.permute.xlu0 %6642
        %6644 = vrot.lane.b32.xlu0 %v6557, 32
        %v6645 = vpop.permute.xlu0 %6644
        %6646 = vrot.lane.b32.xlu0 %v6558, 32
        %v6647 = vpop.permute.xlu0 %6646
        %6648 = vrot.lane.b32.xlu0 %v6559, 32
        %v6649 = vpop.permute.xlu0 %6648
        %6650 = vrot.lane.b32.xlu0 %v6560, 32
        %v6651 = vpop.permute.xlu0 %6650
        %6652 = vrot.lane.b32.xlu0 %v6561, 32
        %v6653 = vpop.permute.xlu0 %6652
        %6654 = vrot.lane.b32.xlu0 %v6562, 32
        %v6655 = vpop.permute.xlu0 %6654
        %6656 = vrot.lane.b32.xlu0 %v6563, 32
        %v6657 = vpop.permute.xlu0 %6656
        %6658 = vrot.lane.b32.xlu0 %v6564, 32
        %v6659 = vpop.permute.xlu0 %6658
        %6660 = vrot.lane.b32.xlu0 %v6565, 32
        %v6661 = vpop.permute.xlu0 %6660
        %vm6662 = vcmask 261120
        %v6665 = vsel %vm6662, %v6583, %v6631
        %v6668 = vsel %vm6662, %v6585, %v6633
        %v6671 = vsel %vm6662, %v6587, %v6635
        %v6674 = vsel %vm6662, %v6589, %v6637
        %v6677 = vsel %vm6662, %v6591, %v6639
        %v6680 = vsel %vm6662, %v6593, %v6641
        %v6683 = vsel %vm6662, %v6595, %v6643
        %v6686 = vsel %vm6662, %v6597, %v6645
        %v6689 = vsel %vm6662, %v6599, %v6647
        %v6692 = vsel %vm6662, %v6601, %v6649
        %v6695 = vsel %vm6662, %v6603, %v6651
        %v6698 = vsel %vm6662, %v6605, %v6653
        %v6701 = vsel %vm6662, %v6607, %v6655
        %v6704 = vsel %vm6662, %v6609, %v6657
        %v6707 = vsel %vm6662, %v6611, %v6659
        %v6710 = vsel %vm6662, %v6613, %v6661
        %v6711 = vld [vmem:[%s7] sm:$0xff]
        %v6712 = vld [vmem:[%s7 + $0x8] sm:$0xff]
        %v6713 = vld [vmem:[%s7 + $0x10] sm:$0xff]
        %v6714 = vld [vmem:[%s7 + $0x18] sm:$0xff]
        %v6715 = vld [vmem:[%s7 + $0x20] sm:$0xff]
        %v6716 = vld [vmem:[%s7 + $0x28] sm:$0xff]
        %v6717 = vld [vmem:[%s7 + $0x30] sm:$0xff]
        %v6718 = vld [vmem:[%s7 + $0x38] sm:$0xff]
        %v6719 = vld [vmem:[%s8] sm:$0x3]
        %v6721 = vlaneseq
        %v6722 = vshrl.u32 %v6721, 7
        %v6723 = vsub.s32 0, %v6722
        %v6724 = vrot.slane %v6719, %v6723
        %v6725 = vlaneseq
        %v6726 = vshrl.u32 %v6725, 7
        %v6727 = vsub.s32 1, %v6726
        %v6728 = vrot.slane %v6719, %v6727
        %v6739 = vunpack.c.l.b16 %v6711
        %v6740 = vunpack.c.h.b16 %v6711
        %v6741 = vunpack.c.l.b16 %v6712
        %v6742 = vunpack.c.h.b16 %v6712
        %v6743 = vunpack.c.l.b16 %v6713
        %v6744 = vunpack.c.h.b16 %v6713
        %v6745 = vunpack.c.l.b16 %v6714
        %v6746 = vunpack.c.h.b16 %v6714
        %v6747 = vunpack.c.l.b16 %v6715
        %v6748 = vunpack.c.h.b16 %v6715
        %v6749 = vunpack.c.l.b16 %v6716
        %v6750 = vunpack.c.h.b16 %v6716
        %v6751 = vunpack.c.l.b16 %v6717
        %v6752 = vunpack.c.h.b16 %v6717
        %v6753 = vunpack.c.l.b16 %v6718
        %v6754 = vunpack.c.h.b16 %v6718
        %v6755 = vpack.c.b16 %v6741, %v6739
        %v6756 = vpack.c.b16 %v6742, %v6740
        %v6757 = vpack.c.b16 %v6745, %v6743
        %v6758 = vpack.c.b16 %v6746, %v6744
        %v6759 = vpack.c.b16 %v6749, %v6747
        %v6760 = vpack.c.b16 %v6750, %v6748
        %v6761 = vpack.c.b16 %v6753, %v6751
        %v6762 = vpack.c.b16 %v6754, %v6752
        %v6771 = vsel %vm1003, %v6665, 0
        %v6773 = vsel %vm1003, %v6668, 0
        %v6775 = vsel %vm1003, %v6671, 0
        %v6777 = vsel %vm1003, %v6674, 0
        %v6779 = vsel %vm1003, %v6677, 0
        %v6781 = vsel %vm1003, %v6680, 0
        %v6783 = vsel %vm1003, %v6683, 0
        %v6785 = vsel %vm1003, %v6686, 0
        %v6787 = vsel %vm1003, %v6689, 0
        %v6789 = vsel %vm1003, %v6692, 0
        %v6791 = vsel %vm1003, %v6695, 0
        %v6793 = vsel %vm1003, %v6698, 0
        %v6795 = vsel %vm1003, %v6701, 0
        %v6797 = vsel %vm1003, %v6704, 0
        %v6799 = vsel %vm1003, %v6707, 0
        %v6801 = vsel %vm1003, %v6710, 0
        %6803 = vmatprep.subr.bf16.mxu0 %v6756
        %6804 = vmatpush1.bf16.msra.mxu0 %v6755
        %6805 = vmatprep.subr.bf16.mxu0 %v6758
        %6806 = vmatpush1.bf16.msra.mxu0 %v6757
        %6807 = vmatprep.subr.bf16.mxu0 %v6760
        %6808 = vmatpush1.bf16.msra.mxu0 %v6759
        %6809 = vmatprep.subr.bf16.mxu0 %v6762
        %6810 = vmatpush1.bf16.msra.mxu0 %v6761
        %6811 = vmatprep.subr.bf16.mxu0 0
        %6812 = vmatpush1.bf16.msra.mxu0 0
        %6813 = vmatprep.subr.bf16.mxu0 0
        %6814 = vmatpush1.bf16.msra.mxu0 0
        %6815 = vmatprep.subr.bf16.mxu0 0
        %6816 = vmatpush1.bf16.msra.mxu0 0
        %6817 = vmatprep.subr.bf16.mxu0 0
        %6818 = vmatpush1.bf16.msra.mxu0 0
        %6819 = vmatprep.subr.bf16.mxu0 0
        %6820 = vmatpush1.bf16.msra.mxu0 0
        %6821 = vmatprep.subr.bf16.mxu0 0
        %6822 = vmatpush1.bf16.msra.mxu0 0
        %6823 = vmatprep.subr.bf16.mxu0 0
        %6824 = vmatpush1.bf16.msra.mxu0 0
        %6825 = vmatprep.subr.bf16.mxu0 0
        %6826 = vmatpush1.bf16.msra.mxu0 0
        %6827 = vmatprep.subr.bf16.mxu0 0
        %6828 = vmatpush1.bf16.msra.mxu0 0
        %6829 = vmatprep.subr.bf16.mxu0 0
        %6830 = vmatpush1.bf16.msra.mxu0 0
        %6831 = vmatprep.subr.bf16.mxu0 0
        %6832 = vmatpush1.bf16.msra.mxu0 0
        %6833 = vmatprep.subr.bf16.mxu0 0
        %6834 = vmatpush1.bf16.msra.mxu0 0
        %6835 = vmatprep.mubr.bf16.mxu0 0
        %6836 = vmatmul.mubr.bf16.gmra.mrb[0].mxu0 %v6771
        %v6837 = vpop.f32.mrb[0].mxu0
        %v6838 = vadd.f32 %v6724, %v6837
        %v6839 = vpop.f32.mrb[0].mxu0
        %v6840 = vadd.f32 %v6728, %v6839
        %v6841 = vpop.f32.mrb[0].mxu0
        %v6842 = vadd.f32 %v6724, %v6841
        %v6843 = vpop.f32.mrb[0].mxu0
        %v6844 = vadd.f32 %v6728, %v6843
        %6845 = vmatprep.mubr.bf16.mxu0 0
        %6846 = vmatmul.mubr.bf16.gmra.mrb[0].mxu0 %v6773
        %v6847 = vpop.f32.mrb[0].mxu0
        %v6848 = vadd.f32 %v6724, %v6847
        %v6849 = vpop.f32.mrb[0].mxu0
        %v6850 = vadd.f32 %v6728, %v6849
        %v6851 = vpop.f32.mrb[0].mxu0
        %v6852 = vadd.f32 %v6724, %v6851
        %v6853 = vpop.f32.mrb[0].mxu0
        %v6854 = vadd.f32 %v6728, %v6853
        %6855 = vmatprep.mubr.bf16.mxu0 0
        %6856 = vmatmul.mubr.bf16.gmra.mrb[0].mxu0 %v6775
        %v6857 = vpop.f32.mrb[0].mxu0
        %v6858 = vadd.f32 %v6724, %v6857
        %v6859 = vpop.f32.mrb[0].mxu0
        %v6860 = vadd.f32 %v6728, %v6859
        %v6861 = vpop.f32.mrb[0].mxu0
        %v6862 = vadd.f32 %v6724, %v6861
        %v6863 = vpop.f32.mrb[0].mxu0
        %v6864 = vadd.f32 %v6728, %v6863
        %6865 = vmatprep.mubr.bf16.mxu0 0
        %6866 = vmatmul.mubr.bf16.gmra.mrb[0].mxu0 %v6777
        %v6867 = vpop.f32.mrb[0].mxu0
        %v6868 = vadd.f32 %v6724, %v6867
        %v6869 = vpop.f32.mrb[0].mxu0
        %v6870 = vadd.f32 %v6728, %v6869
        %v6871 = vpop.f32.mrb[0].mxu0
        %v6872 = vadd.f32 %v6724, %v6871
        %v6873 = vpop.f32.mrb[0].mxu0
        %v6874 = vadd.f32 %v6728, %v6873
        %6875 = vmatprep.mubr.bf16.mxu0 0
        %6876 = vmatmul.mubr.bf16.gmra.mrb[0].mxu0 %v6779
        %v6877 = vpop.f32.mrb[0].mxu0
        %v6878 = vadd.f32 %v6724, %v6877
        %v6879 = vpop.f32.mrb[0].mxu0
        %v6880 = vadd.f32 %v6728, %v6879
        %v6881 = vpop.f32.mrb[0].mxu0
        %v6882 = vadd.f32 %v6724, %v6881
        %v6883 = vpop.f32.mrb[0].mxu0
        %v6884 = vadd.f32 %v6728, %v6883
        %6885 = vmatprep.mubr.bf16.mxu0 0
        %6886 = vmatmul.mubr.bf16.gmra.mrb[0].mxu0 %v6781
        %v6887 = vpop.f32.mrb[0].mxu0
        %v6888 = vadd.f32 %v6724, %v6887
        %v6889 = vpop.f32.mrb[0].mxu0
        %v6890 = vadd.f32 %v6728, %v6889
        %v6891 = vpop.f32.mrb[0].mxu0
        %v6892 = vadd.f32 %v6724, %v6891
        %v6893 = vpop.f32.mrb[0].mxu0
        %v6894 = vadd.f32 %v6728, %v6893
        %6895 = vmatprep.mubr.bf16.mxu0 0
        %6896 = vmatmul.mubr.bf16.gmra.mrb[0].mxu0 %v6783
        %v6897 = vpop.f32.mrb[0].mxu0
        %v6898 = vadd.f32 %v6724, %v6897
        %v6899 = vpop.f32.mrb[0].mxu0
        %v6900 = vadd.f32 %v6728, %v6899
        %v6901 = vpop.f32.mrb[0].mxu0
        %v6902 = vadd.f32 %v6724, %v6901
        %v6903 = vpop.f32.mrb[0].mxu0
        %v6904 = vadd.f32 %v6728, %v6903
        %6905 = vmatprep.mubr.bf16.mxu0 0
        %6906 = vmatmul.mubr.bf16.gmra.mrb[0].mxu0 %v6785
        %v6907 = vpop.f32.mrb[0].mxu0
        %v6908 = vadd.f32 %v6724, %v6907
        %v6909 = vpop.f32.mrb[0].mxu0
        %v6910 = vadd.f32 %v6728, %v6909
        %v6911 = vpop.f32.mrb[0].mxu0
        %v6912 = vadd.f32 %v6724, %v6911
        %v6913 = vpop.f32.mrb[0].mxu0
        %v6914 = vadd.f32 %v6728, %v6913
        %6915 = vmatprep.mubr.bf16.mxu0 0
        %6916 = vmatmul.mubr.bf16.gmra.mrb[0].mxu0 %v6787
        %v6917 = vpop.f32.mrb[0].mxu0
        %v6918 = vadd.f32 %v6724, %v6917
        %v6919 = vpop.f32.mrb[0].mxu0
        %v6920 = vadd.f32 %v6728, %v6919
        %v6921 = vpop.f32.mrb[0].mxu0
        %v6922 = vadd.f32 %v6724, %v6921
        %v6923 = vpop.f32.mrb[0].mxu0
        %v6924 = vadd.f32 %v6728, %v6923
        %6925 = vmatprep.mubr.bf16.mxu0 0
        %6926 = vmatmul.mubr.bf16.gmra.mrb[0].mxu0 %v6789
        %v6927 = vpop.f32.mrb[0].mxu0
        %v6928 = vadd.f32 %v6724, %v6927
        %v6929 = vpop.f32.mrb[0].mxu0
        %v6930 = vadd.f32 %v6728, %v6929
        %v6931 = vpop.f32.mrb[0].mxu0
        %v6932 = vadd.f32 %v6724, %v6931
        %v6933 = vpop.f32.mrb[0].mxu0
        %v6934 = vadd.f32 %v6728, %v6933
        %6935 = vmatprep.mubr.bf16.mxu0 0
        %6936 = vmatmul.mubr.bf16.gmra.mrb[0].mxu0 %v6791
        %v6937 = vpop.f32.mrb[0].mxu0
        %v6938 = vadd.f32 %v6724, %v6937
        %v6939 = vpop.f32.mrb[0].mxu0
        %v6940 = vadd.f32 %v6728, %v6939
        %v6941 = vpop.f32.mrb[0].mxu0
        %v6942 = vadd.f32 %v6724, %v6941
        %v6943 = vpop.f32.mrb[0].mxu0
        %v6944 = vadd.f32 %v6728, %v6943
        %6945 = vmatprep.mubr.bf16.mxu0 0
        %6946 = vmatmul.mubr.bf16.gmra.mrb[0].mxu0 %v6793
        %v6947 = vpop.f32.mrb[0].mxu0
        %v6948 = vadd.f32 %v6724, %v6947
        %v6949 = vpop.f32.mrb[0].mxu0
        %v6950 = vadd.f32 %v6728, %v6949
        %v6951 = vpop.f32.mrb[0].mxu0
        %v6952 = vadd.f32 %v6724, %v6951
        %v6953 = vpop.f32.mrb[0].mxu0
        %v6954 = vadd.f32 %v6728, %v6953
        %6955 = vmatprep.mubr.bf16.mxu0 0
        %6956 = vmatmul.mubr.bf16.gmra.mrb[0].mxu0 %v6795
        %v6957 = vpop.f32.mrb[0].mxu0
        %v6958 = vadd.f32 %v6724, %v6957
        %v6959 = vpop.f32.mrb[0].mxu0
        %v6960 = vadd.f32 %v6728, %v6959
        %v6961 = vpop.f32.mrb[0].mxu0
        %v6962 = vadd.f32 %v6724, %v6961
        %v6963 = vpop.f32.mrb[0].mxu0
        %v6964 = vadd.f32 %v6728, %v6963
        %6965 = vmatprep.mubr.bf16.mxu0 0
        %6966 = vmatmul.mubr.bf16.gmra.mrb[0].mxu0 %v6797
        %v6967 = vpop.f32.mrb[0].mxu0
        %v6968 = vadd.f32 %v6724, %v6967
        %v6969 = vpop.f32.mrb[0].mxu0
        %v6970 = vadd.f32 %v6728, %v6969
        %v6971 = vpop.f32.mrb[0].mxu0
        %v6972 = vadd.f32 %v6724, %v6971
        %v6973 = vpop.f32.mrb[0].mxu0
        %v6974 = vadd.f32 %v6728, %v6973
        %6975 = vmatprep.mubr.bf16.mxu0 0
        %6976 = vmatmul.mubr.bf16.gmra.mrb[0].mxu0 %v6799
        %v6977 = vpop.f32.mrb[0].mxu0
        %v6978 = vadd.f32 %v6724, %v6977
        %v6979 = vpop.f32.mrb[0].mxu0
        %v6980 = vadd.f32 %v6728, %v6979
        %v6981 = vpop.f32.mrb[0].mxu0
        %v6982 = vadd.f32 %v6724, %v6981
        %v6983 = vpop.f32.mrb[0].mxu0
        %v6984 = vadd.f32 %v6728, %v6983
        %6985 = vmatprep.mubr.bf16.mxu0 0
        %6986 = vmatmul.mubr.bf16.gmra.mrb[0].mxu0 %v6801
        %v6987 = vpop.f32.mrb[0].mxu0
        %v6988 = vadd.f32 %v6724, %v6987
        %v6989 = vpop.f32.mrb[0].mxu0
        %v6990 = vadd.f32 %v6728, %v6989
        %v6991 = vpop.f32.mrb[0].mxu0
        %v6992 = vadd.f32 %v6724, %v6991
        %v6993 = vpop.f32.mrb[0].mxu0
        %v6994 = vadd.f32 %v6728, %v6993
        %6995 = vdwg.mxu0
        %v6996 = vpack.c.bf16 %v6842, %v6838
        %v6997 = vpack.c.bf16 %v6852, %v6848
        %v6998 = vpack.c.bf16 %v6862, %v6858
        %v6999 = vpack.c.bf16 %v6872, %v6868
        %v7000 = vpack.c.bf16 %v6882, %v6878
        %v7001 = vpack.c.bf16 %v6892, %v6888
        %v7002 = vpack.c.bf16 %v6902, %v6898
        %v7003 = vpack.c.bf16 %v6912, %v6908
        %v7004 = vpack.c.bf16 %v6922, %v6918
        %v7005 = vpack.c.bf16 %v6932, %v6928
        %v7006 = vpack.c.bf16 %v6942, %v6938
        %v7007 = vpack.c.bf16 %v6952, %v6948
        %v7008 = vpack.c.bf16 %v6962, %v6958
        %v7009 = vpack.c.bf16 %v6972, %v6968
        %v7010 = vpack.c.bf16 %v6982, %v6978
        %v7011 = vpack.c.bf16 %v6992, %v6988
        %7028 = vrot.lane.b32.xlu0 %v6996, 112
        %v7029 = vpop.permute.xlu0 %7028
        %7030 = vrot.lane.b32.xlu0 %v6997, 112
        %v7031 = vpop.permute.xlu0 %7030
        %7032 = vrot.lane.b32.xlu0 %v6998, 112
        %v7033 = vpop.permute.xlu0 %7032
        %7034 = vrot.lane.b32.xlu0 %v6999, 112
        %v7035 = vpop.permute.xlu0 %7034
        %7036 = vrot.lane.b32.xlu0 %v7000, 112
        %v7037 = vpop.permute.xlu0 %7036
        %7038 = vrot.lane.b32.xlu0 %v7001, 112
        %v7039 = vpop.permute.xlu0 %7038
        %7040 = vrot.lane.b32.xlu0 %v7002, 112
        %v7041 = vpop.permute.xlu0 %7040
        %7042 = vrot.lane.b32.xlu0 %v7003, 112
        %v7043 = vpop.permute.xlu0 %7042
        %7044 = vrot.lane.b32.xlu0 %v7004, 112
        %v7045 = vpop.permute.xlu0 %7044
        %7046 = vrot.lane.b32.xlu0 %v7005, 112
        %v7047 = vpop.permute.xlu0 %7046
        %7048 = vrot.lane.b32.xlu0 %v7006, 112
        %v7049 = vpop.permute.xlu0 %7048
        %7050 = vrot.lane.b32.xlu0 %v7007, 112
        %v7051 = vpop.permute.xlu0 %7050
        %7052 = vrot.lane.b32.xlu0 %v7008, 112
        %v7053 = vpop.permute.xlu0 %7052
        %7054 = vrot.lane.b32.xlu0 %v7009, 112
        %v7055 = vpop.permute.xlu0 %7054
        %7056 = vrot.lane.b32.xlu0 %v7010, 112
        %v7057 = vpop.permute.xlu0 %7056
        %7058 = vrot.lane.b32.xlu0 %v7011, 112
        %v7059 = vpop.permute.xlu0 %7058
        %vm7060 = vcmask 130048
        %v7062 = vsel %vm7060, %v6996, 0
        %v7065 = vsel %vm7060, %v6997, 0
        %v7068 = vsel %vm7060, %v6998, 0
        %v7071 = vsel %vm7060, %v6999, 0
        %v7074 = vsel %vm7060, %v7000, 0
        %v7077 = vsel %vm7060, %v7001, 0
        %v7080 = vsel %vm7060, %v7002, 0
        %v7083 = vsel %vm7060, %v7003, 0
        %v7086 = vsel %vm7060, %v7004, 0
        %v7089 = vsel %vm7060, %v7005, 0
        %v7092 = vsel %vm7060, %v7006, 0
        %v7095 = vsel %vm7060, %v7007, 0
        %v7098 = vsel %vm7060, %v7008, 0
        %v7101 = vsel %vm7060, %v7009, 0
        %v7104 = vsel %vm7060, %v7010, 0
        %v7107 = vsel %vm7060, %v7011, 0
        %v7110 = vsel %vm7060, %v7029, 0
        %v7113 = vsel %vm7060, %v7031, 0
        %v7116 = vsel %vm7060, %v7033, 0
        %v7119 = vsel %vm7060, %v7035, 0
        %v7122 = vsel %vm7060, %v7037, 0
        %v7125 = vsel %vm7060, %v7039, 0
        %v7128 = vsel %vm7060, %v7041, 0
        %v7131 = vsel %vm7060, %v7043, 0
        %v7134 = vsel %vm7060, %v7045, 0
        %v7137 = vsel %vm7060, %v7047, 0
        %v7140 = vsel %vm7060, %v7049, 0
        %v7143 = vsel %vm7060, %v7051, 0
        %v7146 = vsel %vm7060, %v7053, 0
        %v7149 = vsel %vm7060, %v7055, 0
        %v7152 = vsel %vm7060, %v7057, 0
        %v7155 = vsel %vm7060, %v7059, 0
        %7157 = vmatprep.subr.bf16.mxu0 0
        %7158 = vmatpush1.bf16.xpose.msra.mxu0 %v7110
        %7159 = vmatprep.subr.bf16.mxu0 0
        %7160 = vmatpush1.bf16.xpose.msra.mxu0 %v7113
        %7161 = vmatprep.subr.bf16.mxu0 0
        %7162 = vmatpush1.bf16.xpose.msra.mxu0 %v7116
        %7163 = vmatprep.subr.bf16.mxu0 0
        %7164 = vmatpush1.bf16.xpose.msra.mxu0 %v7119
        %7165 = vmatprep.subr.bf16.mxu0 0
        %7166 = vmatpush1.bf16.xpose.msra.mxu0 %v7122
        %7167 = vmatprep.subr.bf16.mxu0 0
        %7168 = vmatpush1.bf16.xpose.msra.mxu0 %v7125
        %7169 = vmatprep.subr.bf16.mxu0 0
        %7170 = vmatpush1.bf16.xpose.msra.mxu0 %v7128
        %7171 = vmatprep.subr.bf16.mxu0 0
        %7172 = vmatpush1.bf16.xpose.msra.mxu0 %v7131
        %7173 = vmatprep.subr.bf16.mxu0 0
        %7174 = vmatpush1.bf16.xpose.msra.mxu0 %v7134
        %7175 = vmatprep.subr.bf16.mxu0 0
        %7176 = vmatpush1.bf16.xpose.msra.mxu0 %v7137
        %7177 = vmatprep.subr.bf16.mxu0 0
        %7178 = vmatpush1.bf16.xpose.msra.mxu0 %v7140
        %7179 = vmatprep.subr.bf16.mxu0 0
        %7180 = vmatpush1.bf16.xpose.msra.mxu0 %v7143
        %7181 = vmatprep.subr.bf16.mxu0 0
        %7182 = vmatpush1.bf16.xpose.msra.mxu0 %v7146
        %7183 = vmatprep.subr.bf16.mxu0 0
        %7184 = vmatpush1.bf16.xpose.msra.mxu0 %v7149
        %7185 = vmatprep.subr.bf16.mxu0 0
        %7186 = vmatpush1.bf16.xpose.msra.mxu0 %v7152
        %7187 = vmatprep.subr.bf16.mxu0 0
        %7188 = vmatpush1.bf16.xpose.msra.mxu0 %v7155
        %7189 = vmatprep.mubr.bf16.mxu0 0
        %7190 = vmatmul.mubr.bf16.gmra.mrb[0].mxu0 %v7062
        %v7191 = vpop.f32.mrb[0].mxu0
        %v7192 = vadd.f32 0.0, %v7191
        %v7193 = vpop.f32.mrb[0].mxu0
        %v7194 = vadd.f32 0.0, %v7193
        %v7195 = vpop.f32.mrb[0].mxu0
        %v7196 = vadd.f32 0.0, %v7195
        %v7197 = vpop.f32.mrb[0].mxu0
        %v7198 = vadd.f32 0.0, %v7197
        %7199 = vmatprep.mubr.bf16.mxu0 0
        %7200 = vmatmul.mubr.bf16.gmra.mrb[0].mxu0 %v7065
        %v7201 = vpop.f32.mrb[0].mxu0
        %v7202 = vadd.f32 0.0, %v7201
        %v7203 = vpop.f32.mrb[0].mxu0
        %v7204 = vadd.f32 0.0, %v7203
        %v7205 = vpop.f32.mrb[0].mxu0
        %v7206 = vadd.f32 0.0, %v7205
        %v7207 = vpop.f32.mrb[0].mxu0
        %v7208 = vadd.f32 0.0, %v7207
        %7209 = vmatprep.mubr.bf16.mxu0 0
        %7210 = vmatmul.mubr.bf16.gmra.mrb[0].mxu0 %v7068
        %v7211 = vpop.f32.mrb[0].mxu0
        %v7212 = vadd.f32 0.0, %v7211
        %v7213 = vpop.f32.mrb[0].mxu0
        %v7214 = vadd.f32 0.0, %v7213
        %v7215 = vpop.f32.mrb[0].mxu0
        %v7216 = vadd.f32 0.0, %v7215
        %v7217 = vpop.f32.mrb[0].mxu0
        %v7218 = vadd.f32 0.0, %v7217
        %7219 = vmatprep.mubr.bf16.mxu0 0
        %7220 = vmatmul.mubr.bf16.gmra.mrb[0].mxu0 %v7071
        %v7221 = vpop.f32.mrb[0].mxu0
        %v7222 = vadd.f32 0.0, %v7221
        %v7223 = vpop.f32.mrb[0].mxu0
        %v7224 = vadd.f32 0.0, %v7223
        %v7225 = vpop.f32.mrb[0].mxu0
        %v7226 = vadd.f32 0.0, %v7225
        %v7227 = vpop.f32.mrb[0].mxu0
        %v7228 = vadd.f32 0.0, %v7227
        %7229 = vmatprep.mubr.bf16.mxu0 0
        %7230 = vmatmul.mubr.bf16.gmra.mrb[0].mxu0 %v7074
        %v7231 = vpop.f32.mrb[0].mxu0
        %v7232 = vadd.f32 0.0, %v7231
        %v7233 = vpop.f32.mrb[0].mxu0
        %v7234 = vadd.f32 0.0, %v7233
        %v7235 = vpop.f32.mrb[0].mxu0
        %v7236 = vadd.f32 0.0, %v7235
        %v7237 = vpop.f32.mrb[0].mxu0
        %v7238 = vadd.f32 0.0, %v7237
        %7239 = vmatprep.mubr.bf16.mxu0 0
        %7240 = vmatmul.mubr.bf16.gmra.mrb[0].mxu0 %v7077
        %v7241 = vpop.f32.mrb[0].mxu0
        %v7242 = vadd.f32 0.0, %v7241
        %v7243 = vpop.f32.mrb[0].mxu0
        %v7244 = vadd.f32 0.0, %v7243
        %v7245 = vpop.f32.mrb[0].mxu0
        %v7246 = vadd.f32 0.0, %v7245
        %v7247 = vpop.f32.mrb[0].mxu0
        %v7248 = vadd.f32 0.0, %v7247
        %7249 = vmatprep.mubr.bf16.mxu0 0
        %7250 = vmatmul.mubr.bf16.gmra.mrb[0].mxu0 %v7080
        %v7251 = vpop.f32.mrb[0].mxu0
        %v7252 = vadd.f32 0.0, %v7251
        %v7253 = vpop.f32.mrb[0].mxu0
        %v7254 = vadd.f32 0.0, %v7253
        %v7255 = vpop.f32.mrb[0].mxu0
        %v7256 = vadd.f32 0.0, %v7255
        %v7257 = vpop.f32.mrb[0].mxu0
        %v7258 = vadd.f32 0.0, %v7257
        %7259 = vmatprep.mubr.bf16.mxu0 0
        %7260 = vmatmul.mubr.bf16.gmra.mrb[0].mxu0 %v7083
        %v7261 = vpop.f32.mrb[0].mxu0
        %v7262 = vadd.f32 0.0, %v7261
        %v7263 = vpop.f32.mrb[0].mxu0
        %v7264 = vadd.f32 0.0, %v7263
        %v7265 = vpop.f32.mrb[0].mxu0
        %v7266 = vadd.f32 0.0, %v7265
        %v7267 = vpop.f32.mrb[0].mxu0
        %v7268 = vadd.f32 0.0, %v7267
        %7269 = vmatprep.mubr.bf16.mxu0 0
        %7270 = vmatmul.mubr.bf16.gmra.mrb[0].mxu0 %v7086
        %v7271 = vpop.f32.mrb[0].mxu0
        %v7272 = vadd.f32 0.0, %v7271
        %v7273 = vpop.f32.mrb[0].mxu0
        %v7274 = vadd.f32 0.0, %v7273
        %v7275 = vpop.f32.mrb[0].mxu0
        %v7276 = vadd.f32 0.0, %v7275
        %v7277 = vpop.f32.mrb[0].mxu0
        %v7278 = vadd.f32 0.0, %v7277
        %7279 = vmatprep.mubr.bf16.mxu0 0
        %7280 = vmatmul.mubr.bf16.gmra.mrb[0].mxu0 %v7089
        %v7281 = vpop.f32.mrb[0].mxu0
        %v7282 = vadd.f32 0.0, %v7281
        %v7283 = vpop.f32.mrb[0].mxu0
        %v7284 = vadd.f32 0.0, %v7283
        %v7285 = vpop.f32.mrb[0].mxu0
        %v7286 = vadd.f32 0.0, %v7285
        %v7287 = vpop.f32.mrb[0].mxu0
        %v7288 = vadd.f32 0.0, %v7287
        %7289 = vmatprep.mubr.bf16.mxu0 0
        %7290 = vmatmul.mubr.bf16.gmra.mrb[0].mxu0 %v7092
        %v7291 = vpop.f32.mrb[0].mxu0
        %v7292 = vadd.f32 0.0, %v7291
        %v7293 = vpop.f32.mrb[0].mxu0
        %v7294 = vadd.f32 0.0, %v7293
        %v7295 = vpop.f32.mrb[0].mxu0
        %v7296 = vadd.f32 0.0, %v7295
        %v7297 = vpop.f32.mrb[0].mxu0
        %v7298 = vadd.f32 0.0, %v7297
        %7299 = vmatprep.mubr.bf16.mxu0 0
        %7300 = vmatmul.mubr.bf16.gmra.mrb[0].mxu0 %v7095
        %v7301 = vpop.f32.mrb[0].mxu0
        %v7302 = vadd.f32 0.0, %v7301
        %v7303 = vpop.f32.mrb[0].mxu0
        %v7304 = vadd.f32 0.0, %v7303
        %v7305 = vpop.f32.mrb[0].mxu0
        %v7306 = vadd.f32 0.0, %v7305
        %v7307 = vpop.f32.mrb[0].mxu0
        %v7308 = vadd.f32 0.0, %v7307
        %7309 = vmatprep.mubr.bf16.mxu0 0
        %7310 = vmatmul.mubr.bf16.gmra.mrb[0].mxu0 %v7098
        %v7311 = vpop.f32.mrb[0].mxu0
        %v7312 = vadd.f32 0.0, %v7311
        %v7313 = vpop.f32.mrb[0].mxu0
        %v7314 = vadd.f32 0.0, %v7313
        %v7315 = vpop.f32.mrb[0].mxu0
        %v7316 = vadd.f32 0.0, %v7315
        %v7317 = vpop.f32.mrb[0].mxu0
        %v7318 = vadd.f32 0.0, %v7317
        %7319 = vmatprep.mubr.bf16.mxu0 0
        %7320 = vmatmul.mubr.bf16.gmra.mrb[0].mxu0 %v7101
        %v7321 = vpop.f32.mrb[0].mxu0
        %v7322 = vadd.f32 0.0, %v7321
        %v7323 = vpop.f32.mrb[0].mxu0
        %v7324 = vadd.f32 0.0, %v7323
        %v7325 = vpop.f32.mrb[0].mxu0
        %v7326 = vadd.f32 0.0, %v7325
        %v7327 = vpop.f32.mrb[0].mxu0
        %v7328 = vadd.f32 0.0, %v7327
        %7329 = vmatprep.mubr.bf16.mxu0 0
        %7330 = vmatmul.mubr.bf16.gmra.mrb[0].mxu0 %v7104
        %v7331 = vpop.f32.mrb[0].mxu0
        %v7332 = vadd.f32 0.0, %v7331
        %v7333 = vpop.f32.mrb[0].mxu0
        %v7334 = vadd.f32 0.0, %v7333
        %v7335 = vpop.f32.mrb[0].mxu0
        %v7336 = vadd.f32 0.0, %v7335
        %v7337 = vpop.f32.mrb[0].mxu0
        %v7338 = vadd.f32 0.0, %v7337
        %7339 = vmatprep.mubr.bf16.mxu0 0
        %7340 = vmatmul.mubr.bf16.gmra.mrb[0].mxu0 %v7107
        %v7341 = vpop.f32.mrb[0].mxu0
        %v7342 = vadd.f32 0.0, %v7341
        %v7343 = vpop.f32.mrb[0].mxu0
        %v7344 = vadd.f32 0.0, %v7343
        %v7345 = vpop.f32.mrb[0].mxu0
        %v7346 = vadd.f32 0.0, %v7345
        %v7347 = vpop.f32.mrb[0].mxu0
        %v7348 = vadd.f32 0.0, %v7347
        %7349 = vdwg.mxu0
        %v7350 = vmax.f32 %v7192, %v7194
        %7351 = vmax.xlane.f32.xlu0 %v7350
        %v7352 = vpop.xlane.xlu0 %7351
        %v7353 = vmax.f32 %v7196, %v7198
        %7354 = vmax.xlane.f32.xlu0 %v7353
        %v7355 = vpop.xlane.xlu0 %7354
        %v7356 = vmax.f32 %v7202, %v7204
        %7357 = vmax.xlane.f32.xlu0 %v7356
        %v7358 = vpop.xlane.xlu0 %7357
        %v7359 = vmax.f32 %v7206, %v7208
        %7360 = vmax.xlane.f32.xlu0 %v7359
        %v7361 = vpop.xlane.xlu0 %7360
        %v7362 = vmax.f32 %v7212, %v7214
        %7363 = vmax.xlane.f32.xlu0 %v7362
        %v7364 = vpop.xlane.xlu0 %7363
        %v7365 = vmax.f32 %v7216, %v7218
        %7366 = vmax.xlane.f32.xlu0 %v7365
        %v7367 = vpop.xlane.xlu0 %7366
        %v7368 = vmax.f32 %v7222, %v7224
        %7369 = vmax.xlane.f32.xlu0 %v7368
        %v7370 = vpop.xlane.xlu0 %7369
        %v7371 = vmax.f32 %v7226, %v7228
        %7372 = vmax.xlane.f32.xlu0 %v7371
        %v7373 = vpop.xlane.xlu0 %7372
        %v7374 = vmax.f32 %v7232, %v7234
        %7375 = vmax.xlane.f32.xlu0 %v7374
        %v7376 = vpop.xlane.xlu0 %7375
        %v7377 = vmax.f32 %v7236, %v7238
        %7378 = vmax.xlane.f32.xlu0 %v7377
        %v7379 = vpop.xlane.xlu0 %7378
        %v7380 = vmax.f32 %v7242, %v7244
        %7381 = vmax.xlane.f32.xlu0 %v7380
        %v7382 = vpop.xlane.xlu0 %7381
        %v7383 = vmax.f32 %v7246, %v7248
        %7384 = vmax.xlane.f32.xlu0 %v7383
        %v7385 = vpop.xlane.xlu0 %7384
        %v7386 = vmax.f32 %v7252, %v7254
        %7387 = vmax.xlane.f32.xlu0 %v7386
        %v7388 = vpop.xlane.xlu0 %7387
        %v7389 = vmax.f32 %v7256, %v7258
        %7390 = vmax.xlane.f32.xlu0 %v7389
        %v7391 = vpop.xlane.xlu0 %7390
        %v7392 = vmax.f32 %v7262, %v7264
        %7393 = vmax.xlane.f32.xlu0 %v7392
        %v7394 = vpop.xlane.xlu0 %7393
        %v7395 = vmax.f32 %v7266, %v7268
        %7396 = vmax.xlane.f32.xlu0 %v7395
        %v7397 = vpop.xlane.xlu0 %7396
        %v7398 = vmax.f32 %v7272, %v7274
        %7399 = vmax.xlane.f32.xlu0 %v7398
        %v7400 = vpop.xlane.xlu0 %7399
        %v7401 = vmax.f32 %v7276, %v7278
        %7402 = vmax.xlane.f32.xlu0 %v7401
        %v7403 = vpop.xlane.xlu0 %7402
        %v7404 = vmax.f32 %v7282, %v7284
        %7405 = vmax.xlane.f32.xlu0 %v7404
        %v7406 = vpop.xlane.xlu0 %7405
        %v7407 = vmax.f32 %v7286, %v7288
        %7408 = vmax.xlane.f32.xlu0 %v7407
        %v7409 = vpop.xlane.xlu0 %7408
        %v7410 = vmax.f32 %v7292, %v7294
        %7411 = vmax.xlane.f32.xlu0 %v7410
        %v7412 = vpop.xlane.xlu0 %7411
        %v7413 = vmax.f32 %v7296, %v7298
        %7414 = vmax.xlane.f32.xlu0 %v7413
        %v7415 = vpop.xlane.xlu0 %7414
        %v7416 = vmax.f32 %v7302, %v7304
        %7417 = vmax.xlane.f32.xlu0 %v7416
        %v7418 = vpop.xlane.xlu0 %7417
        %v7419 = vmax.f32 %v7306, %v7308
        %7420 = vmax.xlane.f32.xlu0 %v7419
        %v7421 = vpop.xlane.xlu0 %7420
        %v7422 = vmax.f32 %v7312, %v7314
        %7423 = vmax.xlane.f32.xlu0 %v7422
        %v7424 = vpop.xlane.xlu0 %7423
        %v7425 = vmax.f32 %v7316, %v7318
        %7426 = vmax.xlane.f32.xlu0 %v7425
        %v7427 = vpop.xlane.xlu0 %7426
        %v7428 = vmax.f32 %v7322, %v7324
        %7429 = vmax.xlane.f32.xlu0 %v7428
        %v7430 = vpop.xlane.xlu0 %7429
        %v7431 = vmax.f32 %v7326, %v7328
        %7432 = vmax.xlane.f32.xlu0 %v7431
        %v7433 = vpop.xlane.xlu0 %7432
        %v7434 = vmax.f32 %v7332, %v7334
        %7435 = vmax.xlane.f32.xlu0 %v7434
        %v7436 = vpop.xlane.xlu0 %7435
        %v7437 = vmax.f32 %v7336, %v7338
        %7438 = vmax.xlane.f32.xlu0 %v7437
        %v7439 = vpop.xlane.xlu0 %7438
        %v7440 = vmax.f32 %v7342, %v7344
        %7441 = vmax.xlane.f32.xlu0 %v7440
        %v7442 = vpop.xlane.xlu0 %7441
        %v7443 = vmax.f32 %v7346, %v7348
        %7444 = vmax.xlane.f32.xlu0 %v7443
        %v7445 = vpop.xlane.xlu0 %7444
        %v7446 = vsub.f32 %v7192, %v7352
        %v7447 = vsub.f32 %v7194, %v7352
        %v7448 = vsub.f32 %v7196, %v7355
        %v7449 = vsub.f32 %v7198, %v7355
        %v7450 = vsub.f32 %v7202, %v7358
        %v7451 = vsub.f32 %v7204, %v7358
        %v7452 = vsub.f32 %v7206, %v7361
        %v7453 = vsub.f32 %v7208, %v7361
        %v7454 = vsub.f32 %v7212, %v7364
        %v7455 = vsub.f32 %v7214, %v7364
        %v7456 = vsub.f32 %v7216, %v7367
        %v7457 = vsub.f32 %v7218, %v7367
        %v7458 = vsub.f32 %v7222, %v7370
        %v7459 = vsub.f32 %v7224, %v7370
        %v7460 = vsub.f32 %v7226, %v7373
        %v7461 = vsub.f32 %v7228, %v7373
        %v7462 = vsub.f32 %v7232, %v7376
        %v7463 = vsub.f32 %v7234, %v7376
        %v7464 = vsub.f32 %v7236, %v7379
        %v7465 = vsub.f32 %v7238, %v7379
        %v7466 = vsub.f32 %v7242, %v7382
        %v7467 = vsub.f32 %v7244, %v7382
        %v7468 = vsub.f32 %v7246, %v7385
        %v7469 = vsub.f32 %v7248, %v7385
        %v7470 = vsub.f32 %v7252, %v7388
        %v7471 = vsub.f32 %v7254, %v7388
        %v7472 = vsub.f32 %v7256, %v7391
        %v7473 = vsub.f32 %v7258, %v7391
        %v7474 = vsub.f32 %v7262, %v7394
        %v7475 = vsub.f32 %v7264, %v7394
        %v7476 = vsub.f32 %v7266, %v7397
        %v7477 = vsub.f32 %v7268, %v7397
        %v7478 = vsub.f32 %v7272, %v7400
        %v7479 = vsub.f32 %v7274, %v7400
        %v7480 = vsub.f32 %v7276, %v7403
        %v7481 = vsub.f32 %v7278, %v7403
        %v7482 = vsub.f32 %v7282, %v7406
        %v7483 = vsub.f32 %v7284, %v7406
        %v7484 = vsub.f32 %v7286, %v7409
        %v7485 = vsub.f32 %v7288, %v7409
        %v7486 = vsub.f32 %v7292, %v7412
        %v7487 = vsub.f32 %v7294, %v7412
        %v7488 = vsub.f32 %v7296, %v7415
        %v7489 = vsub.f32 %v7298, %v7415
        %v7490 = vsub.f32 %v7302, %v7418
        %v7491 = vsub.f32 %v7304, %v7418
        %v7492 = vsub.f32 %v7306, %v7421
        %v7493 = vsub.f32 %v7308, %v7421
        %v7494 = vsub.f32 %v7312, %v7424
        %v7495 = vsub.f32 %v7314, %v7424
        %v7496 = vsub.f32 %v7316, %v7427
        %v7497 = vsub.f32 %v7318, %v7427
        %v7498 = vsub.f32 %v7322, %v7430
        %v7499 = vsub.f32 %v7324, %v7430
        %v7500 = vsub.f32 %v7326, %v7433
        %v7501 = vsub.f32 %v7328, %v7433
        %v7502 = vsub.f32 %v7332, %v7436
        %v7503 = vsub.f32 %v7334, %v7436
        %v7504 = vsub.f32 %v7336, %v7439
        %v7505 = vsub.f32 %v7338, %v7439
        %v7506 = vsub.f32 %v7342, %v7442
        %v7507 = vsub.f32 %v7344, %v7442
        %v7508 = vsub.f32 %v7346, %v7445
        %v7509 = vsub.f32 %v7348, %v7445
        %v7510 = vmul.f32 %v7446, 1.442695
        %v7511 = vpow.pop %v7510
        %v7512 = vmul.f32 %v7447, 1.442695
        %v7513 = vpow.pop %v7512
        %v7514 = vmul.f32 %v7448, 1.442695
        %v7515 = vpow.pop %v7514
        %v7516 = vmul.f32 %v7449, 1.442695
        %v7517 = vpow.pop %v7516
        %v7518 = vmul.f32 %v7450, 1.442695
        %v7519 = vpow.pop %v7518
        %v7520 = vmul.f32 %v7451, 1.442695
        %v7521 = vpow.pop %v7520
        %v7522 = vmul.f32 %v7452, 1.442695
        %v7523 = vpow.pop %v7522
        %v7524 = vmul.f32 %v7453, 1.442695
        %v7525 = vpow.pop %v7524
        %v7526 = vmul.f32 %v7454, 1.442695
        %v7527 = vpow.pop %v7526
        %v7528 = vmul.f32 %v7455, 1.442695
        %v7529 = vpow.pop %v7528
        %v7530 = vmul.f32 %v7456, 1.442695
        %v7531 = vpow.pop %v7530
        %v7532 = vmul.f32 %v7457, 1.442695
        %v7533 = vpow.pop %v7532
        %v7534 = vmul.f32 %v7458, 1.442695
        %v7535 = vpow.pop %v7534
        %v7536 = vmul.f32 %v7459, 1.442695
        %v7537 = vpow.pop %v7536
        %v7538 = vmul.f32 %v7460, 1.442695
        %v7539 = vpow.pop %v7538
        %v7540 = vmul.f32 %v7461, 1.442695
        %v7541 = vpow.pop %v7540
        %v7542 = vmul.f32 %v7462, 1.442695
        %v7543 = vpow.pop %v7542
        %v7544 = vmul.f32 %v7463, 1.442695
        %v7545 = vpow.pop %v7544
        %v7546 = vmul.f32 %v7464, 1.442695
        %v7547 = vpow.pop %v7546
        %v7548 = vmul.f32 %v7465, 1.442695
        %v7549 = vpow.pop %v7548
        %v7550 = vmul.f32 %v7466, 1.442695
        %v7551 = vpow.pop %v7550
        %v7552 = vmul.f32 %v7467, 1.442695
        %v7553 = vpow.pop %v7552
        %v7554 = vmul.f32 %v7468, 1.442695
        %v7555 = vpow.pop %v7554
        %v7556 = vmul.f32 %v7469, 1.442695
        %v7557 = vpow.pop %v7556
        %v7558 = vmul.f32 %v7470, 1.442695
        %v7559 = vpow.pop %v7558
        %v7560 = vmul.f32 %v7471, 1.442695
        %v7561 = vpow.pop %v7560
        %v7562 = vmul.f32 %v7472, 1.442695
        %v7563 = vpow.pop %v7562
        %v7564 = vmul.f32 %v7473, 1.442695
        %v7565 = vpow.pop %v7564
        %v7566 = vmul.f32 %v7474, 1.442695
        %v7567 = vpow.pop %v7566
        %v7568 = vmul.f32 %v7475, 1.442695
        %v7569 = vpow.pop %v7568
        %v7570 = vmul.f32 %v7476, 1.442695
        %v7571 = vpow.pop %v7570
        %v7572 = vmul.f32 %v7477, 1.442695
        %v7573 = vpow.pop %v7572
        %v7574 = vmul.f32 %v7478, 1.442695
        %v7575 = vpow.pop %v7574
        %v7576 = vmul.f32 %v7479, 1.442695
        %v7577 = vpow.pop %v7576
        %v7578 = vmul.f32 %v7480, 1.442695
        %v7579 = vpow.pop %v7578
        %v7580 = vmul.f32 %v7481, 1.442695
        %v7581 = vpow.pop %v7580
        %v7582 = vmul.f32 %v7482, 1.442695
        %v7583 = vpow.pop %v7582
        %v7584 = vmul.f32 %v7483, 1.442695
        %v7585 = vpow.pop %v7584
        %v7586 = vmul.f32 %v7484, 1.442695
        %v7587 = vpow.pop %v7586
        %v7588 = vmul.f32 %v7485, 1.442695
        %v7589 = vpow.pop %v7588
        %v7590 = vmul.f32 %v7486, 1.442695
        %v7591 = vpow.pop %v7590
        %v7592 = vmul.f32 %v7487, 1.442695
        %v7593 = vpow.pop %v7592
        %v7594 = vmul.f32 %v7488, 1.442695
        %v7595 = vpow.pop %v7594
        %v7596 = vmul.f32 %v7489, 1.442695
        %v7597 = vpow.pop %v7596
        %v7598 = vmul.f32 %v7490, 1.442695
        %v7599 = vpow.pop %v7598
        %v7600 = vmul.f32 %v7491, 1.442695
        %v7601 = vpow.pop %v7600
        %v7602 = vmul.f32 %v7492, 1.442695
        %v7603 = vpow.pop %v7602
        %v7604 = vmul.f32 %v7493, 1.442695
        %v7605 = vpow.pop %v7604
        %v7606 = vmul.f32 %v7494, 1.442695
        %v7607 = vpow.pop %v7606
        %v7608 = vmul.f32 %v7495, 1.442695
        %v7609 = vpow.pop %v7608
        %v7610 = vmul.f32 %v7496, 1.442695
        %v7611 = vpow.pop %v7610
        %v7612 = vmul.f32 %v7497, 1.442695
        %v7613 = vpow.pop %v7612
        %v7614 = vmul.f32 %v7498, 1.442695
        %v7615 = vpow.pop %v7614
        %v7616 = vmul.f32 %v7499, 1.442695
        %v7617 = vpow.pop %v7616
        %v7618 = vmul.f32 %v7500, 1.442695
        %v7619 = vpow.pop %v7618
        %v7620 = vmul.f32 %v7501, 1.442695
        %v7621 = vpow.pop %v7620
        %v7622 = vmul.f32 %v7502, 1.442695
        %v7623 = vpow.pop %v7622
        %v7624 = vmul.f32 %v7503, 1.442695
        %v7625 = vpow.pop %v7624
        %v7626 = vmul.f32 %v7504, 1.442695
        %v7627 = vpow.pop %v7626
        %v7628 = vmul.f32 %v7505, 1.442695
        %v7629 = vpow.pop %v7628
        %v7630 = vmul.f32 %v7506, 1.442695
        %v7631 = vpow.pop %v7630
        %v7632 = vmul.f32 %v7507, 1.442695
        %v7633 = vpow.pop %v7632
        %v7634 = vmul.f32 %v7508, 1.442695
        %v7635 = vpow.pop %v7634
        %v7636 = vmul.f32 %v7509, 1.442695
        %v7637 = vpow.pop %v7636
        %v7638 = vadd.f32 %v7511, %v7513
        %7639 = vadd.xlane.f32.xlu0 %v7638
        %v7640 = vpop.xlane.xlu0 %7639
        %v7641 = vadd.f32 %v7515, %v7517
        %7642 = vadd.xlane.f32.xlu0 %v7641
        %v7643 = vpop.xlane.xlu0 %7642
        %v7644 = vadd.f32 %v7519, %v7521
        %7645 = vadd.xlane.f32.xlu0 %v7644
        %v7646 = vpop.xlane.xlu0 %7645
        %v7647 = vadd.f32 %v7523, %v7525
        %7648 = vadd.xlane.f32.xlu0 %v7647
        %v7649 = vpop.xlane.xlu0 %7648
        %v7650 = vadd.f32 %v7527, %v7529
        %7651 = vadd.xlane.f32.xlu0 %v7650
        %v7652 = vpop.xlane.xlu0 %7651
        %v7653 = vadd.f32 %v7531, %v7533
        %7654 = vadd.xlane.f32.xlu0 %v7653
        %v7655 = vpop.xlane.xlu0 %7654
        %v7656 = vadd.f32 %v7535, %v7537
        %7657 = vadd.xlane.f32.xlu0 %v7656
        %v7658 = vpop.xlane.xlu0 %7657
        %v7659 = vadd.f32 %v7539, %v7541
        %7660 = vadd.xlane.f32.xlu0 %v7659
        %v7661 = vpop.xlane.xlu0 %7660
        %v7662 = vadd.f32 %v7543, %v7545
        %7663 = vadd.xlane.f32.xlu0 %v7662
        %v7664 = vpop.xlane.xlu0 %7663
        %v7665 = vadd.f32 %v7547, %v7549
        %7666 = vadd.xlane.f32.xlu0 %v7665
        %v7667 = vpop.xlane.xlu0 %7666
        %v7668 = vadd.f32 %v7551, %v7553
        %7669 = vadd.xlane.f32.xlu0 %v7668
        %v7670 = vpop.xlane.xlu0 %7669
        %v7671 = vadd.f32 %v7555, %v7557
        %7672 = vadd.xlane.f32.xlu0 %v7671
        %v7673 = vpop.xlane.xlu0 %7672
        %v7674 = vadd.f32 %v7559, %v7561
        %7675 = vadd.xlane.f32.xlu0 %v7674
        %v7676 = vpop.xlane.xlu0 %7675
        %v7677 = vadd.f32 %v7563, %v7565
        %7678 = vadd.xlane.f32.xlu0 %v7677
        %v7679 = vpop.xlane.xlu0 %7678
        %v7680 = vadd.f32 %v7567, %v7569
        %7681 = vadd.xlane.f32.xlu0 %v7680
        %v7682 = vpop.xlane.xlu0 %7681
        %v7683 = vadd.f32 %v7571, %v7573
        %7684 = vadd.xlane.f32.xlu0 %v7683
        %v7685 = vpop.xlane.xlu0 %7684
        %v7686 = vadd.f32 %v7575, %v7577
        %7687 = vadd.xlane.f32.xlu0 %v7686
        %v7688 = vpop.xlane.xlu0 %7687
        %v7689 = vadd.f32 %v7579, %v7581
        %7690 = vadd.xlane.f32.xlu0 %v7689
        %v7691 = vpop.xlane.xlu0 %7690
        %v7692 = vadd.f32 %v7583, %v7585
        %7693 = vadd.xlane.f32.xlu0 %v7692
        %v7694 = vpop.xlane.xlu0 %7693
        %v7695 = vadd.f32 %v7587, %v7589
        %7696 = vadd.xlane.f32.xlu0 %v7695
        %v7697 = vpop.xlane.xlu0 %7696
        %v7698 = vadd.f32 %v7591, %v7593
        %7699 = vadd.xlane.f32.xlu0 %v7698
        %v7700 = vpop.xlane.xlu0 %7699
        %v7701 = vadd.f32 %v7595, %v7597
        %7702 = vadd.xlane.f32.xlu0 %v7701
        %v7703 = vpop.xlane.xlu0 %7702
        %v7704 = vadd.f32 %v7599, %v7601
        %7705 = vadd.xlane.f32.xlu0 %v7704
        %v7706 = vpop.xlane.xlu0 %7705
        %v7707 = vadd.f32 %v7603, %v7605
        %7708 = vadd.xlane.f32.xlu0 %v7707
        %v7709 = vpop.xlane.xlu0 %7708
        %v7710 = vadd.f32 %v7607, %v7609
        %7711 = vadd.xlane.f32.xlu0 %v7710
        %v7712 = vpop.xlane.xlu0 %7711
        %v7713 = vadd.f32 %v7611, %v7613
        %7714 = vadd.xlane.f32.xlu0 %v7713
        %v7715 = vpop.xlane.xlu0 %7714
        %v7716 = vadd.f32 %v7615, %v7617
        %7717 = vadd.xlane.f32.xlu0 %v7716
        %v7718 = vpop.xlane.xlu0 %7717
        %v7719 = vadd.f32 %v7619, %v7621
        %7720 = vadd.xlane.f32.xlu0 %v7719
        %v7721 = vpop.xlane.xlu0 %7720
        %v7722 = vadd.f32 %v7623, %v7625
        %7723 = vadd.xlane.f32.xlu0 %v7722
        %v7724 = vpop.xlane.xlu0 %7723
        %v7725 = vadd.f32 %v7627, %v7629
        %7726 = vadd.xlane.f32.xlu0 %v7725
        %v7727 = vpop.xlane.xlu0 %7726
        %v7728 = vadd.f32 %v7631, %v7633
        %7729 = vadd.xlane.f32.xlu0 %v7728
        %v7730 = vpop.xlane.xlu0 %7729
        %v7731 = vadd.f32 %v7635, %v7637
        %7732 = vadd.xlane.f32.xlu0 %v7731
        %v7733 = vpop.xlane.xlu0 %7732
        %v7734 = vrcp.pop %v7640
        %v7735 = vrcp.pop %v7643
        %v7736 = vrcp.pop %v7646
        %v7737 = vrcp.pop %v7649
        %v7738 = vrcp.pop %v7652
        %v7739 = vrcp.pop %v7655
        %v7740 = vrcp.pop %v7658
        %v7741 = vrcp.pop %v7661
        %v7742 = vrcp.pop %v7664
        %v7743 = vrcp.pop %v7667
        %v7744 = vrcp.pop %v7670
        %v7745 = vrcp.pop %v7673
        %v7746 = vrcp.pop %v7676
        %v7747 = vrcp.pop %v7679
        %v7748 = vrcp.pop %v7682
        %v7749 = vrcp.pop %v7685
        %v7750 = vrcp.pop %v7688
        %v7751 = vrcp.pop %v7691
        %v7752 = vrcp.pop %v7694
        %v7753 = vrcp.pop %v7697
        %v7754 = vrcp.pop %v7700
        %v7755 = vrcp.pop %v7703
        %v7756 = vrcp.pop %v7706
        %v7757 = vrcp.pop %v7709
        %v7758 = vrcp.pop %v7712
        %v7759 = vrcp.pop %v7715
        %v7760 = vrcp.pop %v7718
        %v7761 = vrcp.pop %v7721
        %v7762 = vrcp.pop %v7724
        %v7763 = vrcp.pop %v7727
        %v7764 = vrcp.pop %v7730
        %v7765 = vrcp.pop %v7733
        %v7766 = vmul.f32 %v7511, %v7734
        %v7767 = vmul.f32 %v7513, %v7734
        %v7768 = vmul.f32 %v7515, %v7735
        %v7769 = vmul.f32 %v7517, %v7735
        %v7770 = vmul.f32 %v7519, %v7736
        %v7771 = vmul.f32 %v7521, %v7736
        %v7772 = vmul.f32 %v7523, %v7737
        %v7773 = vmul.f32 %v7525, %v7737
        %v7774 = vmul.f32 %v7527, %v7738
        %v7775 = vmul.f32 %v7529, %v7738
        %v7776 = vmul.f32 %v7531, %v7739
        %v7777 = vmul.f32 %v7533, %v7739
        %v7778 = vmul.f32 %v7535, %v7740
        %v7779 = vmul.f32 %v7537, %v7740
        %v7780 = vmul.f32 %v7539, %v7741
        %v7781 = vmul.f32 %v7541, %v7741
        %v7782 = vmul.f32 %v7543, %v7742
        %v7783 = vmul.f32 %v7545, %v7742
        %v7784 = vmul.f32 %v7547, %v7743
        %v7785 = vmul.f32 %v7549, %v7743
        %v7786 = vmul.f32 %v7551, %v7744
        %v7787 = vmul.f32 %v7553, %v7744
        %v7788 = vmul.f32 %v7555, %v7745
        %v7789 = vmul.f32 %v7557, %v7745
        %v7790 = vmul.f32 %v7559, %v7746
        %v7791 = vmul.f32 %v7561, %v7746
        %v7792 = vmul.f32 %v7563, %v7747
        %v7793 = vmul.f32 %v7565, %v7747
        %v7794 = vmul.f32 %v7567, %v7748
        %v7795 = vmul.f32 %v7569, %v7748
        %v7796 = vmul.f32 %v7571, %v7749
        %v7797 = vmul.f32 %v7573, %v7749
        %v7798 = vmul.f32 %v7575, %v7750
        %v7799 = vmul.f32 %v7577, %v7750
        %v7800 = vmul.f32 %v7579, %v7751
        %v7801 = vmul.f32 %v7581, %v7751
        %v7802 = vmul.f32 %v7583, %v7752
        %v7803 = vmul.f32 %v7585, %v7752
        %v7804 = vmul.f32 %v7587, %v7753
        %v7805 = vmul.f32 %v7589, %v7753
        %v7806 = vmul.f32 %v7591, %v7754
        %v7807 = vmul.f32 %v7593, %v7754
        %v7808 = vmul.f32 %v7595, %v7755
        %v7809 = vmul.f32 %v7597, %v7755
        %v7810 = vmul.f32 %v7599, %v7756
        %v7811 = vmul.f32 %v7601, %v7756
        %v7812 = vmul.f32 %v7603, %v7757
        %v7813 = vmul.f32 %v7605, %v7757
        %v7814 = vmul.f32 %v7607, %v7758
        %v7815 = vmul.f32 %v7609, %v7758
        %v7816 = vmul.f32 %v7611, %v7759
        %v7817 = vmul.f32 %v7613, %v7759
        %v7818 = vmul.f32 %v7615, %v7760
        %v7819 = vmul.f32 %v7617, %v7760
        %v7820 = vmul.f32 %v7619, %v7761
        %v7821 = vmul.f32 %v7621, %v7761
        %v7822 = vmul.f32 %v7623, %v7762
        %v7823 = vmul.f32 %v7625, %v7762
        %v7824 = vmul.f32 %v7627, %v7763
        %v7825 = vmul.f32 %v7629, %v7763
        %v7826 = vmul.f32 %v7631, %v7764
        %v7827 = vmul.f32 %v7633, %v7764
        %v7828 = vmul.f32 %v7635, %v7765
        %v7829 = vmul.f32 %v7637, %v7765
        %v7830 = vpack.c.bf16 %v7768, %v7766
        %v7831 = vpack.c.bf16 %v7769, %v7767
        %v7832 = vpack.c.bf16 %v7772, %v7770
        %v7833 = vpack.c.bf16 %v7773, %v7771
        %v7834 = vpack.c.bf16 %v7776, %v7774
        %v7835 = vpack.c.bf16 %v7777, %v7775
        %v7836 = vpack.c.bf16 %v7780, %v7778
        %v7837 = vpack.c.bf16 %v7781, %v7779
        %v7838 = vpack.c.bf16 %v7784, %v7782
        %v7839 = vpack.c.bf16 %v7785, %v7783
        %v7840 = vpack.c.bf16 %v7788, %v7786
        %v7841 = vpack.c.bf16 %v7789, %v7787
        %v7842 = vpack.c.bf16 %v7792, %v7790
        %v7843 = vpack.c.bf16 %v7793, %v7791
        %v7844 = vpack.c.bf16 %v7796, %v7794
        %v7845 = vpack.c.bf16 %v7797, %v7795
        %v7846 = vpack.c.bf16 %v7800, %v7798
        %v7847 = vpack.c.bf16 %v7801, %v7799
        %v7848 = vpack.c.bf16 %v7804, %v7802
        %v7849 = vpack.c.bf16 %v7805, %v7803
        %v7850 = vpack.c.bf16 %v7808, %v7806
        %v7851 = vpack.c.bf16 %v7809, %v7807
        %v7852 = vpack.c.bf16 %v7812, %v7810
        %v7853 = vpack.c.bf16 %v7813, %v7811
        %v7854 = vpack.c.bf16 %v7816, %v7814
        %v7855 = vpack.c.bf16 %v7817, %v7815
        %v7856 = vpack.c.bf16 %v7820, %v7818
        %v7857 = vpack.c.bf16 %v7821, %v7819
        %v7858 = vpack.c.bf16 %v7824, %v7822
        %v7859 = vpack.c.bf16 %v7825, %v7823
        %v7860 = vpack.c.bf16 %v7828, %v7826
        %v7861 = vpack.c.bf16 %v7829, %v7827
        %7862 = vrot.lane.b32.xlu0 %v6996, 32
        %v7863 = vpop.permute.xlu0 %7862
        %7864 = vrot.lane.b32.xlu0 %v6997, 32
        %v7865 = vpop.permute.xlu0 %7864
        %7866 = vrot.lane.b32.xlu0 %v6998, 32
        %v7867 = vpop.permute.xlu0 %7866
        %7868 = vrot.lane.b32.xlu0 %v6999, 32
        %v7869 = vpop.permute.xlu0 %7868
        %7870 = vrot.lane.b32.xlu0 %v7000, 32
        %v7871 = vpop.permute.xlu0 %7870
        %7872 = vrot.lane.b32.xlu0 %v7001, 32
        %v7873 = vpop.permute.xlu0 %7872
        %7874 = vrot.lane.b32.xlu0 %v7002, 32
        %v7875 = vpop.permute.xlu0 %7874
        %7876 = vrot.lane.b32.xlu0 %v7003, 32
        %v7877 = vpop.permute.xlu0 %7876
        %7878 = vrot.lane.b32.xlu0 %v7004, 32
        %v7879 = vpop.permute.xlu0 %7878
        %7880 = vrot.lane.b32.xlu0 %v7005, 32
        %v7881 = vpop.permute.xlu0 %7880
        %7882 = vrot.lane.b32.xlu0 %v7006, 32
        %v7883 = vpop.permute.xlu0 %7882
        %7884 = vrot.lane.b32.xlu0 %v7007, 32
        %v7885 = vpop.permute.xlu0 %7884
        %7886 = vrot.lane.b32.xlu0 %v7008, 32
        %v7887 = vpop.permute.xlu0 %7886
        %7888 = vrot.lane.b32.xlu0 %v7009, 32
        %v7889 = vpop.permute.xlu0 %7888
        %7890 = vrot.lane.b32.xlu0 %v7010, 32
        %v7891 = vpop.permute.xlu0 %7890
        %7892 = vrot.lane.b32.xlu0 %v7011, 32
        %v7893 = vpop.permute.xlu0 %7892
        %v7895 = vsel %vm7060, %v7863, 0
        %v7898 = vsel %vm7060, %v7865, 0
        %v7901 = vsel %vm7060, %v7867, 0
        %v7904 = vsel %vm7060, %v7869, 0
        %v7907 = vsel %vm7060, %v7871, 0
        %v7910 = vsel %vm7060, %v7873, 0
        %v7913 = vsel %vm7060, %v7875, 0
        %v7916 = vsel %vm7060, %v7877, 0
        %v7919 = vsel %vm7060, %v7879, 0
        %v7922 = vsel %vm7060, %v7881, 0
        %v7925 = vsel %vm7060, %v7883, 0
        %v7928 = vsel %vm7060, %v7885, 0
        %v7931 = vsel %vm7060, %v7887, 0
        %v7934 = vsel %vm7060, %v7889, 0
        %v7937 = vsel %vm7060, %v7891, 0
        %v7940 = vsel %vm7060, %v7893, 0
        %7942 = vmatprep.subr.bf16.mxu0 0
        %7943 = vmatpush1.bf16.xpose.msra.mxu0 %v7895
        %7944 = vmatprep.subr.bf16.mxu0 0
        %7945 = vmatpush1.bf16.xpose.msra.mxu0 %v7898
        %7946 = vmatprep.subr.bf16.mxu0 0
        %7947 = vmatpush1.bf16.xpose.msra.mxu0 %v7901
        %7948 = vmatprep.subr.bf16.mxu0 0
        %7949 = vmatpush1.bf16.xpose.msra.mxu0 %v7904
        %7950 = vmatprep.subr.bf16.mxu0 0
        %7951 = vmatpush1.bf16.xpose.msra.mxu0 %v7907
        %7952 = vmatprep.subr.bf16.mxu0 0
        %7953 = vmatpush1.bf16.xpose.msra.mxu0 %v7910
        %7954 = vmatprep.subr.bf16.mxu0 0
        %7955 = vmatpush1.bf16.xpose.msra.mxu0 %v7913
        %7956 = vmatprep.subr.bf16.mxu0 0
        %7957 = vmatpush1.bf16.xpose.msra.mxu0 %v7916
        %7958 = vmatprep.subr.bf16.mxu0 0
        %7959 = vmatpush1.bf16.xpose.msra.mxu0 %v7919
        %7960 = vmatprep.subr.bf16.mxu0 0
        %7961 = vmatpush1.bf16.xpose.msra.mxu0 %v7922
        %7962 = vmatprep.subr.bf16.mxu0 0
        %7963 = vmatpush1.bf16.xpose.msra.mxu0 %v7925
        %7964 = vmatprep.subr.bf16.mxu0 0
        %7965 = vmatpush1.bf16.xpose.msra.mxu0 %v7928
        %7966 = vmatprep.subr.bf16.mxu0 0
        %7967 = vmatpush1.bf16.xpose.msra.mxu0 %v7931
        %7968 = vmatprep.subr.bf16.mxu0 0
        %7969 = vmatpush1.bf16.xpose.msra.mxu0 %v7934
        %7970 = vmatprep.subr.bf16.mxu0 0
        %7971 = vmatpush1.bf16.xpose.msra.mxu0 %v7937
        %7972 = vmatprep.subr.bf16.mxu0 0
        %7973 = vmatpush1.bf16.xpose.msra.mxu0 %v7940
        %7974 = vmatprep.mubr.bf16.mxu0 0
        %7975 = vmatmul.mubr.bf16.gmra.mrb[0].mxu0 %v7062
        %v7976 = vpop.f32.mrb[0].mxu0
        %v7977 = vadd.f32 0.0, %v7976
        %v7978 = vpop.f32.mrb[0].mxu0
        %v7979 = vadd.f32 0.0, %v7978
        %v7980 = vpop.f32.mrb[0].mxu0
        %v7981 = vadd.f32 0.0, %v7980
        %v7982 = vpop.f32.mrb[0].mxu0
        %v7983 = vadd.f32 0.0, %v7982
        %7984 = vmatprep.mubr.bf16.mxu0 0
        %7985 = vmatmul.mubr.bf16.gmra.mrb[0].mxu0 %v7065
        %v7986 = vpop.f32.mrb[0].mxu0
        %v7987 = vadd.f32 0.0, %v7986
        %v7988 = vpop.f32.mrb[0].mxu0
        %v7989 = vadd.f32 0.0, %v7988
        %v7990 = vpop.f32.mrb[0].mxu0
        %v7991 = vadd.f32 0.0, %v7990
        %v7992 = vpop.f32.mrb[0].mxu0
        %v7993 = vadd.f32 0.0, %v7992
        %7994 = vmatprep.mubr.bf16.mxu0 0
        %7995 = vmatmul.mubr.bf16.gmra.mrb[0].mxu0 %v7068
        %v7996 = vpop.f32.mrb[0].mxu0
        %v7997 = vadd.f32 0.0, %v7996
        %v7998 = vpop.f32.mrb[0].mxu0
        %v7999 = vadd.f32 0.0, %v7998
        %v8000 = vpop.f32.mrb[0].mxu0
        %v8001 = vadd.f32 0.0, %v8000
        %v8002 = vpop.f32.mrb[0].mxu0
        %v8003 = vadd.f32 0.0, %v8002
        %8004 = vmatprep.mubr.bf16.mxu0 0
        %8005 = vmatmul.mubr.bf16.gmra.mrb[0].mxu0 %v7071
        %v8006 = vpop.f32.mrb[0].mxu0
        %v8007 = vadd.f32 0.0, %v8006
        %v8008 = vpop.f32.mrb[0].mxu0
        %v8009 = vadd.f32 0.0, %v8008
        %v8010 = vpop.f32.mrb[0].mxu0
        %v8011 = vadd.f32 0.0, %v8010
        %v8012 = vpop.f32.mrb[0].mxu0
        %v8013 = vadd.f32 0.0, %v8012
        %8014 = vmatprep.mubr.bf16.mxu0 0
        %8015 = vmatmul.mubr.bf16.gmra.mrb[0].mxu0 %v7074
        %v8016 = vpop.f32.mrb[0].mxu0
        %v8017 = vadd.f32 0.0, %v8016
        %v8018 = vpop.f32.mrb[0].mxu0
        %v8019 = vadd.f32 0.0, %v8018
        %v8020 = vpop.f32.mrb[0].mxu0
        %v8021 = vadd.f32 0.0, %v8020
        %v8022 = vpop.f32.mrb[0].mxu0
        %v8023 = vadd.f32 0.0, %v8022
        %8024 = vmatprep.mubr.bf16.mxu0 0
        %8025 = vmatmul.mubr.bf16.gmra.mrb[0].mxu0 %v7077
        %v8026 = vpop.f32.mrb[0].mxu0
        %v8027 = vadd.f32 0.0, %v8026
        %v8028 = vpop.f32.mrb[0].mxu0
        %v8029 = vadd.f32 0.0, %v8028
        %v8030 = vpop.f32.mrb[0].mxu0
        %v8031 = vadd.f32 0.0, %v8030
        %v8032 = vpop.f32.mrb[0].mxu0
        %v8033 = vadd.f32 0.0, %v8032
        %8034 = vmatprep.mubr.bf16.mxu0 0
        %8035 = vmatmul.mubr.bf16.gmra.mrb[0].mxu0 %v7080
        %v8036 = vpop.f32.mrb[0].mxu0
        %v8037 = vadd.f32 0.0, %v8036
        %v8038 = vpop.f32.mrb[0].mxu0
        %v8039 = vadd.f32 0.0, %v8038
        %v8040 = vpop.f32.mrb[0].mxu0
        %v8041 = vadd.f32 0.0, %v8040
        %v8042 = vpop.f32.mrb[0].mxu0
        %v8043 = vadd.f32 0.0, %v8042
        %8044 = vmatprep.mubr.bf16.mxu0 0
        %8045 = vmatmul.mubr.bf16.gmra.mrb[0].mxu0 %v7083
        %v8046 = vpop.f32.mrb[0].mxu0
        %v8047 = vadd.f32 0.0, %v8046
        %v8048 = vpop.f32.mrb[0].mxu0
        %v8049 = vadd.f32 0.0, %v8048
        %v8050 = vpop.f32.mrb[0].mxu0
        %v8051 = vadd.f32 0.0, %v8050
        %v8052 = vpop.f32.mrb[0].mxu0
        %v8053 = vadd.f32 0.0, %v8052
        %8054 = vmatprep.mubr.bf16.mxu0 0
        %8055 = vmatmul.mubr.bf16.gmra.mrb[0].mxu0 %v7086
        %v8056 = vpop.f32.mrb[0].mxu0
        %v8057 = vadd.f32 0.0, %v8056
        %v8058 = vpop.f32.mrb[0].mxu0
        %v8059 = vadd.f32 0.0, %v8058
        %v8060 = vpop.f32.mrb[0].mxu0
        %v8061 = vadd.f32 0.0, %v8060
        %v8062 = vpop.f32.mrb[0].mxu0
        %v8063 = vadd.f32 0.0, %v8062
        %8064 = vmatprep.mubr.bf16.mxu0 0
        %8065 = vmatmul.mubr.bf16.gmra.mrb[0].mxu0 %v7089
        %v8066 = vpop.f32.mrb[0].mxu0
        %v8067 = vadd.f32 0.0, %v8066
        %v8068 = vpop.f32.mrb[0].mxu0
        %v8069 = vadd.f32 0.0, %v8068
        %v8070 = vpop.f32.mrb[0].mxu0
        %v8071 = vadd.f32 0.0, %v8070
        %v8072 = vpop.f32.mrb[0].mxu0
        %v8073 = vadd.f32 0.0, %v8072
        %8074 = vmatprep.mubr.bf16.mxu0 0
        %8075 = vmatmul.mubr.bf16.gmra.mrb[0].mxu0 %v7092
        %v8076 = vpop.f32.mrb[0].mxu0
        %v8077 = vadd.f32 0.0, %v8076
        %v8078 = vpop.f32.mrb[0].mxu0
        %v8079 = vadd.f32 0.0, %v8078
        %v8080 = vpop.f32.mrb[0].mxu0
        %v8081 = vadd.f32 0.0, %v8080
        %v8082 = vpop.f32.mrb[0].mxu0
        %v8083 = vadd.f32 0.0, %v8082
        %8084 = vmatprep.mubr.bf16.mxu0 0
        %8085 = vmatmul.mubr.bf16.gmra.mrb[0].mxu0 %v7095
        %v8086 = vpop.f32.mrb[0].mxu0
        %v8087 = vadd.f32 0.0, %v8086
        %v8088 = vpop.f32.mrb[0].mxu0
        %v8089 = vadd.f32 0.0, %v8088
        %v8090 = vpop.f32.mrb[0].mxu0
        %v8091 = vadd.f32 0.0, %v8090
        %v8092 = vpop.f32.mrb[0].mxu0
        %v8093 = vadd.f32 0.0, %v8092
        %8094 = vmatprep.mubr.bf16.mxu0 0
        %8095 = vmatmul.mubr.bf16.gmra.mrb[0].mxu0 %v7098
        %v8096 = vpop.f32.mrb[0].mxu0
        %v8097 = vadd.f32 0.0, %v8096
        %v8098 = vpop.f32.mrb[0].mxu0
        %v8099 = vadd.f32 0.0, %v8098
        %v8100 = vpop.f32.mrb[0].mxu0
        %v8101 = vadd.f32 0.0, %v8100
        %v8102 = vpop.f32.mrb[0].mxu0
        %v8103 = vadd.f32 0.0, %v8102
        %8104 = vmatprep.mubr.bf16.mxu0 0
        %8105 = vmatmul.mubr.bf16.gmra.mrb[0].mxu0 %v7101
        %v8106 = vpop.f32.mrb[0].mxu0
        %v8107 = vadd.f32 0.0, %v8106
        %v8108 = vpop.f32.mrb[0].mxu0
        %v8109 = vadd.f32 0.0, %v8108
        %v8110 = vpop.f32.mrb[0].mxu0
        %v8111 = vadd.f32 0.0, %v8110
        %v8112 = vpop.f32.mrb[0].mxu0
        %v8113 = vadd.f32 0.0, %v8112
        %8114 = vmatprep.mubr.bf16.mxu0 0
        %8115 = vmatmul.mubr.bf16.gmra.mrb[0].mxu0 %v7104
        %v8116 = vpop.f32.mrb[0].mxu0
        %v8117 = vadd.f32 0.0, %v8116
        %v8118 = vpop.f32.mrb[0].mxu0
        %v8119 = vadd.f32 0.0, %v8118
        %v8120 = vpop.f32.mrb[0].mxu0
        %v8121 = vadd.f32 0.0, %v8120
        %v8122 = vpop.f32.mrb[0].mxu0
        %v8123 = vadd.f32 0.0, %v8122
        %8124 = vmatprep.mubr.bf16.mxu0 0
        %8125 = vmatmul.mubr.bf16.gmra.mrb[0].mxu0 %v7107
        %v8126 = vpop.f32.mrb[0].mxu0
        %v8127 = vadd.f32 0.0, %v8126
        %v8128 = vpop.f32.mrb[0].mxu0
        %v8129 = vadd.f32 0.0, %v8128
        %v8130 = vpop.f32.mrb[0].mxu0
        %v8131 = vadd.f32 0.0, %v8130
        %v8132 = vpop.f32.mrb[0].mxu0
        %v8133 = vadd.f32 0.0, %v8132
        %8134 = vdwg.mxu0
        %v8135 = vmax.f32 %v7977, %v7979
        %8136 = vmax.xlane.f32.xlu0 %v8135
        %v8137 = vpop.xlane.xlu0 %8136
        %v8138 = vmax.f32 %v7981, %v7983
        %8139 = vmax.xlane.f32.xlu0 %v8138
        %v8140 = vpop.xlane.xlu0 %8139
        %v8141 = vmax.f32 %v7987, %v7989
        %8142 = vmax.xlane.f32.xlu0 %v8141
        %v8143 = vpop.xlane.xlu0 %8142
        %v8144 = vmax.f32 %v7991, %v7993
        %8145 = vmax.xlane.f32.xlu0 %v8144
        %v8146 = vpop.xlane.xlu0 %8145
        %v8147 = vmax.f32 %v7997, %v7999
        %8148 = vmax.xlane.f32.xlu0 %v8147
        %v8149 = vpop.xlane.xlu0 %8148
        %v8150 = vmax.f32 %v8001, %v8003
        %8151 = vmax.xlane.f32.xlu0 %v8150
        %v8152 = vpop.xlane.xlu0 %8151
        %v8153 = vmax.f32 %v8007, %v8009
        %8154 = vmax.xlane.f32.xlu0 %v8153
        %v8155 = vpop.xlane.xlu0 %8154
        %v8156 = vmax.f32 %v8011, %v8013
        %8157 = vmax.xlane.f32.xlu0 %v8156
        %v8158 = vpop.xlane.xlu0 %8157
        %v8159 = vmax.f32 %v8017, %v8019
        %8160 = vmax.xlane.f32.xlu0 %v8159
        %v8161 = vpop.xlane.xlu0 %8160
        %v8162 = vmax.f32 %v8021, %v8023
        %8163 = vmax.xlane.f32.xlu0 %v8162
        %v8164 = vpop.xlane.xlu0 %8163
        %v8165 = vmax.f32 %v8027, %v8029
        %8166 = vmax.xlane.f32.xlu0 %v8165
        %v8167 = vpop.xlane.xlu0 %8166
        %v8168 = vmax.f32 %v8031, %v8033
        %8169 = vmax.xlane.f32.xlu0 %v8168
        %v8170 = vpop.xlane.xlu0 %8169
        %v8171 = vmax.f32 %v8037, %v8039
        %8172 = vmax.xlane.f32.xlu0 %v8171
        %v8173 = vpop.xlane.xlu0 %8172
        %v8174 = vmax.f32 %v8041, %v8043
        %8175 = vmax.xlane.f32.xlu0 %v8174
        %v8176 = vpop.xlane.xlu0 %8175
        %v8177 = vmax.f32 %v8047, %v8049
        %8178 = vmax.xlane.f32.xlu0 %v8177
        %v8179 = vpop.xlane.xlu0 %8178
        %v8180 = vmax.f32 %v8051, %v8053
        %8181 = vmax.xlane.f32.xlu0 %v8180
        %v8182 = vpop.xlane.xlu0 %8181
        %v8183 = vmax.f32 %v8057, %v8059
        %8184 = vmax.xlane.f32.xlu0 %v8183
        %v8185 = vpop.xlane.xlu0 %8184
        %v8186 = vmax.f32 %v8061, %v8063
        %8187 = vmax.xlane.f32.xlu0 %v8186
        %v8188 = vpop.xlane.xlu0 %8187
        %v8189 = vmax.f32 %v8067, %v8069
        %8190 = vmax.xlane.f32.xlu0 %v8189
        %v8191 = vpop.xlane.xlu0 %8190
        %v8192 = vmax.f32 %v8071, %v8073
        %8193 = vmax.xlane.f32.xlu0 %v8192
        %v8194 = vpop.xlane.xlu0 %8193
        %v8195 = vmax.f32 %v8077, %v8079
        %8196 = vmax.xlane.f32.xlu0 %v8195
        %v8197 = vpop.xlane.xlu0 %8196
        %v8198 = vmax.f32 %v8081, %v8083
        %8199 = vmax.xlane.f32.xlu0 %v8198
        %v8200 = vpop.xlane.xlu0 %8199
        %v8201 = vmax.f32 %v8087, %v8089
        %8202 = vmax.xlane.f32.xlu0 %v8201
        %v8203 = vpop.xlane.xlu0 %8202
        %v8204 = vmax.f32 %v8091, %v8093
        %8205 = vmax.xlane.f32.xlu0 %v8204
        %v8206 = vpop.xlane.xlu0 %8205
        %v8207 = vmax.f32 %v8097, %v8099
        %8208 = vmax.xlane.f32.xlu0 %v8207
        %v8209 = vpop.xlane.xlu0 %8208
        %v8210 = vmax.f32 %v8101, %v8103
        %8211 = vmax.xlane.f32.xlu0 %v8210
        %v8212 = vpop.xlane.xlu0 %8211
        %v8213 = vmax.f32 %v8107, %v8109
        %8214 = vmax.xlane.f32.xlu0 %v8213
        %v8215 = vpop.xlane.xlu0 %8214
        %v8216 = vmax.f32 %v8111, %v8113
        %8217 = vmax.xlane.f32.xlu0 %v8216
        %v8218 = vpop.xlane.xlu0 %8217
        %v8219 = vmax.f32 %v8117, %v8119
        %8220 = vmax.xlane.f32.xlu0 %v8219
        %v8221 = vpop.xlane.xlu0 %8220
        %v8222 = vmax.f32 %v8121, %v8123
        %8223 = vmax.xlane.f32.xlu0 %v8222
        %v8224 = vpop.xlane.xlu0 %8223
        %v8225 = vmax.f32 %v8127, %v8129
        %8226 = vmax.xlane.f32.xlu0 %v8225
        %v8227 = vpop.xlane.xlu0 %8226
        %v8228 = vmax.f32 %v8131, %v8133
        %8229 = vmax.xlane.f32.xlu0 %v8228
        %v8230 = vpop.xlane.xlu0 %8229
        %v8231 = vsub.f32 %v7977, %v8137
        %v8232 = vsub.f32 %v7979, %v8137
        %v8233 = vsub.f32 %v7981, %v8140
        %v8234 = vsub.f32 %v7983, %v8140
        %v8235 = vsub.f32 %v7987, %v8143
        %v8236 = vsub.f32 %v7989, %v8143
        %v8237 = vsub.f32 %v7991, %v8146
        %v8238 = vsub.f32 %v7993, %v8146
        %v8239 = vsub.f32 %v7997, %v8149
        %v8240 = vsub.f32 %v7999, %v8149
        %v8241 = vsub.f32 %v8001, %v8152
        %v8242 = vsub.f32 %v8003, %v8152
        %v8243 = vsub.f32 %v8007, %v8155
        %v8244 = vsub.f32 %v8009, %v8155
        %v8245 = vsub.f32 %v8011, %v8158
        %v8246 = vsub.f32 %v8013, %v8158
        %v8247 = vsub.f32 %v8017, %v8161
        %v8248 = vsub.f32 %v8019, %v8161
        %v8249 = vsub.f32 %v8021, %v8164
        %v8250 = vsub.f32 %v8023, %v8164
        %v8251 = vsub.f32 %v8027, %v8167
        %v8252 = vsub.f32 %v8029, %v8167
        %v8253 = vsub.f32 %v8031, %v8170
        %v8254 = vsub.f32 %v8033, %v8170
        %v8255 = vsub.f32 %v8037, %v8173
        %v8256 = vsub.f32 %v8039, %v8173
        %v8257 = vsub.f32 %v8041, %v8176
        %v8258 = vsub.f32 %v8043, %v8176
        %v8259 = vsub.f32 %v8047, %v8179
        %v8260 = vsub.f32 %v8049, %v8179
        %v8261 = vsub.f32 %v8051, %v8182
        %v8262 = vsub.f32 %v8053, %v8182
        %v8263 = vsub.f32 %v8057, %v8185
        %v8264 = vsub.f32 %v8059, %v8185
        %v8265 = vsub.f32 %v8061, %v8188
        %v8266 = vsub.f32 %v8063, %v8188
        %v8267 = vsub.f32 %v8067, %v8191
        %v8268 = vsub.f32 %v8069, %v8191
        %v8269 = vsub.f32 %v8071, %v8194
        %v8270 = vsub.f32 %v8073, %v8194
        %v8271 = vsub.f32 %v8077, %v8197
        %v8272 = vsub.f32 %v8079, %v8197
        %v8273 = vsub.f32 %v8081, %v8200
        %v8274 = vsub.f32 %v8083, %v8200
        %v8275 = vsub.f32 %v8087, %v8203
        %v8276 = vsub.f32 %v8089, %v8203
        %v8277 = vsub.f32 %v8091, %v8206
        %v8278 = vsub.f32 %v8093, %v8206
        %v8279 = vsub.f32 %v8097, %v8209
        %v8280 = vsub.f32 %v8099, %v8209
        %v8281 = vsub.f32 %v8101, %v8212
        %v8282 = vsub.f32 %v8103, %v8212
        %v8283 = vsub.f32 %v8107, %v8215
        %v8284 = vsub.f32 %v8109, %v8215
        %v8285 = vsub.f32 %v8111, %v8218
        %v8286 = vsub.f32 %v8113, %v8218
        %v8287 = vsub.f32 %v8117, %v8221
        %v8288 = vsub.f32 %v8119, %v8221
        %v8289 = vsub.f32 %v8121, %v8224
        %v8290 = vsub.f32 %v8123, %v8224
        %v8291 = vsub.f32 %v8127, %v8227
        %v8292 = vsub.f32 %v8129, %v8227
        %v8293 = vsub.f32 %v8131, %v8230
        %v8294 = vsub.f32 %v8133, %v8230
        %v8295 = vmul.f32 %v8231, 1.442695
        %v8296 = vpow.pop %v8295
        %v8297 = vmul.f32 %v8232, 1.442695
        %v8298 = vpow.pop %v8297
        %v8299 = vmul.f32 %v8233, 1.442695
        %v8300 = vpow.pop %v8299
        %v8301 = vmul.f32 %v8234, 1.442695
        %v8302 = vpow.pop %v8301
        %v8303 = vmul.f32 %v8235, 1.442695
        %v8304 = vpow.pop %v8303
        %v8305 = vmul.f32 %v8236, 1.442695
        %v8306 = vpow.pop %v8305
        %v8307 = vmul.f32 %v8237, 1.442695
        %v8308 = vpow.pop %v8307
        %v8309 = vmul.f32 %v8238, 1.442695
        %v8310 = vpow.pop %v8309
        %v8311 = vmul.f32 %v8239, 1.442695
        %v8312 = vpow.pop %v8311
        %v8313 = vmul.f32 %v8240, 1.442695
        %v8314 = vpow.pop %v8313
        %v8315 = vmul.f32 %v8241, 1.442695
        %v8316 = vpow.pop %v8315
        %v8317 = vmul.f32 %v8242, 1.442695
        %v8318 = vpow.pop %v8317
        %v8319 = vmul.f32 %v8243, 1.442695
        %v8320 = vpow.pop %v8319
        %v8321 = vmul.f32 %v8244, 1.442695
        %v8322 = vpow.pop %v8321
        %v8323 = vmul.f32 %v8245, 1.442695
        %v8324 = vpow.pop %v8323
        %v8325 = vmul.f32 %v8246, 1.442695
        %v8326 = vpow.pop %v8325
        %v8327 = vmul.f32 %v8247, 1.442695
        %v8328 = vpow.pop %v8327
        %v8329 = vmul.f32 %v8248, 1.442695
        %v8330 = vpow.pop %v8329
        %v8331 = vmul.f32 %v8249, 1.442695
        %v8332 = vpow.pop %v8331
        %v8333 = vmul.f32 %v8250, 1.442695
        %v8334 = vpow.pop %v8333
        %v8335 = vmul.f32 %v8251, 1.442695
        %v8336 = vpow.pop %v8335
        %v8337 = vmul.f32 %v8252, 1.442695
        %v8338 = vpow.pop %v8337
        %v8339 = vmul.f32 %v8253, 1.442695
        %v8340 = vpow.pop %v8339
        %v8341 = vmul.f32 %v8254, 1.442695
        %v8342 = vpow.pop %v8341
        %v8343 = vmul.f32 %v8255, 1.442695
        %v8344 = vpow.pop %v8343
        %v8345 = vmul.f32 %v8256, 1.442695
        %v8346 = vpow.pop %v8345
        %v8347 = vmul.f32 %v8257, 1.442695
        %v8348 = vpow.pop %v8347
        %v8349 = vmul.f32 %v8258, 1.442695
        %v8350 = vpow.pop %v8349
        %v8351 = vmul.f32 %v8259, 1.442695
        %v8352 = vpow.pop %v8351
        %v8353 = vmul.f32 %v8260, 1.442695
        %v8354 = vpow.pop %v8353
        %v8355 = vmul.f32 %v8261, 1.442695
        %v8356 = vpow.pop %v8355
        %v8357 = vmul.f32 %v8262, 1.442695
        %v8358 = vpow.pop %v8357
        %v8359 = vmul.f32 %v8263, 1.442695
        %v8360 = vpow.pop %v8359
        %v8361 = vmul.f32 %v8264, 1.442695
        %v8362 = vpow.pop %v8361
        %v8363 = vmul.f32 %v8265, 1.442695
        %v8364 = vpow.pop %v8363
        %v8365 = vmul.f32 %v8266, 1.442695
        %v8366 = vpow.pop %v8365
        %v8367 = vmul.f32 %v8267, 1.442695
        %v8368 = vpow.pop %v8367
        %v8369 = vmul.f32 %v8268, 1.442695
        %v8370 = vpow.pop %v8369
        %v8371 = vmul.f32 %v8269, 1.442695
        %v8372 = vpow.pop %v8371
        %v8373 = vmul.f32 %v8270, 1.442695
        %v8374 = vpow.pop %v8373
        %v8375 = vmul.f32 %v8271, 1.442695
        %v8376 = vpow.pop %v8375
        %v8377 = vmul.f32 %v8272, 1.442695
        %v8378 = vpow.pop %v8377
        %v8379 = vmul.f32 %v8273, 1.442695
        %v8380 = vpow.pop %v8379
        %v8381 = vmul.f32 %v8274, 1.442695
        %v8382 = vpow.pop %v8381
        %v8383 = vmul.f32 %v8275, 1.442695
        %v8384 = vpow.pop %v8383
        %v8385 = vmul.f32 %v8276, 1.442695
        %v8386 = vpow.pop %v8385
        %v8387 = vmul.f32 %v8277, 1.442695
        %v8388 = vpow.pop %v8387
        %v8389 = vmul.f32 %v8278, 1.442695
        %v8390 = vpow.pop %v8389
        %v8391 = vmul.f32 %v8279, 1.442695
        %v8392 = vpow.pop %v8391
        %v8393 = vmul.f32 %v8280, 1.442695
        %v8394 = vpow.pop %v8393
        %v8395 = vmul.f32 %v8281, 1.442695
        %v8396 = vpow.pop %v8395
        %v8397 = vmul.f32 %v8282, 1.442695
        %v8398 = vpow.pop %v8397
        %v8399 = vmul.f32 %v8283, 1.442695
        %v8400 = vpow.pop %v8399
        %v8401 = vmul.f32 %v8284, 1.442695
        %v8402 = vpow.pop %v8401
        %v8403 = vmul.f32 %v8285, 1.442695
        %v8404 = vpow.pop %v8403
        %v8405 = vmul.f32 %v8286, 1.442695
        %v8406 = vpow.pop %v8405
        %v8407 = vmul.f32 %v8287, 1.442695
        %v8408 = vpow.pop %v8407
        %v8409 = vmul.f32 %v8288, 1.442695
        %v8410 = vpow.pop %v8409
        %v8411 = vmul.f32 %v8289, 1.442695
        %v8412 = vpow.pop %v8411
        %v8413 = vmul.f32 %v8290, 1.442695
        %v8414 = vpow.pop %v8413
        %v8415 = vmul.f32 %v8291, 1.442695
        %v8416 = vpow.pop %v8415
        %v8417 = vmul.f32 %v8292, 1.442695
        %v8418 = vpow.pop %v8417
        %v8419 = vmul.f32 %v8293, 1.442695
        %v8420 = vpow.pop %v8419
        %v8421 = vmul.f32 %v8294, 1.442695
        %v8422 = vpow.pop %v8421
        %v8423 = vadd.f32 %v8296, %v8298
        %8424 = vadd.xlane.f32.xlu0 %v8423
        %v8425 = vpop.xlane.xlu0 %8424
        %v8426 = vadd.f32 %v8300, %v8302
        %8427 = vadd.xlane.f32.xlu0 %v8426
        %v8428 = vpop.xlane.xlu0 %8427
        %v8429 = vadd.f32 %v8304, %v8306
        %8430 = vadd.xlane.f32.xlu0 %v8429
        %v8431 = vpop.xlane.xlu0 %8430
        %v8432 = vadd.f32 %v8308, %v8310
        %8433 = vadd.xlane.f32.xlu0 %v8432
        %v8434 = vpop.xlane.xlu0 %8433
        %v8435 = vadd.f32 %v8312, %v8314
        %8436 = vadd.xlane.f32.xlu0 %v8435
        %v8437 = vpop.xlane.xlu0 %8436
        %v8438 = vadd.f32 %v8316, %v8318
        %8439 = vadd.xlane.f32.xlu0 %v8438
        %v8440 = vpop.xlane.xlu0 %8439
        %v8441 = vadd.f32 %v8320, %v8322
        %8442 = vadd.xlane.f32.xlu0 %v8441
        %v8443 = vpop.xlane.xlu0 %8442
        %v8444 = vadd.f32 %v8324, %v8326
        %8445 = vadd.xlane.f32.xlu0 %v8444
        %v8446 = vpop.xlane.xlu0 %8445
        %v8447 = vadd.f32 %v8328, %v8330
        %8448 = vadd.xlane.f32.xlu0 %v8447
        %v8449 = vpop.xlane.xlu0 %8448
        %v8450 = vadd.f32 %v8332, %v8334
        %8451 = vadd.xlane.f32.xlu0 %v8450
        %v8452 = vpop.xlane.xlu0 %8451
        %v8453 = vadd.f32 %v8336, %v8338
        %8454 = vadd.xlane.f32.xlu0 %v8453
        %v8455 = vpop.xlane.xlu0 %8454
        %v8456 = vadd.f32 %v8340, %v8342
        %8457 = vadd.xlane.f32.xlu0 %v8456
        %v8458 = vpop.xlane.xlu0 %8457
        %v8459 = vadd.f32 %v8344, %v8346
        %8460 = vadd.xlane.f32.xlu0 %v8459
        %v8461 = vpop.xlane.xlu0 %8460
        %v8462 = vadd.f32 %v8348, %v8350
        %8463 = vadd.xlane.f32.xlu0 %v8462
        %v8464 = vpop.xlane.xlu0 %8463
        %v8465 = vadd.f32 %v8352, %v8354
        %8466 = vadd.xlane.f32.xlu0 %v8465
        %v8467 = vpop.xlane.xlu0 %8466
        %v8468 = vadd.f32 %v8356, %v8358
        %8469 = vadd.xlane.f32.xlu0 %v8468
        %v8470 = vpop.xlane.xlu0 %8469
        %v8471 = vadd.f32 %v8360, %v8362
        %8472 = vadd.xlane.f32.xlu0 %v8471
        %v8473 = vpop.xlane.xlu0 %8472
        %v8474 = vadd.f32 %v8364, %v8366
        %8475 = vadd.xlane.f32.xlu0 %v8474
        %v8476 = vpop.xlane.xlu0 %8475
        %v8477 = vadd.f32 %v8368, %v8370
        %8478 = vadd.xlane.f32.xlu0 %v8477
        %v8479 = vpop.xlane.xlu0 %8478
        %v8480 = vadd.f32 %v8372, %v8374
        %8481 = vadd.xlane.f32.xlu0 %v8480
        %v8482 = vpop.xlane.xlu0 %8481
        %v8483 = vadd.f32 %v8376, %v8378
        %8484 = vadd.xlane.f32.xlu0 %v8483
        %v8485 = vpop.xlane.xlu0 %8484
        %v8486 = vadd.f32 %v8380, %v8382
        %8487 = vadd.xlane.f32.xlu0 %v8486
        %v8488 = vpop.xlane.xlu0 %8487
        %v8489 = vadd.f32 %v8384, %v8386
        %8490 = vadd.xlane.f32.xlu0 %v8489
        %v8491 = vpop.xlane.xlu0 %8490
        %v8492 = vadd.f32 %v8388, %v8390
        %8493 = vadd.xlane.f32.xlu0 %v8492
        %v8494 = vpop.xlane.xlu0 %8493
        %v8495 = vadd.f32 %v8392, %v8394
        %8496 = vadd.xlane.f32.xlu0 %v8495
        %v8497 = vpop.xlane.xlu0 %8496
        %v8498 = vadd.f32 %v8396, %v8398
        %8499 = vadd.xlane.f32.xlu0 %v8498
        %v8500 = vpop.xlane.xlu0 %8499
        %v8501 = vadd.f32 %v8400, %v8402
        %8502 = vadd.xlane.f32.xlu0 %v8501
        %v8503 = vpop.xlane.xlu0 %8502
        %v8504 = vadd.f32 %v8404, %v8406
        %8505 = vadd.xlane.f32.xlu0 %v8504
        %v8506 = vpop.xlane.xlu0 %8505
        %v8507 = vadd.f32 %v8408, %v8410
        %8508 = vadd.xlane.f32.xlu0 %v8507
        %v8509 = vpop.xlane.xlu0 %8508
        %v8510 = vadd.f32 %v8412, %v8414
        %8511 = vadd.xlane.f32.xlu0 %v8510
        %v8512 = vpop.xlane.xlu0 %8511
        %v8513 = vadd.f32 %v8416, %v8418
        %8514 = vadd.xlane.f32.xlu0 %v8513
        %v8515 = vpop.xlane.xlu0 %8514
        %v8516 = vadd.f32 %v8420, %v8422
        %8517 = vadd.xlane.f32.xlu0 %v8516
        %v8518 = vpop.xlane.xlu0 %8517
        %v8519 = vrcp.pop %v8425
        %v8520 = vrcp.pop %v8428
        %v8521 = vrcp.pop %v8431
        %v8522 = vrcp.pop %v8434
        %v8523 = vrcp.pop %v8437
        %v8524 = vrcp.pop %v8440
        %v8525 = vrcp.pop %v8443
        %v8526 = vrcp.pop %v8446
        %v8527 = vrcp.pop %v8449
        %v8528 = vrcp.pop %v8452
        %v8529 = vrcp.pop %v8455
        %v8530 = vrcp.pop %v8458
        %v8531 = vrcp.pop %v8461
        %v8532 = vrcp.pop %v8464
        %v8533 = vrcp.pop %v8467
        %v8534 = vrcp.pop %v8470
        %v8535 = vrcp.pop %v8473
        %v8536 = vrcp.pop %v8476
        %v8537 = vrcp.pop %v8479
        %v8538 = vrcp.pop %v8482
        %v8539 = vrcp.pop %v8485
        %v8540 = vrcp.pop %v8488
        %v8541 = vrcp.pop %v8491
        %v8542 = vrcp.pop %v8494
        %v8543 = vrcp.pop %v8497
        %v8544 = vrcp.pop %v8500
        %v8545 = vrcp.pop %v8503
        %v8546 = vrcp.pop %v8506
        %v8547 = vrcp.pop %v8509
        %v8548 = vrcp.pop %v8512
        %v8549 = vrcp.pop %v8515
        %v8550 = vrcp.pop %v8518
        %v8551 = vmul.f32 %v8296, %v8519
        %v8552 = vmul.f32 %v8298, %v8519
        %v8553 = vmul.f32 %v8300, %v8520
        %v8554 = vmul.f32 %v8302, %v8520
        %v8555 = vmul.f32 %v8304, %v8521
        %v8556 = vmul.f32 %v8306, %v8521
        %v8557 = vmul.f32 %v8308, %v8522
        %v8558 = vmul.f32 %v8310, %v8522
        %v8559 = vmul.f32 %v8312, %v8523
        %v8560 = vmul.f32 %v8314, %v8523
        %v8561 = vmul.f32 %v8316, %v8524
        %v8562 = vmul.f32 %v8318, %v8524
        %v8563 = vmul.f32 %v8320, %v8525
        %v8564 = vmul.f32 %v8322, %v8525
        %v8565 = vmul.f32 %v8324, %v8526
        %v8566 = vmul.f32 %v8326, %v8526
        %v8567 = vmul.f32 %v8328, %v8527
        %v8568 = vmul.f32 %v8330, %v8527
        %v8569 = vmul.f32 %v8332, %v8528
        %v8570 = vmul.f32 %v8334, %v8528
        %v8571 = vmul.f32 %v8336, %v8529
        %v8572 = vmul.f32 %v8338, %v8529
        %v8573 = vmul.f32 %v8340, %v8530
        %v8574 = vmul.f32 %v8342, %v8530
        %v8575 = vmul.f32 %v8344, %v8531
        %v8576 = vmul.f32 %v8346, %v8531
        %v8577 = vmul.f32 %v8348, %v8532
        %v8578 = vmul.f32 %v8350, %v8532
        %v8579 = vmul.f32 %v8352, %v8533
        %v8580 = vmul.f32 %v8354, %v8533
        %v8581 = vmul.f32 %v8356, %v8534
        %v8582 = vmul.f32 %v8358, %v8534
        %v8583 = vmul.f32 %v8360, %v8535
        %v8584 = vmul.f32 %v8362, %v8535
        %v8585 = vmul.f32 %v8364, %v8536
        %v8586 = vmul.f32 %v8366, %v8536
        %v8587 = vmul.f32 %v8368, %v8537
        %v8588 = vmul.f32 %v8370, %v8537
        %v8589 = vmul.f32 %v8372, %v8538
        %v8590 = vmul.f32 %v8374, %v8538
        %v8591 = vmul.f32 %v8376, %v8539
        %v8592 = vmul.f32 %v8378, %v8539
        %v8593 = vmul.f32 %v8380, %v8540
        %v8594 = vmul.f32 %v8382, %v8540
        %v8595 = vmul.f32 %v8384, %v8541
        %v8596 = vmul.f32 %v8386, %v8541
        %v8597 = vmul.f32 %v8388, %v8542
        %v8598 = vmul.f32 %v8390, %v8542
        %v8599 = vmul.f32 %v8392, %v8543
        %v8600 = vmul.f32 %v8394, %v8543
        %v8601 = vmul.f32 %v8396, %v8544
        %v8602 = vmul.f32 %v8398, %v8544
        %v8603 = vmul.f32 %v8400, %v8545
        %v8604 = vmul.f32 %v8402, %v8545
        %v8605 = vmul.f32 %v8404, %v8546
        %v8606 = vmul.f32 %v8406, %v8546
        %v8607 = vmul.f32 %v8408, %v8547
        %v8608 = vmul.f32 %v8410, %v8547
        %v8609 = vmul.f32 %v8412, %v8548
        %v8610 = vmul.f32 %v8414, %v8548
        %v8611 = vmul.f32 %v8416, %v8549
        %v8612 = vmul.f32 %v8418, %v8549
        %v8613 = vmul.f32 %v8420, %v8550
        %v8614 = vmul.f32 %v8422, %v8550
        %v8615 = vpack.c.bf16 %v8553, %v8551
        %v8616 = vpack.c.bf16 %v8554, %v8552
        %v8617 = vpack.c.bf16 %v8557, %v8555
        %v8618 = vpack.c.bf16 %v8558, %v8556
        %v8619 = vpack.c.bf16 %v8561, %v8559
        %v8620 = vpack.c.bf16 %v8562, %v8560
        %v8621 = vpack.c.bf16 %v8565, %v8563
        %v8622 = vpack.c.bf16 %v8566, %v8564
        %v8623 = vpack.c.bf16 %v8569, %v8567
        %v8624 = vpack.c.bf16 %v8570, %v8568
        %v8625 = vpack.c.bf16 %v8573, %v8571
        %v8626 = vpack.c.bf16 %v8574, %v8572
        %v8627 = vpack.c.bf16 %v8577, %v8575
        %v8628 = vpack.c.bf16 %v8578, %v8576
        %v8629 = vpack.c.bf16 %v8581, %v8579
        %v8630 = vpack.c.bf16 %v8582, %v8580
        %v8631 = vpack.c.bf16 %v8585, %v8583
        %v8632 = vpack.c.bf16 %v8586, %v8584
        %v8633 = vpack.c.bf16 %v8589, %v8587
        %v8634 = vpack.c.bf16 %v8590, %v8588
        %v8635 = vpack.c.bf16 %v8593, %v8591
        %v8636 = vpack.c.bf16 %v8594, %v8592
        %v8637 = vpack.c.bf16 %v8597, %v8595
        %v8638 = vpack.c.bf16 %v8598, %v8596
        %v8639 = vpack.c.bf16 %v8601, %v8599
        %v8640 = vpack.c.bf16 %v8602, %v8600
        %v8641 = vpack.c.bf16 %v8605, %v8603
        %v8642 = vpack.c.bf16 %v8606, %v8604
        %v8643 = vpack.c.bf16 %v8609, %v8607
        %v8644 = vpack.c.bf16 %v8610, %v8608
        %v8645 = vpack.c.bf16 %v8613, %v8611
        %v8646 = vpack.c.bf16 %v8614, %v8612
        %v8647 = vpack.c.bf16 %v6844, %v6840
        %v8648 = vpack.c.bf16 %v6854, %v6850
        %v8649 = vpack.c.bf16 %v6864, %v6860
        %v8650 = vpack.c.bf16 %v6874, %v6870
        %v8651 = vpack.c.bf16 %v6884, %v6880
        %v8652 = vpack.c.bf16 %v6894, %v6890
        %v8653 = vpack.c.bf16 %v6904, %v6900
        %v8654 = vpack.c.bf16 %v6914, %v6910
        %v8655 = vpack.c.bf16 %v6924, %v6920
        %v8656 = vpack.c.bf16 %v6934, %v6930
        %v8657 = vpack.c.bf16 %v6944, %v6940
        %v8658 = vpack.c.bf16 %v6954, %v6950
        %v8659 = vpack.c.bf16 %v6964, %v6960
        %v8660 = vpack.c.bf16 %v6974, %v6970
        %v8661 = vpack.c.bf16 %v6984, %v6980
        %v8662 = vpack.c.bf16 %v6994, %v6990
        %8679 = vrot.lane.b32.xlu0 %v6996, 16
        %v8680 = vpop.permute.xlu0 %8679
        %8681 = vrot.lane.b32.xlu0 %v8647, 16
        %v8682 = vpop.permute.xlu0 %8681
        %8683 = vrot.lane.b32.xlu0 %v6997, 16
        %v8684 = vpop.permute.xlu0 %8683
        %8685 = vrot.lane.b32.xlu0 %v8648, 16
        %v8686 = vpop.permute.xlu0 %8685
        %8687 = vrot.lane.b32.xlu0 %v6998, 16
        %v8688 = vpop.permute.xlu0 %8687
        %8689 = vrot.lane.b32.xlu0 %v8649, 16
        %v8690 = vpop.permute.xlu0 %8689
        %8691 = vrot.lane.b32.xlu0 %v6999, 16
        %v8692 = vpop.permute.xlu0 %8691
        %8693 = vrot.lane.b32.xlu0 %v8650, 16
        %v8694 = vpop.permute.xlu0 %8693
        %8695 = vrot.lane.b32.xlu0 %v7000, 16
        %v8696 = vpop.permute.xlu0 %8695
        %8697 = vrot.lane.b32.xlu0 %v8651, 16
        %v8698 = vpop.permute.xlu0 %8697
        %8699 = vrot.lane.b32.xlu0 %v7001, 16
        %v8700 = vpop.permute.xlu0 %8699
        %8701 = vrot.lane.b32.xlu0 %v8652, 16
        %v8702 = vpop.permute.xlu0 %8701
        %8703 = vrot.lane.b32.xlu0 %v7002, 16
        %v8704 = vpop.permute.xlu0 %8703
        %8705 = vrot.lane.b32.xlu0 %v8653, 16
        %v8706 = vpop.permute.xlu0 %8705
        %8707 = vrot.lane.b32.xlu0 %v7003, 16
        %v8708 = vpop.permute.xlu0 %8707
        %8709 = vrot.lane.b32.xlu0 %v8654, 16
        %v8710 = vpop.permute.xlu0 %8709
        %8711 = vrot.lane.b32.xlu0 %v7004, 16
        %v8712 = vpop.permute.xlu0 %8711
        %8713 = vrot.lane.b32.xlu0 %v8655, 16
        %v8714 = vpop.permute.xlu0 %8713
        %8715 = vrot.lane.b32.xlu0 %v7005, 16
        %v8716 = vpop.permute.xlu0 %8715
        %8717 = vrot.lane.b32.xlu0 %v8656, 16
        %v8718 = vpop.permute.xlu0 %8717
        %8719 = vrot.lane.b32.xlu0 %v7006, 16
        %v8720 = vpop.permute.xlu0 %8719
        %8721 = vrot.lane.b32.xlu0 %v8657, 16
        %v8722 = vpop.permute.xlu0 %8721
        %8723 = vrot.lane.b32.xlu0 %v7007, 16
        %v8724 = vpop.permute.xlu0 %8723
        %8725 = vrot.lane.b32.xlu0 %v8658, 16
        %v8726 = vpop.permute.xlu0 %8725
        %8727 = vrot.lane.b32.xlu0 %v7008, 16
        %v8728 = vpop.permute.xlu0 %8727
        %8729 = vrot.lane.b32.xlu0 %v8659, 16
        %v8730 = vpop.permute.xlu0 %8729
        %8731 = vrot.lane.b32.xlu0 %v7009, 16
        %v8732 = vpop.permute.xlu0 %8731
        %8733 = vrot.lane.b32.xlu0 %v8660, 16
        %v8734 = vpop.permute.xlu0 %8733
        %8735 = vrot.lane.b32.xlu0 %v7010, 16
        %v8736 = vpop.permute.xlu0 %8735
        %8737 = vrot.lane.b32.xlu0 %v8661, 16
        %v8738 = vpop.permute.xlu0 %8737
        %8739 = vrot.lane.b32.xlu0 %v7011, 16
        %v8740 = vpop.permute.xlu0 %8739
        %8741 = vrot.lane.b32.xlu0 %v8662, 16
        %v8742 = vpop.permute.xlu0 %8741
        %vm8743 = vcmask 130048
        %v8744 = vsel %vm8743, %v8680, %v8682
        %v8745 = vsel %vm8743, %v8684, %v8686
        %v8746 = vsel %vm8743, %v8688, %v8690
        %v8747 = vsel %vm8743, %v8692, %v8694
        %v8748 = vsel %vm8743, %v8696, %v8698
        %v8749 = vsel %vm8743, %v8700, %v8702
        %v8750 = vsel %vm8743, %v8704, %v8706
        %v8751 = vsel %vm8743, %v8708, %v8710
        %v8752 = vsel %vm8743, %v8712, %v8714
        %v8753 = vsel %vm8743, %v8716, %v8718
        %v8754 = vsel %vm8743, %v8720, %v8722
        %v8755 = vsel %vm8743, %v8724, %v8726
        %v8756 = vsel %vm8743, %v8728, %v8730
        %v8757 = vsel %vm8743, %v8732, %v8734
        %v8758 = vsel %vm8743, %v8736, %v8738
        %v8759 = vsel %vm8743, %v8740, %v8742
        %8776 = vmatprep.subr.bf16.mxu0 0
        %8777 = vmatpush1.bf16.msra.mxu0 %v8744
        %8778 = vmatprep.subr.bf16.mxu0 0
        %8779 = vmatpush1.bf16.msra.mxu0 %v8745
        %8780 = vmatprep.subr.bf16.mxu0 0
        %8781 = vmatpush1.bf16.msra.mxu0 %v8746
        %8782 = vmatprep.subr.bf16.mxu0 0
        %8783 = vmatpush1.bf16.msra.mxu0 %v8747
        %8784 = vmatprep.subr.bf16.mxu0 0
        %8785 = vmatpush1.bf16.msra.mxu0 %v8748
        %8786 = vmatprep.subr.bf16.mxu0 0
        %8787 = vmatpush1.bf16.msra.mxu0 %v8749
        %8788 = vmatprep.subr.bf16.mxu0 0
        %8789 = vmatpush1.bf16.msra.mxu0 %v8750
        %8790 = vmatprep.subr.bf16.mxu0 0
        %8791 = vmatpush1.bf16.msra.mxu0 %v8751
        %8792 = vmatprep.subr.bf16.mxu0 0
        %8793 = vmatpush1.bf16.msra.mxu0 %v8752
        %8794 = vmatprep.subr.bf16.mxu0 0
        %8795 = vmatpush1.bf16.msra.mxu0 %v8753
        %8796 = vmatprep.subr.bf16.mxu0 0
        %8797 = vmatpush1.bf16.msra.mxu0 %v8754
        %8798 = vmatprep.subr.bf16.mxu0 0
        %8799 = vmatpush1.bf16.msra.mxu0 %v8755
        %8800 = vmatprep.subr.bf16.mxu0 0
        %8801 = vmatpush1.bf16.msra.mxu0 %v8756
        %8802 = vmatprep.subr.bf16.mxu0 0
        %8803 = vmatpush1.bf16.msra.mxu0 %v8757
        %8804 = vmatprep.subr.bf16.mxu0 0
        %8805 = vmatpush1.bf16.msra.mxu0 %v8758
        %8806 = vmatprep.subr.bf16.mxu0 0
        %8807 = vmatpush1.bf16.msra.mxu0 %v8759
        %8808 = vmatprep.mubr.bf16.mxu0 %v8616
        %8809 = vmatmul.mubr.bf16.gmra.mrb[0].mxu0 %v8615
        %v8810 = vpop.f32.mrb[0].mxu0
        %v8811 = vadd.f32 0.0, %v8810
        %v8812 = vpop.f32.mrb[0].mxu0
        %v8813 = vpop.f32.mrb[0].mxu0
        %v8814 = vadd.f32 0.0, %v8813
        %v8815 = vpop.f32.mrb[0].mxu0
        %8816 = vmatprep.mubr.bf16.mxu0 %v8618
        %8817 = vmatmul.mubr.bf16.gmra.mrb[0].mxu0 %v8617
        %v8818 = vpop.f32.mrb[0].mxu0
        %v8819 = vadd.f32 0.0, %v8818
        %v8820 = vpop.f32.mrb[0].mxu0
        %v8821 = vpop.f32.mrb[0].mxu0
        %v8822 = vadd.f32 0.0, %v8821
        %v8823 = vpop.f32.mrb[0].mxu0
        %8824 = vmatprep.mubr.bf16.mxu0 %v8620
        %8825 = vmatmul.mubr.bf16.gmra.mrb[0].mxu0 %v8619
        %v8826 = vpop.f32.mrb[0].mxu0
        %v8827 = vadd.f32 0.0, %v8826
        %v8828 = vpop.f32.mrb[0].mxu0
        %v8829 = vpop.f32.mrb[0].mxu0
        %v8830 = vadd.f32 0.0, %v8829
        %v8831 = vpop.f32.mrb[0].mxu0
        %8832 = vmatprep.mubr.bf16.mxu0 %v8622
        %8833 = vmatmul.mubr.bf16.gmra.mrb[0].mxu0 %v8621
        %v8834 = vpop.f32.mrb[0].mxu0
        %v8835 = vadd.f32 0.0, %v8834
        %v8836 = vpop.f32.mrb[0].mxu0
        %v8837 = vpop.f32.mrb[0].mxu0
        %v8838 = vadd.f32 0.0, %v8837
        %v8839 = vpop.f32.mrb[0].mxu0
        %8840 = vmatprep.mubr.bf16.mxu0 %v8624
        %8841 = vmatmul.mubr.bf16.gmra.mrb[0].mxu0 %v8623
        %v8842 = vpop.f32.mrb[0].mxu0
        %v8843 = vadd.f32 0.0, %v8842
        %v8844 = vpop.f32.mrb[0].mxu0
        %v8845 = vpop.f32.mrb[0].mxu0
        %v8846 = vadd.f32 0.0, %v8845
        %v8847 = vpop.f32.mrb[0].mxu0
        %8848 = vmatprep.mubr.bf16.mxu0 %v8626
        %8849 = vmatmul.mubr.bf16.gmra.mrb[0].mxu0 %v8625
        %v8850 = vpop.f32.mrb[0].mxu0
        %v8851 = vadd.f32 0.0, %v8850
        %v8852 = vpop.f32.mrb[0].mxu0
        %v8853 = vpop.f32.mrb[0].mxu0
        %v8854 = vadd.f32 0.0, %v8853
        %v8855 = vpop.f32.mrb[0].mxu0
        %8856 = vmatprep.mubr.bf16.mxu0 %v8628
        %8857 = vmatmul.mubr.bf16.gmra.mrb[0].mxu0 %v8627
        %v8858 = vpop.f32.mrb[0].mxu0
        %v8859 = vadd.f32 0.0, %v8858
        %v8860 = vpop.f32.mrb[0].mxu0
        %v8861 = vpop.f32.mrb[0].mxu0
        %v8862 = vadd.f32 0.0, %v8861
        %v8863 = vpop.f32.mrb[0].mxu0
        %8864 = vmatprep.mubr.bf16.mxu0 %v8630
        %8865 = vmatmul.mubr.bf16.gmra.mrb[0].mxu0 %v8629
        %v8866 = vpop.f32.mrb[0].mxu0
        %v8867 = vadd.f32 0.0, %v8866
        %v8868 = vpop.f32.mrb[0].mxu0
        %v8869 = vpop.f32.mrb[0].mxu0
        %v8870 = vadd.f32 0.0, %v8869
        %v8871 = vpop.f32.mrb[0].mxu0
        %8872 = vmatprep.mubr.bf16.mxu0 %v8632
        %8873 = vmatmul.mubr.bf16.gmra.mrb[0].mxu0 %v8631
        %v8874 = vpop.f32.mrb[0].mxu0
        %v8875 = vadd.f32 0.0, %v8874
        %v8876 = vpop.f32.mrb[0].mxu0
        %v8877 = vpop.f32.mrb[0].mxu0
        %v8878 = vadd.f32 0.0, %v8877
        %v8879 = vpop.f32.mrb[0].mxu0
        %8880 = vmatprep.mubr.bf16.mxu0 %v8634
        %8881 = vmatmul.mubr.bf16.gmra.mrb[0].mxu0 %v8633
        %v8882 = vpop.f32.mrb[0].mxu0
        %v8883 = vadd.f32 0.0, %v8882
        %v8884 = vpop.f32.mrb[0].mxu0
        %v8885 = vpop.f32.mrb[0].mxu0
        %v8886 = vadd.f32 0.0, %v8885
        %v8887 = vpop.f32.mrb[0].mxu0
        %8888 = vmatprep.mubr.bf16.mxu0 %v8636
        %8889 = vmatmul.mubr.bf16.gmra.mrb[0].mxu0 %v8635
        %v8890 = vpop.f32.mrb[0].mxu0
        %v8891 = vadd.f32 0.0, %v8890
        %v8892 = vpop.f32.mrb[0].mxu0
        %v8893 = vpop.f32.mrb[0].mxu0
        %v8894 = vadd.f32 0.0, %v8893
        %v8895 = vpop.f32.mrb[0].mxu0
        %8896 = vmatprep.mubr.bf16.mxu0 %v8638
        %8897 = vmatmul.mubr.bf16.gmra.mrb[0].mxu0 %v8637
        %v8898 = vpop.f32.mrb[0].mxu0
        %v8899 = vadd.f32 0.0, %v8898
        %v8900 = vpop.f32.mrb[0].mxu0
        %v8901 = vpop.f32.mrb[0].mxu0
        %v8902 = vadd.f32 0.0, %v8901
        %v8903 = vpop.f32.mrb[0].mxu0
        %8904 = vmatprep.mubr.bf16.mxu0 %v8640
        %8905 = vmatmul.mubr.bf16.gmra.mrb[0].mxu0 %v8639
        %v8906 = vpop.f32.mrb[0].mxu0
        %v8907 = vadd.f32 0.0, %v8906
        %v8908 = vpop.f32.mrb[0].mxu0
        %v8909 = vpop.f32.mrb[0].mxu0
        %v8910 = vadd.f32 0.0, %v8909
        %v8911 = vpop.f32.mrb[0].mxu0
        %8912 = vmatprep.mubr.bf16.mxu0 %v8642
        %8913 = vmatmul.mubr.bf16.gmra.mrb[0].mxu0 %v8641
        %v8914 = vpop.f32.mrb[0].mxu0
        %v8915 = vadd.f32 0.0, %v8914
        %v8916 = vpop.f32.mrb[0].mxu0
        %v8917 = vpop.f32.mrb[0].mxu0
        %v8918 = vadd.f32 0.0, %v8917
        %v8919 = vpop.f32.mrb[0].mxu0
        %8920 = vmatprep.mubr.bf16.mxu0 %v8644
        %8921 = vmatmul.mubr.bf16.gmra.mrb[0].mxu0 %v8643
        %v8922 = vpop.f32.mrb[0].mxu0
        %v8923 = vadd.f32 0.0, %v8922
        %v8924 = vpop.f32.mrb[0].mxu0
        %v8925 = vpop.f32.mrb[0].mxu0
        %v8926 = vadd.f32 0.0, %v8925
        %v8927 = vpop.f32.mrb[0].mxu0
        %8928 = vmatprep.mubr.bf16.mxu0 %v8646
        %8929 = vmatmul.mubr.bf16.gmra.mrb[0].mxu0 %v8645
        %v8930 = vpop.f32.mrb[0].mxu0
        %v8931 = vadd.f32 0.0, %v8930
        %v8932 = vpop.f32.mrb[0].mxu0
        %v8933 = vpop.f32.mrb[0].mxu0
        %v8934 = vadd.f32 0.0, %v8933
        %v8935 = vpop.f32.mrb[0].mxu0
        %8936 = vdwg.mxu0
        %8937 = vrot.lane.b32.xlu0 %v6996, 96
        %v8938 = vpop.permute.xlu0 %8937
        %8939 = vrot.lane.b32.xlu0 %v6997, 96
        %v8940 = vpop.permute.xlu0 %8939
        %8941 = vrot.lane.b32.xlu0 %v6998, 96
        %v8942 = vpop.permute.xlu0 %8941
        %8943 = vrot.lane.b32.xlu0 %v6999, 96
        %v8944 = vpop.permute.xlu0 %8943
        %8945 = vrot.lane.b32.xlu0 %v7000, 96
        %v8946 = vpop.permute.xlu0 %8945
        %8947 = vrot.lane.b32.xlu0 %v7001, 96
        %v8948 = vpop.permute.xlu0 %8947
        %8949 = vrot.lane.b32.xlu0 %v7002, 96
        %v8950 = vpop.permute.xlu0 %8949
        %8951 = vrot.lane.b32.xlu0 %v7003, 96
        %v8952 = vpop.permute.xlu0 %8951
        %8953 = vrot.lane.b32.xlu0 %v7004, 96
        %v8954 = vpop.permute.xlu0 %8953
        %8955 = vrot.lane.b32.xlu0 %v7005, 96
        %v8956 = vpop.permute.xlu0 %8955
        %8957 = vrot.lane.b32.xlu0 %v7006, 96
        %v8958 = vpop.permute.xlu0 %8957
        %8959 = vrot.lane.b32.xlu0 %v7007, 96
        %v8960 = vpop.permute.xlu0 %8959
        %8961 = vrot.lane.b32.xlu0 %v7008, 96
        %v8962 = vpop.permute.xlu0 %8961
        %8963 = vrot.lane.b32.xlu0 %v7009, 96
        %v8964 = vpop.permute.xlu0 %8963
        %8965 = vrot.lane.b32.xlu0 %v7010, 96
        %v8966 = vpop.permute.xlu0 %8965
        %8967 = vrot.lane.b32.xlu0 %v7011, 96
        %v8968 = vpop.permute.xlu0 %8967
        %8985 = vmatprep.subr.bf16.mxu0 0
        %8986 = vmatpush1.bf16.msra.mxu0 %v8938
        %8987 = vmatprep.subr.bf16.mxu0 0
        %8988 = vmatpush1.bf16.msra.mxu0 %v8940
        %8989 = vmatprep.subr.bf16.mxu0 0
        %8990 = vmatpush1.bf16.msra.mxu0 %v8942
        %8991 = vmatprep.subr.bf16.mxu0 0
        %8992 = vmatpush1.bf16.msra.mxu0 %v8944
        %8993 = vmatprep.subr.bf16.mxu0 0
        %8994 = vmatpush1.bf16.msra.mxu0 %v8946
        %8995 = vmatprep.subr.bf16.mxu0 0
        %8996 = vmatpush1.bf16.msra.mxu0 %v8948
        %8997 = vmatprep.subr.bf16.mxu0 0
        %8998 = vmatpush1.bf16.msra.mxu0 %v8950
        %8999 = vmatprep.subr.bf16.mxu0 0
        %9000 = vmatpush1.bf16.msra.mxu0 %v8952
        %9001 = vmatprep.subr.bf16.mxu0 0
        %9002 = vmatpush1.bf16.msra.mxu0 %v8954
        %9003 = vmatprep.subr.bf16.mxu0 0
        %9004 = vmatpush1.bf16.msra.mxu0 %v8956
        %9005 = vmatprep.subr.bf16.mxu0 0
        %9006 = vmatpush1.bf16.msra.mxu0 %v8958
        %9007 = vmatprep.subr.bf16.mxu0 0
        %9008 = vmatpush1.bf16.msra.mxu0 %v8960
        %9009 = vmatprep.subr.bf16.mxu0 0
        %9010 = vmatpush1.bf16.msra.mxu0 %v8962
        %9011 = vmatprep.subr.bf16.mxu0 0
        %9012 = vmatpush1.bf16.msra.mxu0 %v8964
        %9013 = vmatprep.subr.bf16.mxu0 0
        %9014 = vmatpush1.bf16.msra.mxu0 %v8966
        %9015 = vmatprep.subr.bf16.mxu0 0
        %9016 = vmatpush1.bf16.msra.mxu0 %v8968
        %9017 = vmatprep.mubr.bf16.mxu0 %v7831
        %9018 = vmatmul.mubr.bf16.gmra.mrb[0].mxu0 %v7830
        %v9019 = vpop.f32.mrb[0].mxu0
        %v9020 = vadd.f32 %v8811, %v9019
        %v9021 = vpop.f32.mrb[0].mxu0
        %v9022 = vpop.f32.mrb[0].mxu0
        %v9023 = vadd.f32 %v8814, %v9022
        %v9024 = vpop.f32.mrb[0].mxu0
        %9025 = vmatprep.mubr.bf16.mxu0 %v7833
        %9026 = vmatmul.mubr.bf16.gmra.mrb[0].mxu0 %v7832
        %v9027 = vpop.f32.mrb[0].mxu0
        %v9028 = vadd.f32 %v8819, %v9027
        %v9029 = vpop.f32.mrb[0].mxu0
        %v9030 = vpop.f32.mrb[0].mxu0
        %v9031 = vadd.f32 %v8822, %v9030
        %v9032 = vpop.f32.mrb[0].mxu0
        %9033 = vmatprep.mubr.bf16.mxu0 %v7835
        %9034 = vmatmul.mubr.bf16.gmra.mrb[0].mxu0 %v7834
        %v9035 = vpop.f32.mrb[0].mxu0
        %v9036 = vadd.f32 %v8827, %v9035
        %v9037 = vpop.f32.mrb[0].mxu0
        %v9038 = vpop.f32.mrb[0].mxu0
        %v9039 = vadd.f32 %v8830, %v9038
        %v9040 = vpop.f32.mrb[0].mxu0
        %9041 = vmatprep.mubr.bf16.mxu0 %v7837
        %9042 = vmatmul.mubr.bf16.gmra.mrb[0].mxu0 %v7836
        %v9043 = vpop.f32.mrb[0].mxu0
        %v9044 = vadd.f32 %v8835, %v9043
        %v9045 = vpop.f32.mrb[0].mxu0
        %v9046 = vpop.f32.mrb[0].mxu0
        %v9047 = vadd.f32 %v8838, %v9046
        %v9048 = vpop.f32.mrb[0].mxu0
        %9049 = vmatprep.mubr.bf16.mxu0 %v7839
        %9050 = vmatmul.mubr.bf16.gmra.mrb[0].mxu0 %v7838
        %v9051 = vpop.f32.mrb[0].mxu0
        %v9052 = vadd.f32 %v8843, %v9051
        %v9053 = vpop.f32.mrb[0].mxu0
        %v9054 = vpop.f32.mrb[0].mxu0
        %v9055 = vadd.f32 %v8846, %v9054
        %v9056 = vpop.f32.mrb[0].mxu0
        %9057 = vmatprep.mubr.bf16.mxu0 %v7841
        %9058 = vmatmul.mubr.bf16.gmra.mrb[0].mxu0 %v7840
        %v9059 = vpop.f32.mrb[0].mxu0
        %v9060 = vadd.f32 %v8851, %v9059
        %v9061 = vpop.f32.mrb[0].mxu0
        %v9062 = vpop.f32.mrb[0].mxu0
        %v9063 = vadd.f32 %v8854, %v9062
        %v9064 = vpop.f32.mrb[0].mxu0
        %9065 = vmatprep.mubr.bf16.mxu0 %v7843
        %9066 = vmatmul.mubr.bf16.gmra.mrb[0].mxu0 %v7842
        %v9067 = vpop.f32.mrb[0].mxu0
        %v9068 = vadd.f32 %v8859, %v9067
        %v9069 = vpop.f32.mrb[0].mxu0
        %v9070 = vpop.f32.mrb[0].mxu0
        %v9071 = vadd.f32 %v8862, %v9070
        %v9072 = vpop.f32.mrb[0].mxu0
        %9073 = vmatprep.mubr.bf16.mxu0 %v7845
        %9074 = vmatmul.mubr.bf16.gmra.mrb[0].mxu0 %v7844
        %v9075 = vpop.f32.mrb[0].mxu0
        %v9076 = vadd.f32 %v8867, %v9075
        %v9077 = vpop.f32.mrb[0].mxu0
        %v9078 = vpop.f32.mrb[0].mxu0
        %v9079 = vadd.f32 %v8870, %v9078
        %v9080 = vpop.f32.mrb[0].mxu0
        %9081 = vmatprep.mubr.bf16.mxu0 %v7847
        %9082 = vmatmul.mubr.bf16.gmra.mrb[0].mxu0 %v7846
        %v9083 = vpop.f32.mrb[0].mxu0
        %v9084 = vadd.f32 %v8875, %v9083
        %v9085 = vpop.f32.mrb[0].mxu0
        %v9086 = vpop.f32.mrb[0].mxu0
        %v9087 = vadd.f32 %v8878, %v9086
        %v9088 = vpop.f32.mrb[0].mxu0
        %9089 = vmatprep.mubr.bf16.mxu0 %v7849
        %9090 = vmatmul.mubr.bf16.gmra.mrb[0].mxu0 %v7848
        %v9091 = vpop.f32.mrb[0].mxu0
        %v9092 = vadd.f32 %v8883, %v9091
        %v9093 = vpop.f32.mrb[0].mxu0
        %v9094 = vpop.f32.mrb[0].mxu0
        %v9095 = vadd.f32 %v8886, %v9094
        %v9096 = vpop.f32.mrb[0].mxu0
        %9097 = vmatprep.mubr.bf16.mxu0 %v7851
        %9098 = vmatmul.mubr.bf16.gmra.mrb[0].mxu0 %v7850
        %v9099 = vpop.f32.mrb[0].mxu0
        %v9100 = vadd.f32 %v8891, %v9099
        %v9101 = vpop.f32.mrb[0].mxu0
        %v9102 = vpop.f32.mrb[0].mxu0
        %v9103 = vadd.f32 %v8894, %v9102
        %v9104 = vpop.f32.mrb[0].mxu0
        %9105 = vmatprep.mubr.bf16.mxu0 %v7853
        %9106 = vmatmul.mubr.bf16.gmra.mrb[0].mxu0 %v7852
        %v9107 = vpop.f32.mrb[0].mxu0
        %v9108 = vadd.f32 %v8899, %v9107
        %v9109 = vpop.f32.mrb[0].mxu0
        %v9110 = vpop.f32.mrb[0].mxu0
        %v9111 = vadd.f32 %v8902, %v9110
        %v9112 = vpop.f32.mrb[0].mxu0
        %9113 = vmatprep.mubr.bf16.mxu0 %v7855
        %9114 = vmatmul.mubr.bf16.gmra.mrb[0].mxu0 %v7854
        %v9115 = vpop.f32.mrb[0].mxu0
        %v9116 = vadd.f32 %v8907, %v9115
        %v9117 = vpop.f32.mrb[0].mxu0
        %v9118 = vpop.f32.mrb[0].mxu0
        %v9119 = vadd.f32 %v8910, %v9118
        %v9120 = vpop.f32.mrb[0].mxu0
        %9121 = vmatprep.mubr.bf16.mxu0 %v7857
        %9122 = vmatmul.mubr.bf16.gmra.mrb[0].mxu0 %v7856
        %v9123 = vpop.f32.mrb[0].mxu0
        %v9124 = vadd.f32 %v8915, %v9123
        %v9125 = vpop.f32.mrb[0].mxu0
        %v9126 = vpop.f32.mrb[0].mxu0
        %v9127 = vadd.f32 %v8918, %v9126
        %v9128 = vpop.f32.mrb[0].mxu0
        %9129 = vmatprep.mubr.bf16.mxu0 %v7859
        %9130 = vmatmul.mubr.bf16.gmra.mrb[0].mxu0 %v7858
        %v9131 = vpop.f32.mrb[0].mxu0
        %v9132 = vadd.f32 %v8923, %v9131
        %v9133 = vpop.f32.mrb[0].mxu0
        %v9134 = vpop.f32.mrb[0].mxu0
        %v9135 = vadd.f32 %v8926, %v9134
        %v9136 = vpop.f32.mrb[0].mxu0
        %9137 = vmatprep.mubr.bf16.mxu0 %v7861
        %9138 = vmatmul.mubr.bf16.gmra.mrb[0].mxu0 %v7860
        %v9139 = vpop.f32.mrb[0].mxu0
        %v9140 = vadd.f32 %v8931, %v9139
        %v9141 = vpop.f32.mrb[0].mxu0
        %v9142 = vpop.f32.mrb[0].mxu0
        %v9143 = vadd.f32 %v8934, %v9142
        %v9144 = vpop.f32.mrb[0].mxu0
        %9145 = vdwg.mxu0
        %v9146 = vld [vmem:[%s11] sm:$0x1]
        %v9148 = vlaneseq
        %v9149 = vshrl.u32 %v9148, 7
        %v9150 = vsub.s32 0, %v9149
        %v9151 = vrot.slane %v9146, %v9150
        %v9153 = vadd.f32 %v9020, %v9151
        %v9154 = vadd.f32 %v9023, %v9151
        %v9155 = vadd.f32 %v9028, %v9151
        %v9156 = vadd.f32 %v9031, %v9151
        %v9157 = vadd.f32 %v9036, %v9151
        %v9158 = vadd.f32 %v9039, %v9151
        %v9159 = vadd.f32 %v9044, %v9151
        %v9160 = vadd.f32 %v9047, %v9151
        %v9161 = vadd.f32 %v9052, %v9151
        %v9162 = vadd.f32 %v9055, %v9151
        %v9163 = vadd.f32 %v9060, %v9151
        %v9164 = vadd.f32 %v9063, %v9151
        %v9165 = vadd.f32 %v9068, %v9151
        %v9166 = vadd.f32 %v9071, %v9151
        %v9167 = vadd.f32 %v9076, %v9151
        %v9168 = vadd.f32 %v9079, %v9151
        %v9169 = vadd.f32 %v9084, %v9151
        %v9170 = vadd.f32 %v9087, %v9151
        %v9171 = vadd.f32 %v9092, %v9151
        %v9172 = vadd.f32 %v9095, %v9151
        %v9173 = vadd.f32 %v9100, %v9151
        %v9174 = vadd.f32 %v9103, %v9151
        %v9175 = vadd.f32 %v9108, %v9151
        %v9176 = vadd.f32 %v9111, %v9151
        %v9177 = vadd.f32 %v9116, %v9151
        %v9178 = vadd.f32 %v9119, %v9151
        %v9179 = vadd.f32 %v9124, %v9151
        %v9180 = vadd.f32 %v9127, %v9151
        %v9181 = vadd.f32 %v9132, %v9151
        %v9182 = vadd.f32 %v9135, %v9151
        %v9183 = vadd.f32 %v9140, %v9151
        %v9184 = vadd.f32 %v9143, %v9151
        %v9185 = vpack.c.bf16 %v9154, %v9153
        %v9186 = vpack.c.bf16 %v9156, %v9155
        %v9187 = vpack.c.bf16 %v9158, %v9157
        %v9188 = vpack.c.bf16 %v9160, %v9159
        %v9189 = vpack.c.bf16 %v9162, %v9161
        %v9190 = vpack.c.bf16 %v9164, %v9163
        %v9191 = vpack.c.bf16 %v9166, %v9165
        %v9192 = vpack.c.bf16 %v9168, %v9167
        %v9193 = vpack.c.bf16 %v9170, %v9169
        %v9194 = vpack.c.bf16 %v9172, %v9171
        %v9195 = vpack.c.bf16 %v9174, %v9173
        %v9196 = vpack.c.bf16 %v9176, %v9175
        %v9197 = vpack.c.bf16 %v9178, %v9177
        %v9198 = vpack.c.bf16 %v9180, %v9179
        %v9199 = vpack.c.bf16 %v9182, %v9181
        %v9200 = vpack.c.bf16 %v9184, %v9183
        %v9201 = vld [vmem:[%s9] sm:$0xf]
        %v9202 = vld [vmem:[%s9 + $0x4] sm:$0xf]
        %v9203 = vld [vmem:[%s9 + $0x8] sm:$0xf]
        %v9204 = vld [vmem:[%s9 + $0xc] sm:$0xf]
        %v9205 = vld [vmem:[%s9 + $0x10] sm:$0xf]
        %v9206 = vld [vmem:[%s9 + $0x14] sm:$0xf]
        %v9207 = vld [vmem:[%s9 + $0x18] sm:$0xf]
        %v9208 = vld [vmem:[%s9 + $0x1c] sm:$0xf]
        %v9209 = vld [vmem:[%s10] sm:$0xf]
        %v9210 = vld [vmem:[%s10 + $0x4] sm:$0xf]
        %v9211 = vld [vmem:[%s10 + $0x8] sm:$0xf]
        %v9212 = vld [vmem:[%s10 + $0xc] sm:$0xf]
        %v9217 = vunpack.c.l.b16 %v9209
        %v9218 = vunpack.c.l.b16 %v9210
        %v9219 = vunpack.c.l.b16 %v9211
        %v9220 = vunpack.c.l.b16 %v9212
        %v9221 = vpack.c.b16 %v9218, %v9217
        %v9222 = vpack.c.b16 %v9220, %v9219
        %v9225 = vsel %vm6662, %v6583, 0
        %v9227 = vsel %vm6662, %v6585, 0
        %v9229 = vsel %vm6662, %v6587, 0
        %v9231 = vsel %vm6662, %v6589, 0
        %v9233 = vsel %vm6662, %v6591, 0
        %v9235 = vsel %vm6662, %v6593, 0
        %v9237 = vsel %vm6662, %v6595, 0
        %v9239 = vsel %vm6662, %v6597, 0
        %v9241 = vsel %vm6662, %v6599, 0
        %v9243 = vsel %vm6662, %v6601, 0
        %v9245 = vsel %vm6662, %v6603, 0
        %v9247 = vsel %vm6662, %v6605, 0
        %v9249 = vsel %vm6662, %v6607, 0
        %v9251 = vsel %vm6662, %v6609, 0
        %v9253 = vsel %vm6662, %v6611, 0
        %v9255 = vsel %vm6662, %v6613, 0
        %9257 = vmatprep.subr.bf16.mxu0 0
        %9258 = vmatpush1.bf16.msra.mxu0 %v9221
        %9259 = vmatprep.subr.bf16.mxu0 0
        %9260 = vmatpush1.bf16.msra.mxu0 %v9222
        %9261 = vmatprep.subr.bf16.mxu0 0
        %9262 = vmatpush1.bf16.msra.mxu0 0
        %9263 = vmatprep.subr.bf16.mxu0 0
        %9264 = vmatpush1.bf16.msra.mxu0 0
        %9265 = vmatprep.subr.bf16.mxu0 0
        %9266 = vmatpush1.bf16.msra.mxu0 0
        %9267 = vmatprep.subr.bf16.mxu0 0
        %9268 = vmatpush1.bf16.msra.mxu0 0
        %9269 = vmatprep.subr.bf16.mxu0 0
        %9270 = vmatpush1.bf16.msra.mxu0 0
        %9271 = vmatprep.subr.bf16.mxu0 0
        %9272 = vmatpush1.bf16.msra.mxu0 0
        %9273 = vmatprep.subr.bf16.mxu0 0
        %9274 = vmatpush1.bf16.msra.mxu0 0
        %9275 = vmatprep.subr.bf16.mxu0 0
        %9276 = vmatpush1.bf16.msra.mxu0 0
        %9277 = vmatprep.subr.bf16.mxu0 0
        %9278 = vmatpush1.bf16.msra.mxu0 0
        %9279 = vmatprep.subr.bf16.mxu0 0
        %9280 = vmatpush1.bf16.msra.mxu0 0
        %9281 = vmatprep.subr.bf16.mxu0 0
        %9282 = vmatpush1.bf16.msra.mxu0 0
        %9283 = vmatprep.subr.bf16.mxu0 0
        %9284 = vmatpush1.bf16.msra.mxu0 0
        %9285 = vmatprep.subr.bf16.mxu0 0
        %9286 = vmatpush1.bf16.msra.mxu0 0
        %9287 = vmatprep.subr.bf16.mxu0 0
        %9288 = vmatpush1.bf16.msra.mxu0 0
        %9289 = vmatprep.mubr.bf16.mxu0 0
        %9290 = vmatmul.mubr.bf16.gmra.mrb[0].mxu0 %v9225
        %v9291 = vpop.f32.mrb[0].mxu0
        %v9292 = vadd.f32 0.0, %v9291
        %v9293 = vpop.f32.mrb[0].mxu0
        %v9294 = vpop.f32.mrb[0].mxu0
        %v9295 = vadd.f32 0.0, %v9294
        %v9296 = vpop.f32.mrb[0].mxu0
        %9297 = vmatprep.mubr.bf16.mxu0 0
        %9298 = vmatmul.mubr.bf16.gmra.mrb[0].mxu0 %v9227
        %v9299 = vpop.f32.mrb[0].mxu0
        %v9300 = vadd.f32 0.0, %v9299
        %v9301 = vpop.f32.mrb[0].mxu0
        %v9302 = vpop.f32.mrb[0].mxu0
        %v9303 = vadd.f32 0.0, %v9302
        %v9304 = vpop.f32.mrb[0].mxu0
        %9305 = vmatprep.mubr.bf16.mxu0 0
        %9306 = vmatmul.mubr.bf16.gmra.mrb[0].mxu0 %v9229
        %v9307 = vpop.f32.mrb[0].mxu0
        %v9308 = vadd.f32 0.0, %v9307
        %v9309 = vpop.f32.mrb[0].mxu0
        %v9310 = vpop.f32.mrb[0].mxu0
        %v9311 = vadd.f32 0.0, %v9310
        %v9312 = vpop.f32.mrb[0].mxu0
        %9313 = vmatprep.mubr.bf16.mxu0 0
        %9314 = vmatmul.mubr.bf16.gmra.mrb[0].mxu0 %v9231
        %v9315 = vpop.f32.mrb[0].mxu0
        %v9316 = vadd.f32 0.0, %v9315
        %v9317 = vpop.f32.mrb[0].mxu0
        %v9318 = vpop.f32.mrb[0].mxu0
        %v9319 = vadd.f32 0.0, %v9318
        %v9320 = vpop.f32.mrb[0].mxu0
        %9321 = vmatprep.mubr.bf16.mxu0 0
        %9322 = vmatmul.mubr.bf16.gmra.mrb[0].mxu0 %v9233
        %v9323 = vpop.f32.mrb[0].mxu0
        %v9324 = vadd.f32 0.0, %v9323
        %v9325 = vpop.f32.mrb[0].mxu0
        %v9326 = vpop.f32.mrb[0].mxu0
        %v9327 = vadd.f32 0.0, %v9326
        %v9328 = vpop.f32.mrb[0].mxu0
        %9329 = vmatprep.mubr.bf16.mxu0 0
        %9330 = vmatmul.mubr.bf16.gmra.mrb[0].mxu0 %v9235
        %v9331 = vpop.f32.mrb[0].mxu0
        %v9332 = vadd.f32 0.0, %v9331
        %v9333 = vpop.f32.mrb[0].mxu0
        %v9334 = vpop.f32.mrb[0].mxu0
        %v9335 = vadd.f32 0.0, %v9334
        %v9336 = vpop.f32.mrb[0].mxu0
        %9337 = vmatprep.mubr.bf16.mxu0 0
        %9338 = vmatmul.mubr.bf16.gmra.mrb[0].mxu0 %v9237
        %v9339 = vpop.f32.mrb[0].mxu0
        %v9340 = vadd.f32 0.0, %v9339
        %v9341 = vpop.f32.mrb[0].mxu0
        %v9342 = vpop.f32.mrb[0].mxu0
        %v9343 = vadd.f32 0.0, %v9342
        %v9344 = vpop.f32.mrb[0].mxu0
        %9345 = vmatprep.mubr.bf16.mxu0 0
        %9346 = vmatmul.mubr.bf16.gmra.mrb[0].mxu0 %v9239
        %v9347 = vpop.f32.mrb[0].mxu0
        %v9348 = vadd.f32 0.0, %v9347
        %v9349 = vpop.f32.mrb[0].mxu0
        %v9350 = vpop.f32.mrb[0].mxu0
        %v9351 = vadd.f32 0.0, %v9350
        %v9352 = vpop.f32.mrb[0].mxu0
        %9353 = vmatprep.mubr.bf16.mxu0 0
        %9354 = vmatmul.mubr.bf16.gmra.mrb[0].mxu0 %v9241
        %v9355 = vpop.f32.mrb[0].mxu0
        %v9356 = vadd.f32 0.0, %v9355
        %v9357 = vpop.f32.mrb[0].mxu0
        %v9358 = vpop.f32.mrb[0].mxu0
        %v9359 = vadd.f32 0.0, %v9358
        %v9360 = vpop.f32.mrb[0].mxu0
        %9361 = vmatprep.mubr.bf16.mxu0 0
        %9362 = vmatmul.mubr.bf16.gmra.mrb[0].mxu0 %v9243
        %v9363 = vpop.f32.mrb[0].mxu0
        %v9364 = vadd.f32 0.0, %v9363
        %v9365 = vpop.f32.mrb[0].mxu0
        %v9366 = vpop.f32.mrb[0].mxu0
        %v9367 = vadd.f32 0.0, %v9366
        %v9368 = vpop.f32.mrb[0].mxu0
        %9369 = vmatprep.mubr.bf16.mxu0 0
        %9370 = vmatmul.mubr.bf16.gmra.mrb[0].mxu0 %v9245
        %v9371 = vpop.f32.mrb[0].mxu0
        %v9372 = vadd.f32 0.0, %v9371
        %v9373 = vpop.f32.mrb[0].mxu0
        %v9374 = vpop.f32.mrb[0].mxu0
        %v9375 = vadd.f32 0.0, %v9374
        %v9376 = vpop.f32.mrb[0].mxu0
        %9377 = vmatprep.mubr.bf16.mxu0 0
        %9378 = vmatmul.mubr.bf16.gmra.mrb[0].mxu0 %v9247
        %v9379 = vpop.f32.mrb[0].mxu0
        %v9380 = vadd.f32 0.0, %v9379
        %v9381 = vpop.f32.mrb[0].mxu0
        %v9382 = vpop.f32.mrb[0].mxu0
        %v9383 = vadd.f32 0.0, %v9382
        %v9384 = vpop.f32.mrb[0].mxu0
        %9385 = vmatprep.mubr.bf16.mxu0 0
        %9386 = vmatmul.mubr.bf16.gmra.mrb[0].mxu0 %v9249
        %v9387 = vpop.f32.mrb[0].mxu0
        %v9388 = vadd.f32 0.0, %v9387
        %v9389 = vpop.f32.mrb[0].mxu0
        %v9390 = vpop.f32.mrb[0].mxu0
        %v9391 = vadd.f32 0.0, %v9390
        %v9392 = vpop.f32.mrb[0].mxu0
        %9393 = vmatprep.mubr.bf16.mxu0 0
        %9394 = vmatmul.mubr.bf16.gmra.mrb[0].mxu0 %v9251
        %v9395 = vpop.f32.mrb[0].mxu0
        %v9396 = vadd.f32 0.0, %v9395
        %v9397 = vpop.f32.mrb[0].mxu0
        %v9398 = vpop.f32.mrb[0].mxu0
        %v9399 = vadd.f32 0.0, %v9398
        %v9400 = vpop.f32.mrb[0].mxu0
        %9401 = vmatprep.mubr.bf16.mxu0 0
        %9402 = vmatmul.mubr.bf16.gmra.mrb[0].mxu0 %v9253
        %v9403 = vpop.f32.mrb[0].mxu0
        %v9404 = vadd.f32 0.0, %v9403
        %v9405 = vpop.f32.mrb[0].mxu0
        %v9406 = vpop.f32.mrb[0].mxu0
        %v9407 = vadd.f32 0.0, %v9406
        %v9408 = vpop.f32.mrb[0].mxu0
        %9409 = vmatprep.mubr.bf16.mxu0 0
        %9410 = vmatmul.mubr.bf16.gmra.mrb[0].mxu0 %v9255
        %v9411 = vpop.f32.mrb[0].mxu0
        %v9412 = vadd.f32 0.0, %v9411
        %v9413 = vpop.f32.mrb[0].mxu0
        %v9414 = vpop.f32.mrb[0].mxu0
        %v9415 = vadd.f32 0.0, %v9414
        %v9416 = vpop.f32.mrb[0].mxu0
        %9417 = vdwg.mxu0
        %v9426 = vunpack.c.l.b16 %v9201
        %v9427 = vunpack.c.l.b16 %v9202
        %v9428 = vunpack.c.l.b16 %v9203
        %v9429 = vunpack.c.l.b16 %v9204
        %v9430 = vunpack.c.l.b16 %v9205
        %v9431 = vunpack.c.l.b16 %v9206
        %v9432 = vunpack.c.l.b16 %v9207
        %v9433 = vunpack.c.l.b16 %v9208
        %v9434 = vpack.c.b16 %v9427, %v9426
        %v9435 = vpack.c.b16 %v9429, %v9428
        %v9436 = vpack.c.b16 %v9431, %v9430
        %v9437 = vpack.c.b16 %v9433, %v9432
        %v9443 = vsel %vm1003, %v9185, 0
        %v9446 = vsel %vm1003, %v9186, 0
        %v9449 = vsel %vm1003, %v9187, 0
        %v9452 = vsel %vm1003, %v9188, 0
        %v9455 = vsel %vm1003, %v9189, 0
        %v9458 = vsel %vm1003, %v9190, 0
        %v9461 = vsel %vm1003, %v9191, 0
        %v9464 = vsel %vm1003, %v9192, 0
        %v9467 = vsel %vm1003, %v9193, 0
        %v9470 = vsel %vm1003, %v9194, 0
        %v9473 = vsel %vm1003, %v9195, 0
        %v9476 = vsel %vm1003, %v9196, 0
        %v9479 = vsel %vm1003, %v9197, 0
        %v9482 = vsel %vm1003, %v9198, 0
        %v9485 = vsel %vm1003, %v9199, 0
        %v9488 = vsel %vm1003, %v9200, 0
        %9490 = vmatprep.subr.bf16.mxu0 0
        %9491 = vmatpush1.bf16.msra.mxu0 %v9434
        %9492 = vmatprep.subr.bf16.mxu0 0
        %9493 = vmatpush1.bf16.msra.mxu0 %v9435
        %9494 = vmatprep.subr.bf16.mxu0 0
        %9495 = vmatpush1.bf16.msra.mxu0 %v9436
        %9496 = vmatprep.subr.bf16.mxu0 0
        %9497 = vmatpush1.bf16.msra.mxu0 %v9437
        %9498 = vmatprep.subr.bf16.mxu0 0
        %9499 = vmatpush1.bf16.msra.mxu0 0
        %9500 = vmatprep.subr.bf16.mxu0 0
        %9501 = vmatpush1.bf16.msra.mxu0 0
        %9502 = vmatprep.subr.bf16.mxu0 0
        %9503 = vmatpush1.bf16.msra.mxu0 0
        %9504 = vmatprep.subr.bf16.mxu0 0
        %9505 = vmatpush1.bf16.msra.mxu0 0
        %9506 = vmatprep.subr.bf16.mxu0 0
        %9507 = vmatpush1.bf16.msra.mxu0 0
        %9508 = vmatprep.subr.bf16.mxu0 0
        %9509 = vmatpush1.bf16.msra.mxu0 0
        %9510 = vmatprep.subr.bf16.mxu0 0
        %9511 = vmatpush1.bf16.msra.mxu0 0
        %9512 = vmatprep.subr.bf16.mxu0 0
        %9513 = vmatpush1.bf16.msra.mxu0 0
        %9514 = vmatprep.subr.bf16.mxu0 0
        %9515 = vmatpush1.bf16.msra.mxu0 0
        %9516 = vmatprep.subr.bf16.mxu0 0
        %9517 = vmatpush1.bf16.msra.mxu0 0
        %9518 = vmatprep.subr.bf16.mxu0 0
        %9519 = vmatpush1.bf16.msra.mxu0 0
        %9520 = vmatprep.subr.bf16.mxu0 0
        %9521 = vmatpush1.bf16.msra.mxu0 0
        %9522 = vmatprep.mubr.bf16.mxu0 0
        %9523 = vmatmul.mubr.bf16.gmra.mrb[0].mxu0 %v9443
        %v9524 = vpop.f32.mrb[0].mxu0
        %v9525 = vadd.f32 %v9292, %v9524
        %v9526 = vpop.f32.mrb[0].mxu0
        %v9527 = vpop.f32.mrb[0].mxu0
        %v9528 = vadd.f32 %v9295, %v9527
        %v9529 = vpop.f32.mrb[0].mxu0
        %9530 = vmatprep.mubr.bf16.mxu0 0
        %9531 = vmatmul.mubr.bf16.gmra.mrb[0].mxu0 %v9446
        %v9532 = vpop.f32.mrb[0].mxu0
        %v9533 = vadd.f32 %v9300, %v9532
        %v9534 = vpop.f32.mrb[0].mxu0
        %v9535 = vpop.f32.mrb[0].mxu0
        %v9536 = vadd.f32 %v9303, %v9535
        %v9537 = vpop.f32.mrb[0].mxu0
        %9538 = vmatprep.mubr.bf16.mxu0 0
        %9539 = vmatmul.mubr.bf16.gmra.mrb[0].mxu0 %v9449
        %v9540 = vpop.f32.mrb[0].mxu0
        %v9541 = vadd.f32 %v9308, %v9540
        %v9542 = vpop.f32.mrb[0].mxu0
        %v9543 = vpop.f32.mrb[0].mxu0
        %v9544 = vadd.f32 %v9311, %v9543
        %v9545 = vpop.f32.mrb[0].mxu0
        %9546 = vmatprep.mubr.bf16.mxu0 0
        %9547 = vmatmul.mubr.bf16.gmra.mrb[0].mxu0 %v9452
        %v9548 = vpop.f32.mrb[0].mxu0
        %v9549 = vadd.f32 %v9316, %v9548
        %v9550 = vpop.f32.mrb[0].mxu0
        %v9551 = vpop.f32.mrb[0].mxu0
        %v9552 = vadd.f32 %v9319, %v9551
        %v9553 = vpop.f32.mrb[0].mxu0
        %9554 = vmatprep.mubr.bf16.mxu0 0
        %9555 = vmatmul.mubr.bf16.gmra.mrb[0].mxu0 %v9455
        %v9556 = vpop.f32.mrb[0].mxu0
        %v9557 = vadd.f32 %v9324, %v9556
        %v9558 = vpop.f32.mrb[0].mxu0
        %v9559 = vpop.f32.mrb[0].mxu0
        %v9560 = vadd.f32 %v9327, %v9559
        %v9561 = vpop.f32.mrb[0].mxu0
        %9562 = vmatprep.mubr.bf16.mxu0 0
        %9563 = vmatmul.mubr.bf16.gmra.mrb[0].mxu0 %v9458
        %v9564 = vpop.f32.mrb[0].mxu0
        %v9565 = vadd.f32 %v9332, %v9564
        %v9566 = vpop.f32.mrb[0].mxu0
        %v9567 = vpop.f32.mrb[0].mxu0
        %v9568 = vadd.f32 %v9335, %v9567
        %v9569 = vpop.f32.mrb[0].mxu0
        %9570 = vmatprep.mubr.bf16.mxu0 0
        %9571 = vmatmul.mubr.bf16.gmra.mrb[0].mxu0 %v9461
        %v9572 = vpop.f32.mrb[0].mxu0
        %v9573 = vadd.f32 %v9340, %v9572
        %v9574 = vpop.f32.mrb[0].mxu0
        %v9575 = vpop.f32.mrb[0].mxu0
        %v9576 = vadd.f32 %v9343, %v9575
        %v9577 = vpop.f32.mrb[0].mxu0
        %9578 = vmatprep.mubr.bf16.mxu0 0
        %9579 = vmatmul.mubr.bf16.gmra.mrb[0].mxu0 %v9464
        %v9580 = vpop.f32.mrb[0].mxu0
        %v9581 = vadd.f32 %v9348, %v9580
        %v9582 = vpop.f32.mrb[0].mxu0
        %v9583 = vpop.f32.mrb[0].mxu0
        %v9584 = vadd.f32 %v9351, %v9583
        %v9585 = vpop.f32.mrb[0].mxu0
        %9586 = vmatprep.mubr.bf16.mxu0 0
        %9587 = vmatmul.mubr.bf16.gmra.mrb[0].mxu0 %v9467
        %v9588 = vpop.f32.mrb[0].mxu0
        %v9589 = vadd.f32 %v9356, %v9588
        %v9590 = vpop.f32.mrb[0].mxu0
        %v9591 = vpop.f32.mrb[0].mxu0
        %v9592 = vadd.f32 %v9359, %v9591
        %v9593 = vpop.f32.mrb[0].mxu0
        %9594 = vmatprep.mubr.bf16.mxu0 0
        %9595 = vmatmul.mubr.bf16.gmra.mrb[0].mxu0 %v9470
        %v9596 = vpop.f32.mrb[0].mxu0
        %v9597 = vadd.f32 %v9364, %v9596
        %v9598 = vpop.f32.mrb[0].mxu0
        %v9599 = vpop.f32.mrb[0].mxu0
        %v9600 = vadd.f32 %v9367, %v9599
        %v9601 = vpop.f32.mrb[0].mxu0
        %9602 = vmatprep.mubr.bf16.mxu0 0
        %9603 = vmatmul.mubr.bf16.gmra.mrb[0].mxu0 %v9473
        %v9604 = vpop.f32.mrb[0].mxu0
        %v9605 = vadd.f32 %v9372, %v9604
        %v9606 = vpop.f32.mrb[0].mxu0
        %v9607 = vpop.f32.mrb[0].mxu0
        %v9608 = vadd.f32 %v9375, %v9607
        %v9609 = vpop.f32.mrb[0].mxu0
        %9610 = vmatprep.mubr.bf16.mxu0 0
        %9611 = vmatmul.mubr.bf16.gmra.mrb[0].mxu0 %v9476
        %v9612 = vpop.f32.mrb[0].mxu0
        %v9613 = vadd.f32 %v9380, %v9612
        %v9614 = vpop.f32.mrb[0].mxu0
        %v9615 = vpop.f32.mrb[0].mxu0
        %v9616 = vadd.f32 %v9383, %v9615
        %v9617 = vpop.f32.mrb[0].mxu0
        %9618 = vmatprep.mubr.bf16.mxu0 0
        %9619 = vmatmul.mubr.bf16.gmra.mrb[0].mxu0 %v9479
        %v9620 = vpop.f32.mrb[0].mxu0
        %v9621 = vadd.f32 %v9388, %v9620
        %v9622 = vpop.f32.mrb[0].mxu0
        %v9623 = vpop.f32.mrb[0].mxu0
        %v9624 = vadd.f32 %v9391, %v9623
        %v9625 = vpop.f32.mrb[0].mxu0
        %9626 = vmatprep.mubr.bf16.mxu0 0
        %9627 = vmatmul.mubr.bf16.gmra.mrb[0].mxu0 %v9482
        %v9628 = vpop.f32.mrb[0].mxu0
        %v9629 = vadd.f32 %v9396, %v9628
        %v9630 = vpop.f32.mrb[0].mxu0
        %v9631 = vpop.f32.mrb[0].mxu0
        %v9632 = vadd.f32 %v9399, %v9631
        %v9633 = vpop.f32.mrb[0].mxu0
        %9634 = vmatprep.mubr.bf16.mxu0 0
        %9635 = vmatmul.mubr.bf16.gmra.mrb[0].mxu0 %v9485
        %v9636 = vpop.f32.mrb[0].mxu0
        %v9637 = vadd.f32 %v9404, %v9636
        %v9638 = vpop.f32.mrb[0].mxu0
        %v9639 = vpop.f32.mrb[0].mxu0
        %v9640 = vadd.f32 %v9407, %v9639
        %v9641 = vpop.f32.mrb[0].mxu0
        %9642 = vmatprep.mubr.bf16.mxu0 0
        %9643 = vmatmul.mubr.bf16.gmra.mrb[0].mxu0 %v9488
        %v9644 = vpop.f32.mrb[0].mxu0
        %v9645 = vadd.f32 %v9412, %v9644
        %v9646 = vpop.f32.mrb[0].mxu0
        %v9647 = vpop.f32.mrb[0].mxu0
        %v9648 = vadd.f32 %v9415, %v9647
        %v9649 = vpop.f32.mrb[0].mxu0
        %9650 = vdwg.mxu0
        %v9651 = vld [vmem:[%s12] sm:$0x1]
        %v9653 = vlaneseq
        %v9654 = vshrl.u32 %v9653, 7
        %v9655 = vsub.s32 0, %v9654
        %v9656 = vrot.slane %v9651, %v9655
        %v9658 = vadd.f32 %v9525, %v9656
        %v9659 = vadd.f32 %v9528, %v9656
        %v9660 = vadd.f32 %v9533, %v9656
        %v9661 = vadd.f32 %v9536, %v9656
        %v9662 = vadd.f32 %v9541, %v9656
        %v9663 = vadd.f32 %v9544, %v9656
        %v9664 = vadd.f32 %v9549, %v9656
        %v9665 = vadd.f32 %v9552, %v9656
        %v9666 = vadd.f32 %v9557, %v9656
        %v9667 = vadd.f32 %v9560, %v9656
        %v9668 = vadd.f32 %v9565, %v9656
        %v9669 = vadd.f32 %v9568, %v9656
        %v9670 = vadd.f32 %v9573, %v9656
        %v9671 = vadd.f32 %v9576, %v9656
        %v9672 = vadd.f32 %v9581, %v9656
        %v9673 = vadd.f32 %v9584, %v9656
        %v9674 = vadd.f32 %v9589, %v9656
        %v9675 = vadd.f32 %v9592, %v9656
        %v9676 = vadd.f32 %v9597, %v9656
        %v9677 = vadd.f32 %v9600, %v9656
        %v9678 = vadd.f32 %v9605, %v9656
        %v9679 = vadd.f32 %v9608, %v9656
        %v9680 = vadd.f32 %v9613, %v9656
        %v9681 = vadd.f32 %v9616, %v9656
        %v9682 = vadd.f32 %v9621, %v9656
        %v9683 = vadd.f32 %v9624, %v9656
        %v9684 = vadd.f32 %v9629, %v9656
        %v9685 = vadd.f32 %v9632, %v9656
        %v9686 = vadd.f32 %v9637, %v9656
        %v9687 = vadd.f32 %v9640, %v9656
        %v9688 = vadd.f32 %v9645, %v9656
        %v9689 = vadd.f32 %v9648, %v9656
        %v9690 = vxor.u32 %v9658, 2147483648
        %v9691 = vxor.u32 %v9659, 2147483648
        %v9692 = vxor.u32 %v9660, 2147483648
        %v9693 = vxor.u32 %v9661, 2147483648
        %v9694 = vxor.u32 %v9662, 2147483648
        %v9695 = vxor.u32 %v9663, 2147483648
        %v9696 = vxor.u32 %v9664, 2147483648
        %v9697 = vxor.u32 %v9665, 2147483648
        %v9698 = vxor.u32 %v9666, 2147483648
        %v9699 = vxor.u32 %v9667, 2147483648
        %v9700 = vxor.u32 %v9668, 2147483648
        %v9701 = vxor.u32 %v9669, 2147483648
        %v9702 = vxor.u32 %v9670, 2147483648
        %v9703 = vxor.u32 %v9671, 2147483648
        %v9704 = vxor.u32 %v9672, 2147483648
        %v9705 = vxor.u32 %v9673, 2147483648
        %v9706 = vxor.u32 %v9674, 2147483648
        %v9707 = vxor.u32 %v9675, 2147483648
        %v9708 = vxor.u32 %v9676, 2147483648
        %v9709 = vxor.u32 %v9677, 2147483648
        %v9710 = vxor.u32 %v9678, 2147483648
        %v9711 = vxor.u32 %v9679, 2147483648
        %v9712 = vxor.u32 %v9680, 2147483648
        %v9713 = vxor.u32 %v9681, 2147483648
        %v9714 = vxor.u32 %v9682, 2147483648
        %v9715 = vxor.u32 %v9683, 2147483648
        %v9716 = vxor.u32 %v9684, 2147483648
        %v9717 = vxor.u32 %v9685, 2147483648
        %v9718 = vxor.u32 %v9686, 2147483648
        %v9719 = vxor.u32 %v9687, 2147483648
        %v9720 = vxor.u32 %v9688, 2147483648
        %v9721 = vxor.u32 %v9689, 2147483648
        %v9722 = vmul.f32 %v9690, 1.442695
        %v9723 = vpow.pop %v9722
        %v9724 = vmul.f32 %v9691, 1.442695
        %v9725 = vpow.pop %v9724
        %v9726 = vmul.f32 %v9692, 1.442695
        %v9727 = vpow.pop %v9726
        %v9728 = vmul.f32 %v9693, 1.442695
        %v9729 = vpow.pop %v9728
        %v9730 = vmul.f32 %v9694, 1.442695
        %v9731 = vpow.pop %v9730
        %v9732 = vmul.f32 %v9695, 1.442695
        %v9733 = vpow.pop %v9732
        %v9734 = vmul.f32 %v9696, 1.442695
        %v9735 = vpow.pop %v9734
        %v9736 = vmul.f32 %v9697, 1.442695
        %v9737 = vpow.pop %v9736
        %v9738 = vmul.f32 %v9698, 1.442695
        %v9739 = vpow.pop %v9738
        %v9740 = vmul.f32 %v9699, 1.442695
        %v9741 = vpow.pop %v9740
        %v9742 = vmul.f32 %v9700, 1.442695
        %v9743 = vpow.pop %v9742
        %v9744 = vmul.f32 %v9701, 1.442695
        %v9745 = vpow.pop %v9744
        %v9746 = vmul.f32 %v9702, 1.442695
        %v9747 = vpow.pop %v9746
        %v9748 = vmul.f32 %v9703, 1.442695
        %v9749 = vpow.pop %v9748
        %v9750 = vmul.f32 %v9704, 1.442695
        %v9751 = vpow.pop %v9750
        %v9752 = vmul.f32 %v9705, 1.442695
        %v9753 = vpow.pop %v9752
        %v9754 = vmul.f32 %v9706, 1.442695
        %v9755 = vpow.pop %v9754
        %v9756 = vmul.f32 %v9707, 1.442695
        %v9757 = vpow.pop %v9756
        %v9758 = vmul.f32 %v9708, 1.442695
        %v9759 = vpow.pop %v9758
        %v9760 = vmul.f32 %v9709, 1.442695
        %v9761 = vpow.pop %v9760
        %v9762 = vmul.f32 %v9710, 1.442695
        %v9763 = vpow.pop %v9762
        %v9764 = vmul.f32 %v9711, 1.442695
        %v9765 = vpow.pop %v9764
        %v9766 = vmul.f32 %v9712, 1.442695
        %v9767 = vpow.pop %v9766
        %v9768 = vmul.f32 %v9713, 1.442695
        %v9769 = vpow.pop %v9768
        %v9770 = vmul.f32 %v9714, 1.442695
        %v9771 = vpow.pop %v9770
        %v9772 = vmul.f32 %v9715, 1.442695
        %v9773 = vpow.pop %v9772
        %v9774 = vmul.f32 %v9716, 1.442695
        %v9775 = vpow.pop %v9774
        %v9776 = vmul.f32 %v9717, 1.442695
        %v9777 = vpow.pop %v9776
        %v9778 = vmul.f32 %v9718, 1.442695
        %v9779 = vpow.pop %v9778
        %v9780 = vmul.f32 %v9719, 1.442695
        %v9781 = vpow.pop %v9780
        %v9782 = vmul.f32 %v9720, 1.442695
        %v9783 = vpow.pop %v9782
        %v9784 = vmul.f32 %v9721, 1.442695
        %v9785 = vpow.pop %v9784
        %v9786 = vadd.f32 %v9723, 1.0
        %v9787 = vadd.f32 %v9725, 1.0
        %v9788 = vadd.f32 %v9727, 1.0
        %v9789 = vadd.f32 %v9729, 1.0
        %v9790 = vadd.f32 %v9731, 1.0
        %v9791 = vadd.f32 %v9733, 1.0
        %v9792 = vadd.f32 %v9735, 1.0
        %v9793 = vadd.f32 %v9737, 1.0
        %v9794 = vadd.f32 %v9739, 1.0
        %v9795 = vadd.f32 %v9741, 1.0
        %v9796 = vadd.f32 %v9743, 1.0
        %v9797 = vadd.f32 %v9745, 1.0
        %v9798 = vadd.f32 %v9747, 1.0
        %v9799 = vadd.f32 %v9749, 1.0
        %v9800 = vadd.f32 %v9751, 1.0
        %v9801 = vadd.f32 %v9753, 1.0
        %v9802 = vadd.f32 %v9755, 1.0
        %v9803 = vadd.f32 %v9757, 1.0
        %v9804 = vadd.f32 %v9759, 1.0
        %v9805 = vadd.f32 %v9761, 1.0
        %v9806 = vadd.f32 %v9763, 1.0
        %v9807 = vadd.f32 %v9765, 1.0
        %v9808 = vadd.f32 %v9767, 1.0
        %v9809 = vadd.f32 %v9769, 1.0
        %v9810 = vadd.f32 %v9771, 1.0
        %v9811 = vadd.f32 %v9773, 1.0
        %v9812 = vadd.f32 %v9775, 1.0
        %v9813 = vadd.f32 %v9777, 1.0
        %v9814 = vadd.f32 %v9779, 1.0
        %v9815 = vadd.f32 %v9781, 1.0
        %v9816 = vadd.f32 %v9783, 1.0
        %v9817 = vadd.f32 %v9785, 1.0
        %v9818 = vrcp.pop %v9786
        %v9819 = vmul.f32 1.0, %v9818
        %v9820 = vrcp.pop %v9787
        %v9821 = vmul.f32 1.0, %v9820
        %v9822 = vrcp.pop %v9788
        %v9823 = vmul.f32 1.0, %v9822
        %v9824 = vrcp.pop %v9789
        %v9825 = vmul.f32 1.0, %v9824
        %v9826 = vrcp.pop %v9790
        %v9827 = vmul.f32 1.0, %v9826
        %v9828 = vrcp.pop %v9791
        %v9829 = vmul.f32 1.0, %v9828
        %v9830 = vrcp.pop %v9792
        %v9831 = vmul.f32 1.0, %v9830
        %v9832 = vrcp.pop %v9793
        %v9833 = vmul.f32 1.0, %v9832
        %v9834 = vrcp.pop %v9794
        %v9835 = vmul.f32 1.0, %v9834
        %v9836 = vrcp.pop %v9795
        %v9837 = vmul.f32 1.0, %v9836
        %v9838 = vrcp.pop %v9796
        %v9839 = vmul.f32 1.0, %v9838
        %v9840 = vrcp.pop %v9797
        %v9841 = vmul.f32 1.0, %v9840
        %v9842 = vrcp.pop %v9798
        %v9843 = vmul.f32 1.0, %v9842
        %v9844 = vrcp.pop %v9799
        %v9845 = vmul.f32 1.0, %v9844
        %v9846 = vrcp.pop %v9800
        %v9847 = vmul.f32 1.0, %v9846
        %v9848 = vrcp.pop %v9801
        %v9849 = vmul.f32 1.0, %v9848
        %v9850 = vrcp.pop %v9802
        %v9851 = vmul.f32 1.0, %v9850
        %v9852 = vrcp.pop %v9803
        %v9853 = vmul.f32 1.0, %v9852
        %v9854 = vrcp.pop %v9804
        %v9855 = vmul.f32 1.0, %v9854
        %v9856 = vrcp.pop %v9805
        %v9857 = vmul.f32 1.0, %v9856
        %v9858 = vrcp.pop %v9806
        %v9859 = vmul.f32 1.0, %v9858
        %v9860 = vrcp.pop %v9807
        %v9861 = vmul.f32 1.0, %v9860
        %v9862 = vrcp.pop %v9808
        %v9863 = vmul.f32 1.0, %v9862
        %v9864 = vrcp.pop %v9809
        %v9865 = vmul.f32 1.0, %v9864
        %v9866 = vrcp.pop %v9810
        %v9867 = vmul.f32 1.0, %v9866
        %v9868 = vrcp.pop %v9811
        %v9869 = vmul.f32 1.0, %v9868
        %v9870 = vrcp.pop %v9812
        %v9871 = vmul.f32 1.0, %v9870
        %v9872 = vrcp.pop %v9813
        %v9873 = vmul.f32 1.0, %v9872
        %v9874 = vrcp.pop %v9814
        %v9875 = vmul.f32 1.0, %v9874
        %v9876 = vrcp.pop %v9815
        %v9877 = vmul.f32 1.0, %v9876
        %v9878 = vrcp.pop %v9816
        %v9879 = vmul.f32 1.0, %v9878
        %v9880 = vrcp.pop %v9817
        %v9881 = vmul.f32 1.0, %v9880
        %v9882 = vtanh.pop %v9658
        %v9883 = vtanh.pop %v9659
        %v9884 = vtanh.pop %v9660
        %v9885 = vtanh.pop %v9661
        %v9886 = vtanh.pop %v9662
        %v9887 = vtanh.pop %v9663
        %v9888 = vtanh.pop %v9664
        %v9889 = vtanh.pop %v9665
        %v9890 = vtanh.pop %v9666
        %v9891 = vtanh.pop %v9667
        %v9892 = vtanh.pop %v9668
        %v9893 = vtanh.pop %v9669
        %v9894 = vtanh.pop %v9670
        %v9895 = vtanh.pop %v9671
        %v9896 = vtanh.pop %v9672
        %v9897 = vtanh.pop %v9673
        %v9898 = vtanh.pop %v9674
        %v9899 = vtanh.pop %v9675
        %v9900 = vtanh.pop %v9676
        %v9901 = vtanh.pop %v9677
        %v9902 = vtanh.pop %v9678
        %v9903 = vtanh.pop %v9679
        %v9904 = vtanh.pop %v9680
        %v9905 = vtanh.pop %v9681
        %v9906 = vtanh.pop %v9682
        %v9907 = vtanh.pop %v9683
        %v9908 = vtanh.pop %v9684
        %v9909 = vtanh.pop %v9685
        %v9910 = vtanh.pop %v9686
        %v9911 = vtanh.pop %v9687
        %v9912 = vtanh.pop %v9688
        %v9913 = vtanh.pop %v9689
        %v9914 = vsub.f32 1.0, %v9819
        %v9915 = vsub.f32 1.0, %v9821
        %v9916 = vsub.f32 1.0, %v9823
        %v9917 = vsub.f32 1.0, %v9825
        %v9918 = vsub.f32 1.0, %v9827
        %v9919 = vsub.f32 1.0, %v9829
        %v9920 = vsub.f32 1.0, %v9831
        %v9921 = vsub.f32 1.0, %v9833
        %v9922 = vsub.f32 1.0, %v9835
        %v9923 = vsub.f32 1.0, %v9837
        %v9924 = vsub.f32 1.0, %v9839
        %v9925 = vsub.f32 1.0, %v9841
        %v9926 = vsub.f32 1.0, %v9843
        %v9927 = vsub.f32 1.0, %v9845
        %v9928 = vsub.f32 1.0, %v9847
        %v9929 = vsub.f32 1.0, %v9849
        %v9930 = vsub.f32 1.0, %v9851
        %v9931 = vsub.f32 1.0, %v9853
        %v9932 = vsub.f32 1.0, %v9855
        %v9933 = vsub.f32 1.0, %v9857
        %v9934 = vsub.f32 1.0, %v9859
        %v9935 = vsub.f32 1.0, %v9861
        %v9936 = vsub.f32 1.0, %v9863
        %v9937 = vsub.f32 1.0, %v9865
        %v9938 = vsub.f32 1.0, %v9867
        %v9939 = vsub.f32 1.0, %v9869
        %v9940 = vsub.f32 1.0, %v9871
        %v9941 = vsub.f32 1.0, %v9873
        %v9942 = vsub.f32 1.0, %v9875
        %v9943 = vsub.f32 1.0, %v9877
        %v9944 = vsub.f32 1.0, %v9879
        %v9945 = vsub.f32 1.0, %v9881
        %9978 = vrot.lane.b32.xlu0 %v5830, 32
        %v9979 = vpop.permute.xlu0 %9978
        %9980 = vrot.lane.b32.xlu0 %v5831, 32
        %v9981 = vpop.permute.xlu0 %9980
        %9982 = vrot.lane.b32.xlu0 %v5832, 32
        %v9983 = vpop.permute.xlu0 %9982
        %9984 = vrot.lane.b32.xlu0 %v5833, 32
        %v9985 = vpop.permute.xlu0 %9984
        %9986 = vrot.lane.b32.xlu0 %v5834, 32
        %v9987 = vpop.permute.xlu0 %9986
        %9988 = vrot.lane.b32.xlu0 %v5835, 32
        %v9989 = vpop.permute.xlu0 %9988
        %9990 = vrot.lane.b32.xlu0 %v5836, 32
        %v9991 = vpop.permute.xlu0 %9990
        %9992 = vrot.lane.b32.xlu0 %v5837, 32
        %v9993 = vpop.permute.xlu0 %9992
        %9994 = vrot.lane.b32.xlu0 %v5838, 32
        %v9995 = vpop.permute.xlu0 %9994
        %9996 = vrot.lane.b32.xlu0 %v5839, 32
        %v9997 = vpop.permute.xlu0 %9996
        %9998 = vrot.lane.b32.xlu0 %v5840, 32
        %v9999 = vpop.permute.xlu0 %9998
        %10000 = vrot.lane.b32.xlu0 %v5841, 32
        %v10001 = vpop.permute.xlu0 %10000
        %10002 = vrot.lane.b32.xlu0 %v5842, 32
        %v10003 = vpop.permute.xlu0 %10002
        %10004 = vrot.lane.b32.xlu0 %v5843, 32
        %v10005 = vpop.permute.xlu0 %10004
        %10006 = vrot.lane.b32.xlu0 %v5844, 32
        %v10007 = vpop.permute.xlu0 %10006
        %10008 = vrot.lane.b32.xlu0 %v5845, 32
        %v10009 = vpop.permute.xlu0 %10008
        %10010 = vrot.lane.b32.xlu0 %v5846, 32
        %v10011 = vpop.permute.xlu0 %10010
        %10012 = vrot.lane.b32.xlu0 %v5847, 32
        %v10013 = vpop.permute.xlu0 %10012
        %10014 = vrot.lane.b32.xlu0 %v5848, 32
        %v10015 = vpop.permute.xlu0 %10014
        %10016 = vrot.lane.b32.xlu0 %v5849, 32
        %v10017 = vpop.permute.xlu0 %10016
        %10018 = vrot.lane.b32.xlu0 %v5850, 32
        %v10019 = vpop.permute.xlu0 %10018
        %10020 = vrot.lane.b32.xlu0 %v5851, 32
        %v10021 = vpop.permute.xlu0 %10020
        %10022 = vrot.lane.b32.xlu0 %v5852, 32
        %v10023 = vpop.permute.xlu0 %10022
        %10024 = vrot.lane.b32.xlu0 %v5853, 32
        %v10025 = vpop.permute.xlu0 %10024
        %10026 = vrot.lane.b32.xlu0 %v5854, 32
        %v10027 = vpop.permute.xlu0 %10026
        %10028 = vrot.lane.b32.xlu0 %v5855, 32
        %v10029 = vpop.permute.xlu0 %10028
        %10030 = vrot.lane.b32.xlu0 %v5856, 32
        %v10031 = vpop.permute.xlu0 %10030
        %10032 = vrot.lane.b32.xlu0 %v5857, 32
        %v10033 = vpop.permute.xlu0 %10032
        %10034 = vrot.lane.b32.xlu0 %v5858, 32
        %v10035 = vpop.permute.xlu0 %10034
        %10036 = vrot.lane.b32.xlu0 %v5859, 32
        %v10037 = vpop.permute.xlu0 %10036
        %10038 = vrot.lane.b32.xlu0 %v5860, 32
        %v10039 = vpop.permute.xlu0 %10038
        %10040 = vrot.lane.b32.xlu0 %v5861, 32
        %v10041 = vpop.permute.xlu0 %10040
        %v10074 = vmul.f32 %v9914, %v9979
        %v10075 = vmul.f32 %v9915, %v9981
        %v10076 = vmul.f32 %v9916, %v9983
        %v10077 = vmul.f32 %v9917, %v9985
        %v10078 = vmul.f32 %v9918, %v9987
        %v10079 = vmul.f32 %v9919, %v9989
        %v10080 = vmul.f32 %v9920, %v9991
        %v10081 = vmul.f32 %v9921, %v9993
        %v10082 = vmul.f32 %v9922, %v9995
        %v10083 = vmul.f32 %v9923, %v9997
        %v10084 = vmul.f32 %v9924, %v9999
        %v10085 = vmul.f32 %v9925, %v10001
        %v10086 = vmul.f32 %v9926, %v10003
        %v10087 = vmul.f32 %v9927, %v10005
        %v10088 = vmul.f32 %v9928, %v10007
        %v10089 = vmul.f32 %v9929, %v10009
        %v10090 = vmul.f32 %v9930, %v10011
        %v10091 = vmul.f32 %v9931, %v10013
        %v10092 = vmul.f32 %v9932, %v10015
        %v10093 = vmul.f32 %v9933, %v10017
        %v10094 = vmul.f32 %v9934, %v10019
        %v10095 = vmul.f32 %v9935, %v10021
        %v10096 = vmul.f32 %v9936, %v10023
        %v10097 = vmul.f32 %v9937, %v10025
        %v10098 = vmul.f32 %v9938, %v10027
        %v10099 = vmul.f32 %v9939, %v10029
        %v10100 = vmul.f32 %v9940, %v10031
        %v10101 = vmul.f32 %v9941, %v10033
        %v10102 = vmul.f32 %v9942, %v10035
        %v10103 = vmul.f32 %v9943, %v10037
        %v10104 = vmul.f32 %v9944, %v10039
        %v10105 = vmul.f32 %v9945, %v10041
        %10138 = vrot.lane.b32.xlu0 %v9882, 96
        %v10139 = vpop.permute.xlu0 %10138
        %10140 = vrot.lane.b32.xlu0 %v9883, 96
        %v10141 = vpop.permute.xlu0 %10140
        %10142 = vrot.lane.b32.xlu0 %v9884, 96
        %v10143 = vpop.permute.xlu0 %10142
        %10144 = vrot.lane.b32.xlu0 %v9885, 96
        %v10145 = vpop.permute.xlu0 %10144
        %10146 = vrot.lane.b32.xlu0 %v9886, 96
        %v10147 = vpop.permute.xlu0 %10146
        %10148 = vrot.lane.b32.xlu0 %v9887, 96
        %v10149 = vpop.permute.xlu0 %10148
        %10150 = vrot.lane.b32.xlu0 %v9888, 96
        %v10151 = vpop.permute.xlu0 %10150
        %10152 = vrot.lane.b32.xlu0 %v9889, 96
        %v10153 = vpop.permute.xlu0 %10152
        %10154 = vrot.lane.b32.xlu0 %v9890, 96
        %v10155 = vpop.permute.xlu0 %10154
        %10156 = vrot.lane.b32.xlu0 %v9891, 96
        %v10157 = vpop.permute.xlu0 %10156
        %10158 = vrot.lane.b32.xlu0 %v9892, 96
        %v10159 = vpop.permute.xlu0 %10158
        %10160 = vrot.lane.b32.xlu0 %v9893, 96
        %v10161 = vpop.permute.xlu0 %10160
        %10162 = vrot.lane.b32.xlu0 %v9894, 96
        %v10163 = vpop.permute.xlu0 %10162
        %10164 = vrot.lane.b32.xlu0 %v9895, 96
        %v10165 = vpop.permute.xlu0 %10164
        %10166 = vrot.lane.b32.xlu0 %v9896, 96
        %v10167 = vpop.permute.xlu0 %10166
        %10168 = vrot.lane.b32.xlu0 %v9897, 96
        %v10169 = vpop.permute.xlu0 %10168
        %10170 = vrot.lane.b32.xlu0 %v9898, 96
        %v10171 = vpop.permute.xlu0 %10170
        %10172 = vrot.lane.b32.xlu0 %v9899, 96
        %v10173 = vpop.permute.xlu0 %10172
        %10174 = vrot.lane.b32.xlu0 %v9900, 96
        %v10175 = vpop.permute.xlu0 %10174
        %10176 = vrot.lane.b32.xlu0 %v9901, 96
        %v10177 = vpop.permute.xlu0 %10176
        %10178 = vrot.lane.b32.xlu0 %v9902, 96
        %v10179 = vpop.permute.xlu0 %10178
        %10180 = vrot.lane.b32.xlu0 %v9903, 96
        %v10181 = vpop.permute.xlu0 %10180
        %10182 = vrot.lane.b32.xlu0 %v9904, 96
        %v10183 = vpop.permute.xlu0 %10182
        %10184 = vrot.lane.b32.xlu0 %v9905, 96
        %v10185 = vpop.permute.xlu0 %10184
        %10186 = vrot.lane.b32.xlu0 %v9906, 96
        %v10187 = vpop.permute.xlu0 %10186
        %10188 = vrot.lane.b32.xlu0 %v9907, 96
        %v10189 = vpop.permute.xlu0 %10188
        %10190 = vrot.lane.b32.xlu0 %v9908, 96
        %v10191 = vpop.permute.xlu0 %10190
        %10192 = vrot.lane.b32.xlu0 %v9909, 96
        %v10193 = vpop.permute.xlu0 %10192
        %10194 = vrot.lane.b32.xlu0 %v9910, 96
        %v10195 = vpop.permute.xlu0 %10194
        %10196 = vrot.lane.b32.xlu0 %v9911, 96
        %v10197 = vpop.permute.xlu0 %10196
        %10198 = vrot.lane.b32.xlu0 %v9912, 96
        %v10199 = vpop.permute.xlu0 %10198
        %10200 = vrot.lane.b32.xlu0 %v9913, 96
        %v10201 = vpop.permute.xlu0 %10200
        %v10234 = vmul.f32 %v9819, %v10139
        %v10235 = vmul.f32 %v9821, %v10141
        %v10236 = vmul.f32 %v9823, %v10143
        %v10237 = vmul.f32 %v9825, %v10145
        %v10238 = vmul.f32 %v9827, %v10147
        %v10239 = vmul.f32 %v9829, %v10149
        %v10240 = vmul.f32 %v9831, %v10151
        %v10241 = vmul.f32 %v9833, %v10153
        %v10242 = vmul.f32 %v9835, %v10155
        %v10243 = vmul.f32 %v9837, %v10157
        %v10244 = vmul.f32 %v9839, %v10159
        %v10245 = vmul.f32 %v9841, %v10161
        %v10246 = vmul.f32 %v9843, %v10163
        %v10247 = vmul.f32 %v9845, %v10165
        %v10248 = vmul.f32 %v9847, %v10167
        %v10249 = vmul.f32 %v9849, %v10169
        %v10250 = vmul.f32 %v9851, %v10171
        %v10251 = vmul.f32 %v9853, %v10173
        %v10252 = vmul.f32 %v9855, %v10175
        %v10253 = vmul.f32 %v9857, %v10177
        %v10254 = vmul.f32 %v9859, %v10179
        %v10255 = vmul.f32 %v9861, %v10181
        %v10256 = vmul.f32 %v9863, %v10183
        %v10257 = vmul.f32 %v9865, %v10185
        %v10258 = vmul.f32 %v9867, %v10187
        %v10259 = vmul.f32 %v9869, %v10189
        %v10260 = vmul.f32 %v9871, %v10191
        %v10261 = vmul.f32 %v9873, %v10193
        %v10262 = vmul.f32 %v9875, %v10195
        %v10263 = vmul.f32 %v9877, %v10197
        %v10264 = vmul.f32 %v9879, %v10199
        %v10265 = vmul.f32 %v9881, %v10201
        %v10266 = vadd.f32 %v10074, %v10234
        %v10267 = vadd.f32 %v10075, %v10235
        %v10268 = vadd.f32 %v10076, %v10236
        %v10269 = vadd.f32 %v10077, %v10237
        %v10270 = vadd.f32 %v10078, %v10238
        %v10271 = vadd.f32 %v10079, %v10239
        %v10272 = vadd.f32 %v10080, %v10240
        %v10273 = vadd.f32 %v10081, %v10241
        %v10274 = vadd.f32 %v10082, %v10242
        %v10275 = vadd.f32 %v10083, %v10243
        %v10276 = vadd.f32 %v10084, %v10244
        %v10277 = vadd.f32 %v10085, %v10245
        %v10278 = vadd.f32 %v10086, %v10246
        %v10279 = vadd.f32 %v10087, %v10247
        %v10280 = vadd.f32 %v10088, %v10248
        %v10281 = vadd.f32 %v10089, %v10249
        %v10282 = vadd.f32 %v10090, %v10250
        %v10283 = vadd.f32 %v10091, %v10251
        %v10284 = vadd.f32 %v10092, %v10252
        %v10285 = vadd.f32 %v10093, %v10253
        %v10286 = vadd.f32 %v10094, %v10254
        %v10287 = vadd.f32 %v10095, %v10255
        %v10288 = vadd.f32 %v10096, %v10256
        %v10289 = vadd.f32 %v10097, %v10257
        %v10290 = vadd.f32 %v10098, %v10258
        %v10291 = vadd.f32 %v10099, %v10259
        %v10292 = vadd.f32 %v10100, %v10260
        %v10293 = vadd.f32 %v10101, %v10261
        %v10294 = vadd.f32 %v10102, %v10262
        %v10295 = vadd.f32 %v10103, %v10263
        %v10296 = vadd.f32 %v10104, %v10264
        %v10297 = vadd.f32 %v10105, %v10265
        %10330 = vrot.lane.b32.xlu0 %v10266, 96
        %v10331 = vpop.permute.xlu0 %10330
        %10332 = vrot.lane.b32.xlu0 %v10267, 96
        %v10333 = vpop.permute.xlu0 %10332
        %10334 = vrot.lane.b32.xlu0 %v10268, 96
        %v10335 = vpop.permute.xlu0 %10334
        %10336 = vrot.lane.b32.xlu0 %v10269, 96
        %v10337 = vpop.permute.xlu0 %10336
        %10338 = vrot.lane.b32.xlu0 %v10270, 96
        %v10339 = vpop.permute.xlu0 %10338
        %10340 = vrot.lane.b32.xlu0 %v10271, 96
        %v10341 = vpop.permute.xlu0 %10340
        %10342 = vrot.lane.b32.xlu0 %v10272, 96
        %v10343 = vpop.permute.xlu0 %10342
        %10344 = vrot.lane.b32.xlu0 %v10273, 96
        %v10345 = vpop.permute.xlu0 %10344
        %10346 = vrot.lane.b32.xlu0 %v10274, 96
        %v10347 = vpop.permute.xlu0 %10346
        %10348 = vrot.lane.b32.xlu0 %v10275, 96
        %v10349 = vpop.permute.xlu0 %10348
        %10350 = vrot.lane.b32.xlu0 %v10276, 96
        %v10351 = vpop.permute.xlu0 %10350
        %10352 = vrot.lane.b32.xlu0 %v10277, 96
        %v10353 = vpop.permute.xlu0 %10352
        %10354 = vrot.lane.b32.xlu0 %v10278, 96
        %v10355 = vpop.permute.xlu0 %10354
        %10356 = vrot.lane.b32.xlu0 %v10279, 96
        %v10357 = vpop.permute.xlu0 %10356
        %10358 = vrot.lane.b32.xlu0 %v10280, 96
        %v10359 = vpop.permute.xlu0 %10358
        %10360 = vrot.lane.b32.xlu0 %v10281, 96
        %v10361 = vpop.permute.xlu0 %10360
        %10362 = vrot.lane.b32.xlu0 %v10282, 96
        %v10363 = vpop.permute.xlu0 %10362
        %10364 = vrot.lane.b32.xlu0 %v10283, 96
        %v10365 = vpop.permute.xlu0 %10364
        %10366 = vrot.lane.b32.xlu0 %v10284, 96
        %v10367 = vpop.permute.xlu0 %10366
        %10368 = vrot.lane.b32.xlu0 %v10285, 96
        %v10369 = vpop.permute.xlu0 %10368
        %10370 = vrot.lane.b32.xlu0 %v10286, 96
        %v10371 = vpop.permute.xlu0 %10370
        %10372 = vrot.lane.b32.xlu0 %v10287, 96
        %v10373 = vpop.permute.xlu0 %10372
        %10374 = vrot.lane.b32.xlu0 %v10288, 96
        %v10375 = vpop.permute.xlu0 %10374
        %10376 = vrot.lane.b32.xlu0 %v10289, 96
        %v10377 = vpop.permute.xlu0 %10376
        %10378 = vrot.lane.b32.xlu0 %v10290, 96
        %v10379 = vpop.permute.xlu0 %10378
        %10380 = vrot.lane.b32.xlu0 %v10291, 96
        %v10381 = vpop.permute.xlu0 %10380
        %10382 = vrot.lane.b32.xlu0 %v10292, 96
        %v10383 = vpop.permute.xlu0 %10382
        %10384 = vrot.lane.b32.xlu0 %v10293, 96
        %v10385 = vpop.permute.xlu0 %10384
        %10386 = vrot.lane.b32.xlu0 %v10294, 96
        %v10387 = vpop.permute.xlu0 %10386
        %10388 = vrot.lane.b32.xlu0 %v10295, 96
        %v10389 = vpop.permute.xlu0 %10388
        %10390 = vrot.lane.b32.xlu0 %v10296, 96
        %v10391 = vpop.permute.xlu0 %10390
        %10392 = vrot.lane.b32.xlu0 %v10297, 96
        %v10393 = vpop.permute.xlu0 %10392
        %v10426 = vmul.f32 %v9819, %v10331
        %v10427 = vmul.f32 %v9821, %v10333
        %v10428 = vmul.f32 %v9823, %v10335
        %v10429 = vmul.f32 %v9825, %v10337
        %v10430 = vmul.f32 %v9827, %v10339
        %v10431 = vmul.f32 %v9829, %v10341
        %v10432 = vmul.f32 %v9831, %v10343
        %v10433 = vmul.f32 %v9833, %v10345
        %v10434 = vmul.f32 %v9835, %v10347
        %v10435 = vmul.f32 %v9837, %v10349
        %v10436 = vmul.f32 %v9839, %v10351
        %v10437 = vmul.f32 %v9841, %v10353
        %v10438 = vmul.f32 %v9843, %v10355
        %v10439 = vmul.f32 %v9845, %v10357
        %v10440 = vmul.f32 %v9847, %v10359
        %v10441 = vmul.f32 %v9849, %v10361
        %v10442 = vmul.f32 %v9851, %v10363
        %v10443 = vmul.f32 %v9853, %v10365
        %v10444 = vmul.f32 %v9855, %v10367
        %v10445 = vmul.f32 %v9857, %v10369
        %v10446 = vmul.f32 %v9859, %v10371
        %v10447 = vmul.f32 %v9861, %v10373
        %v10448 = vmul.f32 %v9863, %v10375
        %v10449 = vmul.f32 %v9865, %v10377
        %v10450 = vmul.f32 %v9867, %v10379
        %v10451 = vmul.f32 %v9869, %v10381
        %v10452 = vmul.f32 %v9871, %v10383
        %v10453 = vmul.f32 %v9873, %v10385
        %v10454 = vmul.f32 %v9875, %v10387
        %v10455 = vmul.f32 %v9877, %v10389
        %v10456 = vmul.f32 %v9879, %v10391
        %v10457 = vmul.f32 %v9881, %v10393
        %10458 = vrot.lane.b32.xlu0 %v10266, 32
        %v10459 = vpop.permute.xlu0 %10458
        %10460 = vrot.lane.b32.xlu0 %v10267, 32
        %v10461 = vpop.permute.xlu0 %10460
        %10462 = vrot.lane.b32.xlu0 %v10268, 32
        %v10463 = vpop.permute.xlu0 %10462
        %10464 = vrot.lane.b32.xlu0 %v10269, 32
        %v10465 = vpop.permute.xlu0 %10464
        %10466 = vrot.lane.b32.xlu0 %v10270, 32
        %v10467 = vpop.permute.xlu0 %10466
        %10468 = vrot.lane.b32.xlu0 %v10271, 32
        %v10469 = vpop.permute.xlu0 %10468
        %10470 = vrot.lane.b32.xlu0 %v10272, 32
        %v10471 = vpop.permute.xlu0 %10470
        %10472 = vrot.lane.b32.xlu0 %v10273, 32
        %v10473 = vpop.permute.xlu0 %10472
        %10474 = vrot.lane.b32.xlu0 %v10274, 32
        %v10475 = vpop.permute.xlu0 %10474
        %10476 = vrot.lane.b32.xlu0 %v10275, 32
        %v10477 = vpop.permute.xlu0 %10476
        %10478 = vrot.lane.b32.xlu0 %v10276, 32
        %v10479 = vpop.permute.xlu0 %10478
        %10480 = vrot.lane.b32.xlu0 %v10277, 32
        %v10481 = vpop.permute.xlu0 %10480
        %10482 = vrot.lane.b32.xlu0 %v10278, 32
        %v10483 = vpop.permute.xlu0 %10482
        %10484 = vrot.lane.b32.xlu0 %v10279, 32
        %v10485 = vpop.permute.xlu0 %10484
        %10486 = vrot.lane.b32.xlu0 %v10280, 32
        %v10487 = vpop.permute.xlu0 %10486
        %10488 = vrot.lane.b32.xlu0 %v10281, 32
        %v10489 = vpop.permute.xlu0 %10488
        %10490 = vrot.lane.b32.xlu0 %v10282, 32
        %v10491 = vpop.permute.xlu0 %10490
        %10492 = vrot.lane.b32.xlu0 %v10283, 32
        %v10493 = vpop.permute.xlu0 %10492
        %10494 = vrot.lane.b32.xlu0 %v10284, 32
        %v10495 = vpop.permute.xlu0 %10494
        %10496 = vrot.lane.b32.xlu0 %v10285, 32
        %v10497 = vpop.permute.xlu0 %10496
        %10498 = vrot.lane.b32.xlu0 %v10286, 32
        %v10499 = vpop.permute.xlu0 %10498
        %10500 = vrot.lane.b32.xlu0 %v10287, 32
        %v10501 = vpop.permute.xlu0 %10500
        %10502 = vrot.lane.b32.xlu0 %v10288, 32
        %v10503 = vpop.permute.xlu0 %10502
        %10504 = vrot.lane.b32.xlu0 %v10289, 32
        %v10505 = vpop.permute.xlu0 %10504
        %10506 = vrot.lane.b32.xlu0 %v10290, 32
        %v10507 = vpop.permute.xlu0 %10506
        %10508 = vrot.lane.b32.xlu0 %v10291, 32
        %v10509 = vpop.permute.xlu0 %10508
        %10510 = vrot.lane.b32.xlu0 %v10292, 32
        %v10511 = vpop.permute.xlu0 %10510
        %10512 = vrot.lane.b32.xlu0 %v10293, 32
        %v10513 = vpop.permute.xlu0 %10512
        %10514 = vrot.lane.b32.xlu0 %v10294, 32
        %v10515 = vpop.permute.xlu0 %10514
        %10516 = vrot.lane.b32.xlu0 %v10295, 32
        %v10517 = vpop.permute.xlu0 %10516
        %10518 = vrot.lane.b32.xlu0 %v10296, 32
        %v10519 = vpop.permute.xlu0 %10518
        %10520 = vrot.lane.b32.xlu0 %v10297, 32
        %v10521 = vpop.permute.xlu0 %10520
        %v10554 = vsel %vm6662, %v10426, %v6310
        %v10555 = vsel %vm6662, %v10427, %v6311
        %v10556 = vsel %vm6662, %v10428, %v6312
        %v10557 = vsel %vm6662, %v10429, %v6313
        %v10558 = vsel %vm6662, %v10430, %v6314
        %v10559 = vsel %vm6662, %v10431, %v6315
        %v10560 = vsel %vm6662, %v10432, %v6316
        %v10561 = vsel %vm6662, %v10433, %v6317
        %v10562 = vsel %vm6662, %v10434, %v6318
        %v10563 = vsel %vm6662, %v10435, %v6319
        %v10564 = vsel %vm6662, %v10436, %v6320
        %v10565 = vsel %vm6662, %v10437, %v6321
        %v10566 = vsel %vm6662, %v10438, %v6322
        %v10567 = vsel %vm6662, %v10439, %v6323
        %v10568 = vsel %vm6662, %v10440, %v6324
        %v10569 = vsel %vm6662, %v10441, %v6325
        %v10570 = vsel %vm6662, %v10442, %v6326
        %v10571 = vsel %vm6662, %v10443, %v6327
        %v10572 = vsel %vm6662, %v10444, %v6328
        %v10573 = vsel %vm6662, %v10445, %v6329
        %v10574 = vsel %vm6662, %v10446, %v6330
        %v10575 = vsel %vm6662, %v10447, %v6331
        %v10576 = vsel %vm6662, %v10448, %v6332
        %v10577 = vsel %vm6662, %v10449, %v6333
        %v10578 = vsel %vm6662, %v10450, %v6334
        %v10579 = vsel %vm6662, %v10451, %v6335
        %v10580 = vsel %vm6662, %v10452, %v6336
        %v10581 = vsel %vm6662, %v10453, %v6337
        %v10582 = vsel %vm6662, %v10454, %v6338
        %v10583 = vsel %vm6662, %v10455, %v6339
        %v10584 = vsel %vm6662, %v10456, %v6340
        %v10585 = vsel %vm6662, %v10457, %v6341
        %v10586 = vsel %vm1003, %v10554, %v10459
        %v10587 = vsel %vm1003, %v10555, %v10461
        %v10588 = vsel %vm1003, %v10556, %v10463
        %v10589 = vsel %vm1003, %v10557, %v10465
        %v10590 = vsel %vm1003, %v10558, %v10467
        %v10591 = vsel %vm1003, %v10559, %v10469
        %v10592 = vsel %vm1003, %v10560, %v10471
        %v10593 = vsel %vm1003, %v10561, %v10473
        %v10594 = vsel %vm1003, %v10562, %v10475
        %v10595 = vsel %vm1003, %v10563, %v10477
        %v10596 = vsel %vm1003, %v10564, %v10479
        %v10597 = vsel %vm1003, %v10565, %v10481
        %v10598 = vsel %vm1003, %v10566, %v10483
        %v10599 = vsel %vm1003, %v10567, %v10485
        %v10600 = vsel %vm1003, %v10568, %v10487
        %v10601 = vsel %vm1003, %v10569, %v10489
        %v10602 = vsel %vm1003, %v10570, %v10491
        %v10603 = vsel %vm1003, %v10571, %v10493
        %v10604 = vsel %vm1003, %v10572, %v10495
        %v10605 = vsel %vm1003, %v10573, %v10497
        %v10606 = vsel %vm1003, %v10574, %v10499
        %v10607 = vsel %vm1003, %v10575, %v10501
        %v10608 = vsel %vm1003, %v10576, %v10503
        %v10609 = vsel %vm1003, %v10577, %v10505
        %v10610 = vsel %vm1003, %v10578, %v10507
        %v10611 = vsel %vm1003, %v10579, %v10509
        %v10612 = vsel %vm1003, %v10580, %v10511
        %v10613 = vsel %vm1003, %v10581, %v10513
        %v10614 = vsel %vm1003, %v10582, %v10515
        %v10615 = vsel %vm1003, %v10583, %v10517
        %v10616 = vsel %vm1003, %v10584, %v10519
        %v10617 = vsel %vm1003, %v10585, %v10521
        %vm10618 = vcmask 785408
        %v10619 = vsel %vm10618, %v10586, 0.0
        %v10620 = vsel %vm10618, %v10587, 0.0
        %v10621 = vsel %vm10618, %v10588, 0.0
        %v10622 = vsel %vm10618, %v10589, 0.0
        %v10623 = vsel %vm10618, %v10590, 0.0
        %v10624 = vsel %vm10618, %v10591, 0.0
        %v10625 = vsel %vm10618, %v10592, 0.0
        %v10626 = vsel %vm10618, %v10593, 0.0
        %v10627 = vsel %vm10618, %v10594, 0.0
        %v10628 = vsel %vm10618, %v10595, 0.0
        %v10629 = vsel %vm10618, %v10596, 0.0
        %v10630 = vsel %vm10618, %v10597, 0.0
        %v10631 = vsel %vm10618, %v10598, 0.0
        %v10632 = vsel %vm10618, %v10599, 0.0
        %v10633 = vsel %vm10618, %v10600, 0.0
        %v10634 = vsel %vm10618, %v10601, 0.0
        %v10635 = vsel %vm10618, %v10602, 0.0
        %v10636 = vsel %vm10618, %v10603, 0.0
        %v10637 = vsel %vm10618, %v10604, 0.0
        %v10638 = vsel %vm10618, %v10605, 0.0
        %v10639 = vsel %vm10618, %v10606, 0.0
        %v10640 = vsel %vm10618, %v10607, 0.0
        %v10641 = vsel %vm10618, %v10608, 0.0
        %v10642 = vsel %vm10618, %v10609, 0.0
        %v10643 = vsel %vm10618, %v10610, 0.0
        %v10644 = vsel %vm10618, %v10611, 0.0
        %v10645 = vsel %vm10618, %v10612, 0.0
        %v10646 = vsel %vm10618, %v10613, 0.0
        %v10647 = vsel %vm10618, %v10614, 0.0
        %v10648 = vsel %vm10618, %v10615, 0.0
        %v10649 = vsel %vm10618, %v10616, 0.0
        %v10650 = vsel %vm10618, %v10617, 0.0
        %10651 = vst [vmem:[%s463] sm:$0xff] %v10619
        %10652 = vst [vmem:[%s463 + $0x8] sm:$0xff] %v10620
        %10653 = vst [vmem:[%s463 + $0x10] sm:$0xff] %v10621
        %10654 = vst [vmem:[%s463 + $0x18] sm:$0xff] %v10622
        %10655 = vst [vmem:[%s463 + $0x20] sm:$0xff] %v10623
        %10656 = vst [vmem:[%s463 + $0x28] sm:$0xff] %v10624
        %10657 = vst [vmem:[%s463 + $0x30] sm:$0xff] %v10625
        %10658 = vst [vmem:[%s463 + $0x38] sm:$0xff] %v10626
        %10659 = vst [vmem:[%s463 + $0x40] sm:$0xff] %v10627
        %10660 = vst [vmem:[%s463 + $0x48] sm:$0xff] %v10628
        %10661 = vst [vmem:[%s463 + $0x50] sm:$0xff] %v10629
        %10662 = vst [vmem:[%s463 + $0x58] sm:$0xff] %v10630
        %10663 = vst [vmem:[%s463 + $0x60] sm:$0xff] %v10631
        %10664 = vst [vmem:[%s463 + $0x68] sm:$0xff] %v10632
        %10665 = vst [vmem:[%s463 + $0x70] sm:$0xff] %v10633
        %10666 = vst [vmem:[%s463 + $0x78] sm:$0xff] %v10634
        %10667 = vst [vmem:[%s463 + $0x80] sm:$0xff] %v10635
        %10668 = vst [vmem:[%s463 + $0x88] sm:$0xff] %v10636
        %10669 = vst [vmem:[%s463 + $0x90] sm:$0xff] %v10637
        %10670 = vst [vmem:[%s463 + $0x98] sm:$0xff] %v10638
        %10671 = vst [vmem:[%s463 + $0xa0] sm:$0xff] %v10639
        %10672 = vst [vmem:[%s463 + $0xa8] sm:$0xff] %v10640
        %10673 = vst [vmem:[%s463 + $0xb0] sm:$0xff] %v10641
        %10674 = vst [vmem:[%s463 + $0xb8] sm:$0xff] %v10642
        %10675 = vst [vmem:[%s463 + $0xc0] sm:$0xff] %v10643
        %10676 = vst [vmem:[%s463 + $0xc8] sm:$0xff] %v10644
        %10677 = vst [vmem:[%s463 + $0xd0] sm:$0xff] %v10645
        %10678 = vst [vmem:[%s463 + $0xd8] sm:$0xff] %v10646
        %10679 = vst [vmem:[%s463 + $0xe0] sm:$0xff] %v10647
        %10680 = vst [vmem:[%s463 + $0xe8] sm:$0xff] %v10648
        %10681 = vst [vmem:[%s463 + $0xf0] sm:$0xff] %v10649
        %10682 = vst [vmem:[%s463 + $0xf8] sm:$0xff] %v10650
        %s10683 = sand.u32 %s323, 1
        %s10684 = scalar_lea.sflag [#allocation3], %s10683
        %s10685 = sand.u32 %s323, 1
        %s10686 = smul.addr %s10685, 256
        %s10687 = scalar_lea.vmem [#allocation2], %s10686
        // Predicated region
        $region73: #{tpu_custom_call.1} parent=71 // pred_check
          %p10688 = pneg %p333
        $region74: #{tpu_custom_call.1} parent=71 // pred_check_branch
          %10690 = sbr.rel (%p10688) target = $region76
        $region75: #{tpu_custom_call.1} parent=71 // pred_region
          %s10692 = ssub.s32 4096, 4096
          %10693 = vsyncadd %s10684, %s10692
          %s10694 = smul.addr %s27, 32
          %s10695 = smul.addr %s10694, 128
          %s10696 = scalar_lea.hbm %s13, %s10695
          %s10697 = sshll.u32 %s10687, 4
          %s10698 = int_to_ptr.vmem [resolvable:$true] %s10697
          %10703 = dma.vmem_to_hbm [thread:$0]  %s10698, 4096, %s10696, %s10684, 128, 128, 8
        $region76: #{tpu_custom_call.1} parent=71 // pred_fallthru
          _
      $region72: #{tpu_custom_call.1} parent=5 // pred_fallthru
        _
      %p10704 = scmp.le.s32.totalorder 2, %s22
      // Predicated region
      $region77: #{tpu_custom_call.1} parent=5 // pred_check
        %p10705 = pneg %p10704
      $region78: #{tpu_custom_call.1} parent=5 // pred_check_branch
        %10707 = sbr.rel (%p10705) target = $region80
      $region79: #{tpu_custom_call.1} parent=5 // pred_region
        %s10708 = ssub.s32 %s22, 2
        // Predicated region
        $region81: #{tpu_custom_call.1} parent=79 // pred_check
          %p10709 = pneg %p339
        $region82: #{tpu_custom_call.1} parent=79 // pred_check_branch
          %10711 = sbr.rel (%p10709) target = $region84
        $region83: #{tpu_custom_call.1} parent=79 // pred_region
          %s10712 = sand.u32 %s324, 1
          %s10713 = scalar_lea.sflag [#allocation3], %s10712
          %s10714 = sand.u32 %s324, 1
          %s10715 = smul.addr %s10714, 256
          %s10716 = scalar_lea.vmem [#allocation2], %s10715
          %10717 = dma.done %s10713, 4096
        $region84: #{tpu_custom_call.1} parent=79 // pred_fallthru
          _
      $region80: #{tpu_custom_call.1} parent=5 // pred_fallthru
        _
    $region6: #{tpu_custom_call.1} parent=1 // loop_footer
      %s26 = sadd.s32 1, %s22
    $region7: #{tpu_custom_call.1} parent=1 // loop_footer_branch
      %21 = sbr.rel target = $region3
    $region8: #{tpu_custom_call.1} parent=1 // loop_exit
      _
    %10718 = vsyncpa [#allocation3], 1
    %s10719 = scalar_lea.sflag [#allocation3], 1
    %10720 = vsyncpa %s10719, 1

</llo_original>
